<compile_context>
chip_gen: v6e
topology: v6e:2x2x1
jax: 0.10.0
libtpu: 0.0.40
codegen_flags: <defaults>
</compile_context>

<pallas_src>
import functools
import math

import jax
import jax.numpy as jnp
from jax import lax
from jax.experimental import pallas as pl
from jax.experimental.pallas import tpu as pltpu


def resblock_kernel(x_ref, w1_ref, w2_ref, par_ref, m_ref, mt_ref, kp_ref, kn_ref,
                    out_ref, *, seq_len, group_size, eps=1e-5,
                    mm_dtype=jnp.float32):
    C, W = x_ref.shape
    L = seq_len
    NB = W // L
    inv_n = 1.0 / float(group_size * L)

    par = par_ref[...]                          # (C, 8) packed per-channel params
    b1, g1, be1 = par[:, 0:1], par[:, 1:2], par[:, 2:3]
    b2, g2, be2 = par[:, 3:4], par[:, 4:5], par[:, 5:6]
    m = m_ref[...]                              # (G, C) group membership (0/1)
    mt = mt_ref[...]                            # (C, G)
    kp = kp_ref[...]                            # (1, W): 0.0 at each sequence start
    kn = kn_ref[...]                            # (1, W): 0.0 at each sequence end

    def conv3(h, w_ref, bias):
        # k=3, pad=1 conv = three accumulated (C,C)@(C,W) dots (no im2col slab).
        # Taps are lane-rolled copies of h; columns that crossed a sequence
        # boundary are zeroed by the precomputed masks (== the conv's padding).
        h_prev = (pltpu.roll(h, 1, axis=1) * kp).astype(mm_dtype)       # h[:, t-1]
        h_next = (pltpu.roll(h, W - 1, axis=1) * kn).astype(mm_dtype)   # h[:, t+1]
        h_mid = h.astype(mm_dtype)
        acc = jnp.dot(w_ref[0], h_prev, preferred_element_type=jnp.float32)
        acc = acc + jnp.dot(w_ref[1], h_mid, preferred_element_type=jnp.float32)
        acc = acc + jnp.dot(w_ref[2], h_next, preferred_element_type=jnp.float32)
        return acc + bias

    def group_norm(y, gamma, beta):
        # Per-(sample, group) statistics off the MXU: the big accumulations over
        # group_size*L elements are exact-f32 XLU lane reductions; only the tiny
        # group-of-8 channel reduce / broadcast-back uses the MXU.  Two-pass
        # (subtract-mean) variance avoids E[y^2]-mean^2 cancellation.
        parts = []
        for nb in range(NB):                                     # static, small
            y_nb = y[:, nb * L:(nb + 1) * L]                     # (C, L)
            s1 = jnp.sum(y_nb, axis=-1, keepdims=True)           # (C, 1)   XLU
            mean_g = jnp.dot(m, s1,
                             preferred_element_type=jnp.float32) * inv_n   # (G, 1)
            mean_c = jnp.dot(mt, mean_g,
                             preferred_element_type=jnp.float32)           # (C, 1)
            d = y_nb - mean_c                                    # (C, L)   VPU
            s2 = jnp.sum(d * d, axis=-1, keepdims=True)          # (C, 1)   XLU
            var_g = jnp.dot(m, s2,
                            preferred_element_type=jnp.float32) * inv_n    # (G, 1)
            inv_g = lax.rsqrt(var_g + eps)                       # EUP
            inv_c = jnp.dot(mt, inv_g,
                            preferred_element_type=jnp.float32)            # (C, 1)
            parts.append(d * (inv_c * gamma) + beta)             # (C, L)   VPU
        return parts[0] if NB == 1 else jnp.concatenate(parts, axis=1)

    h = conv3(x_ref[...], w1_ref, b1)
    h = jnp.maximum(group_norm(h, g1, be1), 0.0)
    h = conv3(h, w2_ref, b2)
    h = group_norm(h, g2, be2)
    # Re-read the residual from the still-resident input tile instead of
    # keeping the (C, W) x value live across the whole body (vreg pressure).
    out_ref[...] = jnp.maximum(h + x_ref[...], 0.0)


def _vmem_capacity_bytes():
    try:
        return int(pltpu.get_tpu_info().vmem_capacity_bytes)
    except Exception:
        return 64 << 20          # conservative default (v7x per-TensorCore VMEM)


def _pick_block_batch(N, L, C, *, target_lanes=1024, vmem_budget):
    """Batch elements folded into the lane axis per grid step (lane-dense W)."""
    legal = [nb for nb in range(1, N + 1)
             if N % nb == 0 and (nb * L) % 128 == 0]
    if not legal:                 # wrapper pads N so this should never trigger
        legal = [N]
    # live-set ~12x C*W*4 (taps, conv acc, GN temporaries) + double-buffered I/O
    fits = [nb for nb in legal if 16 * C * nb * L * 4 <= vmem_budget] or [legal[0]]
    # keep grid >= 2 when possible so both v7x TensorCores get work
    multi = [nb for nb in fits if N // nb >= 2] or fits
    dense = [nb for nb in multi if nb * L >= target_lanes]
    if dense:
        d256 = [nb for nb in dense if (nb * L) % 256 == 0]    # full MXU N-width
        return (d256 or dense)[0]
    return multi[-1]


def resblock_pallas_packed(xp, p, *, n_batch, seq_len, mm_dtype=jnp.float32):
    """ResBlock on activations already packed as (C, n_batch*seq_len).

    Chains of ResBlocks should call this directly so the (N,C,L) <-> (C,N*L)
    repacking HBM traffic is paid once, not once per block.
    """
    C, total = xp.shape
    N, L = n_batch, seq_len
    assert total == N * L
    assert C % 8 == 0, "ResBlock uses GroupNorm(C // 8, C); C must be a multiple of 8"
    group_size = 8
    G = C // group_size

    cap = _vmem_capacity_bytes()
    NB = _pick_block_batch(N, L, C, vmem_budget=int(0.45 * cap))
    W = NB * L

    # conv weights (C_out, C_in, 3) -> (3, C_out, C_in): one (C,C) slab per tap.
    w1 = jnp.transpose(p["w1"], (2, 0, 1)).astype(mm_dtype)
    w2 = jnp.transpose(p["w2"], (2, 0, 1)).astype(mm_dtype)

    zeros = jnp.zeros((C,), jnp.float32)
    par = jnp.stack([p["b1"], p["gn1_w"], p["gn1_b"],
                     p["b2"], p["gn2_w"], p["gn2_b"], zeros, zeros], axis=1)  # (C, 8)

    ch = jnp.arange(C)
    m = (ch[None, :] // group_size == jnp.arange(G)[:, None]).astype(jnp.float32)  # (G, C)
    mt = m.T                                                                       # (C, G)

    pos = jnp.arange(W) % L
    keep_prev = (pos != 0).astype(jnp.float32)[None, :]         # (1, W)
    keep_next = (pos != (L - 1)).astype(jnp.float32)[None, :]   # (1, W)

    full2 = lambda b: (0, 0)
    kernel = functools.partial(resblock_kernel, seq_len=L, group_size=group_size,
                               mm_dtype=mm_dtype)

    est_live = 16 * C * W * 4 + 2 * 3 * C * C * jnp.dtype(mm_dtype).itemsize
    vmem_limit = int(min(cap - (4 << 20), max(32 << 20, 2 * est_live)))

    cost = pl.CostEstimate(
        flops=int(2 * 2 * 3 * C * C * N * L + 24 * C * N * L),
        transcendentals=int(2 * N * G),
        bytes_accessed=int(8 * N * C * L
                           + 2 * 3 * C * C * jnp.dtype(mm_dtype).itemsize
                           + 4 * (C * 8 + 2 * G * C + 2 * W)),
    )

    out = pl.pallas_call(
        kernel,
        out_shape=jax.ShapeDtypeStruct((C, N * L), jnp.float32),
        grid=(N // NB,),
        in_specs=[
            pl.BlockSpec((C, W), lambda b: (0, b)),           # packed activations
            pl.BlockSpec((3, C, C), lambda b: (0, 0, 0)),     # conv1 taps
            pl.BlockSpec((3, C, C), lambda b: (0, 0, 0)),     # conv2 taps
            pl.BlockSpec((C, 8), full2),                      # packed per-channel params
            pl.BlockSpec((G, C), full2),                      # group membership
            pl.BlockSpec((C, G), full2),                      # membership^T
            pl.BlockSpec((1, W), full2),                      # not-first-of-seq mask
            pl.BlockSpec((1, W), full2),                      # not-last-of-seq mask
        ],
        out_specs=pl.BlockSpec((C, W), lambda b: (0, b)),
        compiler_params=pltpu.CompilerParams(
            dimension_semantics=("parallel",),
            vmem_limit_bytes=vmem_limit),
        cost_estimate=cost,
    )(xp, w1, w2, par, m, mt, keep_prev, keep_next)
    return out


def resblock_pallas(x, p, *, mm_dtype=jnp.float32):
    N, C, L = x.shape
    # Pad the batch so every lane tile (and the output store) is a multiple of
    # 128 lanes -> lane-dense, unmasked stores.  Padded samples are independent
    # (per-sample conv masks + per-sample GroupNorm stats) and dropped at the end.
    q = 128 // math.gcd(L, 128)
    N_pad = ((N + q - 1) // q) * q
    if N_pad != N:
        x = jnp.pad(x, ((0, N_pad - N), (0, 0), (0, 0)))
    xp = jnp.transpose(x, (1, 0, 2)).reshape(C, N_pad * L)      # (C, N_pad*L)
    out = resblock_pallas_packed(xp, p, n_batch=N_pad, seq_len=L, mm_dtype=mm_dtype)
    out = jnp.transpose(out.reshape(C, N_pad, L), (1, 0, 2))    # (N_pad, C, L)
    return out[:N]


# ---------------- pure-JAX reference (for correctness check) ----------------
def resblock_ref(x, p, groups):
    def conv1d(h, w, b):
        y = lax.conv_general_dilated(h, w, window_strides=(1,), padding=((1, 1),),
                                     dimension_numbers=("NCH", "OIH", "NCH"))
        return y + b[None, :, None]

    def gn(h, gamma, beta, eps=1e-5):
        N, C, L = h.shape
        hg = h.reshape(N, groups, -1)
        mean = hg.mean(axis=-1, keepdims=True)
        var = hg.var(axis=-1, keepdims=True)
        hn = ((hg - mean) / jnp.sqrt(var + eps)).reshape(N, C, L)
        return hn * gamma[None, :, None] + beta[None, :, None]

    h = conv1d(x, p["w1"], p["b1"])
    h = gn(h, p["gn1_w"], p["gn1_b"])
    h = jax.nn.relu(h)
    h = conv1d(h, p["w2"], p["b2"])
    h = gn(h, p["gn2_w"], p["gn2_b"])
    return jax.nn.relu(h + x)


if __name__ == "__main__":
    chan, batch, length = 32, 2, 16          # chan must be divisible by 8
    groups = chan // 8

    key = jax.random.PRNGKey(0)
    ks = jax.random.split(key, 9)
    params = {
        "w1": 0.1 * jax.random.normal(ks[0], (chan, chan, 3), jnp.float32),
        "b1": 0.05 * jax.random.normal(ks[1], (chan,), jnp.float32),
        "gn1_w": 1.0 + 0.1 * jax.random.normal(ks[2], (chan,), jnp.float32),
        "gn1_b": 0.05 * jax.random.normal(ks[3], (chan,), jnp.float32),
        "w2": 0.1 * jax.random.normal(ks[4], (chan, chan, 3), jnp.float32),
        "b2": 0.05 * jax.random.normal(ks[5], (chan,), jnp.float32),
        "gn2_w": 1.0 + 0.1 * jax.random.normal(ks[6], (chan,), jnp.float32),
        "gn2_b": 0.05 * jax.random.normal(ks[7], (chan,), jnp.float32),
    }
    x = jax.random.normal(ks[8], (batch, chan, length), jnp.float32)

    out = resblock_pallas(x, params)         # f32 operands (default)
    jax.block_until_ready(out)

    ref = resblock_ref(x, params, groups)
    assert out.shape == ref.shape == (batch, chan, length)
    err = float(jnp.max(jnp.abs(out - ref)))
    # Tolerance accommodates the MXU's bf16 operand truncation on real TPUs
    # (the big GroupNorm reductions are exact f32 off-MXU; only convs and the
    # tiny group-of-8 reduces touch the MXU).  Interpret mode matches ~1e-6.
    assert jnp.allclose(out, ref, atol=1e-2, rtol=1e-2), f"max abs err = {err}"

    print("KERNEL_OK")
</pallas_src>

<mosaic_0001>
module attributes {stable_mosaic.version = 11 : i64} {
  func.func @resblock_kernel(%arg0: i32, %arg1: memref<32x128xf32, #tpu.memory_space<vmem>>, %arg2: memref<3x32x32xf32, #tpu.memory_space<vmem>>, %arg3: memref<3x32x32xf32, #tpu.memory_space<vmem>>, %arg4: memref<32x8xf32, #tpu.memory_space<vmem>>, %arg5: memref<4x32xf32, #tpu.memory_space<vmem>>, %arg6: memref<32x4xf32, #tpu.memory_space<vmem>>, %arg7: memref<1x128xf32, #tpu.memory_space<vmem>>, %arg8: memref<1x128xf32, #tpu.memory_space<vmem>>, %arg9: memref<32x128xf32, #tpu.memory_space<vmem>>) attributes {dimension_semantics = [#tpu.dimension_semantics<parallel>], iteration_bounds = array<i64: 1>, scalar_prefetch = 0 : i64, scratch_operands = 0 : i64, tpu.core_type = #tpu.core_type<tc>, window_params = [{transform_indices = @transform_0, window_bounds = array<i64: 32, 128>}, {pipeline_mode = #tpu.pipeline_mode<synchronous>, transform_indices = @transform_1, window_bounds = array<i64: 3, 32, 32>}, {pipeline_mode = #tpu.pipeline_mode<synchronous>, transform_indices = @transform_2, window_bounds = array<i64: 3, 32, 32>}, {pipeline_mode = #tpu.pipeline_mode<synchronous>, transform_indices = @transform_3, window_bounds = array<i64: 32, 8>}, {pipeline_mode = #tpu.pipeline_mode<synchronous>, transform_indices = @transform_4, window_bounds = array<i64: 4, 32>}, {pipeline_mode = #tpu.pipeline_mode<synchronous>, transform_indices = @transform_5, window_bounds = array<i64: 32, 4>}, {pipeline_mode = #tpu.pipeline_mode<synchronous>, transform_indices = @transform_6, window_bounds = array<i64: 1, 128>}, {pipeline_mode = #tpu.pipeline_mode<synchronous>, transform_indices = @transform_7, window_bounds = array<i64: 1, 128>}, {transform_indices = @transform_8, window_bounds = array<i64: 32, 128>}]} {
    %c0 = arith.constant 0 : index
    %c0_0 = arith.constant 0 : index
    %0 = vector.load %arg4[%c0, %c0_0] : memref<32x8xf32, #tpu.memory_space<vmem>>, vector<32x8xf32>
    %1 = vector.extract_strided_slice %0 {offsets = [0, 0], sizes = [32, 1], strides = [1, 1]} : vector<32x8xf32> to vector<32x1xf32>
    %2 = vector.extract_strided_slice %0 {offsets = [0, 1], sizes = [32, 1], strides = [1, 1]} : vector<32x8xf32> to vector<32x1xf32>
    %3 = vector.extract_strided_slice %0 {offsets = [0, 2], sizes = [32, 1], strides = [1, 1]} : vector<32x8xf32> to vector<32x1xf32>
    %4 = vector.extract_strided_slice %0 {offsets = [0, 3], sizes = [32, 1], strides = [1, 1]} : vector<32x8xf32> to vector<32x1xf32>
    %5 = vector.extract_strided_slice %0 {offsets = [0, 4], sizes = [32, 1], strides = [1, 1]} : vector<32x8xf32> to vector<32x1xf32>
    %6 = vector.extract_strided_slice %0 {offsets = [0, 5], sizes = [32, 1], strides = [1, 1]} : vector<32x8xf32> to vector<32x1xf32>
    %c0_1 = arith.constant 0 : index
    %c0_2 = arith.constant 0 : index
    %7 = vector.load %arg5[%c0_1, %c0_2] : memref<4x32xf32, #tpu.memory_space<vmem>>, vector<4x32xf32>
    %c0_3 = arith.constant 0 : index
    %c0_4 = arith.constant 0 : index
    %8 = vector.load %arg6[%c0_3, %c0_4] : memref<32x4xf32, #tpu.memory_space<vmem>>, vector<32x4xf32>
    %c0_5 = arith.constant 0 : index
    %c0_6 = arith.constant 0 : index
    %9 = vector.load %arg7[%c0_5, %c0_6] : memref<1x128xf32, #tpu.memory_space<vmem>>, vector<1x128xf32>
    %c0_7 = arith.constant 0 : index
    %c0_8 = arith.constant 0 : index
    %10 = vector.load %arg8[%c0_7, %c0_8] : memref<1x128xf32, #tpu.memory_space<vmem>>, vector<1x128xf32>
    %c0_9 = arith.constant 0 : index
    %c0_10 = arith.constant 0 : index
    %11 = vector.load %arg1[%c0_9, %c0_10] : memref<32x128xf32, #tpu.memory_space<vmem>>, vector<32x128xf32>
    %c1_i32 = arith.constant 1 : i32
    %12 = tpu.dynamic_rotate %11 by %c1_i32 dim 1 : vector<32x128xf32>, i32 -> vector<32x128xf32>
    %13 = vector.broadcast %9 : vector<1x128xf32> to vector<32x128xf32>
    %14 = arith.mulf %12, %13 : vector<32x128xf32>
    %c127_i32 = arith.constant 127 : i32
    %15 = tpu.dynamic_rotate %11 by %c127_i32 dim 1 : vector<32x128xf32>, i32 -> vector<32x128xf32>
    %16 = vector.broadcast %10 : vector<1x128xf32> to vector<32x128xf32>
    %17 = arith.mulf %15, %16 : vector<32x128xf32>
    %c0_11 = arith.constant 0 : index
    %c0_12 = arith.constant 0 : index
    %c0_13 = arith.constant 0 : index
    %18 = vector.load %arg2[%c0_11, %c0_12, %c0_13] : memref<3x32x32xf32, #tpu.memory_space<vmem>>, vector<1x32x32xf32>
    %19 = vector.shape_cast %18 : vector<1x32x32xf32> to vector<32x32xf32>
    %cst = arith.constant dense<0.000000e+00> : vector<32x128xf32>
    %20 = tpu.matmul %19, %14, %cst {dimension_numbers = #tpu.dot_dimension_numbers<[1], [0], [0], [1], [0, 0, 1, 1], [], []>} : vector<32x32xf32>, vector<32x128xf32>, vector<32x128xf32> -> vector<32x128xf32>
    %c1 = arith.constant 1 : index
    %c0_14 = arith.constant 0 : index
    %c0_15 = arith.constant 0 : index
    %21 = vector.load %arg2[%c1, %c0_14, %c0_15] : memref<3x32x32xf32, #tpu.memory_space<vmem>>, vector<1x32x32xf32>
    %22 = vector.shape_cast %21 : vector<1x32x32xf32> to vector<32x32xf32>
    %cst_16 = arith.constant dense<0.000000e+00> : vector<32x128xf32>
    %23 = tpu.matmul %22, %11, %cst_16 {dimension_numbers = #tpu.dot_dimension_numbers<[1], [0], [0], [1], [0, 0, 1, 1], [], []>} : vector<32x32xf32>, vector<32x128xf32>, vector<32x128xf32> -> vector<32x128xf32>
    %24 = arith.addf %20, %23 : vector<32x128xf32>
    %c2 = arith.constant 2 : index
    %c0_17 = arith.constant 0 : index
    %c0_18 = arith.constant 0 : index
    %25 = vector.load %arg2[%c2, %c0_17, %c0_18] : memref<3x32x32xf32, #tpu.memory_space<vmem>>, vector<1x32x32xf32>
    %26 = vector.shape_cast %25 : vector<1x32x32xf32> to vector<32x32xf32>
    %cst_19 = arith.constant dense<0.000000e+00> : vector<32x128xf32>
    %27 = tpu.matmul %26, %17, %cst_19 {dimension_numbers = #tpu.dot_dimension_numbers<[1], [0], [0], [1], [0, 0, 1, 1], [], []>} : vector<32x32xf32>, vector<32x128xf32>, vector<32x128xf32> -> vector<32x128xf32>
    %28 = arith.addf %24, %27 : vector<32x128xf32>
    %29 = vector.broadcast %1 : vector<32x1xf32> to vector<32x128xf32>
    %30 = arith.addf %28, %29 : vector<32x128xf32>
    %31 = vector.extract_strided_slice %30 {offsets = [0, 0], sizes = [32, 16], strides = [1, 1]} : vector<32x128xf32> to vector<32x16xf32>
    %cst_20 = arith.constant dense<0.000000e+00> : vector<32xf32>
    %32 = vector.multi_reduction <add>, %31, %cst_20 [1] : vector<32x16xf32> to vector<32xf32>
    %33 = vector.shape_cast %32 : vector<32xf32> to vector<32x1xf32>
    %cst_21 = arith.constant dense<0.000000e+00> : vector<4x1xf32>
    %34 = tpu.matmul %7, %33, %cst_21 {dimension_numbers = #tpu.dot_dimension_numbers<[1], [0], [0], [1], [0, 0, 1, 1], [], []>} : vector<4x32xf32>, vector<32x1xf32>, vector<4x1xf32> -> vector<4x1xf32>
    %cst_22 = arith.constant 7.812500e-03 : f32
    %35 = vector.broadcast %cst_22 : f32 to vector<4x1xf32>
    %36 = arith.mulf %34, %35 : vector<4x1xf32>
    %cst_23 = arith.constant dense<0.000000e+00> : vector<32x1xf32>
    %37 = tpu.matmul %8, %36, %cst_23 {dimension_numbers = #tpu.dot_dimension_numbers<[1], [0], [0], [1], [0, 0, 1, 1], [], []>} : vector<32x4xf32>, vector<4x1xf32>, vector<32x1xf32> -> vector<32x1xf32>
    %38 = vector.broadcast %37 : vector<32x1xf32> to vector<32x16xf32>
    %39 = arith.subf %31, %38 : vector<32x16xf32>
    %40 = arith.mulf %39, %39 : vector<32x16xf32>
    %cst_24 = arith.constant dense<0.000000e+00> : vector<32xf32>
    %41 = vector.multi_reduction <add>, %40, %cst_24 [1] : vector<32x16xf32> to vector<32xf32>
    %42 = vector.shape_cast %41 : vector<32xf32> to vector<32x1xf32>
    %cst_25 = arith.constant dense<0.000000e+00> : vector<4x1xf32>
    %43 = tpu.matmul %7, %42, %cst_25 {dimension_numbers = #tpu.dot_dimension_numbers<[1], [0], [0], [1], [0, 0, 1, 1], [], []>} : vector<4x32xf32>, vector<32x1xf32>, vector<4x1xf32> -> vector<4x1xf32>
    %cst_26 = arith.constant 7.812500e-03 : f32
    %44 = vector.broadcast %cst_26 : f32 to vector<4x1xf32>
    %45 = arith.mulf %43, %44 : vector<4x1xf32>
    %cst_27 = arith.constant 9.99999974E-6 : f32
    %46 = vector.broadcast %cst_27 : f32 to vector<4x1xf32>
    %47 = arith.addf %45, %46 : vector<4x1xf32>
    %48 = math.rsqrt %47 : vector<4x1xf32>
    %cst_28 = arith.constant dense<0.000000e+00> : vector<32x1xf32>
    %49 = tpu.matmul %8, %48, %cst_28 {dimension_numbers = #tpu.dot_dimension_numbers<[1], [0], [0], [1], [0, 0, 1, 1], [], []>} : vector<32x4xf32>, vector<4x1xf32>, vector<32x1xf32> -> vector<32x1xf32>
    %50 = arith.mulf %49, %2 : vector<32x1xf32>
    %51 = vector.broadcast %50 : vector<32x1xf32> to vector<32x16xf32>
    %52 = arith.mulf %39, %51 : vector<32x16xf32>
    %53 = vector.broadcast %3 : vector<32x1xf32> to vector<32x16xf32>
    %54 = arith.addf %52, %53 : vector<32x16xf32>
    %55 = vector.extract_strided_slice %30 {offsets = [0, 16], sizes = [32, 16], strides = [1, 1]} : vector<32x128xf32> to vector<32x16xf32>
    %cst_29 = arith.constant dense<0.000000e+00> : vector<32xf32>
    %56 = vector.multi_reduction <add>, %55, %cst_29 [1] : vector<32x16xf32> to vector<32xf32>
    %57 = vector.shape_cast %56 : vector<32xf32> to vector<32x1xf32>
    %cst_30 = arith.constant dense<0.000000e+00> : vector<4x1xf32>
    %58 = tpu.matmul %7, %57, %cst_30 {dimension_numbers = #tpu.dot_dimension_numbers<[1], [0], [0], [1], [0, 0, 1, 1], [], []>} : vector<4x32xf32>, vector<32x1xf32>, vector<4x1xf32> -> vector<4x1xf32>
    %cst_31 = arith.constant 7.812500e-03 : f32
    %59 = vector.broadcast %cst_31 : f32 to vector<4x1xf32>
    %60 = arith.mulf %58, %59 : vector<4x1xf32>
    %cst_32 = arith.constant dense<0.000000e+00> : vector<32x1xf32>
    %61 = tpu.matmul %8, %60, %cst_32 {dimension_numbers = #tpu.dot_dimension_numbers<[1], [0], [0], [1], [0, 0, 1, 1], [], []>} : vector<32x4xf32>, vector<4x1xf32>, vector<32x1xf32> -> vector<32x1xf32>
    %62 = vector.broadcast %61 : vector<32x1xf32> to vector<32x16xf32>
    %63 = arith.subf %55, %62 : vector<32x16xf32>
    %64 = arith.mulf %63, %63 : vector<32x16xf32>
    %cst_33 = arith.constant dense<0.000000e+00> : vector<32xf32>
    %65 = vector.multi_reduction <add>, %64, %cst_33 [1] : vector<32x16xf32> to vector<32xf32>
    %66 = vector.shape_cast %65 : vector<32xf32> to vector<32x1xf32>
    %cst_34 = arith.constant dense<0.000000e+00> : vector<4x1xf32>
    %67 = tpu.matmul %7, %66, %cst_34 {dimension_numbers = #tpu.dot_dimension_numbers<[1], [0], [0], [1], [0, 0, 1, 1], [], []>} : vector<4x32xf32>, vector<32x1xf32>, vector<4x1xf32> -> vector<4x1xf32>
    %cst_35 = arith.constant 7.812500e-03 : f32
    %68 = vector.broadcast %cst_35 : f32 to vector<4x1xf32>
    %69 = arith.mulf %67, %68 : vector<4x1xf32>
    %cst_36 = arith.constant 9.99999974E-6 : f32
    %70 = vector.broadcast %cst_36 : f32 to vector<4x1xf32>
    %71 = arith.addf %69, %70 : vector<4x1xf32>
    %72 = math.rsqrt %71 : vector<4x1xf32>
    %cst_37 = arith.constant dense<0.000000e+00> : vector<32x1xf32>
    %73 = tpu.matmul %8, %72, %cst_37 {dimension_numbers = #tpu.dot_dimension_numbers<[1], [0], [0], [1], [0, 0, 1, 1], [], []>} : vector<32x4xf32>, vector<4x1xf32>, vector<32x1xf32> -> vector<32x1xf32>
    %74 = arith.mulf %73, %2 : vector<32x1xf32>
    %75 = vector.broadcast %74 : vector<32x1xf32> to vector<32x16xf32>
    %76 = arith.mulf %63, %75 : vector<32x16xf32>
    %77 = vector.broadcast %3 : vector<32x1xf32> to vector<32x16xf32>
    %78 = arith.addf %76, %77 : vector<32x16xf32>
    %79 = vector.extract_strided_slice %30 {offsets = [0, 32], sizes = [32, 16], strides = [1, 1]} : vector<32x128xf32> to vector<32x16xf32>
    %cst_38 = arith.constant dense<0.000000e+00> : vector<32xf32>
    %80 = vector.multi_reduction <add>, %79, %cst_38 [1] : vector<32x16xf32> to vector<32xf32>
    %81 = vector.shape_cast %80 : vector<32xf32> to vector<32x1xf32>
    %cst_39 = arith.constant dense<0.000000e+00> : vector<4x1xf32>
    %82 = tpu.matmul %7, %81, %cst_39 {dimension_numbers = #tpu.dot_dimension_numbers<[1], [0], [0], [1], [0, 0, 1, 1], [], []>} : vector<4x32xf32>, vector<32x1xf32>, vector<4x1xf32> -> vector<4x1xf32>
    %cst_40 = arith.constant 7.812500e-03 : f32
    %83 = vector.broadcast %cst_40 : f32 to vector<4x1xf32>
    %84 = arith.mulf %82, %83 : vector<4x1xf32>
    %cst_41 = arith.constant dense<0.000000e+00> : vector<32x1xf32>
    %85 = tpu.matmul %8, %84, %cst_41 {dimension_numbers = #tpu.dot_dimension_numbers<[1], [0], [0], [1], [0, 0, 1, 1], [], []>} : vector<32x4xf32>, vector<4x1xf32>, vector<32x1xf32> -> vector<32x1xf32>
    %86 = vector.broadcast %85 : vector<32x1xf32> to vector<32x16xf32>
    %87 = arith.subf %79, %86 : vector<32x16xf32>
    %88 = arith.mulf %87, %87 : vector<32x16xf32>
    %cst_42 = arith.constant dense<0.000000e+00> : vector<32xf32>
    %89 = vector.multi_reduction <add>, %88, %cst_42 [1] : vector<32x16xf32> to vector<32xf32>
    %90 = vector.shape_cast %89 : vector<32xf32> to vector<32x1xf32>
    %cst_43 = arith.constant dense<0.000000e+00> : vector<4x1xf32>
    %91 = tpu.matmul %7, %90, %cst_43 {dimension_numbers = #tpu.dot_dimension_numbers<[1], [0], [0], [1], [0, 0, 1, 1], [], []>} : vector<4x32xf32>, vector<32x1xf32>, vector<4x1xf32> -> vector<4x1xf32>
    %cst_44 = arith.constant 7.812500e-03 : f32
    %92 = vector.broadcast %cst_44 : f32 to vector<4x1xf32>
    %93 = arith.mulf %91, %92 : vector<4x1xf32>
    %cst_45 = arith.constant 9.99999974E-6 : f32
    %94 = vector.broadcast %cst_45 : f32 to vector<4x1xf32>
    %95 = arith.addf %93, %94 : vector<4x1xf32>
    %96 = math.rsqrt %95 : vector<4x1xf32>
    %cst_46 = arith.constant dense<0.000000e+00> : vector<32x1xf32>
    %97 = tpu.matmul %8, %96, %cst_46 {dimension_numbers = #tpu.dot_dimension_numbers<[1], [0], [0], [1], [0, 0, 1, 1], [], []>} : vector<32x4xf32>, vector<4x1xf32>, vector<32x1xf32> -> vector<32x1xf32>
    %98 = arith.mulf %97, %2 : vector<32x1xf32>
    %99 = vector.broadcast %98 : vector<32x1xf32> to vector<32x16xf32>
    %100 = arith.mulf %87, %99 : vector<32x16xf32>
    %101 = vector.broadcast %3 : vector<32x1xf32> to vector<32x16xf32>
    %102 = arith.addf %100, %101 : vector<32x16xf32>
    %103 = vector.extract_strided_slice %30 {offsets = [0, 48], sizes = [32, 16], strides = [1, 1]} : vector<32x128xf32> to vector<32x16xf32>
    %cst_47 = arith.constant dense<0.000000e+00> : vector<32xf32>
    %104 = vector.multi_reduction <add>, %103, %cst_47 [1] : vector<32x16xf32> to vector<32xf32>
    %105 = vector.shape_cast %104 : vector<32xf32> to vector<32x1xf32>
    %cst_48 = arith.constant dense<0.000000e+00> : vector<4x1xf32>
    %106 = tpu.matmul %7, %105, %cst_48 {dimension_numbers = #tpu.dot_dimension_numbers<[1], [0], [0], [1], [0, 0, 1, 1], [], []>} : vector<4x32xf32>, vector<32x1xf32>, vector<4x1xf32> -> vector<4x1xf32>
    %cst_49 = arith.constant 7.812500e-03 : f32
    %107 = vector.broadcast %cst_49 : f32 to vector<4x1xf32>
    %108 = arith.mulf %106, %107 : vector<4x1xf32>
    %cst_50 = arith.constant dense<0.000000e+00> : vector<32x1xf32>
    %109 = tpu.matmul %8, %108, %cst_50 {dimension_numbers = #tpu.dot_dimension_numbers<[1], [0], [0], [1], [0, 0, 1, 1], [], []>} : vector<32x4xf32>, vector<4x1xf32>, vector<32x1xf32> -> vector<32x1xf32>
    %110 = vector.broadcast %109 : vector<32x1xf32> to vector<32x16xf32>
    %111 = arith.subf %103, %110 : vector<32x16xf32>
    %112 = arith.mulf %111, %111 : vector<32x16xf32>
    %cst_51 = arith.constant dense<0.000000e+00> : vector<32xf32>
    %113 = vector.multi_reduction <add>, %112, %cst_51 [1] : vector<32x16xf32> to vector<32xf32>
    %114 = vector.shape_cast %113 : vector<32xf32> to vector<32x1xf32>
    %cst_52 = arith.constant dense<0.000000e+00> : vector<4x1xf32>
    %115 = tpu.matmul %7, %114, %cst_52 {dimension_numbers = #tpu.dot_dimension_numbers<[1], [0], [0], [1], [0, 0, 1, 1], [], []>} : vector<4x32xf32>, vector<32x1xf32>, vector<4x1xf32> -> vector<4x1xf32>
    %cst_53 = arith.constant 7.812500e-03 : f32
    %116 = vector.broadcast %cst_53 : f32 to vector<4x1xf32>
    %117 = arith.mulf %115, %116 : vector<4x1xf32>
    %cst_54 = arith.constant 9.99999974E-6 : f32
    %118 = vector.broadcast %cst_54 : f32 to vector<4x1xf32>
    %119 = arith.addf %117, %118 : vector<4x1xf32>
    %120 = math.rsqrt %119 : vector<4x1xf32>
    %cst_55 = arith.constant dense<0.000000e+00> : vector<32x1xf32>
    %121 = tpu.matmul %8, %120, %cst_55 {dimension_numbers = #tpu.dot_dimension_numbers<[1], [0], [0], [1], [0, 0, 1, 1], [], []>} : vector<32x4xf32>, vector<4x1xf32>, vector<32x1xf32> -> vector<32x1xf32>
    %122 = arith.mulf %121, %2 : vector<32x1xf32>
    %123 = vector.broadcast %122 : vector<32x1xf32> to vector<32x16xf32>
    %124 = arith.mulf %111, %123 : vector<32x16xf32>
    %125 = vector.broadcast %3 : vector<32x1xf32> to vector<32x16xf32>
    %126 = arith.addf %124, %125 : vector<32x16xf32>
    %127 = vector.extract_strided_slice %30 {offsets = [0, 64], sizes = [32, 16], strides = [1, 1]} : vector<32x128xf32> to vector<32x16xf32>
    %cst_56 = arith.constant dense<0.000000e+00> : vector<32xf32>
    %128 = vector.multi_reduction <add>, %127, %cst_56 [1] : vector<32x16xf32> to vector<32xf32>
    %129 = vector.shape_cast %128 : vector<32xf32> to vector<32x1xf32>
    %cst_57 = arith.constant dense<0.000000e+00> : vector<4x1xf32>
    %130 = tpu.matmul %7, %129, %cst_57 {dimension_numbers = #tpu.dot_dimension_numbers<[1], [0], [0], [1], [0, 0, 1, 1], [], []>} : vector<4x32xf32>, vector<32x1xf32>, vector<4x1xf32> -> vector<4x1xf32>
    %cst_58 = arith.constant 7.812500e-03 : f32
    %131 = vector.broadcast %cst_58 : f32 to vector<4x1xf32>
    %132 = arith.mulf %130, %131 : vector<4x1xf32>
    %cst_59 = arith.constant dense<0.000000e+00> : vector<32x1xf32>
    %133 = tpu.matmul %8, %132, %cst_59 {dimension_numbers = #tpu.dot_dimension_numbers<[1], [0], [0], [1], [0, 0, 1, 1], [], []>} : vector<32x4xf32>, vector<4x1xf32>, vector<32x1xf32> -> vector<32x1xf32>
    %134 = vector.broadcast %133 : vector<32x1xf32> to vector<32x16xf32>
    %135 = arith.subf %127, %134 : vector<32x16xf32>
    %136 = arith.mulf %135, %135 : vector<32x16xf32>
    %cst_60 = arith.constant dense<0.000000e+00> : vector<32xf32>
    %137 = vector.multi_reduction <add>, %136, %cst_60 [1] : vector<32x16xf32> to vector<32xf32>
    %138 = vector.shape_cast %137 : vector<32xf32> to vector<32x1xf32>
    %cst_61 = arith.constant dense<0.000000e+00> : vector<4x1xf32>
    %139 = tpu.matmul %7, %138, %cst_61 {dimension_numbers = #tpu.dot_dimension_numbers<[1], [0], [0], [1], [0, 0, 1, 1], [], []>} : vector<4x32xf32>, vector<32x1xf32>, vector<4x1xf32> -> vector<4x1xf32>
    %cst_62 = arith.constant 7.812500e-03 : f32
    %140 = vector.broadcast %cst_62 : f32 to vector<4x1xf32>
    %141 = arith.mulf %139, %140 : vector<4x1xf32>
    %cst_63 = arith.constant 9.99999974E-6 : f32
    %142 = vector.broadcast %cst_63 : f32 to vector<4x1xf32>
    %143 = arith.addf %141, %142 : vector<4x1xf32>
    %144 = math.rsqrt %143 : vector<4x1xf32>
    %cst_64 = arith.constant dense<0.000000e+00> : vector<32x1xf32>
    %145 = tpu.matmul %8, %144, %cst_64 {dimension_numbers = #tpu.dot_dimension_numbers<[1], [0], [0], [1], [0, 0, 1, 1], [], []>} : vector<32x4xf32>, vector<4x1xf32>, vector<32x1xf32> -> vector<32x1xf32>
    %146 = arith.mulf %145, %2 : vector<32x1xf32>
    %147 = vector.broadcast %146 : vector<32x1xf32> to vector<32x16xf32>
    %148 = arith.mulf %135, %147 : vector<32x16xf32>
    %149 = vector.broadcast %3 : vector<32x1xf32> to vector<32x16xf32>
    %150 = arith.addf %148, %149 : vector<32x16xf32>
    %151 = vector.extract_strided_slice %30 {offsets = [0, 80], sizes = [32, 16], strides = [1, 1]} : vector<32x128xf32> to vector<32x16xf32>
    %cst_65 = arith.constant dense<0.000000e+00> : vector<32xf32>
    %152 = vector.multi_reduction <add>, %151, %cst_65 [1] : vector<32x16xf32> to vector<32xf32>
    %153 = vector.shape_cast %152 : vector<32xf32> to vector<32x1xf32>
    %cst_66 = arith.constant dense<0.000000e+00> : vector<4x1xf32>
    %154 = tpu.matmul %7, %153, %cst_66 {dimension_numbers = #tpu.dot_dimension_numbers<[1], [0], [0], [1], [0, 0, 1, 1], [], []>} : vector<4x32xf32>, vector<32x1xf32>, vector<4x1xf32> -> vector<4x1xf32>
    %cst_67 = arith.constant 7.812500e-03 : f32
    %155 = vector.broadcast %cst_67 : f32 to vector<4x1xf32>
    %156 = arith.mulf %154, %155 : vector<4x1xf32>
    %cst_68 = arith.constant dense<0.000000e+00> : vector<32x1xf32>
    %157 = tpu.matmul %8, %156, %cst_68 {dimension_numbers = #tpu.dot_dimension_numbers<[1], [0], [0], [1], [0, 0, 1, 1], [], []>} : vector<32x4xf32>, vector<4x1xf32>, vector<32x1xf32> -> vector<32x1xf32>
    %158 = vector.broadcast %157 : vector<32x1xf32> to vector<32x16xf32>
    %159 = arith.subf %151, %158 : vector<32x16xf32>
    %160 = arith.mulf %159, %159 : vector<32x16xf32>
    %cst_69 = arith.constant dense<0.000000e+00> : vector<32xf32>
    %161 = vector.multi_reduction <add>, %160, %cst_69 [1] : vector<32x16xf32> to vector<32xf32>
    %162 = vector.shape_cast %161 : vector<32xf32> to vector<32x1xf32>
    %cst_70 = arith.constant dense<0.000000e+00> : vector<4x1xf32>
    %163 = tpu.matmul %7, %162, %cst_70 {dimension_numbers = #tpu.dot_dimension_numbers<[1], [0], [0], [1], [0, 0, 1, 1], [], []>} : vector<4x32xf32>, vector<32x1xf32>, vector<4x1xf32> -> vector<4x1xf32>
    %cst_71 = arith.constant 7.812500e-03 : f32
    %164 = vector.broadcast %cst_71 : f32 to vector<4x1xf32>
    %165 = arith.mulf %163, %164 : vector<4x1xf32>
    %cst_72 = arith.constant 9.99999974E-6 : f32
    %166 = vector.broadcast %cst_72 : f32 to vector<4x1xf32>
    %167 = arith.addf %165, %166 : vector<4x1xf32>
    %168 = math.rsqrt %167 : vector<4x1xf32>
    %cst_73 = arith.constant dense<0.000000e+00> : vector<32x1xf32>
    %169 = tpu.matmul %8, %168, %cst_73 {dimension_numbers = #tpu.dot_dimension_numbers<[1], [0], [0], [1], [0, 0, 1, 1], [], []>} : vector<32x4xf32>, vector<4x1xf32>, vector<32x1xf32> -> vector<32x1xf32>
    %170 = arith.mulf %169, %2 : vector<32x1xf32>
    %171 = vector.broadcast %170 : vector<32x1xf32> to vector<32x16xf32>
    %172 = arith.mulf %159, %171 : vector<32x16xf32>
    %173 = vector.broadcast %3 : vector<32x1xf32> to vector<32x16xf32>
    %174 = arith.addf %172, %173 : vector<32x16xf32>
    %175 = vector.extract_strided_slice %30 {offsets = [0, 96], sizes = [32, 16], strides = [1, 1]} : vector<32x128xf32> to vector<32x16xf32>
    %cst_74 = arith.constant dense<0.000000e+00> : vector<32xf32>
    %176 = vector.multi_reduction <add>, %175, %cst_74 [1] : vector<32x16xf32> to vector<32xf32>
    %177 = vector.shape_cast %176 : vector<32xf32> to vector<32x1xf32>
    %cst_75 = arith.constant dense<0.000000e+00> : vector<4x1xf32>
    %178 = tpu.matmul %7, %177, %cst_75 {dimension_numbers = #tpu.dot_dimension_numbers<[1], [0], [0], [1], [0, 0, 1, 1], [], []>} : vector<4x32xf32>, vector<32x1xf32>, vector<4x1xf32> -> vector<4x1xf32>
    %cst_76 = arith.constant 7.812500e-03 : f32
    %179 = vector.broadcast %cst_76 : f32 to vector<4x1xf32>
    %180 = arith.mulf %178, %179 : vector<4x1xf32>
    %cst_77 = arith.constant dense<0.000000e+00> : vector<32x1xf32>
    %181 = tpu.matmul %8, %180, %cst_77 {dimension_numbers = #tpu.dot_dimension_numbers<[1], [0], [0], [1], [0, 0, 1, 1], [], []>} : vector<32x4xf32>, vector<4x1xf32>, vector<32x1xf32> -> vector<32x1xf32>
    %182 = vector.broadcast %181 : vector<32x1xf32> to vector<32x16xf32>
    %183 = arith.subf %175, %182 : vector<32x16xf32>
    %184 = arith.mulf %183, %183 : vector<32x16xf32>
    %cst_78 = arith.constant dense<0.000000e+00> : vector<32xf32>
    %185 = vector.multi_reduction <add>, %184, %cst_78 [1] : vector<32x16xf32> to vector<32xf32>
    %186 = vector.shape_cast %185 : vector<32xf32> to vector<32x1xf32>
    %cst_79 = arith.constant dense<0.000000e+00> : vector<4x1xf32>
    %187 = tpu.matmul %7, %186, %cst_79 {dimension_numbers = #tpu.dot_dimension_numbers<[1], [0], [0], [1], [0, 0, 1, 1], [], []>} : vector<4x32xf32>, vector<32x1xf32>, vector<4x1xf32> -> vector<4x1xf32>
    %cst_80 = arith.constant 7.812500e-03 : f32
    %188 = vector.broadcast %cst_80 : f32 to vector<4x1xf32>
    %189 = arith.mulf %187, %188 : vector<4x1xf32>
    %cst_81 = arith.constant 9.99999974E-6 : f32
    %190 = vector.broadcast %cst_81 : f32 to vector<4x1xf32>
    %191 = arith.addf %189, %190 : vector<4x1xf32>
    %192 = math.rsqrt %191 : vector<4x1xf32>
    %cst_82 = arith.constant dense<0.000000e+00> : vector<32x1xf32>
    %193 = tpu.matmul %8, %192, %cst_82 {dimension_numbers = #tpu.dot_dimension_numbers<[1], [0], [0], [1], [0, 0, 1, 1], [], []>} : vector<32x4xf32>, vector<4x1xf32>, vector<32x1xf32> -> vector<32x1xf32>
    %194 = arith.mulf %193, %2 : vector<32x1xf32>
    %195 = vector.broadcast %194 : vector<32x1xf32> to vector<32x16xf32>
    %196 = arith.mulf %183, %195 : vector<32x16xf32>
    %197 = vector.broadcast %3 : vector<32x1xf32> to vector<32x16xf32>
    %198 = arith.addf %196, %197 : vector<32x16xf32>
    %199 = vector.extract_strided_slice %30 {offsets = [0, 112], sizes = [32, 16], strides = [1, 1]} : vector<32x128xf32> to vector<32x16xf32>
    %cst_83 = arith.constant dense<0.000000e+00> : vector<32xf32>
    %200 = vector.multi_reduction <add>, %199, %cst_83 [1] : vector<32x16xf32> to vector<32xf32>
    %201 = vector.shape_cast %200 : vector<32xf32> to vector<32x1xf32>
    %cst_84 = arith.constant dense<0.000000e+00> : vector<4x1xf32>
    %202 = tpu.matmul %7, %201, %cst_84 {dimension_numbers = #tpu.dot_dimension_numbers<[1], [0], [0], [1], [0, 0, 1, 1], [], []>} : vector<4x32xf32>, vector<32x1xf32>, vector<4x1xf32> -> vector<4x1xf32>
    %cst_85 = arith.constant 7.812500e-03 : f32
    %203 = vector.broadcast %cst_85 : f32 to vector<4x1xf32>
    %204 = arith.mulf %202, %203 : vector<4x1xf32>
    %cst_86 = arith.constant dense<0.000000e+00> : vector<32x1xf32>
    %205 = tpu.matmul %8, %204, %cst_86 {dimension_numbers = #tpu.dot_dimension_numbers<[1], [0], [0], [1], [0, 0, 1, 1], [], []>} : vector<32x4xf32>, vector<4x1xf32>, vector<32x1xf32> -> vector<32x1xf32>
    %206 = vector.broadcast %205 : vector<32x1xf32> to vector<32x16xf32>
    %207 = arith.subf %199, %206 : vector<32x16xf32>
    %208 = arith.mulf %207, %207 : vector<32x16xf32>
    %cst_87 = arith.constant dense<0.000000e+00> : vector<32xf32>
    %209 = vector.multi_reduction <add>, %208, %cst_87 [1] : vector<32x16xf32> to vector<32xf32>
    %210 = vector.shape_cast %209 : vector<32xf32> to vector<32x1xf32>
    %cst_88 = arith.constant dense<0.000000e+00> : vector<4x1xf32>
    %211 = tpu.matmul %7, %210, %cst_88 {dimension_numbers = #tpu.dot_dimension_numbers<[1], [0], [0], [1], [0, 0, 1, 1], [], []>} : vector<4x32xf32>, vector<32x1xf32>, vector<4x1xf32> -> vector<4x1xf32>
    %cst_89 = arith.constant 7.812500e-03 : f32
    %212 = vector.broadcast %cst_89 : f32 to vector<4x1xf32>
    %213 = arith.mulf %211, %212 : vector<4x1xf32>
    %cst_90 = arith.constant 9.99999974E-6 : f32
    %214 = vector.broadcast %cst_90 : f32 to vector<4x1xf32>
    %215 = arith.addf %213, %214 : vector<4x1xf32>
    %216 = math.rsqrt %215 : vector<4x1xf32>
    %cst_91 = arith.constant dense<0.000000e+00> : vector<32x1xf32>
    %217 = tpu.matmul %8, %216, %cst_91 {dimension_numbers = #tpu.dot_dimension_numbers<[1], [0], [0], [1], [0, 0, 1, 1], [], []>} : vector<32x4xf32>, vector<4x1xf32>, vector<32x1xf32> -> vector<32x1xf32>
    %218 = arith.mulf %217, %2 : vector<32x1xf32>
    %219 = vector.broadcast %218 : vector<32x1xf32> to vector<32x16xf32>
    %220 = arith.mulf %207, %219 : vector<32x16xf32>
    %221 = vector.broadcast %3 : vector<32x1xf32> to vector<32x16xf32>
    %222 = arith.addf %220, %221 : vector<32x16xf32>
    %223 = tpu.concatenate %54, %78, %102, %126, %150, %174, %198, %222 in 1 : vector<32x16xf32>, vector<32x16xf32>, vector<32x16xf32>, vector<32x16xf32>, vector<32x16xf32>, vector<32x16xf32>, vector<32x16xf32>, vector<32x16xf32> -> vector<32x128xf32>
    %cst_92 = arith.constant 0.000000e+00 : f32
    %224 = vector.broadcast %cst_92 : f32 to vector<32x128xf32>
    %225 = arith.maximumf %223, %224 : vector<32x128xf32>
    %c1_i32_93 = arith.constant 1 : i32
    %226 = tpu.dynamic_rotate %225 by %c1_i32_93 dim 1 : vector<32x128xf32>, i32 -> vector<32x128xf32>
    %227 = vector.broadcast %9 : vector<1x128xf32> to vector<32x128xf32>
    %228 = arith.mulf %226, %227 : vector<32x128xf32>
    %c127_i32_94 = arith.constant 127 : i32
    %229 = tpu.dynamic_rotate %225 by %c127_i32_94 dim 1 : vector<32x128xf32>, i32 -> vector<32x128xf32>
    %230 = vector.broadcast %10 : vector<1x128xf32> to vector<32x128xf32>
    %231 = arith.mulf %229, %230 : vector<32x128xf32>
    %c0_95 = arith.constant 0 : index
    %c0_96 = arith.constant 0 : index
    %c0_97 = arith.constant 0 : index
    %232 = vector.load %arg3[%c0_95, %c0_96, %c0_97] : memref<3x32x32xf32, #tpu.memory_space<vmem>>, vector<1x32x32xf32>
    %233 = vector.shape_cast %232 : vector<1x32x32xf32> to vector<32x32xf32>
    %cst_98 = arith.constant dense<0.000000e+00> : vector<32x128xf32>
    %234 = tpu.matmul %233, %228, %cst_98 {dimension_numbers = #tpu.dot_dimension_numbers<[1], [0], [0], [1], [0, 0, 1, 1], [], []>} : vector<32x32xf32>, vector<32x128xf32>, vector<32x128xf32> -> vector<32x128xf32>
    %c1_99 = arith.constant 1 : index
    %c0_100 = arith.constant 0 : index
    %c0_101 = arith.constant 0 : index
    %235 = vector.load %arg3[%c1_99, %c0_100, %c0_101] : memref<3x32x32xf32, #tpu.memory_space<vmem>>, vector<1x32x32xf32>
    %236 = vector.shape_cast %235 : vector<1x32x32xf32> to vector<32x32xf32>
    %cst_102 = arith.constant dense<0.000000e+00> : vector<32x128xf32>
    %237 = tpu.matmul %236, %225, %cst_102 {dimension_numbers = #tpu.dot_dimension_numbers<[1], [0], [0], [1], [0, 0, 1, 1], [], []>} : vector<32x32xf32>, vector<32x128xf32>, vector<32x128xf32> -> vector<32x128xf32>
    %238 = arith.addf %234, %237 : vector<32x128xf32>
    %c2_103 = arith.constant 2 : index
    %c0_104 = arith.constant 0 : index
    %c0_105 = arith.constant 0 : index
    %239 = vector.load %arg3[%c2_103, %c0_104, %c0_105] : memref<3x32x32xf32, #tpu.memory_space<vmem>>, vector<1x32x32xf32>
    %240 = vector.shape_cast %239 : vector<1x32x32xf32> to vector<32x32xf32>
    %cst_106 = arith.constant dense<0.000000e+00> : vector<32x128xf32>
    %241 = tpu.matmul %240, %231, %cst_106 {dimension_numbers = #tpu.dot_dimension_numbers<[1], [0], [0], [1], [0, 0, 1, 1], [], []>} : vector<32x32xf32>, vector<32x128xf32>, vector<32x128xf32> -> vector<32x128xf32>
    %242 = arith.addf %238, %241 : vector<32x128xf32>
    %243 = vector.broadcast %4 : vector<32x1xf32> to vector<32x128xf32>
    %244 = arith.addf %242, %243 : vector<32x128xf32>
    %245 = vector.extract_strided_slice %244 {offsets = [0, 0], sizes = [32, 16], strides = [1, 1]} : vector<32x128xf32> to vector<32x16xf32>
    %cst_107 = arith.constant dense<0.000000e+00> : vector<32xf32>
    %246 = vector.multi_reduction <add>, %245, %cst_107 [1] : vector<32x16xf32> to vector<32xf32>
    %247 = vector.shape_cast %246 : vector<32xf32> to vector<32x1xf32>
    %cst_108 = arith.constant dense<0.000000e+00> : vector<4x1xf32>
    %248 = tpu.matmul %7, %247, %cst_108 {dimension_numbers = #tpu.dot_dimension_numbers<[1], [0], [0], [1], [0, 0, 1, 1], [], []>} : vector<4x32xf32>, vector<32x1xf32>, vector<4x1xf32> -> vector<4x1xf32>
    %cst_109 = arith.constant 7.812500e-03 : f32
    %249 = vector.broadcast %cst_109 : f32 to vector<4x1xf32>
    %250 = arith.mulf %248, %249 : vector<4x1xf32>
    %cst_110 = arith.constant dense<0.000000e+00> : vector<32x1xf32>
    %251 = tpu.matmul %8, %250, %cst_110 {dimension_numbers = #tpu.dot_dimension_numbers<[1], [0], [0], [1], [0, 0, 1, 1], [], []>} : vector<32x4xf32>, vector<4x1xf32>, vector<32x1xf32> -> vector<32x1xf32>
    %252 = vector.broadcast %251 : vector<32x1xf32> to vector<32x16xf32>
    %253 = arith.subf %245, %252 : vector<32x16xf32>
    %254 = arith.mulf %253, %253 : vector<32x16xf32>
    %cst_111 = arith.constant dense<0.000000e+00> : vector<32xf32>
    %255 = vector.multi_reduction <add>, %254, %cst_111 [1] : vector<32x16xf32> to vector<32xf32>
    %256 = vector.shape_cast %255 : vector<32xf32> to vector<32x1xf32>
    %cst_112 = arith.constant dense<0.000000e+00> : vector<4x1xf32>
    %257 = tpu.matmul %7, %256, %cst_112 {dimension_numbers = #tpu.dot_dimension_numbers<[1], [0], [0], [1], [0, 0, 1, 1], [], []>} : vector<4x32xf32>, vector<32x1xf32>, vector<4x1xf32> -> vector<4x1xf32>
    %cst_113 = arith.constant 7.812500e-03 : f32
    %258 = vector.broadcast %cst_113 : f32 to vector<4x1xf32>
    %259 = arith.mulf %257, %258 : vector<4x1xf32>
    %cst_114 = arith.constant 9.99999974E-6 : f32
    %260 = vector.broadcast %cst_114 : f32 to vector<4x1xf32>
    %261 = arith.addf %259, %260 : vector<4x1xf32>
    %262 = math.rsqrt %261 : vector<4x1xf32>
    %cst_115 = arith.constant dense<0.000000e+00> : vector<32x1xf32>
    %263 = tpu.matmul %8, %262, %cst_115 {dimension_numbers = #tpu.dot_dimension_numbers<[1], [0], [0], [1], [0, 0, 1, 1], [], []>} : vector<32x4xf32>, vector<4x1xf32>, vector<32x1xf32> -> vector<32x1xf32>
    %264 = arith.mulf %263, %5 : vector<32x1xf32>
    %265 = vector.broadcast %264 : vector<32x1xf32> to vector<32x16xf32>
    %266 = arith.mulf %253, %265 : vector<32x16xf32>
    %267 = vector.broadcast %6 : vector<32x1xf32> to vector<32x16xf32>
    %268 = arith.addf %266, %267 : vector<32x16xf32>
    %269 = vector.extract_strided_slice %244 {offsets = [0, 16], sizes = [32, 16], strides = [1, 1]} : vector<32x128xf32> to vector<32x16xf32>
    %cst_116 = arith.constant dense<0.000000e+00> : vector<32xf32>
    %270 = vector.multi_reduction <add>, %269, %cst_116 [1] : vector<32x16xf32> to vector<32xf32>
    %271 = vector.shape_cast %270 : vector<32xf32> to vector<32x1xf32>
    %cst_117 = arith.constant dense<0.000000e+00> : vector<4x1xf32>
    %272 = tpu.matmul %7, %271, %cst_117 {dimension_numbers = #tpu.dot_dimension_numbers<[1], [0], [0], [1], [0, 0, 1, 1], [], []>} : vector<4x32xf32>, vector<32x1xf32>, vector<4x1xf32> -> vector<4x1xf32>
    %cst_118 = arith.constant 7.812500e-03 : f32
    %273 = vector.broadcast %cst_118 : f32 to vector<4x1xf32>
    %274 = arith.mulf %272, %273 : vector<4x1xf32>
    %cst_119 = arith.constant dense<0.000000e+00> : vector<32x1xf32>
    %275 = tpu.matmul %8, %274, %cst_119 {dimension_numbers = #tpu.dot_dimension_numbers<[1], [0], [0], [1], [0, 0, 1, 1], [], []>} : vector<32x4xf32>, vector<4x1xf32>, vector<32x1xf32> -> vector<32x1xf32>
    %276 = vector.broadcast %275 : vector<32x1xf32> to vector<32x16xf32>
    %277 = arith.subf %269, %276 : vector<32x16xf32>
    %278 = arith.mulf %277, %277 : vector<32x16xf32>
    %cst_120 = arith.constant dense<0.000000e+00> : vector<32xf32>
    %279 = vector.multi_reduction <add>, %278, %cst_120 [1] : vector<32x16xf32> to vector<32xf32>
    %280 = vector.shape_cast %279 : vector<32xf32> to vector<32x1xf32>
    %cst_121 = arith.constant dense<0.000000e+00> : vector<4x1xf32>
    %281 = tpu.matmul %7, %280, %cst_121 {dimension_numbers = #tpu.dot_dimension_numbers<[1], [0], [0], [1], [0, 0, 1, 1], [], []>} : vector<4x32xf32>, vector<32x1xf32>, vector<4x1xf32> -> vector<4x1xf32>
    %cst_122 = arith.constant 7.812500e-03 : f32
    %282 = vector.broadcast %cst_122 : f32 to vector<4x1xf32>
    %283 = arith.mulf %281, %282 : vector<4x1xf32>
    %cst_123 = arith.constant 9.99999974E-6 : f32
    %284 = vector.broadcast %cst_123 : f32 to vector<4x1xf32>
    %285 = arith.addf %283, %284 : vector<4x1xf32>
    %286 = math.rsqrt %285 : vector<4x1xf32>
    %cst_124 = arith.constant dense<0.000000e+00> : vector<32x1xf32>
    %287 = tpu.matmul %8, %286, %cst_124 {dimension_numbers = #tpu.dot_dimension_numbers<[1], [0], [0], [1], [0, 0, 1, 1], [], []>} : vector<32x4xf32>, vector<4x1xf32>, vector<32x1xf32> -> vector<32x1xf32>
    %288 = arith.mulf %287, %5 : vector<32x1xf32>
    %289 = vector.broadcast %288 : vector<32x1xf32> to vector<32x16xf32>
    %290 = arith.mulf %277, %289 : vector<32x16xf32>
    %291 = vector.broadcast %6 : vector<32x1xf32> to vector<32x16xf32>
    %292 = arith.addf %290, %291 : vector<32x16xf32>
    %293 = vector.extract_strided_slice %244 {offsets = [0, 32], sizes = [32, 16], strides = [1, 1]} : vector<32x128xf32> to vector<32x16xf32>
    %cst_125 = arith.constant dense<0.000000e+00> : vector<32xf32>
    %294 = vector.multi_reduction <add>, %293, %cst_125 [1] : vector<32x16xf32> to vector<32xf32>
    %295 = vector.shape_cast %294 : vector<32xf32> to vector<32x1xf32>
    %cst_126 = arith.constant dense<0.000000e+00> : vector<4x1xf32>
    %296 = tpu.matmul %7, %295, %cst_126 {dimension_numbers = #tpu.dot_dimension_numbers<[1], [0], [0], [1], [0, 0, 1, 1], [], []>} : vector<4x32xf32>, vector<32x1xf32>, vector<4x1xf32> -> vector<4x1xf32>
    %cst_127 = arith.constant 7.812500e-03 : f32
    %297 = vector.broadcast %cst_127 : f32 to vector<4x1xf32>
    %298 = arith.mulf %296, %297 : vector<4x1xf32>
    %cst_128 = arith.constant dense<0.000000e+00> : vector<32x1xf32>
    %299 = tpu.matmul %8, %298, %cst_128 {dimension_numbers = #tpu.dot_dimension_numbers<[1], [0], [0], [1], [0, 0, 1, 1], [], []>} : vector<32x4xf32>, vector<4x1xf32>, vector<32x1xf32> -> vector<32x1xf32>
    %300 = vector.broadcast %299 : vector<32x1xf32> to vector<32x16xf32>
    %301 = arith.subf %293, %300 : vector<32x16xf32>
    %302 = arith.mulf %301, %301 : vector<32x16xf32>
    %cst_129 = arith.constant dense<0.000000e+00> : vector<32xf32>
    %303 = vector.multi_reduction <add>, %302, %cst_129 [1] : vector<32x16xf32> to vector<32xf32>
    %304 = vector.shape_cast %303 : vector<32xf32> to vector<32x1xf32>
    %cst_130 = arith.constant dense<0.000000e+00> : vector<4x1xf32>
    %305 = tpu.matmul %7, %304, %cst_130 {dimension_numbers = #tpu.dot_dimension_numbers<[1], [0], [0], [1], [0, 0, 1, 1], [], []>} : vector<4x32xf32>, vector<32x1xf32>, vector<4x1xf32> -> vector<4x1xf32>
    %cst_131 = arith.constant 7.812500e-03 : f32
    %306 = vector.broadcast %cst_131 : f32 to vector<4x1xf32>
    %307 = arith.mulf %305, %306 : vector<4x1xf32>
    %cst_132 = arith.constant 9.99999974E-6 : f32
    %308 = vector.broadcast %cst_132 : f32 to vector<4x1xf32>
    %309 = arith.addf %307, %308 : vector<4x1xf32>
    %310 = math.rsqrt %309 : vector<4x1xf32>
    %cst_133 = arith.constant dense<0.000000e+00> : vector<32x1xf32>
    %311 = tpu.matmul %8, %310, %cst_133 {dimension_numbers = #tpu.dot_dimension_numbers<[1], [0], [0], [1], [0, 0, 1, 1], [], []>} : vector<32x4xf32>, vector<4x1xf32>, vector<32x1xf32> -> vector<32x1xf32>
    %312 = arith.mulf %311, %5 : vector<32x1xf32>
    %313 = vector.broadcast %312 : vector<32x1xf32> to vector<32x16xf32>
    %314 = arith.mulf %301, %313 : vector<32x16xf32>
    %315 = vector.broadcast %6 : vector<32x1xf32> to vector<32x16xf32>
    %316 = arith.addf %314, %315 : vector<32x16xf32>
    %317 = vector.extract_strided_slice %244 {offsets = [0, 48], sizes = [32, 16], strides = [1, 1]} : vector<32x128xf32> to vector<32x16xf32>
    %cst_134 = arith.constant dense<0.000000e+00> : vector<32xf32>
    %318 = vector.multi_reduction <add>, %317, %cst_134 [1] : vector<32x16xf32> to vector<32xf32>
    %319 = vector.shape_cast %318 : vector<32xf32> to vector<32x1xf32>
    %cst_135 = arith.constant dense<0.000000e+00> : vector<4x1xf32>
    %320 = tpu.matmul %7, %319, %cst_135 {dimension_numbers = #tpu.dot_dimension_numbers<[1], [0], [0], [1], [0, 0, 1, 1], [], []>} : vector<4x32xf32>, vector<32x1xf32>, vector<4x1xf32> -> vector<4x1xf32>
    %cst_136 = arith.constant 7.812500e-03 : f32
    %321 = vector.broadcast %cst_136 : f32 to vector<4x1xf32>
    %322 = arith.mulf %320, %321 : vector<4x1xf32>
    %cst_137 = arith.constant dense<0.000000e+00> : vector<32x1xf32>
    %323 = tpu.matmul %8, %322, %cst_137 {dimension_numbers = #tpu.dot_dimension_numbers<[1], [0], [0], [1], [0, 0, 1, 1], [], []>} : vector<32x4xf32>, vector<4x1xf32>, vector<32x1xf32> -> vector<32x1xf32>
    %324 = vector.broadcast %323 : vector<32x1xf32> to vector<32x16xf32>
    %325 = arith.subf %317, %324 : vector<32x16xf32>
    %326 = arith.mulf %325, %325 : vector<32x16xf32>
    %cst_138 = arith.constant dense<0.000000e+00> : vector<32xf32>
    %327 = vector.multi_reduction <add>, %326, %cst_138 [1] : vector<32x16xf32> to vector<32xf32>
    %328 = vector.shape_cast %327 : vector<32xf32> to vector<32x1xf32>
    %cst_139 = arith.constant dense<0.000000e+00> : vector<4x1xf32>
    %329 = tpu.matmul %7, %328, %cst_139 {dimension_numbers = #tpu.dot_dimension_numbers<[1], [0], [0], [1], [0, 0, 1, 1], [], []>} : vector<4x32xf32>, vector<32x1xf32>, vector<4x1xf32> -> vector<4x1xf32>
    %cst_140 = arith.constant 7.812500e-03 : f32
    %330 = vector.broadcast %cst_140 : f32 to vector<4x1xf32>
    %331 = arith.mulf %329, %330 : vector<4x1xf32>
    %cst_141 = arith.constant 9.99999974E-6 : f32
    %332 = vector.broadcast %cst_141 : f32 to vector<4x1xf32>
    %333 = arith.addf %331, %332 : vector<4x1xf32>
    %334 = math.rsqrt %333 : vector<4x1xf32>
    %cst_142 = arith.constant dense<0.000000e+00> : vector<32x1xf32>
    %335 = tpu.matmul %8, %334, %cst_142 {dimension_numbers = #tpu.dot_dimension_numbers<[1], [0], [0], [1], [0, 0, 1, 1], [], []>} : vector<32x4xf32>, vector<4x1xf32>, vector<32x1xf32> -> vector<32x1xf32>
    %336 = arith.mulf %335, %5 : vector<32x1xf32>
    %337 = vector.broadcast %336 : vector<32x1xf32> to vector<32x16xf32>
    %338 = arith.mulf %325, %337 : vector<32x16xf32>
    %339 = vector.broadcast %6 : vector<32x1xf32> to vector<32x16xf32>
    %340 = arith.addf %338, %339 : vector<32x16xf32>
    %341 = vector.extract_strided_slice %244 {offsets = [0, 64], sizes = [32, 16], strides = [1, 1]} : vector<32x128xf32> to vector<32x16xf32>
    %cst_143 = arith.constant dense<0.000000e+00> : vector<32xf32>
    %342 = vector.multi_reduction <add>, %341, %cst_143 [1] : vector<32x16xf32> to vector<32xf32>
    %343 = vector.shape_cast %342 : vector<32xf32> to vector<32x1xf32>
    %cst_144 = arith.constant dense<0.000000e+00> : vector<4x1xf32>
    %344 = tpu.matmul %7, %343, %cst_144 {dimension_numbers = #tpu.dot_dimension_numbers<[1], [0], [0], [1], [0, 0, 1, 1], [], []>} : vector<4x32xf32>, vector<32x1xf32>, vector<4x1xf32> -> vector<4x1xf32>
    %cst_145 = arith.constant 7.812500e-03 : f32
    %345 = vector.broadcast %cst_145 : f32 to vector<4x1xf32>
    %346 = arith.mulf %344, %345 : vector<4x1xf32>
    %cst_146 = arith.constant dense<0.000000e+00> : vector<32x1xf32>
    %347 = tpu.matmul %8, %346, %cst_146 {dimension_numbers = #tpu.dot_dimension_numbers<[1], [0], [0], [1], [0, 0, 1, 1], [], []>} : vector<32x4xf32>, vector<4x1xf32>, vector<32x1xf32> -> vector<32x1xf32>
    %348 = vector.broadcast %347 : vector<32x1xf32> to vector<32x16xf32>
    %349 = arith.subf %341, %348 : vector<32x16xf32>
    %350 = arith.mulf %349, %349 : vector<32x16xf32>
    %cst_147 = arith.constant dense<0.000000e+00> : vector<32xf32>
    %351 = vector.multi_reduction <add>, %350, %cst_147 [1] : vector<32x16xf32> to vector<32xf32>
    %352 = vector.shape_cast %351 : vector<32xf32> to vector<32x1xf32>
    %cst_148 = arith.constant dense<0.000000e+00> : vector<4x1xf32>
    %353 = tpu.matmul %7, %352, %cst_148 {dimension_numbers = #tpu.dot_dimension_numbers<[1], [0], [0], [1], [0, 0, 1, 1], [], []>} : vector<4x32xf32>, vector<32x1xf32>, vector<4x1xf32> -> vector<4x1xf32>
    %cst_149 = arith.constant 7.812500e-03 : f32
    %354 = vector.broadcast %cst_149 : f32 to vector<4x1xf32>
    %355 = arith.mulf %353, %354 : vector<4x1xf32>
    %cst_150 = arith.constant 9.99999974E-6 : f32
    %356 = vector.broadcast %cst_150 : f32 to vector<4x1xf32>
    %357 = arith.addf %355, %356 : vector<4x1xf32>
    %358 = math.rsqrt %357 : vector<4x1xf32>
    %cst_151 = arith.constant dense<0.000000e+00> : vector<32x1xf32>
    %359 = tpu.matmul %8, %358, %cst_151 {dimension_numbers = #tpu.dot_dimension_numbers<[1], [0], [0], [1], [0, 0, 1, 1], [], []>} : vector<32x4xf32>, vector<4x1xf32>, vector<32x1xf32> -> vector<32x1xf32>
    %360 = arith.mulf %359, %5 : vector<32x1xf32>
    %361 = vector.broadcast %360 : vector<32x1xf32> to vector<32x16xf32>
    %362 = arith.mulf %349, %361 : vector<32x16xf32>
    %363 = vector.broadcast %6 : vector<32x1xf32> to vector<32x16xf32>
    %364 = arith.addf %362, %363 : vector<32x16xf32>
    %365 = vector.extract_strided_slice %244 {offsets = [0, 80], sizes = [32, 16], strides = [1, 1]} : vector<32x128xf32> to vector<32x16xf32>
    %cst_152 = arith.constant dense<0.000000e+00> : vector<32xf32>
    %366 = vector.multi_reduction <add>, %365, %cst_152 [1] : vector<32x16xf32> to vector<32xf32>
    %367 = vector.shape_cast %366 : vector<32xf32> to vector<32x1xf32>
    %cst_153 = arith.constant dense<0.000000e+00> : vector<4x1xf32>
    %368 = tpu.matmul %7, %367, %cst_153 {dimension_numbers = #tpu.dot_dimension_numbers<[1], [0], [0], [1], [0, 0, 1, 1], [], []>} : vector<4x32xf32>, vector<32x1xf32>, vector<4x1xf32> -> vector<4x1xf32>
    %cst_154 = arith.constant 7.812500e-03 : f32
    %369 = vector.broadcast %cst_154 : f32 to vector<4x1xf32>
    %370 = arith.mulf %368, %369 : vector<4x1xf32>
    %cst_155 = arith.constant dense<0.000000e+00> : vector<32x1xf32>
    %371 = tpu.matmul %8, %370, %cst_155 {dimension_numbers = #tpu.dot_dimension_numbers<[1], [0], [0], [1], [0, 0, 1, 1], [], []>} : vector<32x4xf32>, vector<4x1xf32>, vector<32x1xf32> -> vector<32x1xf32>
    %372 = vector.broadcast %371 : vector<32x1xf32> to vector<32x16xf32>
    %373 = arith.subf %365, %372 : vector<32x16xf32>
    %374 = arith.mulf %373, %373 : vector<32x16xf32>
    %cst_156 = arith.constant dense<0.000000e+00> : vector<32xf32>
    %375 = vector.multi_reduction <add>, %374, %cst_156 [1] : vector<32x16xf32> to vector<32xf32>
    %376 = vector.shape_cast %375 : vector<32xf32> to vector<32x1xf32>
    %cst_157 = arith.constant dense<0.000000e+00> : vector<4x1xf32>
    %377 = tpu.matmul %7, %376, %cst_157 {dimension_numbers = #tpu.dot_dimension_numbers<[1], [0], [0], [1], [0, 0, 1, 1], [], []>} : vector<4x32xf32>, vector<32x1xf32>, vector<4x1xf32> -> vector<4x1xf32>
    %cst_158 = arith.constant 7.812500e-03 : f32
    %378 = vector.broadcast %cst_158 : f32 to vector<4x1xf32>
    %379 = arith.mulf %377, %378 : vector<4x1xf32>
    %cst_159 = arith.constant 9.99999974E-6 : f32
    %380 = vector.broadcast %cst_159 : f32 to vector<4x1xf32>
    %381 = arith.addf %379, %380 : vector<4x1xf32>
    %382 = math.rsqrt %381 : vector<4x1xf32>
    %cst_160 = arith.constant dense<0.000000e+00> : vector<32x1xf32>
    %383 = tpu.matmul %8, %382, %cst_160 {dimension_numbers = #tpu.dot_dimension_numbers<[1], [0], [0], [1], [0, 0, 1, 1], [], []>} : vector<32x4xf32>, vector<4x1xf32>, vector<32x1xf32> -> vector<32x1xf32>
    %384 = arith.mulf %383, %5 : vector<32x1xf32>
    %385 = vector.broadcast %384 : vector<32x1xf32> to vector<32x16xf32>
    %386 = arith.mulf %373, %385 : vector<32x16xf32>
    %387 = vector.broadcast %6 : vector<32x1xf32> to vector<32x16xf32>
    %388 = arith.addf %386, %387 : vector<32x16xf32>
    %389 = vector.extract_strided_slice %244 {offsets = [0, 96], sizes = [32, 16], strides = [1, 1]} : vector<32x128xf32> to vector<32x16xf32>
    %cst_161 = arith.constant dense<0.000000e+00> : vector<32xf32>
    %390 = vector.multi_reduction <add>, %389, %cst_161 [1] : vector<32x16xf32> to vector<32xf32>
    %391 = vector.shape_cast %390 : vector<32xf32> to vector<32x1xf32>
    %cst_162 = arith.constant dense<0.000000e+00> : vector<4x1xf32>
    %392 = tpu.matmul %7, %391, %cst_162 {dimension_numbers = #tpu.dot_dimension_numbers<[1], [0], [0], [1], [0, 0, 1, 1], [], []>} : vector<4x32xf32>, vector<32x1xf32>, vector<4x1xf32> -> vector<4x1xf32>
    %cst_163 = arith.constant 7.812500e-03 : f32
    %393 = vector.broadcast %cst_163 : f32 to vector<4x1xf32>
    %394 = arith.mulf %392, %393 : vector<4x1xf32>
    %cst_164 = arith.constant dense<0.000000e+00> : vector<32x1xf32>
    %395 = tpu.matmul %8, %394, %cst_164 {dimension_numbers = #tpu.dot_dimension_numbers<[1], [0], [0], [1], [0, 0, 1, 1], [], []>} : vector<32x4xf32>, vector<4x1xf32>, vector<32x1xf32> -> vector<32x1xf32>
    %396 = vector.broadcast %395 : vector<32x1xf32> to vector<32x16xf32>
    %397 = arith.subf %389, %396 : vector<32x16xf32>
    %398 = arith.mulf %397, %397 : vector<32x16xf32>
    %cst_165 = arith.constant dense<0.000000e+00> : vector<32xf32>
    %399 = vector.multi_reduction <add>, %398, %cst_165 [1] : vector<32x16xf32> to vector<32xf32>
    %400 = vector.shape_cast %399 : vector<32xf32> to vector<32x1xf32>
    %cst_166 = arith.constant dense<0.000000e+00> : vector<4x1xf32>
    %401 = tpu.matmul %7, %400, %cst_166 {dimension_numbers = #tpu.dot_dimension_numbers<[1], [0], [0], [1], [0, 0, 1, 1], [], []>} : vector<4x32xf32>, vector<32x1xf32>, vector<4x1xf32> -> vector<4x1xf32>
    %cst_167 = arith.constant 7.812500e-03 : f32
    %402 = vector.broadcast %cst_167 : f32 to vector<4x1xf32>
    %403 = arith.mulf %401, %402 : vector<4x1xf32>
    %cst_168 = arith.constant 9.99999974E-6 : f32
    %404 = vector.broadcast %cst_168 : f32 to vector<4x1xf32>
    %405 = arith.addf %403, %404 : vector<4x1xf32>
    %406 = math.rsqrt %405 : vector<4x1xf32>
    %cst_169 = arith.constant dense<0.000000e+00> : vector<32x1xf32>
    %407 = tpu.matmul %8, %406, %cst_169 {dimension_numbers = #tpu.dot_dimension_numbers<[1], [0], [0], [1], [0, 0, 1, 1], [], []>} : vector<32x4xf32>, vector<4x1xf32>, vector<32x1xf32> -> vector<32x1xf32>
    %408 = arith.mulf %407, %5 : vector<32x1xf32>
    %409 = vector.broadcast %408 : vector<32x1xf32> to vector<32x16xf32>
    %410 = arith.mulf %397, %409 : vector<32x16xf32>
    %411 = vector.broadcast %6 : vector<32x1xf32> to vector<32x16xf32>
    %412 = arith.addf %410, %411 : vector<32x16xf32>
    %413 = vector.extract_strided_slice %244 {offsets = [0, 112], sizes = [32, 16], strides = [1, 1]} : vector<32x128xf32> to vector<32x16xf32>
    %cst_170 = arith.constant dense<0.000000e+00> : vector<32xf32>
    %414 = vector.multi_reduction <add>, %413, %cst_170 [1] : vector<32x16xf32> to vector<32xf32>
    %415 = vector.shape_cast %414 : vector<32xf32> to vector<32x1xf32>
    %cst_171 = arith.constant dense<0.000000e+00> : vector<4x1xf32>
    %416 = tpu.matmul %7, %415, %cst_171 {dimension_numbers = #tpu.dot_dimension_numbers<[1], [0], [0], [1], [0, 0, 1, 1], [], []>} : vector<4x32xf32>, vector<32x1xf32>, vector<4x1xf32> -> vector<4x1xf32>
    %cst_172 = arith.constant 7.812500e-03 : f32
    %417 = vector.broadcast %cst_172 : f32 to vector<4x1xf32>
    %418 = arith.mulf %416, %417 : vector<4x1xf32>
    %cst_173 = arith.constant dense<0.000000e+00> : vector<32x1xf32>
    %419 = tpu.matmul %8, %418, %cst_173 {dimension_numbers = #tpu.dot_dimension_numbers<[1], [0], [0], [1], [0, 0, 1, 1], [], []>} : vector<32x4xf32>, vector<4x1xf32>, vector<32x1xf32> -> vector<32x1xf32>
    %420 = vector.broadcast %419 : vector<32x1xf32> to vector<32x16xf32>
    %421 = arith.subf %413, %420 : vector<32x16xf32>
    %422 = arith.mulf %421, %421 : vector<32x16xf32>
    %cst_174 = arith.constant dense<0.000000e+00> : vector<32xf32>
    %423 = vector.multi_reduction <add>, %422, %cst_174 [1] : vector<32x16xf32> to vector<32xf32>
    %424 = vector.shape_cast %423 : vector<32xf32> to vector<32x1xf32>
    %cst_175 = arith.constant dense<0.000000e+00> : vector<4x1xf32>
    %425 = tpu.matmul %7, %424, %cst_175 {dimension_numbers = #tpu.dot_dimension_numbers<[1], [0], [0], [1], [0, 0, 1, 1], [], []>} : vector<4x32xf32>, vector<32x1xf32>, vector<4x1xf32> -> vector<4x1xf32>
    %cst_176 = arith.constant 7.812500e-03 : f32
    %426 = vector.broadcast %cst_176 : f32 to vector<4x1xf32>
    %427 = arith.mulf %425, %426 : vector<4x1xf32>
    %cst_177 = arith.constant 9.99999974E-6 : f32
    %428 = vector.broadcast %cst_177 : f32 to vector<4x1xf32>
    %429 = arith.addf %427, %428 : vector<4x1xf32>
    %430 = math.rsqrt %429 : vector<4x1xf32>
    %cst_178 = arith.constant dense<0.000000e+00> : vector<32x1xf32>
    %431 = tpu.matmul %8, %430, %cst_178 {dimension_numbers = #tpu.dot_dimension_numbers<[1], [0], [0], [1], [0, 0, 1, 1], [], []>} : vector<32x4xf32>, vector<4x1xf32>, vector<32x1xf32> -> vector<32x1xf32>
    %432 = arith.mulf %431, %5 : vector<32x1xf32>
    %433 = vector.broadcast %432 : vector<32x1xf32> to vector<32x16xf32>
    %434 = arith.mulf %421, %433 : vector<32x16xf32>
    %435 = vector.broadcast %6 : vector<32x1xf32> to vector<32x16xf32>
    %436 = arith.addf %434, %435 : vector<32x16xf32>
    %437 = tpu.concatenate %268, %292, %316, %340, %364, %388, %412, %436 in 1 : vector<32x16xf32>, vector<32x16xf32>, vector<32x16xf32>, vector<32x16xf32>, vector<32x16xf32>, vector<32x16xf32>, vector<32x16xf32>, vector<32x16xf32> -> vector<32x128xf32>
    %c0_179 = arith.constant 0 : index
    %c0_180 = arith.constant 0 : index
    %438 = vector.load %arg1[%c0_179, %c0_180] : memref<32x128xf32, #tpu.memory_space<vmem>>, vector<32x128xf32>
    %439 = arith.addf %437, %438 : vector<32x128xf32>
    %cst_181 = arith.constant 0.000000e+00 : f32
    %440 = vector.broadcast %cst_181 : f32 to vector<32x128xf32>
    %441 = arith.maximumf %439, %440 : vector<32x128xf32>
    %c0_182 = arith.constant 0 : index
    %c0_183 = arith.constant 0 : index
    %442 = vector.load %arg9[%c0_182, %c0_183] : memref<32x128xf32, #tpu.memory_space<vmem>>, vector<32x128xf32>
    tpu.vector_store %arg9[%c0_182, %c0_183], %441 {strides = array<i32>} : memref<32x128xf32, #tpu.memory_space<vmem>>, vector<32x128xf32>,
    return
  }
  func.func @transform_0(%arg0: i32) -> (i32, i32) {
    %c0_i32 = arith.constant 0 : i32
    %c0_i32_0 = arith.constant 0 : i32
    return %c0_i32, %arg0 : i32, i32
  }
  func.func @transform_1(%arg0: i32) -> (i32, i32, i32) {
    %c0_i32 = arith.constant 0 : i32
    %c0_i32_0 = arith.constant 0 : i32
    %c0_i32_1 = arith.constant 0 : i32
    %c0_i32_2 = arith.constant 0 : i32
    return %c0_i32, %c0_i32_0, %c0_i32_1 : i32, i32, i32
  }
  func.func @transform_2(%arg0: i32) -> (i32, i32, i32) {
    %c0_i32 = arith.constant 0 : i32
    %c0_i32_0 = arith.constant 0 : i32
    %c0_i32_1 = arith.constant 0 : i32
    %c0_i32_2 = arith.constant 0 : i32
    return %c0_i32, %c0_i32_0, %c0_i32_1 : i32, i32, i32
  }
  func.func @transform_3(%arg0: i32) -> (i32, i32) {
    %c0_i32 = arith.constant 0 : i32
    %c0_i32_0 = arith.constant 0 : i32
    %c0_i32_1 = arith.constant 0 : i32
    return %c0_i32, %c0_i32_0 : i32, i32
  }
  func.func @transform_4(%arg0: i32) -> (i32, i32) {
    %c0_i32 = arith.constant 0 : i32
    %c0_i32_0 = arith.constant 0 : i32
    %c0_i32_1 = arith.constant 0 : i32
    return %c0_i32, %c0_i32_0 : i32, i32
  }
  func.func @transform_5(%arg0: i32) -> (i32, i32) {
    %c0_i32 = arith.constant 0 : i32
    %c0_i32_0 = arith.constant 0 : i32
    %c0_i32_1 = arith.constant 0 : i32
    return %c0_i32, %c0_i32_0 : i32, i32
  }
  func.func @transform_6(%arg0: i32) -> (i32, i32) {
    %c0_i32 = arith.constant 0 : i32
    %c0_i32_0 = arith.constant 0 : i32
    %c0_i32_1 = arith.constant 0 : i32
    return %c0_i32, %c0_i32_0 : i32, i32
  }
  func.func @transform_7(%arg0: i32) -> (i32, i32) {
    %c0_i32 = arith.constant 0 : i32
    %c0_i32_0 = arith.constant 0 : i32
    %c0_i32_1 = arith.constant 0 : i32
    return %c0_i32, %c0_i32_0 : i32, i32
  }
  func.func @transform_8(%arg0: i32) -> (i32, i32) {
    %c0_i32 = arith.constant 0 : i32
    %c0_i32_0 = arith.constant 0 : i32
    return %c0_i32, %arg0 : i32, i32
  }
}

</mosaic_0001>

<llo_original>
// kernel: tpu_custom_call.1
$region0: #{tpu_custom_call.1}
  #allocation0 [shape = 'u32[]', space=smem, size = 0x4, offset = 0x4, fixed_abs, tag = 'smem constant byte address 0x4 - core index']
  #allocation1 [shape = 'u32[144,128]{1,0:T(1,128)}', space=vmem, size = 0x12000, scoped, tag = 'internal scratch']
  %s0 = inlined_call_operand.vmem [shape: f32[32,128], index: 0, kind: input, shape index: {}]
  %s1 = inlined_call_operand.hbm [shape: f32[3,32,32], index: 1, kind: input, shape index: {}]
  %s2 = inlined_call_operand.hbm [shape: f32[3,32,32], index: 2, kind: input, shape index: {}]
  %s3 = inlined_call_operand.vmem [shape: f32[32,8], index: 3, kind: input, shape index: {}]
  %s4 = inlined_call_operand.vmem [shape: f32[4,32], index: 4, kind: input, shape index: {}]
  %s5 = inlined_call_operand.vmem [shape: f32[32,4], index: 5, kind: input, shape index: {}]
  %s6 = inlined_call_operand.vmem [shape: f32[1,128], index: 6, kind: input, shape index: {}]
  %s7 = inlined_call_operand.vmem [shape: f32[1,128], index: 7, kind: input, shape index: {}]
  %s8 = inlined_call_operand.hbm [shape: f32[32,128], index: 8, kind: output, shape index: {}]
  %s9 = sld [smem:[#allocation0]]
  $region50: #{tpu_custom_call.1} parent=0
    _
  %s11 = ssub.s32 1, %s9
  %s12 = scalar_select 0, %s11, %s9
  $region1: #{tpu_custom_call.1} parent=0
    #allocation2 [shape = 'u8[49152]{0}', space=vmem, size = 0xc000, scoped, tag = 'input window, operand 1, single buffered']
    #allocation3 [shape = 's32[1]{0}', space=sflag, size = 0x4, scoped, tag = 'scoped memory for tpu_custom_call.1']
    #allocation4 [shape = 's32[1]{0}', space=sflag, size = 0x4, scoped, tag = 'scoped memory for tpu_custom_call.1']
    #allocation5 [shape = 'u8[49152]{0}', space=vmem, size = 0xc000, scoped, tag = 'input window, operand 2, single buffered']
    #allocation6 [shape = 's32[1]{0}', space=sflag, size = 0x4, scoped, tag = 'scoped memory for tpu_custom_call.1']
    #allocation7 [shape = 'u8[16384]{0}', space=vmem, size = 0x4000, scoped, tag = 'output window, operand 0, single buffered']
    %13 = vsyncpa [#allocation3], 0
    %14 = vsyncpa [#allocation6], 0
    %15 = vsyncpa [#allocation4], 0
    // Predicated region
    $region2: #{tpu_custom_call.1} parent=1 // pred_check
      _
    $region3: #{tpu_custom_call.1} parent=1 // pred_check_branch
      %17 = sbr.rel (0) target = $region5
    $region4: #{tpu_custom_call.1} parent=1 // pred_region
      _
    $region5: #{tpu_custom_call.1} parent=1 // pred_fallthru
      _
    // Predicated region
    $region6: #{tpu_custom_call.1} parent=1 // pred_check
      _
    $region7: #{tpu_custom_call.1} parent=1 // pred_check_branch
      %19 = sbr.rel (0) target = $region9
    $region8: #{tpu_custom_call.1} parent=1 // pred_region
      %s21 = ssub.s32 1536, 1536
      %22 = vsyncadd [#allocation3], %s21
      %s23 = sshll.u32 [#allocation2], 4
      %s24 = int_to_ptr.vmem [resolvable:$true] %s23
      %29 = dma.hbm_to_vmem [thread:$0]  %s1, 1536, %s24, [#allocation3], 128, 128, 8
    $region9: #{tpu_custom_call.1} parent=1 // pred_fallthru
      _
    // Predicated region
    $region10: #{tpu_custom_call.1} parent=1 // pred_check
      _
    $region11: #{tpu_custom_call.1} parent=1 // pred_check_branch
      %31 = sbr.rel (0) target = $region13
    $region12: #{tpu_custom_call.1} parent=1 // pred_region
      %s33 = ssub.s32 1536, 1536
      %34 = vsyncadd [#allocation6], %s33
      %s35 = sshll.u32 [#allocation5], 4
      %s36 = int_to_ptr.vmem [resolvable:$true] %s35
      %41 = dma.hbm_to_vmem [thread:$0]  %s2, 1536, %s36, [#allocation6], 128, 128, 8
    $region13: #{tpu_custom_call.1} parent=1 // pred_fallthru
      _
    // Predicated region
    $region14: #{tpu_custom_call.1} parent=1 // pred_check
      _
    $region15: #{tpu_custom_call.1} parent=1 // pred_check_branch
      %43 = sbr.rel (0) target = $region17
    $region16: #{tpu_custom_call.1} parent=1 // pred_region
      _
    $region17: #{tpu_custom_call.1} parent=1 // pred_fallthru
      _
    // Predicated region
    $region18: #{tpu_custom_call.1} parent=1 // pred_check
      _
    $region19: #{tpu_custom_call.1} parent=1 // pred_check_branch
      %45 = sbr.rel (0) target = $region21
    $region20: #{tpu_custom_call.1} parent=1 // pred_region
      _
    $region21: #{tpu_custom_call.1} parent=1 // pred_fallthru
      _
    // Predicated region
    $region22: #{tpu_custom_call.1} parent=1 // pred_check
      _
    $region23: #{tpu_custom_call.1} parent=1 // pred_check_branch
      %47 = sbr.rel (0) target = $region25
    $region24: #{tpu_custom_call.1} parent=1 // pred_region
      _
    $region25: #{tpu_custom_call.1} parent=1 // pred_fallthru
      _
    // Predicated region
    $region26: #{tpu_custom_call.1} parent=1 // pred_check
      _
    $region27: #{tpu_custom_call.1} parent=1 // pred_check_branch
      %49 = sbr.rel (0) target = $region29
    $region28: #{tpu_custom_call.1} parent=1 // pred_region
      _
    $region29: #{tpu_custom_call.1} parent=1 // pred_fallthru
      _
    // Predicated region
    $region30: #{tpu_custom_call.1} parent=1 // pred_check
      _
    $region31: #{tpu_custom_call.1} parent=1 // pred_check_branch
      %51 = sbr.rel (0) target = $region33
    $region32: #{tpu_custom_call.1} parent=1 // pred_region
      _
    $region33: #{tpu_custom_call.1} parent=1 // pred_fallthru
      _
    // Predicated region
    $region34: #{tpu_custom_call.1} parent=1 // pred_check
      _
    $region35: #{tpu_custom_call.1} parent=1 // pred_check_branch
      %53 = sbr.rel (0) target = $region37
    $region36: #{tpu_custom_call.1} parent=1 // pred_region
      %54 = dma.done [#allocation3], 1536
    $region37: #{tpu_custom_call.1} parent=1 // pred_fallthru
      _
    // Predicated region
    $region38: #{tpu_custom_call.1} parent=1 // pred_check
      _
    $region39: #{tpu_custom_call.1} parent=1 // pred_check_branch
      %56 = sbr.rel (0) target = $region41
    $region40: #{tpu_custom_call.1} parent=1 // pred_region
      %57 = dma.done [#allocation6], 1536
    $region41: #{tpu_custom_call.1} parent=1 // pred_fallthru
      _
    %v58 = vld [vmem:[%s3] sm:$0xff]
    %v59 = vld [vmem:[%s3 + $0x8] sm:$0xff]
    %v60 = vld [vmem:[%s3 + $0x10] sm:$0xff]
    %v61 = vld [vmem:[%s3 + $0x18] sm:$0xff]
    %v62 = vld [vmem:[%s4] sm:$0xf]
    %v63 = vld [vmem:[%s5] sm:$0xff]
    %v64 = vld [vmem:[%s5 + $0x8] sm:$0xff]
    %v65 = vld [vmem:[%s5 + $0x10] sm:$0xff]
    %v66 = vld [vmem:[%s5 + $0x18] sm:$0xff]
    %v67 = vld [vmem:[%s6] sm:$0x1]
    %v68 = vld [vmem:[%s7] sm:$0x1]
    %v69 = vld [vmem:[%s0] sm:$0xff]
    %v70 = vld [vmem:[%s0 + $0x8] sm:$0xff]
    %v71 = vld [vmem:[%s0 + $0x10] sm:$0xff]
    %v72 = vld [vmem:[%s0 + $0x18] sm:$0xff]
    %73 = vrot.lane.b32.xlu0 %v69, 1
    %v74 = vpop.permute.xlu0 %73
    %75 = vrot.lane.b32.xlu0 %v70, 1
    %v76 = vpop.permute.xlu0 %75
    %77 = vrot.lane.b32.xlu0 %v71, 1
    %v78 = vpop.permute.xlu0 %77
    %79 = vrot.lane.b32.xlu0 %v72, 1
    %v80 = vpop.permute.xlu0 %79
    %v82 = vlaneseq
    %v83 = vshrl.u32 %v82, 7
    %v84 = vsub.s32 0, %v83
    %v85 = vrot.slane %v67, %v84
    %v87 = vmul.f32 %v74, %v85
    %v88 = vmul.f32 %v76, %v85
    %v89 = vmul.f32 %v78, %v85
    %v90 = vmul.f32 %v80, %v85
    %91 = vrot.lane.b32.xlu0 %v69, 127
    %v92 = vpop.permute.xlu0 %91
    %93 = vrot.lane.b32.xlu0 %v70, 127
    %v94 = vpop.permute.xlu0 %93
    %95 = vrot.lane.b32.xlu0 %v71, 127
    %v96 = vpop.permute.xlu0 %95
    %97 = vrot.lane.b32.xlu0 %v72, 127
    %v98 = vpop.permute.xlu0 %97
    %v100 = vlaneseq
    %v101 = vshrl.u32 %v100, 7
    %v102 = vsub.s32 0, %v101
    %v103 = vrot.slane %v68, %v102
    %v105 = vmul.f32 %v92, %v103
    %v106 = vmul.f32 %v94, %v103
    %v107 = vmul.f32 %v96, %v103
    %v108 = vmul.f32 %v98, %v103
    %v109 = vld [vmem:[#allocation2] sm:$0xff]
    %v110 = vld [vmem:[#allocation2 + $0x8] sm:$0xff]
    %v111 = vld [vmem:[#allocation2 + $0x10] sm:$0xff]
    %v112 = vld [vmem:[#allocation2 + $0x18] sm:$0xff]
    %s113 = scalar_lea.vmem [#allocation2], 32
    %v114 = vld [vmem:[%s113] sm:$0xff]
    %v115 = vld [vmem:[%s113 + $0x8] sm:$0xff]
    %v116 = vld [vmem:[%s113 + $0x10] sm:$0xff]
    %v117 = vld [vmem:[%s113 + $0x18] sm:$0xff]
    %vm118 = vcmask 261120
    %v120 = vsel %vm118, %v114, 0
    %v123 = vsel %vm118, %v115, 0
    %v126 = vsel %vm118, %v116, 0
    %v129 = vsel %vm118, %v117, 0
    %131 = vmatprep.subr.mxu0 0.0
    %132 = vmatpush1.msra.mxu0 0.0
    %133 = vmatprep.subr.mxu0 0.0
    %134 = vmatpush1.msra.mxu0 0.0
    %135 = vmatprep.subr.mxu0 0.0
    %136 = vmatpush1.msra.mxu0 0.0
    %137 = vmatprep.subr.mxu0 0.0
    %138 = vmatpush1.msra.mxu0 0.0
    %139 = vmatprep.subr.mxu0 0.0
    %140 = vmatpush1.msra.mxu0 0.0
    %141 = vmatprep.subr.mxu0 0.0
    %142 = vmatpush1.msra.mxu0 0.0
    %143 = vmatprep.subr.mxu0 0.0
    %144 = vmatpush1.msra.mxu0 0.0
    %145 = vmatprep.subr.mxu0 0.0
    %146 = vmatpush1.msra.mxu0 0.0
    %147 = vmatprep.subr.mxu0 0.0
    %148 = vmatpush1.msra.mxu0 0.0
    %149 = vmatprep.subr.mxu0 0.0
    %150 = vmatpush1.msra.mxu0 0.0
    %151 = vmatprep.subr.mxu0 0.0
    %152 = vmatpush1.msra.mxu0 0.0
    %153 = vmatprep.subr.mxu0 0.0
    %154 = vmatpush1.msra.mxu0 0.0
    %155 = vmatprep.subr.mxu0 0.0
    %156 = vmatpush1.msra.mxu0 %v72
    %157 = vmatprep.subr.mxu0 0.0
    %158 = vmatpush1.msra.mxu0 %v71
    %159 = vmatprep.subr.mxu0 0.0
    %160 = vmatpush1.msra.mxu0 %v70
    %161 = vmatprep.subr.mxu0 0.0
    %162 = vmatpush1.msra.mxu0 %v69
    %163 = vmatprep.subr.mxu0 0.0
    %164 = vmatpush2.msra.mxu0 0.0
    %165 = vmatprep.subr.mxu0 0.0
    %166 = vmatpush2.msra.mxu0 0.0
    %167 = vmatprep.subr.mxu0 0.0
    %168 = vmatpush2.msra.mxu0 0.0
    %169 = vmatprep.subr.mxu0 0.0
    %170 = vmatpush2.msra.mxu0 0.0
    %171 = vmatprep.subr.mxu0 0.0
    %172 = vmatpush2.msra.mxu0 0.0
    %173 = vmatprep.subr.mxu0 0.0
    %174 = vmatpush2.msra.mxu0 0.0
    %175 = vmatprep.subr.mxu0 0.0
    %176 = vmatpush2.msra.mxu0 0.0
    %177 = vmatprep.subr.mxu0 0.0
    %178 = vmatpush2.msra.mxu0 0.0
    %179 = vmatprep.subr.mxu0 0.0
    %180 = vmatpush2.msra.mxu0 0.0
    %181 = vmatprep.subr.mxu0 0.0
    %182 = vmatpush2.msra.mxu0 0.0
    %183 = vmatprep.subr.mxu0 0.0
    %184 = vmatpush2.msra.mxu0 0.0
    %185 = vmatprep.subr.mxu0 0.0
    %186 = vmatpush2.msra.mxu0 0.0
    %187 = vmatprep.subr.mxu0 0.0
    %188 = vmatpush2.msra.mxu0 0.0
    %189 = vmatprep.subr.mxu0 0.0
    %190 = vmatpush2.msra.mxu0 0.0
    %191 = vmatprep.subr.mxu0 0.0
    %192 = vmatpush2.msra.mxu0 0.0
    %193 = vmatprep.subr.mxu0 0.0
    %194 = vmatpush2.msra.mxu0 0.0
    %195 = vmatprep.mubr.f32.mxu0 0.0
    %196 = vmatmul.mubr.f32.gmra.mxu0 %v120
    %v197 = vpop.f32.mrf.mxu0
    %v198 = vadd.f32 0.0, %v197
    %v199 = vpop.f32.mrf.mxu0
    %200 = vmatprep.mubr.f32.mxu0 0.0
    %201 = vmatmul.mubr.f32.gmra.mxu0 %v123
    %v202 = vpop.f32.mrf.mxu0
    %v203 = vadd.f32 0.0, %v202
    %v204 = vpop.f32.mrf.mxu0
    %205 = vmatprep.mubr.f32.mxu0 0.0
    %206 = vmatmul.mubr.f32.gmra.mxu0 %v126
    %v207 = vpop.f32.mrf.mxu0
    %v208 = vadd.f32 0.0, %v207
    %v209 = vpop.f32.mrf.mxu0
    %210 = vmatprep.mubr.f32.mxu0 0.0
    %211 = vmatmul.mubr.f32.gmra.mxu0 %v129
    %v212 = vpop.f32.mrf.mxu0
    %v213 = vadd.f32 0.0, %v212
    %v214 = vpop.f32.mrf.mxu0
    %215 = vdwg.mxu0
    %v217 = vsel %vm118, %v109, 0
    %v220 = vsel %vm118, %v110, 0
    %v223 = vsel %vm118, %v111, 0
    %v226 = vsel %vm118, %v112, 0
    %228 = vmatprep.subr.mxu0 0.0
    %229 = vmatpush1.msra.mxu0 0.0
    %230 = vmatprep.subr.mxu0 0.0
    %231 = vmatpush1.msra.mxu0 0.0
    %232 = vmatprep.subr.mxu0 0.0
    %233 = vmatpush1.msra.mxu0 0.0
    %234 = vmatprep.subr.mxu0 0.0
    %235 = vmatpush1.msra.mxu0 0.0
    %236 = vmatprep.subr.mxu0 0.0
    %237 = vmatpush1.msra.mxu0 0.0
    %238 = vmatprep.subr.mxu0 0.0
    %239 = vmatpush1.msra.mxu0 0.0
    %240 = vmatprep.subr.mxu0 0.0
    %241 = vmatpush1.msra.mxu0 0.0
    %242 = vmatprep.subr.mxu0 0.0
    %243 = vmatpush1.msra.mxu0 0.0
    %244 = vmatprep.subr.mxu0 0.0
    %245 = vmatpush1.msra.mxu0 0.0
    %246 = vmatprep.subr.mxu0 0.0
    %247 = vmatpush1.msra.mxu0 0.0
    %248 = vmatprep.subr.mxu0 0.0
    %249 = vmatpush1.msra.mxu0 0.0
    %250 = vmatprep.subr.mxu0 0.0
    %251 = vmatpush1.msra.mxu0 0.0
    %252 = vmatprep.subr.mxu0 0.0
    %253 = vmatpush1.msra.mxu0 %v90
    %254 = vmatprep.subr.mxu0 0.0
    %255 = vmatpush1.msra.mxu0 %v89
    %256 = vmatprep.subr.mxu0 0.0
    %257 = vmatpush1.msra.mxu0 %v88
    %258 = vmatprep.subr.mxu0 0.0
    %259 = vmatpush1.msra.mxu0 %v87
    %260 = vmatprep.subr.mxu0 0.0
    %261 = vmatpush2.msra.mxu0 0.0
    %262 = vmatprep.subr.mxu0 0.0
    %263 = vmatpush2.msra.mxu0 0.0
    %264 = vmatprep.subr.mxu0 0.0
    %265 = vmatpush2.msra.mxu0 0.0
    %266 = vmatprep.subr.mxu0 0.0
    %267 = vmatpush2.msra.mxu0 0.0
    %268 = vmatprep.subr.mxu0 0.0
    %269 = vmatpush2.msra.mxu0 0.0
    %270 = vmatprep.subr.mxu0 0.0
    %271 = vmatpush2.msra.mxu0 0.0
    %272 = vmatprep.subr.mxu0 0.0
    %273 = vmatpush2.msra.mxu0 0.0
    %274 = vmatprep.subr.mxu0 0.0
    %275 = vmatpush2.msra.mxu0 0.0
    %276 = vmatprep.subr.mxu0 0.0
    %277 = vmatpush2.msra.mxu0 0.0
    %278 = vmatprep.subr.mxu0 0.0
    %279 = vmatpush2.msra.mxu0 0.0
    %280 = vmatprep.subr.mxu0 0.0
    %281 = vmatpush2.msra.mxu0 0.0
    %282 = vmatprep.subr.mxu0 0.0
    %283 = vmatpush2.msra.mxu0 0.0
    %284 = vmatprep.subr.mxu0 0.0
    %285 = vmatpush2.msra.mxu0 0.0
    %286 = vmatprep.subr.mxu0 0.0
    %287 = vmatpush2.msra.mxu0 0.0
    %288 = vmatprep.subr.mxu0 0.0
    %289 = vmatpush2.msra.mxu0 0.0
    %290 = vmatprep.subr.mxu0 0.0
    %291 = vmatpush2.msra.mxu0 0.0
    %292 = vmatprep.mubr.f32.mxu0 0.0
    %293 = vmatmul.mubr.f32.gmra.mxu0 %v217
    %v294 = vpop.f32.mrf.mxu0
    %v295 = vadd.f32 %v198, %v294
    %v296 = vpop.f32.mrf.mxu0
    %297 = vmatprep.mubr.f32.mxu0 0.0
    %298 = vmatmul.mubr.f32.gmra.mxu0 %v220
    %v299 = vpop.f32.mrf.mxu0
    %v300 = vadd.f32 %v203, %v299
    %v301 = vpop.f32.mrf.mxu0
    %302 = vmatprep.mubr.f32.mxu0 0.0
    %303 = vmatmul.mubr.f32.gmra.mxu0 %v223
    %v304 = vpop.f32.mrf.mxu0
    %v305 = vadd.f32 %v208, %v304
    %v306 = vpop.f32.mrf.mxu0
    %307 = vmatprep.mubr.f32.mxu0 0.0
    %308 = vmatmul.mubr.f32.gmra.mxu0 %v226
    %v309 = vpop.f32.mrf.mxu0
    %v310 = vadd.f32 %v213, %v309
    %v311 = vpop.f32.mrf.mxu0
    %312 = vdwg.mxu0
    %s313 = scalar_lea.vmem [#allocation2], 64
    %v314 = vld [vmem:[%s313] sm:$0xff]
    %v315 = vld [vmem:[%s313 + $0x8] sm:$0xff]
    %v316 = vld [vmem:[%s313 + $0x10] sm:$0xff]
    %v317 = vld [vmem:[%s313 + $0x18] sm:$0xff]
    %v319 = vsel %vm118, %v314, 0
    %v322 = vsel %vm118, %v315, 0
    %v325 = vsel %vm118, %v316, 0
    %v328 = vsel %vm118, %v317, 0
    %330 = vmatprep.subr.mxu0 0.0
    %331 = vmatpush1.msra.mxu0 0.0
    %332 = vmatprep.subr.mxu0 0.0
    %333 = vmatpush1.msra.mxu0 0.0
    %334 = vmatprep.subr.mxu0 0.0
    %335 = vmatpush1.msra.mxu0 0.0
    %336 = vmatprep.subr.mxu0 0.0
    %337 = vmatpush1.msra.mxu0 0.0
    %338 = vmatprep.subr.mxu0 0.0
    %339 = vmatpush1.msra.mxu0 0.0
    %340 = vmatprep.subr.mxu0 0.0
    %341 = vmatpush1.msra.mxu0 0.0
    %342 = vmatprep.subr.mxu0 0.0
    %343 = vmatpush1.msra.mxu0 0.0
    %344 = vmatprep.subr.mxu0 0.0
    %345 = vmatpush1.msra.mxu0 0.0
    %346 = vmatprep.subr.mxu0 0.0
    %347 = vmatpush1.msra.mxu0 0.0
    %348 = vmatprep.subr.mxu0 0.0
    %349 = vmatpush1.msra.mxu0 0.0
    %350 = vmatprep.subr.mxu0 0.0
    %351 = vmatpush1.msra.mxu0 0.0
    %352 = vmatprep.subr.mxu0 0.0
    %353 = vmatpush1.msra.mxu0 0.0
    %354 = vmatprep.subr.mxu0 0.0
    %355 = vmatpush1.msra.mxu0 %v108
    %356 = vmatprep.subr.mxu0 0.0
    %357 = vmatpush1.msra.mxu0 %v107
    %358 = vmatprep.subr.mxu0 0.0
    %359 = vmatpush1.msra.mxu0 %v106
    %360 = vmatprep.subr.mxu0 0.0
    %361 = vmatpush1.msra.mxu0 %v105
    %362 = vmatprep.subr.mxu0 0.0
    %363 = vmatpush2.msra.mxu0 0.0
    %364 = vmatprep.subr.mxu0 0.0
    %365 = vmatpush2.msra.mxu0 0.0
    %366 = vmatprep.subr.mxu0 0.0
    %367 = vmatpush2.msra.mxu0 0.0
    %368 = vmatprep.subr.mxu0 0.0
    %369 = vmatpush2.msra.mxu0 0.0
    %370 = vmatprep.subr.mxu0 0.0
    %371 = vmatpush2.msra.mxu0 0.0
    %372 = vmatprep.subr.mxu0 0.0
    %373 = vmatpush2.msra.mxu0 0.0
    %374 = vmatprep.subr.mxu0 0.0
    %375 = vmatpush2.msra.mxu0 0.0
    %376 = vmatprep.subr.mxu0 0.0
    %377 = vmatpush2.msra.mxu0 0.0
    %378 = vmatprep.subr.mxu0 0.0
    %379 = vmatpush2.msra.mxu0 0.0
    %380 = vmatprep.subr.mxu0 0.0
    %381 = vmatpush2.msra.mxu0 0.0
    %382 = vmatprep.subr.mxu0 0.0
    %383 = vmatpush2.msra.mxu0 0.0
    %384 = vmatprep.subr.mxu0 0.0
    %385 = vmatpush2.msra.mxu0 0.0
    %386 = vmatprep.subr.mxu0 0.0
    %387 = vmatpush2.msra.mxu0 0.0
    %388 = vmatprep.subr.mxu0 0.0
    %389 = vmatpush2.msra.mxu0 0.0
    %390 = vmatprep.subr.mxu0 0.0
    %391 = vmatpush2.msra.mxu0 0.0
    %392 = vmatprep.subr.mxu0 0.0
    %393 = vmatpush2.msra.mxu0 0.0
    %394 = vmatprep.mubr.f32.mxu0 0.0
    %395 = vmatmul.mubr.f32.gmra.mxu0 %v319
    %v396 = vpop.f32.mrf.mxu0
    %v397 = vadd.f32 0.0, %v396
    %v398 = vpop.f32.mrf.mxu0
    %399 = vmatprep.mubr.f32.mxu0 0.0
    %400 = vmatmul.mubr.f32.gmra.mxu0 %v322
    %v401 = vpop.f32.mrf.mxu0
    %v402 = vadd.f32 0.0, %v401
    %v403 = vpop.f32.mrf.mxu0
    %404 = vmatprep.mubr.f32.mxu0 0.0
    %405 = vmatmul.mubr.f32.gmra.mxu0 %v325
    %v406 = vpop.f32.mrf.mxu0
    %v407 = vadd.f32 0.0, %v406
    %v408 = vpop.f32.mrf.mxu0
    %409 = vmatprep.mubr.f32.mxu0 0.0
    %410 = vmatmul.mubr.f32.gmra.mxu0 %v328
    %v411 = vpop.f32.mrf.mxu0
    %v412 = vadd.f32 0.0, %v411
    %v413 = vpop.f32.mrf.mxu0
    %414 = vdwg.mxu0
    %v415 = vadd.f32 %v295, %v397
    %v416 = vadd.f32 %v300, %v402
    %v417 = vadd.f32 %v305, %v407
    %v418 = vadd.f32 %v310, %v412
    %420 = vset.pattern.permute.xlu0 0
    %421 = vperm.xlu0 %420, %v58
    %v422 = vpop.permute.xlu0 %421
    %425 = vset.pattern.permute.xlu0 0
    %426 = vperm.xlu0 %425, %v59
    %v427 = vpop.permute.xlu0 %426
    %430 = vset.pattern.permute.xlu0 0
    %431 = vperm.xlu0 %430, %v60
    %v432 = vpop.permute.xlu0 %431
    %435 = vset.pattern.permute.xlu0 0
    %436 = vperm.xlu0 %435, %v61
    %v437 = vpop.permute.xlu0 %436
    %v439 = vadd.f32 %v415, %v422
    %v440 = vadd.f32 %v416, %v427
    %v441 = vadd.f32 %v417, %v432
    %v442 = vadd.f32 %v418, %v437
    %vm443 = vcmask 130048
    %v444 = vsel %vm443, %v439, 0.0
    %445 = vadd.xlane.f32.xlu0 %v444
    %v446 = vpop.xlane.xlu0 %445
    %v447 = vsel %vm443, %v440, 0.0
    %448 = vadd.xlane.f32.xlu0 %v447
    %v449 = vpop.xlane.xlu0 %448
    %v450 = vsel %vm443, %v441, 0.0
    %451 = vadd.xlane.f32.xlu0 %v450
    %v452 = vpop.xlane.xlu0 %451
    %v453 = vsel %vm443, %v442, 0.0
    %454 = vadd.xlane.f32.xlu0 %v453
    %v455 = vpop.xlane.xlu0 %454
    %v457 = vsel %vm118, %v62, 0
    %459 = vmatprep.subr.mxu0 0.0
    %460 = vmatpush1.msra.mxu0 0.0
    %461 = vmatprep.subr.mxu0 0.0
    %462 = vmatpush1.msra.mxu0 0.0
    %463 = vmatprep.subr.mxu0 0.0
    %464 = vmatpush1.msra.mxu0 0.0
    %465 = vmatprep.subr.mxu0 0.0
    %466 = vmatpush1.msra.mxu0 0.0
    %467 = vmatprep.subr.mxu0 0.0
    %468 = vmatpush1.msra.mxu0 0.0
    %469 = vmatprep.subr.mxu0 0.0
    %470 = vmatpush1.msra.mxu0 0.0
    %471 = vmatprep.subr.mxu0 0.0
    %472 = vmatpush1.msra.mxu0 0.0
    %473 = vmatprep.subr.mxu0 0.0
    %474 = vmatpush1.msra.mxu0 0.0
    %475 = vmatprep.subr.mxu0 0.0
    %476 = vmatpush1.msra.mxu0 0.0
    %477 = vmatprep.subr.mxu0 0.0
    %478 = vmatpush1.msra.mxu0 0.0
    %479 = vmatprep.subr.mxu0 0.0
    %480 = vmatpush1.msra.mxu0 0.0
    %481 = vmatprep.subr.mxu0 0.0
    %482 = vmatpush1.msra.mxu0 0.0
    %483 = vmatprep.subr.mxu0 0.0
    %484 = vmatpush1.msra.mxu0 %v455
    %485 = vmatprep.subr.mxu0 0.0
    %486 = vmatpush1.msra.mxu0 %v452
    %487 = vmatprep.subr.mxu0 0.0
    %488 = vmatpush1.msra.mxu0 %v449
    %489 = vmatprep.subr.mxu0 0.0
    %490 = vmatpush1.msra.mxu0 %v446
    %491 = vmatprep.subr.mxu0 0.0
    %492 = vmatpush2.msra.mxu0 0.0
    %493 = vmatprep.subr.mxu0 0.0
    %494 = vmatpush2.msra.mxu0 0.0
    %495 = vmatprep.subr.mxu0 0.0
    %496 = vmatpush2.msra.mxu0 0.0
    %497 = vmatprep.subr.mxu0 0.0
    %498 = vmatpush2.msra.mxu0 0.0
    %499 = vmatprep.subr.mxu0 0.0
    %500 = vmatpush2.msra.mxu0 0.0
    %501 = vmatprep.subr.mxu0 0.0
    %502 = vmatpush2.msra.mxu0 0.0
    %503 = vmatprep.subr.mxu0 0.0
    %504 = vmatpush2.msra.mxu0 0.0
    %505 = vmatprep.subr.mxu0 0.0
    %506 = vmatpush2.msra.mxu0 0.0
    %507 = vmatprep.subr.mxu0 0.0
    %508 = vmatpush2.msra.mxu0 0.0
    %509 = vmatprep.subr.mxu0 0.0
    %510 = vmatpush2.msra.mxu0 0.0
    %511 = vmatprep.subr.mxu0 0.0
    %512 = vmatpush2.msra.mxu0 0.0
    %513 = vmatprep.subr.mxu0 0.0
    %514 = vmatpush2.msra.mxu0 0.0
    %515 = vmatprep.subr.mxu0 0.0
    %516 = vmatpush2.msra.mxu0 0.0
    %517 = vmatprep.subr.mxu0 0.0
    %518 = vmatpush2.msra.mxu0 0.0
    %519 = vmatprep.subr.mxu0 0.0
    %520 = vmatpush2.msra.mxu0 0.0
    %521 = vmatprep.subr.mxu0 0.0
    %522 = vmatpush2.msra.mxu0 0.0
    %523 = vmatprep.mubr.f32.mxu0 0.0
    %524 = vmatmul.mubr.f32.gmra.mxu0 %v457
    %v525 = vpop.f32.mrf.mxu0
    %v526 = vadd.f32 0.0, %v525
    %v527 = vpop.f32.mrf.mxu0
    %528 = vdwg.mxu0
    %v529 = vmul.f32 %v526, 0.0078125
    %vm530 = vcmask 31744
    %v532 = vsel %vm530, %v63, 0
    %v535 = vsel %vm530, %v64, 0
    %v538 = vsel %vm530, %v65, 0
    %v541 = vsel %vm530, %v66, 0
    %vm543 = vcmask 1043456
    %v545 = vsel %vm543, %v529, 0
    %547 = vmatprep.subr.mxu0 0.0
    %548 = vmatpush1.msra.mxu0 0.0
    %549 = vmatprep.subr.mxu0 0.0
    %550 = vmatpush1.msra.mxu0 0.0
    %551 = vmatprep.subr.mxu0 0.0
    %552 = vmatpush1.msra.mxu0 0.0
    %553 = vmatprep.subr.mxu0 0.0
    %554 = vmatpush1.msra.mxu0 0.0
    %555 = vmatprep.subr.mxu0 0.0
    %556 = vmatpush1.msra.mxu0 0.0
    %557 = vmatprep.subr.mxu0 0.0
    %558 = vmatpush1.msra.mxu0 0.0
    %559 = vmatprep.subr.mxu0 0.0
    %560 = vmatpush1.msra.mxu0 0.0
    %561 = vmatprep.subr.mxu0 0.0
    %562 = vmatpush1.msra.mxu0 0.0
    %563 = vmatprep.subr.mxu0 0.0
    %564 = vmatpush1.msra.mxu0 0.0
    %565 = vmatprep.subr.mxu0 0.0
    %566 = vmatpush1.msra.mxu0 0.0
    %567 = vmatprep.subr.mxu0 0.0
    %568 = vmatpush1.msra.mxu0 0.0
    %569 = vmatprep.subr.mxu0 0.0
    %570 = vmatpush1.msra.mxu0 0.0
    %571 = vmatprep.subr.mxu0 0.0
    %572 = vmatpush1.msra.mxu0 0.0
    %573 = vmatprep.subr.mxu0 0.0
    %574 = vmatpush1.msra.mxu0 0.0
    %575 = vmatprep.subr.mxu0 0.0
    %576 = vmatpush1.msra.mxu0 0.0
    %577 = vmatprep.subr.mxu0 0.0
    %578 = vmatpush1.msra.mxu0 %v545
    %579 = vmatprep.subr.mxu0 0.0
    %580 = vmatpush2.msra.mxu0 0.0
    %581 = vmatprep.subr.mxu0 0.0
    %582 = vmatpush2.msra.mxu0 0.0
    %583 = vmatprep.subr.mxu0 0.0
    %584 = vmatpush2.msra.mxu0 0.0
    %585 = vmatprep.subr.mxu0 0.0
    %586 = vmatpush2.msra.mxu0 0.0
    %587 = vmatprep.subr.mxu0 0.0
    %588 = vmatpush2.msra.mxu0 0.0
    %589 = vmatprep.subr.mxu0 0.0
    %590 = vmatpush2.msra.mxu0 0.0
    %591 = vmatprep.subr.mxu0 0.0
    %592 = vmatpush2.msra.mxu0 0.0
    %593 = vmatprep.subr.mxu0 0.0
    %594 = vmatpush2.msra.mxu0 0.0
    %595 = vmatprep.subr.mxu0 0.0
    %596 = vmatpush2.msra.mxu0 0.0
    %597 = vmatprep.subr.mxu0 0.0
    %598 = vmatpush2.msra.mxu0 0.0
    %599 = vmatprep.subr.mxu0 0.0
    %600 = vmatpush2.msra.mxu0 0.0
    %601 = vmatprep.subr.mxu0 0.0
    %602 = vmatpush2.msra.mxu0 0.0
    %603 = vmatprep.subr.mxu0 0.0
    %604 = vmatpush2.msra.mxu0 0.0
    %605 = vmatprep.subr.mxu0 0.0
    %606 = vmatpush2.msra.mxu0 0.0
    %607 = vmatprep.subr.mxu0 0.0
    %608 = vmatpush2.msra.mxu0 0.0
    %609 = vmatprep.subr.mxu0 0.0
    %610 = vmatpush2.msra.mxu0 0.0
    %611 = vmatprep.mubr.f32.mxu0 0.0
    %612 = vmatmul.mubr.f32.gmra.mxu0 %v532
    %v613 = vpop.f32.mrf.mxu0
    %v614 = vadd.f32 0.0, %v613
    %v615 = vpop.f32.mrf.mxu0
    %616 = vmatprep.mubr.f32.mxu0 0.0
    %617 = vmatmul.mubr.f32.gmra.mxu0 %v535
    %v618 = vpop.f32.mrf.mxu0
    %v619 = vadd.f32 0.0, %v618
    %v620 = vpop.f32.mrf.mxu0
    %621 = vmatprep.mubr.f32.mxu0 0.0
    %622 = vmatmul.mubr.f32.gmra.mxu0 %v538
    %v623 = vpop.f32.mrf.mxu0
    %v624 = vadd.f32 0.0, %v623
    %v625 = vpop.f32.mrf.mxu0
    %626 = vmatprep.mubr.f32.mxu0 0.0
    %627 = vmatmul.mubr.f32.gmra.mxu0 %v541
    %v628 = vpop.f32.mrf.mxu0
    %v629 = vadd.f32 0.0, %v628
    %v630 = vpop.f32.mrf.mxu0
    %631 = vdwg.mxu0
    %633 = vset.pattern.permute.xlu0 0
    %634 = vperm.xlu0 %633, %v614
    %v635 = vpop.permute.xlu0 %634
    %638 = vset.pattern.permute.xlu0 0
    %639 = vperm.xlu0 %638, %v619
    %v640 = vpop.permute.xlu0 %639
    %643 = vset.pattern.permute.xlu0 0
    %644 = vperm.xlu0 %643, %v624
    %v645 = vpop.permute.xlu0 %644
    %648 = vset.pattern.permute.xlu0 0
    %649 = vperm.xlu0 %648, %v629
    %v650 = vpop.permute.xlu0 %649
    %v652 = vsub.f32 %v439, %v635
    %v653 = vsub.f32 %v440, %v640
    %v654 = vsub.f32 %v441, %v645
    %v655 = vsub.f32 %v442, %v650
    %v656 = vmul.f32 %v652, %v652
    %v657 = vmul.f32 %v653, %v653
    %v658 = vmul.f32 %v654, %v654
    %v659 = vmul.f32 %v655, %v655
    %v660 = vsel %vm443, %v656, 0.0
    %661 = vadd.xlane.f32.xlu0 %v660
    %v662 = vpop.xlane.xlu0 %661
    %v663 = vsel %vm443, %v657, 0.0
    %664 = vadd.xlane.f32.xlu0 %v663
    %v665 = vpop.xlane.xlu0 %664
    %v666 = vsel %vm443, %v658, 0.0
    %667 = vadd.xlane.f32.xlu0 %v666
    %v668 = vpop.xlane.xlu0 %667
    %v669 = vsel %vm443, %v659, 0.0
    %670 = vadd.xlane.f32.xlu0 %v669
    %v671 = vpop.xlane.xlu0 %670
    %672 = vmatprep.subr.mxu0 0.0
    %673 = vmatpush1.msra.mxu0 0.0
    %674 = vmatprep.subr.mxu0 0.0
    %675 = vmatpush1.msra.mxu0 0.0
    %676 = vmatprep.subr.mxu0 0.0
    %677 = vmatpush1.msra.mxu0 0.0
    %678 = vmatprep.subr.mxu0 0.0
    %679 = vmatpush1.msra.mxu0 0.0
    %680 = vmatprep.subr.mxu0 0.0
    %681 = vmatpush1.msra.mxu0 0.0
    %682 = vmatprep.subr.mxu0 0.0
    %683 = vmatpush1.msra.mxu0 0.0
    %684 = vmatprep.subr.mxu0 0.0
    %685 = vmatpush1.msra.mxu0 0.0
    %686 = vmatprep.subr.mxu0 0.0
    %687 = vmatpush1.msra.mxu0 0.0
    %688 = vmatprep.subr.mxu0 0.0
    %689 = vmatpush1.msra.mxu0 0.0
    %690 = vmatprep.subr.mxu0 0.0
    %691 = vmatpush1.msra.mxu0 0.0
    %692 = vmatprep.subr.mxu0 0.0
    %693 = vmatpush1.msra.mxu0 0.0
    %694 = vmatprep.subr.mxu0 0.0
    %695 = vmatpush1.msra.mxu0 0.0
    %696 = vmatprep.subr.mxu0 0.0
    %697 = vmatpush1.msra.mxu0 %v671
    %698 = vmatprep.subr.mxu0 0.0
    %699 = vmatpush1.msra.mxu0 %v668
    %700 = vmatprep.subr.mxu0 0.0
    %701 = vmatpush1.msra.mxu0 %v665
    %702 = vmatprep.subr.mxu0 0.0
    %703 = vmatpush1.msra.mxu0 %v662
    %704 = vmatprep.subr.mxu0 0.0
    %705 = vmatpush2.msra.mxu0 0.0
    %706 = vmatprep.subr.mxu0 0.0
    %707 = vmatpush2.msra.mxu0 0.0
    %708 = vmatprep.subr.mxu0 0.0
    %709 = vmatpush2.msra.mxu0 0.0
    %710 = vmatprep.subr.mxu0 0.0
    %711 = vmatpush2.msra.mxu0 0.0
    %712 = vmatprep.subr.mxu0 0.0
    %713 = vmatpush2.msra.mxu0 0.0
    %714 = vmatprep.subr.mxu0 0.0
    %715 = vmatpush2.msra.mxu0 0.0
    %716 = vmatprep.subr.mxu0 0.0
    %717 = vmatpush2.msra.mxu0 0.0
    %718 = vmatprep.subr.mxu0 0.0
    %719 = vmatpush2.msra.mxu0 0.0
    %720 = vmatprep.subr.mxu0 0.0
    %721 = vmatpush2.msra.mxu0 0.0
    %722 = vmatprep.subr.mxu0 0.0
    %723 = vmatpush2.msra.mxu0 0.0
    %724 = vmatprep.subr.mxu0 0.0
    %725 = vmatpush2.msra.mxu0 0.0
    %726 = vmatprep.subr.mxu0 0.0
    %727 = vmatpush2.msra.mxu0 0.0
    %728 = vmatprep.subr.mxu0 0.0
    %729 = vmatpush2.msra.mxu0 0.0
    %730 = vmatprep.subr.mxu0 0.0
    %731 = vmatpush2.msra.mxu0 0.0
    %732 = vmatprep.subr.mxu0 0.0
    %733 = vmatpush2.msra.mxu0 0.0
    %734 = vmatprep.subr.mxu0 0.0
    %735 = vmatpush2.msra.mxu0 0.0
    %736 = vmatprep.mubr.f32.mxu0 0.0
    %737 = vmatmul.mubr.f32.gmra.mxu0 %v457
    %v738 = vpop.f32.mrf.mxu0
    %v739 = vadd.f32 0.0, %v738
    %v740 = vpop.f32.mrf.mxu0
    %741 = vdwg.mxu0
    %v742 = vmul.f32 %v739, 0.0078125
    %v743 = vadd.f32 %v742, 1e-05
    %v744 = vrsqrt.pop %v743
    %v746 = vsel %vm543, %v744, 0
    %748 = vmatprep.subr.mxu0 0.0
    %749 = vmatpush1.msra.mxu0 0.0
    %750 = vmatprep.subr.mxu0 0.0
    %751 = vmatpush1.msra.mxu0 0.0
    %752 = vmatprep.subr.mxu0 0.0
    %753 = vmatpush1.msra.mxu0 0.0
    %754 = vmatprep.subr.mxu0 0.0
    %755 = vmatpush1.msra.mxu0 0.0
    %756 = vmatprep.subr.mxu0 0.0
    %757 = vmatpush1.msra.mxu0 0.0
    %758 = vmatprep.subr.mxu0 0.0
    %759 = vmatpush1.msra.mxu0 0.0
    %760 = vmatprep.subr.mxu0 0.0
    %761 = vmatpush1.msra.mxu0 0.0
    %762 = vmatprep.subr.mxu0 0.0
    %763 = vmatpush1.msra.mxu0 0.0
    %764 = vmatprep.subr.mxu0 0.0
    %765 = vmatpush1.msra.mxu0 0.0
    %766 = vmatprep.subr.mxu0 0.0
    %767 = vmatpush1.msra.mxu0 0.0
    %768 = vmatprep.subr.mxu0 0.0
    %769 = vmatpush1.msra.mxu0 0.0
    %770 = vmatprep.subr.mxu0 0.0
    %771 = vmatpush1.msra.mxu0 0.0
    %772 = vmatprep.subr.mxu0 0.0
    %773 = vmatpush1.msra.mxu0 0.0
    %774 = vmatprep.subr.mxu0 0.0
    %775 = vmatpush1.msra.mxu0 0.0
    %776 = vmatprep.subr.mxu0 0.0
    %777 = vmatpush1.msra.mxu0 0.0
    %778 = vmatprep.subr.mxu0 0.0
    %779 = vmatpush1.msra.mxu0 %v746
    %780 = vmatprep.subr.mxu0 0.0
    %781 = vmatpush2.msra.mxu0 0.0
    %782 = vmatprep.subr.mxu0 0.0
    %783 = vmatpush2.msra.mxu0 0.0
    %784 = vmatprep.subr.mxu0 0.0
    %785 = vmatpush2.msra.mxu0 0.0
    %786 = vmatprep.subr.mxu0 0.0
    %787 = vmatpush2.msra.mxu0 0.0
    %788 = vmatprep.subr.mxu0 0.0
    %789 = vmatpush2.msra.mxu0 0.0
    %790 = vmatprep.subr.mxu0 0.0
    %791 = vmatpush2.msra.mxu0 0.0
    %792 = vmatprep.subr.mxu0 0.0
    %793 = vmatpush2.msra.mxu0 0.0
    %794 = vmatprep.subr.mxu0 0.0
    %795 = vmatpush2.msra.mxu0 0.0
    %796 = vmatprep.subr.mxu0 0.0
    %797 = vmatpush2.msra.mxu0 0.0
    %798 = vmatprep.subr.mxu0 0.0
    %799 = vmatpush2.msra.mxu0 0.0
    %800 = vmatprep.subr.mxu0 0.0
    %801 = vmatpush2.msra.mxu0 0.0
    %802 = vmatprep.subr.mxu0 0.0
    %803 = vmatpush2.msra.mxu0 0.0
    %804 = vmatprep.subr.mxu0 0.0
    %805 = vmatpush2.msra.mxu0 0.0
    %806 = vmatprep.subr.mxu0 0.0
    %807 = vmatpush2.msra.mxu0 0.0
    %808 = vmatprep.subr.mxu0 0.0
    %809 = vmatpush2.msra.mxu0 0.0
    %810 = vmatprep.subr.mxu0 0.0
    %811 = vmatpush2.msra.mxu0 0.0
    %812 = vmatprep.mubr.f32.mxu0 0.0
    %813 = vmatmul.mubr.f32.gmra.mxu0 %v532
    %v814 = vpop.f32.mrf.mxu0
    %v815 = vadd.f32 0.0, %v814
    %v816 = vpop.f32.mrf.mxu0
    %817 = vmatprep.mubr.f32.mxu0 0.0
    %818 = vmatmul.mubr.f32.gmra.mxu0 %v535
    %v819 = vpop.f32.mrf.mxu0
    %v820 = vadd.f32 0.0, %v819
    %v821 = vpop.f32.mrf.mxu0
    %822 = vmatprep.mubr.f32.mxu0 0.0
    %823 = vmatmul.mubr.f32.gmra.mxu0 %v538
    %v824 = vpop.f32.mrf.mxu0
    %v825 = vadd.f32 0.0, %v824
    %v826 = vpop.f32.mrf.mxu0
    %827 = vmatprep.mubr.f32.mxu0 0.0
    %828 = vmatmul.mubr.f32.gmra.mxu0 %v541
    %v829 = vpop.f32.mrf.mxu0
    %v830 = vadd.f32 0.0, %v829
    %v831 = vpop.f32.mrf.mxu0
    %832 = vdwg.mxu0
    %833 = vrot.lane.b32.xlu0 %v58, 127
    %v834 = vpop.permute.xlu0 %833
    %835 = vrot.lane.b32.xlu0 %v59, 127
    %v836 = vpop.permute.xlu0 %835
    %837 = vrot.lane.b32.xlu0 %v60, 127
    %v838 = vpop.permute.xlu0 %837
    %839 = vrot.lane.b32.xlu0 %v61, 127
    %v840 = vpop.permute.xlu0 %839
    %v845 = vmul.f32 %v815, %v834
    %v846 = vmul.f32 %v820, %v836
    %v847 = vmul.f32 %v825, %v838
    %v848 = vmul.f32 %v830, %v840
    %850 = vset.pattern.permute.xlu0 0
    %851 = vperm.xlu0 %850, %v845
    %v852 = vpop.permute.xlu0 %851
    %855 = vset.pattern.permute.xlu0 0
    %856 = vperm.xlu0 %855, %v846
    %v857 = vpop.permute.xlu0 %856
    %860 = vset.pattern.permute.xlu0 0
    %861 = vperm.xlu0 %860, %v847
    %v862 = vpop.permute.xlu0 %861
    %865 = vset.pattern.permute.xlu0 0
    %866 = vperm.xlu0 %865, %v848
    %v867 = vpop.permute.xlu0 %866
    %v869 = vmul.f32 %v652, %v852
    %v870 = vmul.f32 %v653, %v857
    %v871 = vmul.f32 %v654, %v862
    %v872 = vmul.f32 %v655, %v867
    %873 = vset.pattern.permute.xlu0 2
    %874 = vperm.xlu0 %873, %v58
    %v875 = vpop.permute.xlu0 %874
    %877 = vset.pattern.permute.xlu0 2
    %878 = vperm.xlu0 %877, %v59
    %v879 = vpop.permute.xlu0 %878
    %881 = vset.pattern.permute.xlu0 2
    %882 = vperm.xlu0 %881, %v60
    %v883 = vpop.permute.xlu0 %882
    %885 = vset.pattern.permute.xlu0 2
    %886 = vperm.xlu0 %885, %v61
    %v887 = vpop.permute.xlu0 %886
    %v889 = vadd.f32 %v869, %v875
    %v890 = vadd.f32 %v870, %v879
    %v891 = vadd.f32 %v871, %v883
    %v892 = vadd.f32 %v872, %v887
    %897 = vrot.lane.b32.xlu0 %v439, 112
    %v898 = vpop.permute.xlu0 %897
    %899 = vrot.lane.b32.xlu0 %v440, 112
    %v900 = vpop.permute.xlu0 %899
    %901 = vrot.lane.b32.xlu0 %v441, 112
    %v902 = vpop.permute.xlu0 %901
    %903 = vrot.lane.b32.xlu0 %v442, 112
    %v904 = vpop.permute.xlu0 %903
    %v909 = vsel %vm443, %v898, 0.0
    %910 = vadd.xlane.f32.xlu0 %v909
    %v911 = vpop.xlane.xlu0 %910
    %v912 = vsel %vm443, %v900, 0.0
    %913 = vadd.xlane.f32.xlu0 %v912
    %v914 = vpop.xlane.xlu0 %913
    %v915 = vsel %vm443, %v902, 0.0
    %916 = vadd.xlane.f32.xlu0 %v915
    %v917 = vpop.xlane.xlu0 %916
    %v918 = vsel %vm443, %v904, 0.0
    %919 = vadd.xlane.f32.xlu0 %v918
    %v920 = vpop.xlane.xlu0 %919
    %921 = vmatprep.subr.mxu0 0.0
    %922 = vmatpush1.msra.mxu0 0.0
    %923 = vmatprep.subr.mxu0 0.0
    %924 = vmatpush1.msra.mxu0 0.0
    %925 = vmatprep.subr.mxu0 0.0
    %926 = vmatpush1.msra.mxu0 0.0
    %927 = vmatprep.subr.mxu0 0.0
    %928 = vmatpush1.msra.mxu0 0.0
    %929 = vmatprep.subr.mxu0 0.0
    %930 = vmatpush1.msra.mxu0 0.0
    %931 = vmatprep.subr.mxu0 0.0
    %932 = vmatpush1.msra.mxu0 0.0
    %933 = vmatprep.subr.mxu0 0.0
    %934 = vmatpush1.msra.mxu0 0.0
    %935 = vmatprep.subr.mxu0 0.0
    %936 = vmatpush1.msra.mxu0 0.0
    %937 = vmatprep.subr.mxu0 0.0
    %938 = vmatpush1.msra.mxu0 0.0
    %939 = vmatprep.subr.mxu0 0.0
    %940 = vmatpush1.msra.mxu0 0.0
    %941 = vmatprep.subr.mxu0 0.0
    %942 = vmatpush1.msra.mxu0 0.0
    %943 = vmatprep.subr.mxu0 0.0
    %944 = vmatpush1.msra.mxu0 0.0
    %945 = vmatprep.subr.mxu0 0.0
    %946 = vmatpush1.msra.mxu0 %v920
    %947 = vmatprep.subr.mxu0 0.0
    %948 = vmatpush1.msra.mxu0 %v917
    %949 = vmatprep.subr.mxu0 0.0
    %950 = vmatpush1.msra.mxu0 %v914
    %951 = vmatprep.subr.mxu0 0.0
    %952 = vmatpush1.msra.mxu0 %v911
    %953 = vmatprep.subr.mxu0 0.0
    %954 = vmatpush2.msra.mxu0 0.0
    %955 = vmatprep.subr.mxu0 0.0
    %956 = vmatpush2.msra.mxu0 0.0
    %957 = vmatprep.subr.mxu0 0.0
    %958 = vmatpush2.msra.mxu0 0.0
    %959 = vmatprep.subr.mxu0 0.0
    %960 = vmatpush2.msra.mxu0 0.0
    %961 = vmatprep.subr.mxu0 0.0
    %962 = vmatpush2.msra.mxu0 0.0
    %963 = vmatprep.subr.mxu0 0.0
    %964 = vmatpush2.msra.mxu0 0.0
    %965 = vmatprep.subr.mxu0 0.0
    %966 = vmatpush2.msra.mxu0 0.0
    %967 = vmatprep.subr.mxu0 0.0
    %968 = vmatpush2.msra.mxu0 0.0
    %969 = vmatprep.subr.mxu0 0.0
    %970 = vmatpush2.msra.mxu0 0.0
    %971 = vmatprep.subr.mxu0 0.0
    %972 = vmatpush2.msra.mxu0 0.0
    %973 = vmatprep.subr.mxu0 0.0
    %974 = vmatpush2.msra.mxu0 0.0
    %975 = vmatprep.subr.mxu0 0.0
    %976 = vmatpush2.msra.mxu0 0.0
    %977 = vmatprep.subr.mxu0 0.0
    %978 = vmatpush2.msra.mxu0 0.0
    %979 = vmatprep.subr.mxu0 0.0
    %980 = vmatpush2.msra.mxu0 0.0
    %981 = vmatprep.subr.mxu0 0.0
    %982 = vmatpush2.msra.mxu0 0.0
    %983 = vmatprep.subr.mxu0 0.0
    %984 = vmatpush2.msra.mxu0 0.0
    %985 = vmatprep.mubr.f32.mxu0 0.0
    %986 = vmatmul.mubr.f32.gmra.mxu0 %v457
    %v987 = vpop.f32.mrf.mxu0
    %v988 = vadd.f32 0.0, %v987
    %v989 = vpop.f32.mrf.mxu0
    %990 = vdwg.mxu0
    %v991 = vmul.f32 %v988, 0.0078125
    %v993 = vsel %vm543, %v991, 0
    %995 = vmatprep.subr.mxu0 0.0
    %996 = vmatpush1.msra.mxu0 0.0
    %997 = vmatprep.subr.mxu0 0.0
    %998 = vmatpush1.msra.mxu0 0.0
    %999 = vmatprep.subr.mxu0 0.0
    %1000 = vmatpush1.msra.mxu0 0.0
    %1001 = vmatprep.subr.mxu0 0.0
    %1002 = vmatpush1.msra.mxu0 0.0
    %1003 = vmatprep.subr.mxu0 0.0
    %1004 = vmatpush1.msra.mxu0 0.0
    %1005 = vmatprep.subr.mxu0 0.0
    %1006 = vmatpush1.msra.mxu0 0.0
    %1007 = vmatprep.subr.mxu0 0.0
    %1008 = vmatpush1.msra.mxu0 0.0
    %1009 = vmatprep.subr.mxu0 0.0
    %1010 = vmatpush1.msra.mxu0 0.0
    %1011 = vmatprep.subr.mxu0 0.0
    %1012 = vmatpush1.msra.mxu0 0.0
    %1013 = vmatprep.subr.mxu0 0.0
    %1014 = vmatpush1.msra.mxu0 0.0
    %1015 = vmatprep.subr.mxu0 0.0
    %1016 = vmatpush1.msra.mxu0 0.0
    %1017 = vmatprep.subr.mxu0 0.0
    %1018 = vmatpush1.msra.mxu0 0.0
    %1019 = vmatprep.subr.mxu0 0.0
    %1020 = vmatpush1.msra.mxu0 0.0
    %1021 = vmatprep.subr.mxu0 0.0
    %1022 = vmatpush1.msra.mxu0 0.0
    %1023 = vmatprep.subr.mxu0 0.0
    %1024 = vmatpush1.msra.mxu0 0.0
    %1025 = vmatprep.subr.mxu0 0.0
    %1026 = vmatpush1.msra.mxu0 %v993
    %1027 = vmatprep.subr.mxu0 0.0
    %1028 = vmatpush2.msra.mxu0 0.0
    %1029 = vmatprep.subr.mxu0 0.0
    %1030 = vmatpush2.msra.mxu0 0.0
    %1031 = vmatprep.subr.mxu0 0.0
    %1032 = vmatpush2.msra.mxu0 0.0
    %1033 = vmatprep.subr.mxu0 0.0
    %1034 = vmatpush2.msra.mxu0 0.0
    %1035 = vmatprep.subr.mxu0 0.0
    %1036 = vmatpush2.msra.mxu0 0.0
    %1037 = vmatprep.subr.mxu0 0.0
    %1038 = vmatpush2.msra.mxu0 0.0
    %1039 = vmatprep.subr.mxu0 0.0
    %1040 = vmatpush2.msra.mxu0 0.0
    %1041 = vmatprep.subr.mxu0 0.0
    %1042 = vmatpush2.msra.mxu0 0.0
    %1043 = vmatprep.subr.mxu0 0.0
    %1044 = vmatpush2.msra.mxu0 0.0
    %1045 = vmatprep.subr.mxu0 0.0
    %1046 = vmatpush2.msra.mxu0 0.0
    %1047 = vmatprep.subr.mxu0 0.0
    %1048 = vmatpush2.msra.mxu0 0.0
    %1049 = vmatprep.subr.mxu0 0.0
    %1050 = vmatpush2.msra.mxu0 0.0
    %1051 = vmatprep.subr.mxu0 0.0
    %1052 = vmatpush2.msra.mxu0 0.0
    %1053 = vmatprep.subr.mxu0 0.0
    %1054 = vmatpush2.msra.mxu0 0.0
    %1055 = vmatprep.subr.mxu0 0.0
    %1056 = vmatpush2.msra.mxu0 0.0
    %1057 = vmatprep.subr.mxu0 0.0
    %1058 = vmatpush2.msra.mxu0 0.0
    %1059 = vmatprep.mubr.f32.mxu0 0.0
    %1060 = vmatmul.mubr.f32.gmra.mxu0 %v532
    %v1061 = vpop.f32.mrf.mxu0
    %v1062 = vadd.f32 0.0, %v1061
    %v1063 = vpop.f32.mrf.mxu0
    %1064 = vmatprep.mubr.f32.mxu0 0.0
    %1065 = vmatmul.mubr.f32.gmra.mxu0 %v535
    %v1066 = vpop.f32.mrf.mxu0
    %v1067 = vadd.f32 0.0, %v1066
    %v1068 = vpop.f32.mrf.mxu0
    %1069 = vmatprep.mubr.f32.mxu0 0.0
    %1070 = vmatmul.mubr.f32.gmra.mxu0 %v538
    %v1071 = vpop.f32.mrf.mxu0
    %v1072 = vadd.f32 0.0, %v1071
    %v1073 = vpop.f32.mrf.mxu0
    %1074 = vmatprep.mubr.f32.mxu0 0.0
    %1075 = vmatmul.mubr.f32.gmra.mxu0 %v541
    %v1076 = vpop.f32.mrf.mxu0
    %v1077 = vadd.f32 0.0, %v1076
    %v1078 = vpop.f32.mrf.mxu0
    %1079 = vdwg.mxu0
    %1081 = vset.pattern.permute.xlu0 0
    %1082 = vperm.xlu0 %1081, %v1062
    %v1083 = vpop.permute.xlu0 %1082
    %1086 = vset.pattern.permute.xlu0 0
    %1087 = vperm.xlu0 %1086, %v1067
    %v1088 = vpop.permute.xlu0 %1087
    %1091 = vset.pattern.permute.xlu0 0
    %1092 = vperm.xlu0 %1091, %v1072
    %v1093 = vpop.permute.xlu0 %1092
    %1096 = vset.pattern.permute.xlu0 0
    %1097 = vperm.xlu0 %1096, %v1077
    %v1098 = vpop.permute.xlu0 %1097
    %v1100 = vsub.f32 %v439, %v1083
    %v1101 = vsub.f32 %v440, %v1088
    %v1102 = vsub.f32 %v441, %v1093
    %v1103 = vsub.f32 %v442, %v1098
    %v1104 = vmul.f32 %v1100, %v1100
    %v1105 = vmul.f32 %v1101, %v1101
    %v1106 = vmul.f32 %v1102, %v1102
    %v1107 = vmul.f32 %v1103, %v1103
    %1112 = vrot.lane.b32.xlu0 %v1104, 112
    %v1113 = vpop.permute.xlu0 %1112
    %1114 = vrot.lane.b32.xlu0 %v1105, 112
    %v1115 = vpop.permute.xlu0 %1114
    %1116 = vrot.lane.b32.xlu0 %v1106, 112
    %v1117 = vpop.permute.xlu0 %1116
    %1118 = vrot.lane.b32.xlu0 %v1107, 112
    %v1119 = vpop.permute.xlu0 %1118
    %v1124 = vsel %vm443, %v1113, 0.0
    %1125 = vadd.xlane.f32.xlu0 %v1124
    %v1126 = vpop.xlane.xlu0 %1125
    %v1127 = vsel %vm443, %v1115, 0.0
    %1128 = vadd.xlane.f32.xlu0 %v1127
    %v1129 = vpop.xlane.xlu0 %1128
    %v1130 = vsel %vm443, %v1117, 0.0
    %1131 = vadd.xlane.f32.xlu0 %v1130
    %v1132 = vpop.xlane.xlu0 %1131
    %v1133 = vsel %vm443, %v1119, 0.0
    %1134 = vadd.xlane.f32.xlu0 %v1133
    %v1135 = vpop.xlane.xlu0 %1134
    %1136 = vmatprep.subr.mxu0 0.0
    %1137 = vmatpush1.msra.mxu0 0.0
    %1138 = vmatprep.subr.mxu0 0.0
    %1139 = vmatpush1.msra.mxu0 0.0
    %1140 = vmatprep.subr.mxu0 0.0
    %1141 = vmatpush1.msra.mxu0 0.0
    %1142 = vmatprep.subr.mxu0 0.0
    %1143 = vmatpush1.msra.mxu0 0.0
    %1144 = vmatprep.subr.mxu0 0.0
    %1145 = vmatpush1.msra.mxu0 0.0
    %1146 = vmatprep.subr.mxu0 0.0
    %1147 = vmatpush1.msra.mxu0 0.0
    %1148 = vmatprep.subr.mxu0 0.0
    %1149 = vmatpush1.msra.mxu0 0.0
    %1150 = vmatprep.subr.mxu0 0.0
    %1151 = vmatpush1.msra.mxu0 0.0
    %1152 = vmatprep.subr.mxu0 0.0
    %1153 = vmatpush1.msra.mxu0 0.0
    %1154 = vmatprep.subr.mxu0 0.0
    %1155 = vmatpush1.msra.mxu0 0.0
    %1156 = vmatprep.subr.mxu0 0.0
    %1157 = vmatpush1.msra.mxu0 0.0
    %1158 = vmatprep.subr.mxu0 0.0
    %1159 = vmatpush1.msra.mxu0 0.0
    %1160 = vmatprep.subr.mxu0 0.0
    %1161 = vmatpush1.msra.mxu0 %v1135
    %1162 = vmatprep.subr.mxu0 0.0
    %1163 = vmatpush1.msra.mxu0 %v1132
    %1164 = vmatprep.subr.mxu0 0.0
    %1165 = vmatpush1.msra.mxu0 %v1129
    %1166 = vmatprep.subr.mxu0 0.0
    %1167 = vmatpush1.msra.mxu0 %v1126
    %1168 = vmatprep.subr.mxu0 0.0
    %1169 = vmatpush2.msra.mxu0 0.0
    %1170 = vmatprep.subr.mxu0 0.0
    %1171 = vmatpush2.msra.mxu0 0.0
    %1172 = vmatprep.subr.mxu0 0.0
    %1173 = vmatpush2.msra.mxu0 0.0
    %1174 = vmatprep.subr.mxu0 0.0
    %1175 = vmatpush2.msra.mxu0 0.0
    %1176 = vmatprep.subr.mxu0 0.0
    %1177 = vmatpush2.msra.mxu0 0.0
    %1178 = vmatprep.subr.mxu0 0.0
    %1179 = vmatpush2.msra.mxu0 0.0
    %1180 = vmatprep.subr.mxu0 0.0
    %1181 = vmatpush2.msra.mxu0 0.0
    %1182 = vmatprep.subr.mxu0 0.0
    %1183 = vmatpush2.msra.mxu0 0.0
    %1184 = vmatprep.subr.mxu0 0.0
    %1185 = vmatpush2.msra.mxu0 0.0
    %1186 = vmatprep.subr.mxu0 0.0
    %1187 = vmatpush2.msra.mxu0 0.0
    %1188 = vmatprep.subr.mxu0 0.0
    %1189 = vmatpush2.msra.mxu0 0.0
    %1190 = vmatprep.subr.mxu0 0.0
    %1191 = vmatpush2.msra.mxu0 0.0
    %1192 = vmatprep.subr.mxu0 0.0
    %1193 = vmatpush2.msra.mxu0 0.0
    %1194 = vmatprep.subr.mxu0 0.0
    %1195 = vmatpush2.msra.mxu0 0.0
    %1196 = vmatprep.subr.mxu0 0.0
    %1197 = vmatpush2.msra.mxu0 0.0
    %1198 = vmatprep.subr.mxu0 0.0
    %1199 = vmatpush2.msra.mxu0 0.0
    %1200 = vmatprep.mubr.f32.mxu0 0.0
    %1201 = vmatmul.mubr.f32.gmra.mxu0 %v457
    %v1202 = vpop.f32.mrf.mxu0
    %v1203 = vadd.f32 0.0, %v1202
    %v1204 = vpop.f32.mrf.mxu0
    %1205 = vdwg.mxu0
    %v1206 = vmul.f32 %v1203, 0.0078125
    %v1207 = vadd.f32 %v1206, 1e-05
    %v1208 = vrsqrt.pop %v1207
    %v1210 = vsel %vm543, %v1208, 0
    %1212 = vmatprep.subr.mxu0 0.0
    %1213 = vmatpush1.msra.mxu0 0.0
    %1214 = vmatprep.subr.mxu0 0.0
    %1215 = vmatpush1.msra.mxu0 0.0
    %1216 = vmatprep.subr.mxu0 0.0
    %1217 = vmatpush1.msra.mxu0 0.0
    %1218 = vmatprep.subr.mxu0 0.0
    %1219 = vmatpush1.msra.mxu0 0.0
    %1220 = vmatprep.subr.mxu0 0.0
    %1221 = vmatpush1.msra.mxu0 0.0
    %1222 = vmatprep.subr.mxu0 0.0
    %1223 = vmatpush1.msra.mxu0 0.0
    %1224 = vmatprep.subr.mxu0 0.0
    %1225 = vmatpush1.msra.mxu0 0.0
    %1226 = vmatprep.subr.mxu0 0.0
    %1227 = vmatpush1.msra.mxu0 0.0
    %1228 = vmatprep.subr.mxu0 0.0
    %1229 = vmatpush1.msra.mxu0 0.0
    %1230 = vmatprep.subr.mxu0 0.0
    %1231 = vmatpush1.msra.mxu0 0.0
    %1232 = vmatprep.subr.mxu0 0.0
    %1233 = vmatpush1.msra.mxu0 0.0
    %1234 = vmatprep.subr.mxu0 0.0
    %1235 = vmatpush1.msra.mxu0 0.0
    %1236 = vmatprep.subr.mxu0 0.0
    %1237 = vmatpush1.msra.mxu0 0.0
    %1238 = vmatprep.subr.mxu0 0.0
    %1239 = vmatpush1.msra.mxu0 0.0
    %1240 = vmatprep.subr.mxu0 0.0
    %1241 = vmatpush1.msra.mxu0 0.0
    %1242 = vmatprep.subr.mxu0 0.0
    %1243 = vmatpush1.msra.mxu0 %v1210
    %1244 = vmatprep.subr.mxu0 0.0
    %1245 = vmatpush2.msra.mxu0 0.0
    %1246 = vmatprep.subr.mxu0 0.0
    %1247 = vmatpush2.msra.mxu0 0.0
    %1248 = vmatprep.subr.mxu0 0.0
    %1249 = vmatpush2.msra.mxu0 0.0
    %1250 = vmatprep.subr.mxu0 0.0
    %1251 = vmatpush2.msra.mxu0 0.0
    %1252 = vmatprep.subr.mxu0 0.0
    %1253 = vmatpush2.msra.mxu0 0.0
    %1254 = vmatprep.subr.mxu0 0.0
    %1255 = vmatpush2.msra.mxu0 0.0
    %1256 = vmatprep.subr.mxu0 0.0
    %1257 = vmatpush2.msra.mxu0 0.0
    %1258 = vmatprep.subr.mxu0 0.0
    %1259 = vmatpush2.msra.mxu0 0.0
    %1260 = vmatprep.subr.mxu0 0.0
    %1261 = vmatpush2.msra.mxu0 0.0
    %1262 = vmatprep.subr.mxu0 0.0
    %1263 = vmatpush2.msra.mxu0 0.0
    %1264 = vmatprep.subr.mxu0 0.0
    %1265 = vmatpush2.msra.mxu0 0.0
    %1266 = vmatprep.subr.mxu0 0.0
    %1267 = vmatpush2.msra.mxu0 0.0
    %1268 = vmatprep.subr.mxu0 0.0
    %1269 = vmatpush2.msra.mxu0 0.0
    %1270 = vmatprep.subr.mxu0 0.0
    %1271 = vmatpush2.msra.mxu0 0.0
    %1272 = vmatprep.subr.mxu0 0.0
    %1273 = vmatpush2.msra.mxu0 0.0
    %1274 = vmatprep.subr.mxu0 0.0
    %1275 = vmatpush2.msra.mxu0 0.0
    %1276 = vmatprep.mubr.f32.mxu0 0.0
    %1277 = vmatmul.mubr.f32.gmra.mxu0 %v532
    %v1278 = vpop.f32.mrf.mxu0
    %v1279 = vadd.f32 0.0, %v1278
    %v1280 = vpop.f32.mrf.mxu0
    %1281 = vmatprep.mubr.f32.mxu0 0.0
    %1282 = vmatmul.mubr.f32.gmra.mxu0 %v535
    %v1283 = vpop.f32.mrf.mxu0
    %v1284 = vadd.f32 0.0, %v1283
    %v1285 = vpop.f32.mrf.mxu0
    %1286 = vmatprep.mubr.f32.mxu0 0.0
    %1287 = vmatmul.mubr.f32.gmra.mxu0 %v538
    %v1288 = vpop.f32.mrf.mxu0
    %v1289 = vadd.f32 0.0, %v1288
    %v1290 = vpop.f32.mrf.mxu0
    %1291 = vmatprep.mubr.f32.mxu0 0.0
    %1292 = vmatmul.mubr.f32.gmra.mxu0 %v541
    %v1293 = vpop.f32.mrf.mxu0
    %v1294 = vadd.f32 0.0, %v1293
    %v1295 = vpop.f32.mrf.mxu0
    %1296 = vdwg.mxu0
    %v1297 = vmul.f32 %v1279, %v834
    %v1298 = vmul.f32 %v1284, %v836
    %v1299 = vmul.f32 %v1289, %v838
    %v1300 = vmul.f32 %v1294, %v840
    %1302 = vset.pattern.permute.xlu0 0
    %1303 = vperm.xlu0 %1302, %v1297
    %v1304 = vpop.permute.xlu0 %1303
    %1307 = vset.pattern.permute.xlu0 0
    %1308 = vperm.xlu0 %1307, %v1298
    %v1309 = vpop.permute.xlu0 %1308
    %1312 = vset.pattern.permute.xlu0 0
    %1313 = vperm.xlu0 %1312, %v1299
    %v1314 = vpop.permute.xlu0 %1313
    %1317 = vset.pattern.permute.xlu0 0
    %1318 = vperm.xlu0 %1317, %v1300
    %v1319 = vpop.permute.xlu0 %1318
    %v1321 = vmul.f32 %v1100, %v1304
    %v1322 = vmul.f32 %v1101, %v1309
    %v1323 = vmul.f32 %v1102, %v1314
    %v1324 = vmul.f32 %v1103, %v1319
    %v1325 = vadd.f32 %v1321, %v875
    %v1326 = vadd.f32 %v1322, %v879
    %v1327 = vadd.f32 %v1323, %v883
    %v1328 = vadd.f32 %v1324, %v887
    %1329 = vrot.lane.b32.xlu0 %v439, 96
    %v1330 = vpop.permute.xlu0 %1329
    %1331 = vrot.lane.b32.xlu0 %v440, 96
    %v1332 = vpop.permute.xlu0 %1331
    %1333 = vrot.lane.b32.xlu0 %v441, 96
    %v1334 = vpop.permute.xlu0 %1333
    %1335 = vrot.lane.b32.xlu0 %v442, 96
    %v1336 = vpop.permute.xlu0 %1335
    %v1341 = vsel %vm443, %v1330, 0.0
    %1342 = vadd.xlane.f32.xlu0 %v1341
    %v1343 = vpop.xlane.xlu0 %1342
    %v1344 = vsel %vm443, %v1332, 0.0
    %1345 = vadd.xlane.f32.xlu0 %v1344
    %v1346 = vpop.xlane.xlu0 %1345
    %v1347 = vsel %vm443, %v1334, 0.0
    %1348 = vadd.xlane.f32.xlu0 %v1347
    %v1349 = vpop.xlane.xlu0 %1348
    %v1350 = vsel %vm443, %v1336, 0.0
    %1351 = vadd.xlane.f32.xlu0 %v1350
    %v1352 = vpop.xlane.xlu0 %1351
    %1353 = vmatprep.subr.mxu0 0.0
    %1354 = vmatpush1.msra.mxu0 0.0
    %1355 = vmatprep.subr.mxu0 0.0
    %1356 = vmatpush1.msra.mxu0 0.0
    %1357 = vmatprep.subr.mxu0 0.0
    %1358 = vmatpush1.msra.mxu0 0.0
    %1359 = vmatprep.subr.mxu0 0.0
    %1360 = vmatpush1.msra.mxu0 0.0
    %1361 = vmatprep.subr.mxu0 0.0
    %1362 = vmatpush1.msra.mxu0 0.0
    %1363 = vmatprep.subr.mxu0 0.0
    %1364 = vmatpush1.msra.mxu0 0.0
    %1365 = vmatprep.subr.mxu0 0.0
    %1366 = vmatpush1.msra.mxu0 0.0
    %1367 = vmatprep.subr.mxu0 0.0
    %1368 = vmatpush1.msra.mxu0 0.0
    %1369 = vmatprep.subr.mxu0 0.0
    %1370 = vmatpush1.msra.mxu0 0.0
    %1371 = vmatprep.subr.mxu0 0.0
    %1372 = vmatpush1.msra.mxu0 0.0
    %1373 = vmatprep.subr.mxu0 0.0
    %1374 = vmatpush1.msra.mxu0 0.0
    %1375 = vmatprep.subr.mxu0 0.0
    %1376 = vmatpush1.msra.mxu0 0.0
    %1377 = vmatprep.subr.mxu0 0.0
    %1378 = vmatpush1.msra.mxu0 %v1352
    %1379 = vmatprep.subr.mxu0 0.0
    %1380 = vmatpush1.msra.mxu0 %v1349
    %1381 = vmatprep.subr.mxu0 0.0
    %1382 = vmatpush1.msra.mxu0 %v1346
    %1383 = vmatprep.subr.mxu0 0.0
    %1384 = vmatpush1.msra.mxu0 %v1343
    %1385 = vmatprep.subr.mxu0 0.0
    %1386 = vmatpush2.msra.mxu0 0.0
    %1387 = vmatprep.subr.mxu0 0.0
    %1388 = vmatpush2.msra.mxu0 0.0
    %1389 = vmatprep.subr.mxu0 0.0
    %1390 = vmatpush2.msra.mxu0 0.0
    %1391 = vmatprep.subr.mxu0 0.0
    %1392 = vmatpush2.msra.mxu0 0.0
    %1393 = vmatprep.subr.mxu0 0.0
    %1394 = vmatpush2.msra.mxu0 0.0
    %1395 = vmatprep.subr.mxu0 0.0
    %1396 = vmatpush2.msra.mxu0 0.0
    %1397 = vmatprep.subr.mxu0 0.0
    %1398 = vmatpush2.msra.mxu0 0.0
    %1399 = vmatprep.subr.mxu0 0.0
    %1400 = vmatpush2.msra.mxu0 0.0
    %1401 = vmatprep.subr.mxu0 0.0
    %1402 = vmatpush2.msra.mxu0 0.0
    %1403 = vmatprep.subr.mxu0 0.0
    %1404 = vmatpush2.msra.mxu0 0.0
    %1405 = vmatprep.subr.mxu0 0.0
    %1406 = vmatpush2.msra.mxu0 0.0
    %1407 = vmatprep.subr.mxu0 0.0
    %1408 = vmatpush2.msra.mxu0 0.0
    %1409 = vmatprep.subr.mxu0 0.0
    %1410 = vmatpush2.msra.mxu0 0.0
    %1411 = vmatprep.subr.mxu0 0.0
    %1412 = vmatpush2.msra.mxu0 0.0
    %1413 = vmatprep.subr.mxu0 0.0
    %1414 = vmatpush2.msra.mxu0 0.0
    %1415 = vmatprep.subr.mxu0 0.0
    %1416 = vmatpush2.msra.mxu0 0.0
    %1417 = vmatprep.mubr.f32.mxu0 0.0
    %1418 = vmatmul.mubr.f32.gmra.mxu0 %v457
    %v1419 = vpop.f32.mrf.mxu0
    %v1420 = vadd.f32 0.0, %v1419
    %v1421 = vpop.f32.mrf.mxu0
    %1422 = vdwg.mxu0
    %v1423 = vmul.f32 %v1420, 0.0078125
    %v1425 = vsel %vm543, %v1423, 0
    %1427 = vmatprep.subr.mxu0 0.0
    %1428 = vmatpush1.msra.mxu0 0.0
    %1429 = vmatprep.subr.mxu0 0.0
    %1430 = vmatpush1.msra.mxu0 0.0
    %1431 = vmatprep.subr.mxu0 0.0
    %1432 = vmatpush1.msra.mxu0 0.0
    %1433 = vmatprep.subr.mxu0 0.0
    %1434 = vmatpush1.msra.mxu0 0.0
    %1435 = vmatprep.subr.mxu0 0.0
    %1436 = vmatpush1.msra.mxu0 0.0
    %1437 = vmatprep.subr.mxu0 0.0
    %1438 = vmatpush1.msra.mxu0 0.0
    %1439 = vmatprep.subr.mxu0 0.0
    %1440 = vmatpush1.msra.mxu0 0.0
    %1441 = vmatprep.subr.mxu0 0.0
    %1442 = vmatpush1.msra.mxu0 0.0
    %1443 = vmatprep.subr.mxu0 0.0
    %1444 = vmatpush1.msra.mxu0 0.0
    %1445 = vmatprep.subr.mxu0 0.0
    %1446 = vmatpush1.msra.mxu0 0.0
    %1447 = vmatprep.subr.mxu0 0.0
    %1448 = vmatpush1.msra.mxu0 0.0
    %1449 = vmatprep.subr.mxu0 0.0
    %1450 = vmatpush1.msra.mxu0 0.0
    %1451 = vmatprep.subr.mxu0 0.0
    %1452 = vmatpush1.msra.mxu0 0.0
    %1453 = vmatprep.subr.mxu0 0.0
    %1454 = vmatpush1.msra.mxu0 0.0
    %1455 = vmatprep.subr.mxu0 0.0
    %1456 = vmatpush1.msra.mxu0 0.0
    %1457 = vmatprep.subr.mxu0 0.0
    %1458 = vmatpush1.msra.mxu0 %v1425
    %1459 = vmatprep.subr.mxu0 0.0
    %1460 = vmatpush2.msra.mxu0 0.0
    %1461 = vmatprep.subr.mxu0 0.0
    %1462 = vmatpush2.msra.mxu0 0.0
    %1463 = vmatprep.subr.mxu0 0.0
    %1464 = vmatpush2.msra.mxu0 0.0
    %1465 = vmatprep.subr.mxu0 0.0
    %1466 = vmatpush2.msra.mxu0 0.0
    %1467 = vmatprep.subr.mxu0 0.0
    %1468 = vmatpush2.msra.mxu0 0.0
    %1469 = vmatprep.subr.mxu0 0.0
    %1470 = vmatpush2.msra.mxu0 0.0
    %1471 = vmatprep.subr.mxu0 0.0
    %1472 = vmatpush2.msra.mxu0 0.0
    %1473 = vmatprep.subr.mxu0 0.0
    %1474 = vmatpush2.msra.mxu0 0.0
    %1475 = vmatprep.subr.mxu0 0.0
    %1476 = vmatpush2.msra.mxu0 0.0
    %1477 = vmatprep.subr.mxu0 0.0
    %1478 = vmatpush2.msra.mxu0 0.0
    %1479 = vmatprep.subr.mxu0 0.0
    %1480 = vmatpush2.msra.mxu0 0.0
    %1481 = vmatprep.subr.mxu0 0.0
    %1482 = vmatpush2.msra.mxu0 0.0
    %1483 = vmatprep.subr.mxu0 0.0
    %1484 = vmatpush2.msra.mxu0 0.0
    %1485 = vmatprep.subr.mxu0 0.0
    %1486 = vmatpush2.msra.mxu0 0.0
    %1487 = vmatprep.subr.mxu0 0.0
    %1488 = vmatpush2.msra.mxu0 0.0
    %1489 = vmatprep.subr.mxu0 0.0
    %1490 = vmatpush2.msra.mxu0 0.0
    %1491 = vmatprep.mubr.f32.mxu0 0.0
    %1492 = vmatmul.mubr.f32.gmra.mxu0 %v532
    %v1493 = vpop.f32.mrf.mxu0
    %v1494 = vadd.f32 0.0, %v1493
    %v1495 = vpop.f32.mrf.mxu0
    %1496 = vmatprep.mubr.f32.mxu0 0.0
    %1497 = vmatmul.mubr.f32.gmra.mxu0 %v535
    %v1498 = vpop.f32.mrf.mxu0
    %v1499 = vadd.f32 0.0, %v1498
    %v1500 = vpop.f32.mrf.mxu0
    %1501 = vmatprep.mubr.f32.mxu0 0.0
    %1502 = vmatmul.mubr.f32.gmra.mxu0 %v538
    %v1503 = vpop.f32.mrf.mxu0
    %v1504 = vadd.f32 0.0, %v1503
    %v1505 = vpop.f32.mrf.mxu0
    %1506 = vmatprep.mubr.f32.mxu0 0.0
    %1507 = vmatmul.mubr.f32.gmra.mxu0 %v541
    %v1508 = vpop.f32.mrf.mxu0
    %v1509 = vadd.f32 0.0, %v1508
    %v1510 = vpop.f32.mrf.mxu0
    %1511 = vdwg.mxu0
    %1513 = vset.pattern.permute.xlu0 0
    %1514 = vperm.xlu0 %1513, %v1494
    %v1515 = vpop.permute.xlu0 %1514
    %1518 = vset.pattern.permute.xlu0 0
    %1519 = vperm.xlu0 %1518, %v1499
    %v1520 = vpop.permute.xlu0 %1519
    %1523 = vset.pattern.permute.xlu0 0
    %1524 = vperm.xlu0 %1523, %v1504
    %v1525 = vpop.permute.xlu0 %1524
    %1528 = vset.pattern.permute.xlu0 0
    %1529 = vperm.xlu0 %1528, %v1509
    %v1530 = vpop.permute.xlu0 %1529
    %v1532 = vsub.f32 %v439, %v1515
    %v1533 = vsub.f32 %v440, %v1520
    %v1534 = vsub.f32 %v441, %v1525
    %v1535 = vsub.f32 %v442, %v1530
    %v1536 = vmul.f32 %v1532, %v1532
    %v1537 = vmul.f32 %v1533, %v1533
    %v1538 = vmul.f32 %v1534, %v1534
    %v1539 = vmul.f32 %v1535, %v1535
    %1544 = vrot.lane.b32.xlu0 %v1536, 96
    %v1545 = vpop.permute.xlu0 %1544
    %1546 = vrot.lane.b32.xlu0 %v1537, 96
    %v1547 = vpop.permute.xlu0 %1546
    %1548 = vrot.lane.b32.xlu0 %v1538, 96
    %v1549 = vpop.permute.xlu0 %1548
    %1550 = vrot.lane.b32.xlu0 %v1539, 96
    %v1551 = vpop.permute.xlu0 %1550
    %v1556 = vsel %vm443, %v1545, 0.0
    %1557 = vadd.xlane.f32.xlu0 %v1556
    %v1558 = vpop.xlane.xlu0 %1557
    %v1559 = vsel %vm443, %v1547, 0.0
    %1560 = vadd.xlane.f32.xlu0 %v1559
    %v1561 = vpop.xlane.xlu0 %1560
    %v1562 = vsel %vm443, %v1549, 0.0
    %1563 = vadd.xlane.f32.xlu0 %v1562
    %v1564 = vpop.xlane.xlu0 %1563
    %v1565 = vsel %vm443, %v1551, 0.0
    %1566 = vadd.xlane.f32.xlu0 %v1565
    %v1567 = vpop.xlane.xlu0 %1566
    %1568 = vmatprep.subr.mxu0 0.0
    %1569 = vmatpush1.msra.mxu0 0.0
    %1570 = vmatprep.subr.mxu0 0.0
    %1571 = vmatpush1.msra.mxu0 0.0
    %1572 = vmatprep.subr.mxu0 0.0
    %1573 = vmatpush1.msra.mxu0 0.0
    %1574 = vmatprep.subr.mxu0 0.0
    %1575 = vmatpush1.msra.mxu0 0.0
    %1576 = vmatprep.subr.mxu0 0.0
    %1577 = vmatpush1.msra.mxu0 0.0
    %1578 = vmatprep.subr.mxu0 0.0
    %1579 = vmatpush1.msra.mxu0 0.0
    %1580 = vmatprep.subr.mxu0 0.0
    %1581 = vmatpush1.msra.mxu0 0.0
    %1582 = vmatprep.subr.mxu0 0.0
    %1583 = vmatpush1.msra.mxu0 0.0
    %1584 = vmatprep.subr.mxu0 0.0
    %1585 = vmatpush1.msra.mxu0 0.0
    %1586 = vmatprep.subr.mxu0 0.0
    %1587 = vmatpush1.msra.mxu0 0.0
    %1588 = vmatprep.subr.mxu0 0.0
    %1589 = vmatpush1.msra.mxu0 0.0
    %1590 = vmatprep.subr.mxu0 0.0
    %1591 = vmatpush1.msra.mxu0 0.0
    %1592 = vmatprep.subr.mxu0 0.0
    %1593 = vmatpush1.msra.mxu0 %v1567
    %1594 = vmatprep.subr.mxu0 0.0
    %1595 = vmatpush1.msra.mxu0 %v1564
    %1596 = vmatprep.subr.mxu0 0.0
    %1597 = vmatpush1.msra.mxu0 %v1561
    %1598 = vmatprep.subr.mxu0 0.0
    %1599 = vmatpush1.msra.mxu0 %v1558
    %1600 = vmatprep.subr.mxu0 0.0
    %1601 = vmatpush2.msra.mxu0 0.0
    %1602 = vmatprep.subr.mxu0 0.0
    %1603 = vmatpush2.msra.mxu0 0.0
    %1604 = vmatprep.subr.mxu0 0.0
    %1605 = vmatpush2.msra.mxu0 0.0
    %1606 = vmatprep.subr.mxu0 0.0
    %1607 = vmatpush2.msra.mxu0 0.0
    %1608 = vmatprep.subr.mxu0 0.0
    %1609 = vmatpush2.msra.mxu0 0.0
    %1610 = vmatprep.subr.mxu0 0.0
    %1611 = vmatpush2.msra.mxu0 0.0
    %1612 = vmatprep.subr.mxu0 0.0
    %1613 = vmatpush2.msra.mxu0 0.0
    %1614 = vmatprep.subr.mxu0 0.0
    %1615 = vmatpush2.msra.mxu0 0.0
    %1616 = vmatprep.subr.mxu0 0.0
    %1617 = vmatpush2.msra.mxu0 0.0
    %1618 = vmatprep.subr.mxu0 0.0
    %1619 = vmatpush2.msra.mxu0 0.0
    %1620 = vmatprep.subr.mxu0 0.0
    %1621 = vmatpush2.msra.mxu0 0.0
    %1622 = vmatprep.subr.mxu0 0.0
    %1623 = vmatpush2.msra.mxu0 0.0
    %1624 = vmatprep.subr.mxu0 0.0
    %1625 = vmatpush2.msra.mxu0 0.0
    %1626 = vmatprep.subr.mxu0 0.0
    %1627 = vmatpush2.msra.mxu0 0.0
    %1628 = vmatprep.subr.mxu0 0.0
    %1629 = vmatpush2.msra.mxu0 0.0
    %1630 = vmatprep.subr.mxu0 0.0
    %1631 = vmatpush2.msra.mxu0 0.0
    %1632 = vmatprep.mubr.f32.mxu0 0.0
    %1633 = vmatmul.mubr.f32.gmra.mxu0 %v457
    %v1634 = vpop.f32.mrf.mxu0
    %v1635 = vadd.f32 0.0, %v1634
    %v1636 = vpop.f32.mrf.mxu0
    %1637 = vdwg.mxu0
    %v1638 = vmul.f32 %v1635, 0.0078125
    %v1639 = vadd.f32 %v1638, 1e-05
    %v1640 = vrsqrt.pop %v1639
    %v1642 = vsel %vm543, %v1640, 0
    %1644 = vmatprep.subr.mxu0 0.0
    %1645 = vmatpush1.msra.mxu0 0.0
    %1646 = vmatprep.subr.mxu0 0.0
    %1647 = vmatpush1.msra.mxu0 0.0
    %1648 = vmatprep.subr.mxu0 0.0
    %1649 = vmatpush1.msra.mxu0 0.0
    %1650 = vmatprep.subr.mxu0 0.0
    %1651 = vmatpush1.msra.mxu0 0.0
    %1652 = vmatprep.subr.mxu0 0.0
    %1653 = vmatpush1.msra.mxu0 0.0
    %1654 = vmatprep.subr.mxu0 0.0
    %1655 = vmatpush1.msra.mxu0 0.0
    %1656 = vmatprep.subr.mxu0 0.0
    %1657 = vmatpush1.msra.mxu0 0.0
    %1658 = vmatprep.subr.mxu0 0.0
    %1659 = vmatpush1.msra.mxu0 0.0
    %1660 = vmatprep.subr.mxu0 0.0
    %1661 = vmatpush1.msra.mxu0 0.0
    %1662 = vmatprep.subr.mxu0 0.0
    %1663 = vmatpush1.msra.mxu0 0.0
    %1664 = vmatprep.subr.mxu0 0.0
    %1665 = vmatpush1.msra.mxu0 0.0
    %1666 = vmatprep.subr.mxu0 0.0
    %1667 = vmatpush1.msra.mxu0 0.0
    %1668 = vmatprep.subr.mxu0 0.0
    %1669 = vmatpush1.msra.mxu0 0.0
    %1670 = vmatprep.subr.mxu0 0.0
    %1671 = vmatpush1.msra.mxu0 0.0
    %1672 = vmatprep.subr.mxu0 0.0
    %1673 = vmatpush1.msra.mxu0 0.0
    %1674 = vmatprep.subr.mxu0 0.0
    %1675 = vmatpush1.msra.mxu0 %v1642
    %1676 = vmatprep.subr.mxu0 0.0
    %1677 = vmatpush2.msra.mxu0 0.0
    %1678 = vmatprep.subr.mxu0 0.0
    %1679 = vmatpush2.msra.mxu0 0.0
    %1680 = vmatprep.subr.mxu0 0.0
    %1681 = vmatpush2.msra.mxu0 0.0
    %1682 = vmatprep.subr.mxu0 0.0
    %1683 = vmatpush2.msra.mxu0 0.0
    %1684 = vmatprep.subr.mxu0 0.0
    %1685 = vmatpush2.msra.mxu0 0.0
    %1686 = vmatprep.subr.mxu0 0.0
    %1687 = vmatpush2.msra.mxu0 0.0
    %1688 = vmatprep.subr.mxu0 0.0
    %1689 = vmatpush2.msra.mxu0 0.0
    %1690 = vmatprep.subr.mxu0 0.0
    %1691 = vmatpush2.msra.mxu0 0.0
    %1692 = vmatprep.subr.mxu0 0.0
    %1693 = vmatpush2.msra.mxu0 0.0
    %1694 = vmatprep.subr.mxu0 0.0
    %1695 = vmatpush2.msra.mxu0 0.0
    %1696 = vmatprep.subr.mxu0 0.0
    %1697 = vmatpush2.msra.mxu0 0.0
    %1698 = vmatprep.subr.mxu0 0.0
    %1699 = vmatpush2.msra.mxu0 0.0
    %1700 = vmatprep.subr.mxu0 0.0
    %1701 = vmatpush2.msra.mxu0 0.0
    %1702 = vmatprep.subr.mxu0 0.0
    %1703 = vmatpush2.msra.mxu0 0.0
    %1704 = vmatprep.subr.mxu0 0.0
    %1705 = vmatpush2.msra.mxu0 0.0
    %1706 = vmatprep.subr.mxu0 0.0
    %1707 = vmatpush2.msra.mxu0 0.0
    %1708 = vmatprep.mubr.f32.mxu0 0.0
    %1709 = vmatmul.mubr.f32.gmra.mxu0 %v532
    %v1710 = vpop.f32.mrf.mxu0
    %v1711 = vadd.f32 0.0, %v1710
    %v1712 = vpop.f32.mrf.mxu0
    %1713 = vmatprep.mubr.f32.mxu0 0.0
    %1714 = vmatmul.mubr.f32.gmra.mxu0 %v535
    %v1715 = vpop.f32.mrf.mxu0
    %v1716 = vadd.f32 0.0, %v1715
    %v1717 = vpop.f32.mrf.mxu0
    %1718 = vmatprep.mubr.f32.mxu0 0.0
    %1719 = vmatmul.mubr.f32.gmra.mxu0 %v538
    %v1720 = vpop.f32.mrf.mxu0
    %v1721 = vadd.f32 0.0, %v1720
    %v1722 = vpop.f32.mrf.mxu0
    %1723 = vmatprep.mubr.f32.mxu0 0.0
    %1724 = vmatmul.mubr.f32.gmra.mxu0 %v541
    %v1725 = vpop.f32.mrf.mxu0
    %v1726 = vadd.f32 0.0, %v1725
    %v1727 = vpop.f32.mrf.mxu0
    %1728 = vdwg.mxu0
    %v1729 = vmul.f32 %v1711, %v834
    %v1730 = vmul.f32 %v1716, %v836
    %v1731 = vmul.f32 %v1721, %v838
    %v1732 = vmul.f32 %v1726, %v840
    %1734 = vset.pattern.permute.xlu0 0
    %1735 = vperm.xlu0 %1734, %v1729
    %v1736 = vpop.permute.xlu0 %1735
    %1739 = vset.pattern.permute.xlu0 0
    %1740 = vperm.xlu0 %1739, %v1730
    %v1741 = vpop.permute.xlu0 %1740
    %1744 = vset.pattern.permute.xlu0 0
    %1745 = vperm.xlu0 %1744, %v1731
    %v1746 = vpop.permute.xlu0 %1745
    %1749 = vset.pattern.permute.xlu0 0
    %1750 = vperm.xlu0 %1749, %v1732
    %v1751 = vpop.permute.xlu0 %1750
    %v1753 = vmul.f32 %v1532, %v1736
    %v1754 = vmul.f32 %v1533, %v1741
    %v1755 = vmul.f32 %v1534, %v1746
    %v1756 = vmul.f32 %v1535, %v1751
    %v1757 = vadd.f32 %v1753, %v875
    %v1758 = vadd.f32 %v1754, %v879
    %v1759 = vadd.f32 %v1755, %v883
    %v1760 = vadd.f32 %v1756, %v887
    %1761 = vrot.lane.b32.xlu0 %v439, 80
    %v1762 = vpop.permute.xlu0 %1761
    %1763 = vrot.lane.b32.xlu0 %v440, 80
    %v1764 = vpop.permute.xlu0 %1763
    %1765 = vrot.lane.b32.xlu0 %v441, 80
    %v1766 = vpop.permute.xlu0 %1765
    %1767 = vrot.lane.b32.xlu0 %v442, 80
    %v1768 = vpop.permute.xlu0 %1767
    %v1773 = vsel %vm443, %v1762, 0.0
    %1774 = vadd.xlane.f32.xlu0 %v1773
    %v1775 = vpop.xlane.xlu0 %1774
    %v1776 = vsel %vm443, %v1764, 0.0
    %1777 = vadd.xlane.f32.xlu0 %v1776
    %v1778 = vpop.xlane.xlu0 %1777
    %v1779 = vsel %vm443, %v1766, 0.0
    %1780 = vadd.xlane.f32.xlu0 %v1779
    %v1781 = vpop.xlane.xlu0 %1780
    %v1782 = vsel %vm443, %v1768, 0.0
    %1783 = vadd.xlane.f32.xlu0 %v1782
    %v1784 = vpop.xlane.xlu0 %1783
    %1785 = vmatprep.subr.mxu0 0.0
    %1786 = vmatpush1.msra.mxu0 0.0
    %1787 = vmatprep.subr.mxu0 0.0
    %1788 = vmatpush1.msra.mxu0 0.0
    %1789 = vmatprep.subr.mxu0 0.0
    %1790 = vmatpush1.msra.mxu0 0.0
    %1791 = vmatprep.subr.mxu0 0.0
    %1792 = vmatpush1.msra.mxu0 0.0
    %1793 = vmatprep.subr.mxu0 0.0
    %1794 = vmatpush1.msra.mxu0 0.0
    %1795 = vmatprep.subr.mxu0 0.0
    %1796 = vmatpush1.msra.mxu0 0.0
    %1797 = vmatprep.subr.mxu0 0.0
    %1798 = vmatpush1.msra.mxu0 0.0
    %1799 = vmatprep.subr.mxu0 0.0
    %1800 = vmatpush1.msra.mxu0 0.0
    %1801 = vmatprep.subr.mxu0 0.0
    %1802 = vmatpush1.msra.mxu0 0.0
    %1803 = vmatprep.subr.mxu0 0.0
    %1804 = vmatpush1.msra.mxu0 0.0
    %1805 = vmatprep.subr.mxu0 0.0
    %1806 = vmatpush1.msra.mxu0 0.0
    %1807 = vmatprep.subr.mxu0 0.0
    %1808 = vmatpush1.msra.mxu0 0.0
    %1809 = vmatprep.subr.mxu0 0.0
    %1810 = vmatpush1.msra.mxu0 %v1784
    %1811 = vmatprep.subr.mxu0 0.0
    %1812 = vmatpush1.msra.mxu0 %v1781
    %1813 = vmatprep.subr.mxu0 0.0
    %1814 = vmatpush1.msra.mxu0 %v1778
    %1815 = vmatprep.subr.mxu0 0.0
    %1816 = vmatpush1.msra.mxu0 %v1775
    %1817 = vmatprep.subr.mxu0 0.0
    %1818 = vmatpush2.msra.mxu0 0.0
    %1819 = vmatprep.subr.mxu0 0.0
    %1820 = vmatpush2.msra.mxu0 0.0
    %1821 = vmatprep.subr.mxu0 0.0
    %1822 = vmatpush2.msra.mxu0 0.0
    %1823 = vmatprep.subr.mxu0 0.0
    %1824 = vmatpush2.msra.mxu0 0.0
    %1825 = vmatprep.subr.mxu0 0.0
    %1826 = vmatpush2.msra.mxu0 0.0
    %1827 = vmatprep.subr.mxu0 0.0
    %1828 = vmatpush2.msra.mxu0 0.0
    %1829 = vmatprep.subr.mxu0 0.0
    %1830 = vmatpush2.msra.mxu0 0.0
    %1831 = vmatprep.subr.mxu0 0.0
    %1832 = vmatpush2.msra.mxu0 0.0
    %1833 = vmatprep.subr.mxu0 0.0
    %1834 = vmatpush2.msra.mxu0 0.0
    %1835 = vmatprep.subr.mxu0 0.0
    %1836 = vmatpush2.msra.mxu0 0.0
    %1837 = vmatprep.subr.mxu0 0.0
    %1838 = vmatpush2.msra.mxu0 0.0
    %1839 = vmatprep.subr.mxu0 0.0
    %1840 = vmatpush2.msra.mxu0 0.0
    %1841 = vmatprep.subr.mxu0 0.0
    %1842 = vmatpush2.msra.mxu0 0.0
    %1843 = vmatprep.subr.mxu0 0.0
    %1844 = vmatpush2.msra.mxu0 0.0
    %1845 = vmatprep.subr.mxu0 0.0
    %1846 = vmatpush2.msra.mxu0 0.0
    %1847 = vmatprep.subr.mxu0 0.0
    %1848 = vmatpush2.msra.mxu0 0.0
    %1849 = vmatprep.mubr.f32.mxu0 0.0
    %1850 = vmatmul.mubr.f32.gmra.mxu0 %v457
    %v1851 = vpop.f32.mrf.mxu0
    %v1852 = vadd.f32 0.0, %v1851
    %v1853 = vpop.f32.mrf.mxu0
    %1854 = vdwg.mxu0
    %v1855 = vmul.f32 %v1852, 0.0078125
    %v1857 = vsel %vm543, %v1855, 0
    %1859 = vmatprep.subr.mxu0 0.0
    %1860 = vmatpush1.msra.mxu0 0.0
    %1861 = vmatprep.subr.mxu0 0.0
    %1862 = vmatpush1.msra.mxu0 0.0
    %1863 = vmatprep.subr.mxu0 0.0
    %1864 = vmatpush1.msra.mxu0 0.0
    %1865 = vmatprep.subr.mxu0 0.0
    %1866 = vmatpush1.msra.mxu0 0.0
    %1867 = vmatprep.subr.mxu0 0.0
    %1868 = vmatpush1.msra.mxu0 0.0
    %1869 = vmatprep.subr.mxu0 0.0
    %1870 = vmatpush1.msra.mxu0 0.0
    %1871 = vmatprep.subr.mxu0 0.0
    %1872 = vmatpush1.msra.mxu0 0.0
    %1873 = vmatprep.subr.mxu0 0.0
    %1874 = vmatpush1.msra.mxu0 0.0
    %1875 = vmatprep.subr.mxu0 0.0
    %1876 = vmatpush1.msra.mxu0 0.0
    %1877 = vmatprep.subr.mxu0 0.0
    %1878 = vmatpush1.msra.mxu0 0.0
    %1879 = vmatprep.subr.mxu0 0.0
    %1880 = vmatpush1.msra.mxu0 0.0
    %1881 = vmatprep.subr.mxu0 0.0
    %1882 = vmatpush1.msra.mxu0 0.0
    %1883 = vmatprep.subr.mxu0 0.0
    %1884 = vmatpush1.msra.mxu0 0.0
    %1885 = vmatprep.subr.mxu0 0.0
    %1886 = vmatpush1.msra.mxu0 0.0
    %1887 = vmatprep.subr.mxu0 0.0
    %1888 = vmatpush1.msra.mxu0 0.0
    %1889 = vmatprep.subr.mxu0 0.0
    %1890 = vmatpush1.msra.mxu0 %v1857
    %1891 = vmatprep.subr.mxu0 0.0
    %1892 = vmatpush2.msra.mxu0 0.0
    %1893 = vmatprep.subr.mxu0 0.0
    %1894 = vmatpush2.msra.mxu0 0.0
    %1895 = vmatprep.subr.mxu0 0.0
    %1896 = vmatpush2.msra.mxu0 0.0
    %1897 = vmatprep.subr.mxu0 0.0
    %1898 = vmatpush2.msra.mxu0 0.0
    %1899 = vmatprep.subr.mxu0 0.0
    %1900 = vmatpush2.msra.mxu0 0.0
    %1901 = vmatprep.subr.mxu0 0.0
    %1902 = vmatpush2.msra.mxu0 0.0
    %1903 = vmatprep.subr.mxu0 0.0
    %1904 = vmatpush2.msra.mxu0 0.0
    %1905 = vmatprep.subr.mxu0 0.0
    %1906 = vmatpush2.msra.mxu0 0.0
    %1907 = vmatprep.subr.mxu0 0.0
    %1908 = vmatpush2.msra.mxu0 0.0
    %1909 = vmatprep.subr.mxu0 0.0
    %1910 = vmatpush2.msra.mxu0 0.0
    %1911 = vmatprep.subr.mxu0 0.0
    %1912 = vmatpush2.msra.mxu0 0.0
    %1913 = vmatprep.subr.mxu0 0.0
    %1914 = vmatpush2.msra.mxu0 0.0
    %1915 = vmatprep.subr.mxu0 0.0
    %1916 = vmatpush2.msra.mxu0 0.0
    %1917 = vmatprep.subr.mxu0 0.0
    %1918 = vmatpush2.msra.mxu0 0.0
    %1919 = vmatprep.subr.mxu0 0.0
    %1920 = vmatpush2.msra.mxu0 0.0
    %1921 = vmatprep.subr.mxu0 0.0
    %1922 = vmatpush2.msra.mxu0 0.0
    %1923 = vmatprep.mubr.f32.mxu0 0.0
    %1924 = vmatmul.mubr.f32.gmra.mxu0 %v532
    %v1925 = vpop.f32.mrf.mxu0
    %v1926 = vadd.f32 0.0, %v1925
    %v1927 = vpop.f32.mrf.mxu0
    %1928 = vmatprep.mubr.f32.mxu0 0.0
    %1929 = vmatmul.mubr.f32.gmra.mxu0 %v535
    %v1930 = vpop.f32.mrf.mxu0
    %v1931 = vadd.f32 0.0, %v1930
    %v1932 = vpop.f32.mrf.mxu0
    %1933 = vmatprep.mubr.f32.mxu0 0.0
    %1934 = vmatmul.mubr.f32.gmra.mxu0 %v538
    %v1935 = vpop.f32.mrf.mxu0
    %v1936 = vadd.f32 0.0, %v1935
    %v1937 = vpop.f32.mrf.mxu0
    %1938 = vmatprep.mubr.f32.mxu0 0.0
    %1939 = vmatmul.mubr.f32.gmra.mxu0 %v541
    %v1940 = vpop.f32.mrf.mxu0
    %v1941 = vadd.f32 0.0, %v1940
    %v1942 = vpop.f32.mrf.mxu0
    %1943 = vdwg.mxu0
    %1945 = vset.pattern.permute.xlu0 0
    %1946 = vperm.xlu0 %1945, %v1926
    %v1947 = vpop.permute.xlu0 %1946
    %1950 = vset.pattern.permute.xlu0 0
    %1951 = vperm.xlu0 %1950, %v1931
    %v1952 = vpop.permute.xlu0 %1951
    %1955 = vset.pattern.permute.xlu0 0
    %1956 = vperm.xlu0 %1955, %v1936
    %v1957 = vpop.permute.xlu0 %1956
    %1960 = vset.pattern.permute.xlu0 0
    %1961 = vperm.xlu0 %1960, %v1941
    %v1962 = vpop.permute.xlu0 %1961
    %v1964 = vsub.f32 %v439, %v1947
    %v1965 = vsub.f32 %v440, %v1952
    %v1966 = vsub.f32 %v441, %v1957
    %v1967 = vsub.f32 %v442, %v1962
    %v1968 = vmul.f32 %v1964, %v1964
    %v1969 = vmul.f32 %v1965, %v1965
    %v1970 = vmul.f32 %v1966, %v1966
    %v1971 = vmul.f32 %v1967, %v1967
    %1976 = vrot.lane.b32.xlu0 %v1968, 80
    %v1977 = vpop.permute.xlu0 %1976
    %1978 = vrot.lane.b32.xlu0 %v1969, 80
    %v1979 = vpop.permute.xlu0 %1978
    %1980 = vrot.lane.b32.xlu0 %v1970, 80
    %v1981 = vpop.permute.xlu0 %1980
    %1982 = vrot.lane.b32.xlu0 %v1971, 80
    %v1983 = vpop.permute.xlu0 %1982
    %v1988 = vsel %vm443, %v1977, 0.0
    %1989 = vadd.xlane.f32.xlu0 %v1988
    %v1990 = vpop.xlane.xlu0 %1989
    %v1991 = vsel %vm443, %v1979, 0.0
    %1992 = vadd.xlane.f32.xlu0 %v1991
    %v1993 = vpop.xlane.xlu0 %1992
    %v1994 = vsel %vm443, %v1981, 0.0
    %1995 = vadd.xlane.f32.xlu0 %v1994
    %v1996 = vpop.xlane.xlu0 %1995
    %v1997 = vsel %vm443, %v1983, 0.0
    %1998 = vadd.xlane.f32.xlu0 %v1997
    %v1999 = vpop.xlane.xlu0 %1998
    %2000 = vmatprep.subr.mxu0 0.0
    %2001 = vmatpush1.msra.mxu0 0.0
    %2002 = vmatprep.subr.mxu0 0.0
    %2003 = vmatpush1.msra.mxu0 0.0
    %2004 = vmatprep.subr.mxu0 0.0
    %2005 = vmatpush1.msra.mxu0 0.0
    %2006 = vmatprep.subr.mxu0 0.0
    %2007 = vmatpush1.msra.mxu0 0.0
    %2008 = vmatprep.subr.mxu0 0.0
    %2009 = vmatpush1.msra.mxu0 0.0
    %2010 = vmatprep.subr.mxu0 0.0
    %2011 = vmatpush1.msra.mxu0 0.0
    %2012 = vmatprep.subr.mxu0 0.0
    %2013 = vmatpush1.msra.mxu0 0.0
    %2014 = vmatprep.subr.mxu0 0.0
    %2015 = vmatpush1.msra.mxu0 0.0
    %2016 = vmatprep.subr.mxu0 0.0
    %2017 = vmatpush1.msra.mxu0 0.0
    %2018 = vmatprep.subr.mxu0 0.0
    %2019 = vmatpush1.msra.mxu0 0.0
    %2020 = vmatprep.subr.mxu0 0.0
    %2021 = vmatpush1.msra.mxu0 0.0
    %2022 = vmatprep.subr.mxu0 0.0
    %2023 = vmatpush1.msra.mxu0 0.0
    %2024 = vmatprep.subr.mxu0 0.0
    %2025 = vmatpush1.msra.mxu0 %v1999
    %2026 = vmatprep.subr.mxu0 0.0
    %2027 = vmatpush1.msra.mxu0 %v1996
    %2028 = vmatprep.subr.mxu0 0.0
    %2029 = vmatpush1.msra.mxu0 %v1993
    %2030 = vmatprep.subr.mxu0 0.0
    %2031 = vmatpush1.msra.mxu0 %v1990
    %2032 = vmatprep.subr.mxu0 0.0
    %2033 = vmatpush2.msra.mxu0 0.0
    %2034 = vmatprep.subr.mxu0 0.0
    %2035 = vmatpush2.msra.mxu0 0.0
    %2036 = vmatprep.subr.mxu0 0.0
    %2037 = vmatpush2.msra.mxu0 0.0
    %2038 = vmatprep.subr.mxu0 0.0
    %2039 = vmatpush2.msra.mxu0 0.0
    %2040 = vmatprep.subr.mxu0 0.0
    %2041 = vmatpush2.msra.mxu0 0.0
    %2042 = vmatprep.subr.mxu0 0.0
    %2043 = vmatpush2.msra.mxu0 0.0
    %2044 = vmatprep.subr.mxu0 0.0
    %2045 = vmatpush2.msra.mxu0 0.0
    %2046 = vmatprep.subr.mxu0 0.0
    %2047 = vmatpush2.msra.mxu0 0.0
    %2048 = vmatprep.subr.mxu0 0.0
    %2049 = vmatpush2.msra.mxu0 0.0
    %2050 = vmatprep.subr.mxu0 0.0
    %2051 = vmatpush2.msra.mxu0 0.0
    %2052 = vmatprep.subr.mxu0 0.0
    %2053 = vmatpush2.msra.mxu0 0.0
    %2054 = vmatprep.subr.mxu0 0.0
    %2055 = vmatpush2.msra.mxu0 0.0
    %2056 = vmatprep.subr.mxu0 0.0
    %2057 = vmatpush2.msra.mxu0 0.0
    %2058 = vmatprep.subr.mxu0 0.0
    %2059 = vmatpush2.msra.mxu0 0.0
    %2060 = vmatprep.subr.mxu0 0.0
    %2061 = vmatpush2.msra.mxu0 0.0
    %2062 = vmatprep.subr.mxu0 0.0
    %2063 = vmatpush2.msra.mxu0 0.0
    %2064 = vmatprep.mubr.f32.mxu0 0.0
    %2065 = vmatmul.mubr.f32.gmra.mxu0 %v457
    %v2066 = vpop.f32.mrf.mxu0
    %v2067 = vadd.f32 0.0, %v2066
    %v2068 = vpop.f32.mrf.mxu0
    %2069 = vdwg.mxu0
    %v2070 = vmul.f32 %v2067, 0.0078125
    %v2071 = vadd.f32 %v2070, 1e-05
    %v2072 = vrsqrt.pop %v2071
    %v2074 = vsel %vm543, %v2072, 0
    %2076 = vmatprep.subr.mxu0 0.0
    %2077 = vmatpush1.msra.mxu0 0.0
    %2078 = vmatprep.subr.mxu0 0.0
    %2079 = vmatpush1.msra.mxu0 0.0
    %2080 = vmatprep.subr.mxu0 0.0
    %2081 = vmatpush1.msra.mxu0 0.0
    %2082 = vmatprep.subr.mxu0 0.0
    %2083 = vmatpush1.msra.mxu0 0.0
    %2084 = vmatprep.subr.mxu0 0.0
    %2085 = vmatpush1.msra.mxu0 0.0
    %2086 = vmatprep.subr.mxu0 0.0
    %2087 = vmatpush1.msra.mxu0 0.0
    %2088 = vmatprep.subr.mxu0 0.0
    %2089 = vmatpush1.msra.mxu0 0.0
    %2090 = vmatprep.subr.mxu0 0.0
    %2091 = vmatpush1.msra.mxu0 0.0
    %2092 = vmatprep.subr.mxu0 0.0
    %2093 = vmatpush1.msra.mxu0 0.0
    %2094 = vmatprep.subr.mxu0 0.0
    %2095 = vmatpush1.msra.mxu0 0.0
    %2096 = vmatprep.subr.mxu0 0.0
    %2097 = vmatpush1.msra.mxu0 0.0
    %2098 = vmatprep.subr.mxu0 0.0
    %2099 = vmatpush1.msra.mxu0 0.0
    %2100 = vmatprep.subr.mxu0 0.0
    %2101 = vmatpush1.msra.mxu0 0.0
    %2102 = vmatprep.subr.mxu0 0.0
    %2103 = vmatpush1.msra.mxu0 0.0
    %2104 = vmatprep.subr.mxu0 0.0
    %2105 = vmatpush1.msra.mxu0 0.0
    %2106 = vmatprep.subr.mxu0 0.0
    %2107 = vmatpush1.msra.mxu0 %v2074
    %2108 = vmatprep.subr.mxu0 0.0
    %2109 = vmatpush2.msra.mxu0 0.0
    %2110 = vmatprep.subr.mxu0 0.0
    %2111 = vmatpush2.msra.mxu0 0.0
    %2112 = vmatprep.subr.mxu0 0.0
    %2113 = vmatpush2.msra.mxu0 0.0
    %2114 = vmatprep.subr.mxu0 0.0
    %2115 = vmatpush2.msra.mxu0 0.0
    %2116 = vmatprep.subr.mxu0 0.0
    %2117 = vmatpush2.msra.mxu0 0.0
    %2118 = vmatprep.subr.mxu0 0.0
    %2119 = vmatpush2.msra.mxu0 0.0
    %2120 = vmatprep.subr.mxu0 0.0
    %2121 = vmatpush2.msra.mxu0 0.0
    %2122 = vmatprep.subr.mxu0 0.0
    %2123 = vmatpush2.msra.mxu0 0.0
    %2124 = vmatprep.subr.mxu0 0.0
    %2125 = vmatpush2.msra.mxu0 0.0
    %2126 = vmatprep.subr.mxu0 0.0
    %2127 = vmatpush2.msra.mxu0 0.0
    %2128 = vmatprep.subr.mxu0 0.0
    %2129 = vmatpush2.msra.mxu0 0.0
    %2130 = vmatprep.subr.mxu0 0.0
    %2131 = vmatpush2.msra.mxu0 0.0
    %2132 = vmatprep.subr.mxu0 0.0
    %2133 = vmatpush2.msra.mxu0 0.0
    %2134 = vmatprep.subr.mxu0 0.0
    %2135 = vmatpush2.msra.mxu0 0.0
    %2136 = vmatprep.subr.mxu0 0.0
    %2137 = vmatpush2.msra.mxu0 0.0
    %2138 = vmatprep.subr.mxu0 0.0
    %2139 = vmatpush2.msra.mxu0 0.0
    %2140 = vmatprep.mubr.f32.mxu0 0.0
    %2141 = vmatmul.mubr.f32.gmra.mxu0 %v532
    %v2142 = vpop.f32.mrf.mxu0
    %v2143 = vadd.f32 0.0, %v2142
    %v2144 = vpop.f32.mrf.mxu0
    %2145 = vmatprep.mubr.f32.mxu0 0.0
    %2146 = vmatmul.mubr.f32.gmra.mxu0 %v535
    %v2147 = vpop.f32.mrf.mxu0
    %v2148 = vadd.f32 0.0, %v2147
    %v2149 = vpop.f32.mrf.mxu0
    %2150 = vmatprep.mubr.f32.mxu0 0.0
    %2151 = vmatmul.mubr.f32.gmra.mxu0 %v538
    %v2152 = vpop.f32.mrf.mxu0
    %v2153 = vadd.f32 0.0, %v2152
    %v2154 = vpop.f32.mrf.mxu0
    %2155 = vmatprep.mubr.f32.mxu0 0.0
    %2156 = vmatmul.mubr.f32.gmra.mxu0 %v541
    %v2157 = vpop.f32.mrf.mxu0
    %v2158 = vadd.f32 0.0, %v2157
    %v2159 = vpop.f32.mrf.mxu0
    %2160 = vdwg.mxu0
    %v2161 = vmul.f32 %v2143, %v834
    %v2162 = vmul.f32 %v2148, %v836
    %v2163 = vmul.f32 %v2153, %v838
    %v2164 = vmul.f32 %v2158, %v840
    %2166 = vset.pattern.permute.xlu0 0
    %2167 = vperm.xlu0 %2166, %v2161
    %v2168 = vpop.permute.xlu0 %2167
    %2171 = vset.pattern.permute.xlu0 0
    %2172 = vperm.xlu0 %2171, %v2162
    %v2173 = vpop.permute.xlu0 %2172
    %2176 = vset.pattern.permute.xlu0 0
    %2177 = vperm.xlu0 %2176, %v2163
    %v2178 = vpop.permute.xlu0 %2177
    %2181 = vset.pattern.permute.xlu0 0
    %2182 = vperm.xlu0 %2181, %v2164
    %v2183 = vpop.permute.xlu0 %2182
    %v2185 = vmul.f32 %v1964, %v2168
    %v2186 = vmul.f32 %v1965, %v2173
    %v2187 = vmul.f32 %v1966, %v2178
    %v2188 = vmul.f32 %v1967, %v2183
    %v2189 = vadd.f32 %v2185, %v875
    %v2190 = vadd.f32 %v2186, %v879
    %v2191 = vadd.f32 %v2187, %v883
    %v2192 = vadd.f32 %v2188, %v887
    %2193 = vrot.lane.b32.xlu0 %v439, 64
    %v2194 = vpop.permute.xlu0 %2193
    %2195 = vrot.lane.b32.xlu0 %v440, 64
    %v2196 = vpop.permute.xlu0 %2195
    %2197 = vrot.lane.b32.xlu0 %v441, 64
    %v2198 = vpop.permute.xlu0 %2197
    %2199 = vrot.lane.b32.xlu0 %v442, 64
    %v2200 = vpop.permute.xlu0 %2199
    %v2205 = vsel %vm443, %v2194, 0.0
    %2206 = vadd.xlane.f32.xlu0 %v2205
    %v2207 = vpop.xlane.xlu0 %2206
    %v2208 = vsel %vm443, %v2196, 0.0
    %2209 = vadd.xlane.f32.xlu0 %v2208
    %v2210 = vpop.xlane.xlu0 %2209
    %v2211 = vsel %vm443, %v2198, 0.0
    %2212 = vadd.xlane.f32.xlu0 %v2211
    %v2213 = vpop.xlane.xlu0 %2212
    %v2214 = vsel %vm443, %v2200, 0.0
    %2215 = vadd.xlane.f32.xlu0 %v2214
    %v2216 = vpop.xlane.xlu0 %2215
    %2217 = vmatprep.subr.mxu0 0.0
    %2218 = vmatpush1.msra.mxu0 0.0
    %2219 = vmatprep.subr.mxu0 0.0
    %2220 = vmatpush1.msra.mxu0 0.0
    %2221 = vmatprep.subr.mxu0 0.0
    %2222 = vmatpush1.msra.mxu0 0.0
    %2223 = vmatprep.subr.mxu0 0.0
    %2224 = vmatpush1.msra.mxu0 0.0
    %2225 = vmatprep.subr.mxu0 0.0
    %2226 = vmatpush1.msra.mxu0 0.0
    %2227 = vmatprep.subr.mxu0 0.0
    %2228 = vmatpush1.msra.mxu0 0.0
    %2229 = vmatprep.subr.mxu0 0.0
    %2230 = vmatpush1.msra.mxu0 0.0
    %2231 = vmatprep.subr.mxu0 0.0
    %2232 = vmatpush1.msra.mxu0 0.0
    %2233 = vmatprep.subr.mxu0 0.0
    %2234 = vmatpush1.msra.mxu0 0.0
    %2235 = vmatprep.subr.mxu0 0.0
    %2236 = vmatpush1.msra.mxu0 0.0
    %2237 = vmatprep.subr.mxu0 0.0
    %2238 = vmatpush1.msra.mxu0 0.0
    %2239 = vmatprep.subr.mxu0 0.0
    %2240 = vmatpush1.msra.mxu0 0.0
    %2241 = vmatprep.subr.mxu0 0.0
    %2242 = vmatpush1.msra.mxu0 %v2216
    %2243 = vmatprep.subr.mxu0 0.0
    %2244 = vmatpush1.msra.mxu0 %v2213
    %2245 = vmatprep.subr.mxu0 0.0
    %2246 = vmatpush1.msra.mxu0 %v2210
    %2247 = vmatprep.subr.mxu0 0.0
    %2248 = vmatpush1.msra.mxu0 %v2207
    %2249 = vmatprep.subr.mxu0 0.0
    %2250 = vmatpush2.msra.mxu0 0.0
    %2251 = vmatprep.subr.mxu0 0.0
    %2252 = vmatpush2.msra.mxu0 0.0
    %2253 = vmatprep.subr.mxu0 0.0
    %2254 = vmatpush2.msra.mxu0 0.0
    %2255 = vmatprep.subr.mxu0 0.0
    %2256 = vmatpush2.msra.mxu0 0.0
    %2257 = vmatprep.subr.mxu0 0.0
    %2258 = vmatpush2.msra.mxu0 0.0
    %2259 = vmatprep.subr.mxu0 0.0
    %2260 = vmatpush2.msra.mxu0 0.0
    %2261 = vmatprep.subr.mxu0 0.0
    %2262 = vmatpush2.msra.mxu0 0.0
    %2263 = vmatprep.subr.mxu0 0.0
    %2264 = vmatpush2.msra.mxu0 0.0
    %2265 = vmatprep.subr.mxu0 0.0
    %2266 = vmatpush2.msra.mxu0 0.0
    %2267 = vmatprep.subr.mxu0 0.0
    %2268 = vmatpush2.msra.mxu0 0.0
    %2269 = vmatprep.subr.mxu0 0.0
    %2270 = vmatpush2.msra.mxu0 0.0
    %2271 = vmatprep.subr.mxu0 0.0
    %2272 = vmatpush2.msra.mxu0 0.0
    %2273 = vmatprep.subr.mxu0 0.0
    %2274 = vmatpush2.msra.mxu0 0.0
    %2275 = vmatprep.subr.mxu0 0.0
    %2276 = vmatpush2.msra.mxu0 0.0
    %2277 = vmatprep.subr.mxu0 0.0
    %2278 = vmatpush2.msra.mxu0 0.0
    %2279 = vmatprep.subr.mxu0 0.0
    %2280 = vmatpush2.msra.mxu0 0.0
    %2281 = vmatprep.mubr.f32.mxu0 0.0
    %2282 = vmatmul.mubr.f32.gmra.mxu0 %v457
    %v2283 = vpop.f32.mrf.mxu0
    %v2284 = vadd.f32 0.0, %v2283
    %v2285 = vpop.f32.mrf.mxu0
    %2286 = vdwg.mxu0
    %v2287 = vmul.f32 %v2284, 0.0078125
    %v2289 = vsel %vm543, %v2287, 0
    %2291 = vmatprep.subr.mxu0 0.0
    %2292 = vmatpush1.msra.mxu0 0.0
    %2293 = vmatprep.subr.mxu0 0.0
    %2294 = vmatpush1.msra.mxu0 0.0
    %2295 = vmatprep.subr.mxu0 0.0
    %2296 = vmatpush1.msra.mxu0 0.0
    %2297 = vmatprep.subr.mxu0 0.0
    %2298 = vmatpush1.msra.mxu0 0.0
    %2299 = vmatprep.subr.mxu0 0.0
    %2300 = vmatpush1.msra.mxu0 0.0
    %2301 = vmatprep.subr.mxu0 0.0
    %2302 = vmatpush1.msra.mxu0 0.0
    %2303 = vmatprep.subr.mxu0 0.0
    %2304 = vmatpush1.msra.mxu0 0.0
    %2305 = vmatprep.subr.mxu0 0.0
    %2306 = vmatpush1.msra.mxu0 0.0
    %2307 = vmatprep.subr.mxu0 0.0
    %2308 = vmatpush1.msra.mxu0 0.0
    %2309 = vmatprep.subr.mxu0 0.0
    %2310 = vmatpush1.msra.mxu0 0.0
    %2311 = vmatprep.subr.mxu0 0.0
    %2312 = vmatpush1.msra.mxu0 0.0
    %2313 = vmatprep.subr.mxu0 0.0
    %2314 = vmatpush1.msra.mxu0 0.0
    %2315 = vmatprep.subr.mxu0 0.0
    %2316 = vmatpush1.msra.mxu0 0.0
    %2317 = vmatprep.subr.mxu0 0.0
    %2318 = vmatpush1.msra.mxu0 0.0
    %2319 = vmatprep.subr.mxu0 0.0
    %2320 = vmatpush1.msra.mxu0 0.0
    %2321 = vmatprep.subr.mxu0 0.0
    %2322 = vmatpush1.msra.mxu0 %v2289
    %2323 = vmatprep.subr.mxu0 0.0
    %2324 = vmatpush2.msra.mxu0 0.0
    %2325 = vmatprep.subr.mxu0 0.0
    %2326 = vmatpush2.msra.mxu0 0.0
    %2327 = vmatprep.subr.mxu0 0.0
    %2328 = vmatpush2.msra.mxu0 0.0
    %2329 = vmatprep.subr.mxu0 0.0
    %2330 = vmatpush2.msra.mxu0 0.0
    %2331 = vmatprep.subr.mxu0 0.0
    %2332 = vmatpush2.msra.mxu0 0.0
    %2333 = vmatprep.subr.mxu0 0.0
    %2334 = vmatpush2.msra.mxu0 0.0
    %2335 = vmatprep.subr.mxu0 0.0
    %2336 = vmatpush2.msra.mxu0 0.0
    %2337 = vmatprep.subr.mxu0 0.0
    %2338 = vmatpush2.msra.mxu0 0.0
    %2339 = vmatprep.subr.mxu0 0.0
    %2340 = vmatpush2.msra.mxu0 0.0
    %2341 = vmatprep.subr.mxu0 0.0
    %2342 = vmatpush2.msra.mxu0 0.0
    %2343 = vmatprep.subr.mxu0 0.0
    %2344 = vmatpush2.msra.mxu0 0.0
    %2345 = vmatprep.subr.mxu0 0.0
    %2346 = vmatpush2.msra.mxu0 0.0
    %2347 = vmatprep.subr.mxu0 0.0
    %2348 = vmatpush2.msra.mxu0 0.0
    %2349 = vmatprep.subr.mxu0 0.0
    %2350 = vmatpush2.msra.mxu0 0.0
    %2351 = vmatprep.subr.mxu0 0.0
    %2352 = vmatpush2.msra.mxu0 0.0
    %2353 = vmatprep.subr.mxu0 0.0
    %2354 = vmatpush2.msra.mxu0 0.0
    %2355 = vmatprep.mubr.f32.mxu0 0.0
    %2356 = vmatmul.mubr.f32.gmra.mxu0 %v532
    %v2357 = vpop.f32.mrf.mxu0
    %v2358 = vadd.f32 0.0, %v2357
    %v2359 = vpop.f32.mrf.mxu0
    %2360 = vmatprep.mubr.f32.mxu0 0.0
    %2361 = vmatmul.mubr.f32.gmra.mxu0 %v535
    %v2362 = vpop.f32.mrf.mxu0
    %v2363 = vadd.f32 0.0, %v2362
    %v2364 = vpop.f32.mrf.mxu0
    %2365 = vmatprep.mubr.f32.mxu0 0.0
    %2366 = vmatmul.mubr.f32.gmra.mxu0 %v538
    %v2367 = vpop.f32.mrf.mxu0
    %v2368 = vadd.f32 0.0, %v2367
    %v2369 = vpop.f32.mrf.mxu0
    %2370 = vmatprep.mubr.f32.mxu0 0.0
    %2371 = vmatmul.mubr.f32.gmra.mxu0 %v541
    %v2372 = vpop.f32.mrf.mxu0
    %v2373 = vadd.f32 0.0, %v2372
    %v2374 = vpop.f32.mrf.mxu0
    %2375 = vdwg.mxu0
    %2377 = vset.pattern.permute.xlu0 0
    %2378 = vperm.xlu0 %2377, %v2358
    %v2379 = vpop.permute.xlu0 %2378
    %2382 = vset.pattern.permute.xlu0 0
    %2383 = vperm.xlu0 %2382, %v2363
    %v2384 = vpop.permute.xlu0 %2383
    %2387 = vset.pattern.permute.xlu0 0
    %2388 = vperm.xlu0 %2387, %v2368
    %v2389 = vpop.permute.xlu0 %2388
    %2392 = vset.pattern.permute.xlu0 0
    %2393 = vperm.xlu0 %2392, %v2373
    %v2394 = vpop.permute.xlu0 %2393
    %v2396 = vsub.f32 %v439, %v2379
    %v2397 = vsub.f32 %v440, %v2384
    %v2398 = vsub.f32 %v441, %v2389
    %v2399 = vsub.f32 %v442, %v2394
    %v2400 = vmul.f32 %v2396, %v2396
    %v2401 = vmul.f32 %v2397, %v2397
    %v2402 = vmul.f32 %v2398, %v2398
    %v2403 = vmul.f32 %v2399, %v2399
    %2408 = vrot.lane.b32.xlu0 %v2400, 64
    %v2409 = vpop.permute.xlu0 %2408
    %2410 = vrot.lane.b32.xlu0 %v2401, 64
    %v2411 = vpop.permute.xlu0 %2410
    %2412 = vrot.lane.b32.xlu0 %v2402, 64
    %v2413 = vpop.permute.xlu0 %2412
    %2414 = vrot.lane.b32.xlu0 %v2403, 64
    %v2415 = vpop.permute.xlu0 %2414
    %v2420 = vsel %vm443, %v2409, 0.0
    %2421 = vadd.xlane.f32.xlu0 %v2420
    %v2422 = vpop.xlane.xlu0 %2421
    %v2423 = vsel %vm443, %v2411, 0.0
    %2424 = vadd.xlane.f32.xlu0 %v2423
    %v2425 = vpop.xlane.xlu0 %2424
    %v2426 = vsel %vm443, %v2413, 0.0
    %2427 = vadd.xlane.f32.xlu0 %v2426
    %v2428 = vpop.xlane.xlu0 %2427
    %v2429 = vsel %vm443, %v2415, 0.0
    %2430 = vadd.xlane.f32.xlu0 %v2429
    %v2431 = vpop.xlane.xlu0 %2430
    %2432 = vmatprep.subr.mxu0 0.0
    %2433 = vmatpush1.msra.mxu0 0.0
    %2434 = vmatprep.subr.mxu0 0.0
    %2435 = vmatpush1.msra.mxu0 0.0
    %2436 = vmatprep.subr.mxu0 0.0
    %2437 = vmatpush1.msra.mxu0 0.0
    %2438 = vmatprep.subr.mxu0 0.0
    %2439 = vmatpush1.msra.mxu0 0.0
    %2440 = vmatprep.subr.mxu0 0.0
    %2441 = vmatpush1.msra.mxu0 0.0
    %2442 = vmatprep.subr.mxu0 0.0
    %2443 = vmatpush1.msra.mxu0 0.0
    %2444 = vmatprep.subr.mxu0 0.0
    %2445 = vmatpush1.msra.mxu0 0.0
    %2446 = vmatprep.subr.mxu0 0.0
    %2447 = vmatpush1.msra.mxu0 0.0
    %2448 = vmatprep.subr.mxu0 0.0
    %2449 = vmatpush1.msra.mxu0 0.0
    %2450 = vmatprep.subr.mxu0 0.0
    %2451 = vmatpush1.msra.mxu0 0.0
    %2452 = vmatprep.subr.mxu0 0.0
    %2453 = vmatpush1.msra.mxu0 0.0
    %2454 = vmatprep.subr.mxu0 0.0
    %2455 = vmatpush1.msra.mxu0 0.0
    %2456 = vmatprep.subr.mxu0 0.0
    %2457 = vmatpush1.msra.mxu0 %v2431
    %2458 = vmatprep.subr.mxu0 0.0
    %2459 = vmatpush1.msra.mxu0 %v2428
    %2460 = vmatprep.subr.mxu0 0.0
    %2461 = vmatpush1.msra.mxu0 %v2425
    %2462 = vmatprep.subr.mxu0 0.0
    %2463 = vmatpush1.msra.mxu0 %v2422
    %2464 = vmatprep.subr.mxu0 0.0
    %2465 = vmatpush2.msra.mxu0 0.0
    %2466 = vmatprep.subr.mxu0 0.0
    %2467 = vmatpush2.msra.mxu0 0.0
    %2468 = vmatprep.subr.mxu0 0.0
    %2469 = vmatpush2.msra.mxu0 0.0
    %2470 = vmatprep.subr.mxu0 0.0
    %2471 = vmatpush2.msra.mxu0 0.0
    %2472 = vmatprep.subr.mxu0 0.0
    %2473 = vmatpush2.msra.mxu0 0.0
    %2474 = vmatprep.subr.mxu0 0.0
    %2475 = vmatpush2.msra.mxu0 0.0
    %2476 = vmatprep.subr.mxu0 0.0
    %2477 = vmatpush2.msra.mxu0 0.0
    %2478 = vmatprep.subr.mxu0 0.0
    %2479 = vmatpush2.msra.mxu0 0.0
    %2480 = vmatprep.subr.mxu0 0.0
    %2481 = vmatpush2.msra.mxu0 0.0
    %2482 = vmatprep.subr.mxu0 0.0
    %2483 = vmatpush2.msra.mxu0 0.0
    %2484 = vmatprep.subr.mxu0 0.0
    %2485 = vmatpush2.msra.mxu0 0.0
    %2486 = vmatprep.subr.mxu0 0.0
    %2487 = vmatpush2.msra.mxu0 0.0
    %2488 = vmatprep.subr.mxu0 0.0
    %2489 = vmatpush2.msra.mxu0 0.0
    %2490 = vmatprep.subr.mxu0 0.0
    %2491 = vmatpush2.msra.mxu0 0.0
    %2492 = vmatprep.subr.mxu0 0.0
    %2493 = vmatpush2.msra.mxu0 0.0
    %2494 = vmatprep.subr.mxu0 0.0
    %2495 = vmatpush2.msra.mxu0 0.0
    %2496 = vmatprep.mubr.f32.mxu0 0.0
    %2497 = vmatmul.mubr.f32.gmra.mxu0 %v457
    %v2498 = vpop.f32.mrf.mxu0
    %v2499 = vadd.f32 0.0, %v2498
    %v2500 = vpop.f32.mrf.mxu0
    %2501 = vdwg.mxu0
    %v2502 = vmul.f32 %v2499, 0.0078125
    %v2503 = vadd.f32 %v2502, 1e-05
    %v2504 = vrsqrt.pop %v2503
    %v2506 = vsel %vm543, %v2504, 0
    %2508 = vmatprep.subr.mxu0 0.0
    %2509 = vmatpush1.msra.mxu0 0.0
    %2510 = vmatprep.subr.mxu0 0.0
    %2511 = vmatpush1.msra.mxu0 0.0
    %2512 = vmatprep.subr.mxu0 0.0
    %2513 = vmatpush1.msra.mxu0 0.0
    %2514 = vmatprep.subr.mxu0 0.0
    %2515 = vmatpush1.msra.mxu0 0.0
    %2516 = vmatprep.subr.mxu0 0.0
    %2517 = vmatpush1.msra.mxu0 0.0
    %2518 = vmatprep.subr.mxu0 0.0
    %2519 = vmatpush1.msra.mxu0 0.0
    %2520 = vmatprep.subr.mxu0 0.0
    %2521 = vmatpush1.msra.mxu0 0.0
    %2522 = vmatprep.subr.mxu0 0.0
    %2523 = vmatpush1.msra.mxu0 0.0
    %2524 = vmatprep.subr.mxu0 0.0
    %2525 = vmatpush1.msra.mxu0 0.0
    %2526 = vmatprep.subr.mxu0 0.0
    %2527 = vmatpush1.msra.mxu0 0.0
    %2528 = vmatprep.subr.mxu0 0.0
    %2529 = vmatpush1.msra.mxu0 0.0
    %2530 = vmatprep.subr.mxu0 0.0
    %2531 = vmatpush1.msra.mxu0 0.0
    %2532 = vmatprep.subr.mxu0 0.0
    %2533 = vmatpush1.msra.mxu0 0.0
    %2534 = vmatprep.subr.mxu0 0.0
    %2535 = vmatpush1.msra.mxu0 0.0
    %2536 = vmatprep.subr.mxu0 0.0
    %2537 = vmatpush1.msra.mxu0 0.0
    %2538 = vmatprep.subr.mxu0 0.0
    %2539 = vmatpush1.msra.mxu0 %v2506
    %2540 = vmatprep.subr.mxu0 0.0
    %2541 = vmatpush2.msra.mxu0 0.0
    %2542 = vmatprep.subr.mxu0 0.0
    %2543 = vmatpush2.msra.mxu0 0.0
    %2544 = vmatprep.subr.mxu0 0.0
    %2545 = vmatpush2.msra.mxu0 0.0
    %2546 = vmatprep.subr.mxu0 0.0
    %2547 = vmatpush2.msra.mxu0 0.0
    %2548 = vmatprep.subr.mxu0 0.0
    %2549 = vmatpush2.msra.mxu0 0.0
    %2550 = vmatprep.subr.mxu0 0.0
    %2551 = vmatpush2.msra.mxu0 0.0
    %2552 = vmatprep.subr.mxu0 0.0
    %2553 = vmatpush2.msra.mxu0 0.0
    %2554 = vmatprep.subr.mxu0 0.0
    %2555 = vmatpush2.msra.mxu0 0.0
    %2556 = vmatprep.subr.mxu0 0.0
    %2557 = vmatpush2.msra.mxu0 0.0
    %2558 = vmatprep.subr.mxu0 0.0
    %2559 = vmatpush2.msra.mxu0 0.0
    %2560 = vmatprep.subr.mxu0 0.0
    %2561 = vmatpush2.msra.mxu0 0.0
    %2562 = vmatprep.subr.mxu0 0.0
    %2563 = vmatpush2.msra.mxu0 0.0
    %2564 = vmatprep.subr.mxu0 0.0
    %2565 = vmatpush2.msra.mxu0 0.0
    %2566 = vmatprep.subr.mxu0 0.0
    %2567 = vmatpush2.msra.mxu0 0.0
    %2568 = vmatprep.subr.mxu0 0.0
    %2569 = vmatpush2.msra.mxu0 0.0
    %2570 = vmatprep.subr.mxu0 0.0
    %2571 = vmatpush2.msra.mxu0 0.0
    %2572 = vmatprep.mubr.f32.mxu0 0.0
    %2573 = vmatmul.mubr.f32.gmra.mxu0 %v532
    %v2574 = vpop.f32.mrf.mxu0
    %v2575 = vadd.f32 0.0, %v2574
    %v2576 = vpop.f32.mrf.mxu0
    %2577 = vmatprep.mubr.f32.mxu0 0.0
    %2578 = vmatmul.mubr.f32.gmra.mxu0 %v535
    %v2579 = vpop.f32.mrf.mxu0
    %v2580 = vadd.f32 0.0, %v2579
    %v2581 = vpop.f32.mrf.mxu0
    %2582 = vmatprep.mubr.f32.mxu0 0.0
    %2583 = vmatmul.mubr.f32.gmra.mxu0 %v538
    %v2584 = vpop.f32.mrf.mxu0
    %v2585 = vadd.f32 0.0, %v2584
    %v2586 = vpop.f32.mrf.mxu0
    %2587 = vmatprep.mubr.f32.mxu0 0.0
    %2588 = vmatmul.mubr.f32.gmra.mxu0 %v541
    %v2589 = vpop.f32.mrf.mxu0
    %v2590 = vadd.f32 0.0, %v2589
    %v2591 = vpop.f32.mrf.mxu0
    %2592 = vdwg.mxu0
    %v2593 = vmul.f32 %v2575, %v834
    %v2594 = vmul.f32 %v2580, %v836
    %v2595 = vmul.f32 %v2585, %v838
    %v2596 = vmul.f32 %v2590, %v840
    %2598 = vset.pattern.permute.xlu0 0
    %2599 = vperm.xlu0 %2598, %v2593
    %v2600 = vpop.permute.xlu0 %2599
    %2603 = vset.pattern.permute.xlu0 0
    %2604 = vperm.xlu0 %2603, %v2594
    %v2605 = vpop.permute.xlu0 %2604
    %2608 = vset.pattern.permute.xlu0 0
    %2609 = vperm.xlu0 %2608, %v2595
    %v2610 = vpop.permute.xlu0 %2609
    %2613 = vset.pattern.permute.xlu0 0
    %2614 = vperm.xlu0 %2613, %v2596
    %v2615 = vpop.permute.xlu0 %2614
    %v2617 = vmul.f32 %v2396, %v2600
    %v2618 = vmul.f32 %v2397, %v2605
    %v2619 = vmul.f32 %v2398, %v2610
    %v2620 = vmul.f32 %v2399, %v2615
    %v2621 = vadd.f32 %v2617, %v875
    %v2622 = vadd.f32 %v2618, %v879
    %v2623 = vadd.f32 %v2619, %v883
    %v2624 = vadd.f32 %v2620, %v887
    %2625 = vrot.lane.b32.xlu0 %v439, 48
    %v2626 = vpop.permute.xlu0 %2625
    %2627 = vrot.lane.b32.xlu0 %v440, 48
    %v2628 = vpop.permute.xlu0 %2627
    %2629 = vrot.lane.b32.xlu0 %v441, 48
    %v2630 = vpop.permute.xlu0 %2629
    %2631 = vrot.lane.b32.xlu0 %v442, 48
    %v2632 = vpop.permute.xlu0 %2631
    %v2637 = vsel %vm443, %v2626, 0.0
    %2638 = vadd.xlane.f32.xlu0 %v2637
    %v2639 = vpop.xlane.xlu0 %2638
    %v2640 = vsel %vm443, %v2628, 0.0
    %2641 = vadd.xlane.f32.xlu0 %v2640
    %v2642 = vpop.xlane.xlu0 %2641
    %v2643 = vsel %vm443, %v2630, 0.0
    %2644 = vadd.xlane.f32.xlu0 %v2643
    %v2645 = vpop.xlane.xlu0 %2644
    %v2646 = vsel %vm443, %v2632, 0.0
    %2647 = vadd.xlane.f32.xlu0 %v2646
    %v2648 = vpop.xlane.xlu0 %2647
    %2649 = vmatprep.subr.mxu0 0.0
    %2650 = vmatpush1.msra.mxu0 0.0
    %2651 = vmatprep.subr.mxu0 0.0
    %2652 = vmatpush1.msra.mxu0 0.0
    %2653 = vmatprep.subr.mxu0 0.0
    %2654 = vmatpush1.msra.mxu0 0.0
    %2655 = vmatprep.subr.mxu0 0.0
    %2656 = vmatpush1.msra.mxu0 0.0
    %2657 = vmatprep.subr.mxu0 0.0
    %2658 = vmatpush1.msra.mxu0 0.0
    %2659 = vmatprep.subr.mxu0 0.0
    %2660 = vmatpush1.msra.mxu0 0.0
    %2661 = vmatprep.subr.mxu0 0.0
    %2662 = vmatpush1.msra.mxu0 0.0
    %2663 = vmatprep.subr.mxu0 0.0
    %2664 = vmatpush1.msra.mxu0 0.0
    %2665 = vmatprep.subr.mxu0 0.0
    %2666 = vmatpush1.msra.mxu0 0.0
    %2667 = vmatprep.subr.mxu0 0.0
    %2668 = vmatpush1.msra.mxu0 0.0
    %2669 = vmatprep.subr.mxu0 0.0
    %2670 = vmatpush1.msra.mxu0 0.0
    %2671 = vmatprep.subr.mxu0 0.0
    %2672 = vmatpush1.msra.mxu0 0.0
    %2673 = vmatprep.subr.mxu0 0.0
    %2674 = vmatpush1.msra.mxu0 %v2648
    %2675 = vmatprep.subr.mxu0 0.0
    %2676 = vmatpush1.msra.mxu0 %v2645
    %2677 = vmatprep.subr.mxu0 0.0
    %2678 = vmatpush1.msra.mxu0 %v2642
    %2679 = vmatprep.subr.mxu0 0.0
    %2680 = vmatpush1.msra.mxu0 %v2639
    %2681 = vmatprep.subr.mxu0 0.0
    %2682 = vmatpush2.msra.mxu0 0.0
    %2683 = vmatprep.subr.mxu0 0.0
    %2684 = vmatpush2.msra.mxu0 0.0
    %2685 = vmatprep.subr.mxu0 0.0
    %2686 = vmatpush2.msra.mxu0 0.0
    %2687 = vmatprep.subr.mxu0 0.0
    %2688 = vmatpush2.msra.mxu0 0.0
    %2689 = vmatprep.subr.mxu0 0.0
    %2690 = vmatpush2.msra.mxu0 0.0
    %2691 = vmatprep.subr.mxu0 0.0
    %2692 = vmatpush2.msra.mxu0 0.0
    %2693 = vmatprep.subr.mxu0 0.0
    %2694 = vmatpush2.msra.mxu0 0.0
    %2695 = vmatprep.subr.mxu0 0.0
    %2696 = vmatpush2.msra.mxu0 0.0
    %2697 = vmatprep.subr.mxu0 0.0
    %2698 = vmatpush2.msra.mxu0 0.0
    %2699 = vmatprep.subr.mxu0 0.0
    %2700 = vmatpush2.msra.mxu0 0.0
    %2701 = vmatprep.subr.mxu0 0.0
    %2702 = vmatpush2.msra.mxu0 0.0
    %2703 = vmatprep.subr.mxu0 0.0
    %2704 = vmatpush2.msra.mxu0 0.0
    %2705 = vmatprep.subr.mxu0 0.0
    %2706 = vmatpush2.msra.mxu0 0.0
    %2707 = vmatprep.subr.mxu0 0.0
    %2708 = vmatpush2.msra.mxu0 0.0
    %2709 = vmatprep.subr.mxu0 0.0
    %2710 = vmatpush2.msra.mxu0 0.0
    %2711 = vmatprep.subr.mxu0 0.0
    %2712 = vmatpush2.msra.mxu0 0.0
    %2713 = vmatprep.mubr.f32.mxu0 0.0
    %2714 = vmatmul.mubr.f32.gmra.mxu0 %v457
    %v2715 = vpop.f32.mrf.mxu0
    %v2716 = vadd.f32 0.0, %v2715
    %v2717 = vpop.f32.mrf.mxu0
    %2718 = vdwg.mxu0
    %v2719 = vmul.f32 %v2716, 0.0078125
    %v2721 = vsel %vm543, %v2719, 0
    %2723 = vmatprep.subr.mxu0 0.0
    %2724 = vmatpush1.msra.mxu0 0.0
    %2725 = vmatprep.subr.mxu0 0.0
    %2726 = vmatpush1.msra.mxu0 0.0
    %2727 = vmatprep.subr.mxu0 0.0
    %2728 = vmatpush1.msra.mxu0 0.0
    %2729 = vmatprep.subr.mxu0 0.0
    %2730 = vmatpush1.msra.mxu0 0.0
    %2731 = vmatprep.subr.mxu0 0.0
    %2732 = vmatpush1.msra.mxu0 0.0
    %2733 = vmatprep.subr.mxu0 0.0
    %2734 = vmatpush1.msra.mxu0 0.0
    %2735 = vmatprep.subr.mxu0 0.0
    %2736 = vmatpush1.msra.mxu0 0.0
    %2737 = vmatprep.subr.mxu0 0.0
    %2738 = vmatpush1.msra.mxu0 0.0
    %2739 = vmatprep.subr.mxu0 0.0
    %2740 = vmatpush1.msra.mxu0 0.0
    %2741 = vmatprep.subr.mxu0 0.0
    %2742 = vmatpush1.msra.mxu0 0.0
    %2743 = vmatprep.subr.mxu0 0.0
    %2744 = vmatpush1.msra.mxu0 0.0
    %2745 = vmatprep.subr.mxu0 0.0
    %2746 = vmatpush1.msra.mxu0 0.0
    %2747 = vmatprep.subr.mxu0 0.0
    %2748 = vmatpush1.msra.mxu0 0.0
    %2749 = vmatprep.subr.mxu0 0.0
    %2750 = vmatpush1.msra.mxu0 0.0
    %2751 = vmatprep.subr.mxu0 0.0
    %2752 = vmatpush1.msra.mxu0 0.0
    %2753 = vmatprep.subr.mxu0 0.0
    %2754 = vmatpush1.msra.mxu0 %v2721
    %2755 = vmatprep.subr.mxu0 0.0
    %2756 = vmatpush2.msra.mxu0 0.0
    %2757 = vmatprep.subr.mxu0 0.0
    %2758 = vmatpush2.msra.mxu0 0.0
    %2759 = vmatprep.subr.mxu0 0.0
    %2760 = vmatpush2.msra.mxu0 0.0
    %2761 = vmatprep.subr.mxu0 0.0
    %2762 = vmatpush2.msra.mxu0 0.0
    %2763 = vmatprep.subr.mxu0 0.0
    %2764 = vmatpush2.msra.mxu0 0.0
    %2765 = vmatprep.subr.mxu0 0.0
    %2766 = vmatpush2.msra.mxu0 0.0
    %2767 = vmatprep.subr.mxu0 0.0
    %2768 = vmatpush2.msra.mxu0 0.0
    %2769 = vmatprep.subr.mxu0 0.0
    %2770 = vmatpush2.msra.mxu0 0.0
    %2771 = vmatprep.subr.mxu0 0.0
    %2772 = vmatpush2.msra.mxu0 0.0
    %2773 = vmatprep.subr.mxu0 0.0
    %2774 = vmatpush2.msra.mxu0 0.0
    %2775 = vmatprep.subr.mxu0 0.0
    %2776 = vmatpush2.msra.mxu0 0.0
    %2777 = vmatprep.subr.mxu0 0.0
    %2778 = vmatpush2.msra.mxu0 0.0
    %2779 = vmatprep.subr.mxu0 0.0
    %2780 = vmatpush2.msra.mxu0 0.0
    %2781 = vmatprep.subr.mxu0 0.0
    %2782 = vmatpush2.msra.mxu0 0.0
    %2783 = vmatprep.subr.mxu0 0.0
    %2784 = vmatpush2.msra.mxu0 0.0
    %2785 = vmatprep.subr.mxu0 0.0
    %2786 = vmatpush2.msra.mxu0 0.0
    %2787 = vmatprep.mubr.f32.mxu0 0.0
    %2788 = vmatmul.mubr.f32.gmra.mxu0 %v532
    %v2789 = vpop.f32.mrf.mxu0
    %v2790 = vadd.f32 0.0, %v2789
    %v2791 = vpop.f32.mrf.mxu0
    %2792 = vmatprep.mubr.f32.mxu0 0.0
    %2793 = vmatmul.mubr.f32.gmra.mxu0 %v535
    %v2794 = vpop.f32.mrf.mxu0
    %v2795 = vadd.f32 0.0, %v2794
    %v2796 = vpop.f32.mrf.mxu0
    %2797 = vmatprep.mubr.f32.mxu0 0.0
    %2798 = vmatmul.mubr.f32.gmra.mxu0 %v538
    %v2799 = vpop.f32.mrf.mxu0
    %v2800 = vadd.f32 0.0, %v2799
    %v2801 = vpop.f32.mrf.mxu0
    %2802 = vmatprep.mubr.f32.mxu0 0.0
    %2803 = vmatmul.mubr.f32.gmra.mxu0 %v541
    %v2804 = vpop.f32.mrf.mxu0
    %v2805 = vadd.f32 0.0, %v2804
    %v2806 = vpop.f32.mrf.mxu0
    %2807 = vdwg.mxu0
    %2809 = vset.pattern.permute.xlu0 0
    %2810 = vperm.xlu0 %2809, %v2790
    %v2811 = vpop.permute.xlu0 %2810
    %2814 = vset.pattern.permute.xlu0 0
    %2815 = vperm.xlu0 %2814, %v2795
    %v2816 = vpop.permute.xlu0 %2815
    %2819 = vset.pattern.permute.xlu0 0
    %2820 = vperm.xlu0 %2819, %v2800
    %v2821 = vpop.permute.xlu0 %2820
    %2824 = vset.pattern.permute.xlu0 0
    %2825 = vperm.xlu0 %2824, %v2805
    %v2826 = vpop.permute.xlu0 %2825
    %v2828 = vsub.f32 %v439, %v2811
    %v2829 = vsub.f32 %v440, %v2816
    %v2830 = vsub.f32 %v441, %v2821
    %v2831 = vsub.f32 %v442, %v2826
    %v2832 = vmul.f32 %v2828, %v2828
    %v2833 = vmul.f32 %v2829, %v2829
    %v2834 = vmul.f32 %v2830, %v2830
    %v2835 = vmul.f32 %v2831, %v2831
    %2840 = vrot.lane.b32.xlu0 %v2832, 48
    %v2841 = vpop.permute.xlu0 %2840
    %2842 = vrot.lane.b32.xlu0 %v2833, 48
    %v2843 = vpop.permute.xlu0 %2842
    %2844 = vrot.lane.b32.xlu0 %v2834, 48
    %v2845 = vpop.permute.xlu0 %2844
    %2846 = vrot.lane.b32.xlu0 %v2835, 48
    %v2847 = vpop.permute.xlu0 %2846
    %v2852 = vsel %vm443, %v2841, 0.0
    %2853 = vadd.xlane.f32.xlu0 %v2852
    %v2854 = vpop.xlane.xlu0 %2853
    %v2855 = vsel %vm443, %v2843, 0.0
    %2856 = vadd.xlane.f32.xlu0 %v2855
    %v2857 = vpop.xlane.xlu0 %2856
    %v2858 = vsel %vm443, %v2845, 0.0
    %2859 = vadd.xlane.f32.xlu0 %v2858
    %v2860 = vpop.xlane.xlu0 %2859
    %v2861 = vsel %vm443, %v2847, 0.0
    %2862 = vadd.xlane.f32.xlu0 %v2861
    %v2863 = vpop.xlane.xlu0 %2862
    %2864 = vmatprep.subr.mxu0 0.0
    %2865 = vmatpush1.msra.mxu0 0.0
    %2866 = vmatprep.subr.mxu0 0.0
    %2867 = vmatpush1.msra.mxu0 0.0
    %2868 = vmatprep.subr.mxu0 0.0
    %2869 = vmatpush1.msra.mxu0 0.0
    %2870 = vmatprep.subr.mxu0 0.0
    %2871 = vmatpush1.msra.mxu0 0.0
    %2872 = vmatprep.subr.mxu0 0.0
    %2873 = vmatpush1.msra.mxu0 0.0
    %2874 = vmatprep.subr.mxu0 0.0
    %2875 = vmatpush1.msra.mxu0 0.0
    %2876 = vmatprep.subr.mxu0 0.0
    %2877 = vmatpush1.msra.mxu0 0.0
    %2878 = vmatprep.subr.mxu0 0.0
    %2879 = vmatpush1.msra.mxu0 0.0
    %2880 = vmatprep.subr.mxu0 0.0
    %2881 = vmatpush1.msra.mxu0 0.0
    %2882 = vmatprep.subr.mxu0 0.0
    %2883 = vmatpush1.msra.mxu0 0.0
    %2884 = vmatprep.subr.mxu0 0.0
    %2885 = vmatpush1.msra.mxu0 0.0
    %2886 = vmatprep.subr.mxu0 0.0
    %2887 = vmatpush1.msra.mxu0 0.0
    %2888 = vmatprep.subr.mxu0 0.0
    %2889 = vmatpush1.msra.mxu0 %v2863
    %2890 = vmatprep.subr.mxu0 0.0
    %2891 = vmatpush1.msra.mxu0 %v2860
    %2892 = vmatprep.subr.mxu0 0.0
    %2893 = vmatpush1.msra.mxu0 %v2857
    %2894 = vmatprep.subr.mxu0 0.0
    %2895 = vmatpush1.msra.mxu0 %v2854
    %2896 = vmatprep.subr.mxu0 0.0
    %2897 = vmatpush2.msra.mxu0 0.0
    %2898 = vmatprep.subr.mxu0 0.0
    %2899 = vmatpush2.msra.mxu0 0.0
    %2900 = vmatprep.subr.mxu0 0.0
    %2901 = vmatpush2.msra.mxu0 0.0
    %2902 = vmatprep.subr.mxu0 0.0
    %2903 = vmatpush2.msra.mxu0 0.0
    %2904 = vmatprep.subr.mxu0 0.0
    %2905 = vmatpush2.msra.mxu0 0.0
    %2906 = vmatprep.subr.mxu0 0.0
    %2907 = vmatpush2.msra.mxu0 0.0
    %2908 = vmatprep.subr.mxu0 0.0
    %2909 = vmatpush2.msra.mxu0 0.0
    %2910 = vmatprep.subr.mxu0 0.0
    %2911 = vmatpush2.msra.mxu0 0.0
    %2912 = vmatprep.subr.mxu0 0.0
    %2913 = vmatpush2.msra.mxu0 0.0
    %2914 = vmatprep.subr.mxu0 0.0
    %2915 = vmatpush2.msra.mxu0 0.0
    %2916 = vmatprep.subr.mxu0 0.0
    %2917 = vmatpush2.msra.mxu0 0.0
    %2918 = vmatprep.subr.mxu0 0.0
    %2919 = vmatpush2.msra.mxu0 0.0
    %2920 = vmatprep.subr.mxu0 0.0
    %2921 = vmatpush2.msra.mxu0 0.0
    %2922 = vmatprep.subr.mxu0 0.0
    %2923 = vmatpush2.msra.mxu0 0.0
    %2924 = vmatprep.subr.mxu0 0.0
    %2925 = vmatpush2.msra.mxu0 0.0
    %2926 = vmatprep.subr.mxu0 0.0
    %2927 = vmatpush2.msra.mxu0 0.0
    %2928 = vmatprep.mubr.f32.mxu0 0.0
    %2929 = vmatmul.mubr.f32.gmra.mxu0 %v457
    %v2930 = vpop.f32.mrf.mxu0
    %v2931 = vadd.f32 0.0, %v2930
    %v2932 = vpop.f32.mrf.mxu0
    %2933 = vdwg.mxu0
    %v2934 = vmul.f32 %v2931, 0.0078125
    %v2935 = vadd.f32 %v2934, 1e-05
    %v2936 = vrsqrt.pop %v2935
    %v2938 = vsel %vm543, %v2936, 0
    %2940 = vmatprep.subr.mxu0 0.0
    %2941 = vmatpush1.msra.mxu0 0.0
    %2942 = vmatprep.subr.mxu0 0.0
    %2943 = vmatpush1.msra.mxu0 0.0
    %2944 = vmatprep.subr.mxu0 0.0
    %2945 = vmatpush1.msra.mxu0 0.0
    %2946 = vmatprep.subr.mxu0 0.0
    %2947 = vmatpush1.msra.mxu0 0.0
    %2948 = vmatprep.subr.mxu0 0.0
    %2949 = vmatpush1.msra.mxu0 0.0
    %2950 = vmatprep.subr.mxu0 0.0
    %2951 = vmatpush1.msra.mxu0 0.0
    %2952 = vmatprep.subr.mxu0 0.0
    %2953 = vmatpush1.msra.mxu0 0.0
    %2954 = vmatprep.subr.mxu0 0.0
    %2955 = vmatpush1.msra.mxu0 0.0
    %2956 = vmatprep.subr.mxu0 0.0
    %2957 = vmatpush1.msra.mxu0 0.0
    %2958 = vmatprep.subr.mxu0 0.0
    %2959 = vmatpush1.msra.mxu0 0.0
    %2960 = vmatprep.subr.mxu0 0.0
    %2961 = vmatpush1.msra.mxu0 0.0
    %2962 = vmatprep.subr.mxu0 0.0
    %2963 = vmatpush1.msra.mxu0 0.0
    %2964 = vmatprep.subr.mxu0 0.0
    %2965 = vmatpush1.msra.mxu0 0.0
    %2966 = vmatprep.subr.mxu0 0.0
    %2967 = vmatpush1.msra.mxu0 0.0
    %2968 = vmatprep.subr.mxu0 0.0
    %2969 = vmatpush1.msra.mxu0 0.0
    %2970 = vmatprep.subr.mxu0 0.0
    %2971 = vmatpush1.msra.mxu0 %v2938
    %2972 = vmatprep.subr.mxu0 0.0
    %2973 = vmatpush2.msra.mxu0 0.0
    %2974 = vmatprep.subr.mxu0 0.0
    %2975 = vmatpush2.msra.mxu0 0.0
    %2976 = vmatprep.subr.mxu0 0.0
    %2977 = vmatpush2.msra.mxu0 0.0
    %2978 = vmatprep.subr.mxu0 0.0
    %2979 = vmatpush2.msra.mxu0 0.0
    %2980 = vmatprep.subr.mxu0 0.0
    %2981 = vmatpush2.msra.mxu0 0.0
    %2982 = vmatprep.subr.mxu0 0.0
    %2983 = vmatpush2.msra.mxu0 0.0
    %2984 = vmatprep.subr.mxu0 0.0
    %2985 = vmatpush2.msra.mxu0 0.0
    %2986 = vmatprep.subr.mxu0 0.0
    %2987 = vmatpush2.msra.mxu0 0.0
    %2988 = vmatprep.subr.mxu0 0.0
    %2989 = vmatpush2.msra.mxu0 0.0
    %2990 = vmatprep.subr.mxu0 0.0
    %2991 = vmatpush2.msra.mxu0 0.0
    %2992 = vmatprep.subr.mxu0 0.0
    %2993 = vmatpush2.msra.mxu0 0.0
    %2994 = vmatprep.subr.mxu0 0.0
    %2995 = vmatpush2.msra.mxu0 0.0
    %2996 = vmatprep.subr.mxu0 0.0
    %2997 = vmatpush2.msra.mxu0 0.0
    %2998 = vmatprep.subr.mxu0 0.0
    %2999 = vmatpush2.msra.mxu0 0.0
    %3000 = vmatprep.subr.mxu0 0.0
    %3001 = vmatpush2.msra.mxu0 0.0
    %3002 = vmatprep.subr.mxu0 0.0
    %3003 = vmatpush2.msra.mxu0 0.0
    %3004 = vmatprep.mubr.f32.mxu0 0.0
    %3005 = vmatmul.mubr.f32.gmra.mxu0 %v532
    %v3006 = vpop.f32.mrf.mxu0
    %v3007 = vadd.f32 0.0, %v3006
    %v3008 = vpop.f32.mrf.mxu0
    %3009 = vmatprep.mubr.f32.mxu0 0.0
    %3010 = vmatmul.mubr.f32.gmra.mxu0 %v535
    %v3011 = vpop.f32.mrf.mxu0
    %v3012 = vadd.f32 0.0, %v3011
    %v3013 = vpop.f32.mrf.mxu0
    %3014 = vmatprep.mubr.f32.mxu0 0.0
    %3015 = vmatmul.mubr.f32.gmra.mxu0 %v538
    %v3016 = vpop.f32.mrf.mxu0
    %v3017 = vadd.f32 0.0, %v3016
    %v3018 = vpop.f32.mrf.mxu0
    %3019 = vmatprep.mubr.f32.mxu0 0.0
    %3020 = vmatmul.mubr.f32.gmra.mxu0 %v541
    %v3021 = vpop.f32.mrf.mxu0
    %v3022 = vadd.f32 0.0, %v3021
    %v3023 = vpop.f32.mrf.mxu0
    %3024 = vdwg.mxu0
    %v3025 = vmul.f32 %v3007, %v834
    %v3026 = vmul.f32 %v3012, %v836
    %v3027 = vmul.f32 %v3017, %v838
    %v3028 = vmul.f32 %v3022, %v840
    %3030 = vset.pattern.permute.xlu0 0
    %3031 = vperm.xlu0 %3030, %v3025
    %v3032 = vpop.permute.xlu0 %3031
    %3035 = vset.pattern.permute.xlu0 0
    %3036 = vperm.xlu0 %3035, %v3026
    %v3037 = vpop.permute.xlu0 %3036
    %3040 = vset.pattern.permute.xlu0 0
    %3041 = vperm.xlu0 %3040, %v3027
    %v3042 = vpop.permute.xlu0 %3041
    %3045 = vset.pattern.permute.xlu0 0
    %3046 = vperm.xlu0 %3045, %v3028
    %v3047 = vpop.permute.xlu0 %3046
    %v3049 = vmul.f32 %v2828, %v3032
    %v3050 = vmul.f32 %v2829, %v3037
    %v3051 = vmul.f32 %v2830, %v3042
    %v3052 = vmul.f32 %v2831, %v3047
    %v3053 = vadd.f32 %v3049, %v875
    %v3054 = vadd.f32 %v3050, %v879
    %v3055 = vadd.f32 %v3051, %v883
    %v3056 = vadd.f32 %v3052, %v887
    %3057 = vrot.lane.b32.xlu0 %v439, 32
    %v3058 = vpop.permute.xlu0 %3057
    %3059 = vrot.lane.b32.xlu0 %v440, 32
    %v3060 = vpop.permute.xlu0 %3059
    %3061 = vrot.lane.b32.xlu0 %v441, 32
    %v3062 = vpop.permute.xlu0 %3061
    %3063 = vrot.lane.b32.xlu0 %v442, 32
    %v3064 = vpop.permute.xlu0 %3063
    %v3069 = vsel %vm443, %v3058, 0.0
    %3070 = vadd.xlane.f32.xlu0 %v3069
    %v3071 = vpop.xlane.xlu0 %3070
    %v3072 = vsel %vm443, %v3060, 0.0
    %3073 = vadd.xlane.f32.xlu0 %v3072
    %v3074 = vpop.xlane.xlu0 %3073
    %v3075 = vsel %vm443, %v3062, 0.0
    %3076 = vadd.xlane.f32.xlu0 %v3075
    %v3077 = vpop.xlane.xlu0 %3076
    %v3078 = vsel %vm443, %v3064, 0.0
    %3079 = vadd.xlane.f32.xlu0 %v3078
    %v3080 = vpop.xlane.xlu0 %3079
    %3081 = vmatprep.subr.mxu0 0.0
    %3082 = vmatpush1.msra.mxu0 0.0
    %3083 = vmatprep.subr.mxu0 0.0
    %3084 = vmatpush1.msra.mxu0 0.0
    %3085 = vmatprep.subr.mxu0 0.0
    %3086 = vmatpush1.msra.mxu0 0.0
    %3087 = vmatprep.subr.mxu0 0.0
    %3088 = vmatpush1.msra.mxu0 0.0
    %3089 = vmatprep.subr.mxu0 0.0
    %3090 = vmatpush1.msra.mxu0 0.0
    %3091 = vmatprep.subr.mxu0 0.0
    %3092 = vmatpush1.msra.mxu0 0.0
    %3093 = vmatprep.subr.mxu0 0.0
    %3094 = vmatpush1.msra.mxu0 0.0
    %3095 = vmatprep.subr.mxu0 0.0
    %3096 = vmatpush1.msra.mxu0 0.0
    %3097 = vmatprep.subr.mxu0 0.0
    %3098 = vmatpush1.msra.mxu0 0.0
    %3099 = vmatprep.subr.mxu0 0.0
    %3100 = vmatpush1.msra.mxu0 0.0
    %3101 = vmatprep.subr.mxu0 0.0
    %3102 = vmatpush1.msra.mxu0 0.0
    %3103 = vmatprep.subr.mxu0 0.0
    %3104 = vmatpush1.msra.mxu0 0.0
    %3105 = vmatprep.subr.mxu0 0.0
    %3106 = vmatpush1.msra.mxu0 %v3080
    %3107 = vmatprep.subr.mxu0 0.0
    %3108 = vmatpush1.msra.mxu0 %v3077
    %3109 = vmatprep.subr.mxu0 0.0
    %3110 = vmatpush1.msra.mxu0 %v3074
    %3111 = vmatprep.subr.mxu0 0.0
    %3112 = vmatpush1.msra.mxu0 %v3071
    %3113 = vmatprep.subr.mxu0 0.0
    %3114 = vmatpush2.msra.mxu0 0.0
    %3115 = vmatprep.subr.mxu0 0.0
    %3116 = vmatpush2.msra.mxu0 0.0
    %3117 = vmatprep.subr.mxu0 0.0
    %3118 = vmatpush2.msra.mxu0 0.0
    %3119 = vmatprep.subr.mxu0 0.0
    %3120 = vmatpush2.msra.mxu0 0.0
    %3121 = vmatprep.subr.mxu0 0.0
    %3122 = vmatpush2.msra.mxu0 0.0
    %3123 = vmatprep.subr.mxu0 0.0
    %3124 = vmatpush2.msra.mxu0 0.0
    %3125 = vmatprep.subr.mxu0 0.0
    %3126 = vmatpush2.msra.mxu0 0.0
    %3127 = vmatprep.subr.mxu0 0.0
    %3128 = vmatpush2.msra.mxu0 0.0
    %3129 = vmatprep.subr.mxu0 0.0
    %3130 = vmatpush2.msra.mxu0 0.0
    %3131 = vmatprep.subr.mxu0 0.0
    %3132 = vmatpush2.msra.mxu0 0.0
    %3133 = vmatprep.subr.mxu0 0.0
    %3134 = vmatpush2.msra.mxu0 0.0
    %3135 = vmatprep.subr.mxu0 0.0
    %3136 = vmatpush2.msra.mxu0 0.0
    %3137 = vmatprep.subr.mxu0 0.0
    %3138 = vmatpush2.msra.mxu0 0.0
    %3139 = vmatprep.subr.mxu0 0.0
    %3140 = vmatpush2.msra.mxu0 0.0
    %3141 = vmatprep.subr.mxu0 0.0
    %3142 = vmatpush2.msra.mxu0 0.0
    %3143 = vmatprep.subr.mxu0 0.0
    %3144 = vmatpush2.msra.mxu0 0.0
    %3145 = vmatprep.mubr.f32.mxu0 0.0
    %3146 = vmatmul.mubr.f32.gmra.mxu0 %v457
    %v3147 = vpop.f32.mrf.mxu0
    %v3148 = vadd.f32 0.0, %v3147
    %v3149 = vpop.f32.mrf.mxu0
    %3150 = vdwg.mxu0
    %v3151 = vmul.f32 %v3148, 0.0078125
    %v3153 = vsel %vm543, %v3151, 0
    %3155 = vmatprep.subr.mxu0 0.0
    %3156 = vmatpush1.msra.mxu0 0.0
    %3157 = vmatprep.subr.mxu0 0.0
    %3158 = vmatpush1.msra.mxu0 0.0
    %3159 = vmatprep.subr.mxu0 0.0
    %3160 = vmatpush1.msra.mxu0 0.0
    %3161 = vmatprep.subr.mxu0 0.0
    %3162 = vmatpush1.msra.mxu0 0.0
    %3163 = vmatprep.subr.mxu0 0.0
    %3164 = vmatpush1.msra.mxu0 0.0
    %3165 = vmatprep.subr.mxu0 0.0
    %3166 = vmatpush1.msra.mxu0 0.0
    %3167 = vmatprep.subr.mxu0 0.0
    %3168 = vmatpush1.msra.mxu0 0.0
    %3169 = vmatprep.subr.mxu0 0.0
    %3170 = vmatpush1.msra.mxu0 0.0
    %3171 = vmatprep.subr.mxu0 0.0
    %3172 = vmatpush1.msra.mxu0 0.0
    %3173 = vmatprep.subr.mxu0 0.0
    %3174 = vmatpush1.msra.mxu0 0.0
    %3175 = vmatprep.subr.mxu0 0.0
    %3176 = vmatpush1.msra.mxu0 0.0
    %3177 = vmatprep.subr.mxu0 0.0
    %3178 = vmatpush1.msra.mxu0 0.0
    %3179 = vmatprep.subr.mxu0 0.0
    %3180 = vmatpush1.msra.mxu0 0.0
    %3181 = vmatprep.subr.mxu0 0.0
    %3182 = vmatpush1.msra.mxu0 0.0
    %3183 = vmatprep.subr.mxu0 0.0
    %3184 = vmatpush1.msra.mxu0 0.0
    %3185 = vmatprep.subr.mxu0 0.0
    %3186 = vmatpush1.msra.mxu0 %v3153
    %3187 = vmatprep.subr.mxu0 0.0
    %3188 = vmatpush2.msra.mxu0 0.0
    %3189 = vmatprep.subr.mxu0 0.0
    %3190 = vmatpush2.msra.mxu0 0.0
    %3191 = vmatprep.subr.mxu0 0.0
    %3192 = vmatpush2.msra.mxu0 0.0
    %3193 = vmatprep.subr.mxu0 0.0
    %3194 = vmatpush2.msra.mxu0 0.0
    %3195 = vmatprep.subr.mxu0 0.0
    %3196 = vmatpush2.msra.mxu0 0.0
    %3197 = vmatprep.subr.mxu0 0.0
    %3198 = vmatpush2.msra.mxu0 0.0
    %3199 = vmatprep.subr.mxu0 0.0
    %3200 = vmatpush2.msra.mxu0 0.0
    %3201 = vmatprep.subr.mxu0 0.0
    %3202 = vmatpush2.msra.mxu0 0.0
    %3203 = vmatprep.subr.mxu0 0.0
    %3204 = vmatpush2.msra.mxu0 0.0
    %3205 = vmatprep.subr.mxu0 0.0
    %3206 = vmatpush2.msra.mxu0 0.0
    %3207 = vmatprep.subr.mxu0 0.0
    %3208 = vmatpush2.msra.mxu0 0.0
    %3209 = vmatprep.subr.mxu0 0.0
    %3210 = vmatpush2.msra.mxu0 0.0
    %3211 = vmatprep.subr.mxu0 0.0
    %3212 = vmatpush2.msra.mxu0 0.0
    %3213 = vmatprep.subr.mxu0 0.0
    %3214 = vmatpush2.msra.mxu0 0.0
    %3215 = vmatprep.subr.mxu0 0.0
    %3216 = vmatpush2.msra.mxu0 0.0
    %3217 = vmatprep.subr.mxu0 0.0
    %3218 = vmatpush2.msra.mxu0 0.0
    %3219 = vmatprep.mubr.f32.mxu0 0.0
    %3220 = vmatmul.mubr.f32.gmra.mxu0 %v532
    %v3221 = vpop.f32.mrf.mxu0
    %v3222 = vadd.f32 0.0, %v3221
    %v3223 = vpop.f32.mrf.mxu0
    %3224 = vmatprep.mubr.f32.mxu0 0.0
    %3225 = vmatmul.mubr.f32.gmra.mxu0 %v535
    %v3226 = vpop.f32.mrf.mxu0
    %v3227 = vadd.f32 0.0, %v3226
    %v3228 = vpop.f32.mrf.mxu0
    %3229 = vmatprep.mubr.f32.mxu0 0.0
    %3230 = vmatmul.mubr.f32.gmra.mxu0 %v538
    %v3231 = vpop.f32.mrf.mxu0
    %v3232 = vadd.f32 0.0, %v3231
    %v3233 = vpop.f32.mrf.mxu0
    %3234 = vmatprep.mubr.f32.mxu0 0.0
    %3235 = vmatmul.mubr.f32.gmra.mxu0 %v541
    %v3236 = vpop.f32.mrf.mxu0
    %v3237 = vadd.f32 0.0, %v3236
    %v3238 = vpop.f32.mrf.mxu0
    %3239 = vdwg.mxu0
    %3241 = vset.pattern.permute.xlu0 0
    %3242 = vperm.xlu0 %3241, %v3222
    %v3243 = vpop.permute.xlu0 %3242
    %3246 = vset.pattern.permute.xlu0 0
    %3247 = vperm.xlu0 %3246, %v3227
    %v3248 = vpop.permute.xlu0 %3247
    %3251 = vset.pattern.permute.xlu0 0
    %3252 = vperm.xlu0 %3251, %v3232
    %v3253 = vpop.permute.xlu0 %3252
    %3256 = vset.pattern.permute.xlu0 0
    %3257 = vperm.xlu0 %3256, %v3237
    %v3258 = vpop.permute.xlu0 %3257
    %v3260 = vsub.f32 %v439, %v3243
    %v3261 = vsub.f32 %v440, %v3248
    %v3262 = vsub.f32 %v441, %v3253
    %v3263 = vsub.f32 %v442, %v3258
    %v3264 = vmul.f32 %v3260, %v3260
    %v3265 = vmul.f32 %v3261, %v3261
    %v3266 = vmul.f32 %v3262, %v3262
    %v3267 = vmul.f32 %v3263, %v3263
    %3272 = vrot.lane.b32.xlu0 %v3264, 32
    %v3273 = vpop.permute.xlu0 %3272
    %3274 = vrot.lane.b32.xlu0 %v3265, 32
    %v3275 = vpop.permute.xlu0 %3274
    %3276 = vrot.lane.b32.xlu0 %v3266, 32
    %v3277 = vpop.permute.xlu0 %3276
    %3278 = vrot.lane.b32.xlu0 %v3267, 32
    %v3279 = vpop.permute.xlu0 %3278
    %v3284 = vsel %vm443, %v3273, 0.0
    %3285 = vadd.xlane.f32.xlu0 %v3284
    %v3286 = vpop.xlane.xlu0 %3285
    %v3287 = vsel %vm443, %v3275, 0.0
    %3288 = vadd.xlane.f32.xlu0 %v3287
    %v3289 = vpop.xlane.xlu0 %3288
    %v3290 = vsel %vm443, %v3277, 0.0
    %3291 = vadd.xlane.f32.xlu0 %v3290
    %v3292 = vpop.xlane.xlu0 %3291
    %v3293 = vsel %vm443, %v3279, 0.0
    %3294 = vadd.xlane.f32.xlu0 %v3293
    %v3295 = vpop.xlane.xlu0 %3294
    %3296 = vmatprep.subr.mxu0 0.0
    %3297 = vmatpush1.msra.mxu0 0.0
    %3298 = vmatprep.subr.mxu0 0.0
    %3299 = vmatpush1.msra.mxu0 0.0
    %3300 = vmatprep.subr.mxu0 0.0
    %3301 = vmatpush1.msra.mxu0 0.0
    %3302 = vmatprep.subr.mxu0 0.0
    %3303 = vmatpush1.msra.mxu0 0.0
    %3304 = vmatprep.subr.mxu0 0.0
    %3305 = vmatpush1.msra.mxu0 0.0
    %3306 = vmatprep.subr.mxu0 0.0
    %3307 = vmatpush1.msra.mxu0 0.0
    %3308 = vmatprep.subr.mxu0 0.0
    %3309 = vmatpush1.msra.mxu0 0.0
    %3310 = vmatprep.subr.mxu0 0.0
    %3311 = vmatpush1.msra.mxu0 0.0
    %3312 = vmatprep.subr.mxu0 0.0
    %3313 = vmatpush1.msra.mxu0 0.0
    %3314 = vmatprep.subr.mxu0 0.0
    %3315 = vmatpush1.msra.mxu0 0.0
    %3316 = vmatprep.subr.mxu0 0.0
    %3317 = vmatpush1.msra.mxu0 0.0
    %3318 = vmatprep.subr.mxu0 0.0
    %3319 = vmatpush1.msra.mxu0 0.0
    %3320 = vmatprep.subr.mxu0 0.0
    %3321 = vmatpush1.msra.mxu0 %v3295
    %3322 = vmatprep.subr.mxu0 0.0
    %3323 = vmatpush1.msra.mxu0 %v3292
    %3324 = vmatprep.subr.mxu0 0.0
    %3325 = vmatpush1.msra.mxu0 %v3289
    %3326 = vmatprep.subr.mxu0 0.0
    %3327 = vmatpush1.msra.mxu0 %v3286
    %3328 = vmatprep.subr.mxu0 0.0
    %3329 = vmatpush2.msra.mxu0 0.0
    %3330 = vmatprep.subr.mxu0 0.0
    %3331 = vmatpush2.msra.mxu0 0.0
    %3332 = vmatprep.subr.mxu0 0.0
    %3333 = vmatpush2.msra.mxu0 0.0
    %3334 = vmatprep.subr.mxu0 0.0
    %3335 = vmatpush2.msra.mxu0 0.0
    %3336 = vmatprep.subr.mxu0 0.0
    %3337 = vmatpush2.msra.mxu0 0.0
    %3338 = vmatprep.subr.mxu0 0.0
    %3339 = vmatpush2.msra.mxu0 0.0
    %3340 = vmatprep.subr.mxu0 0.0
    %3341 = vmatpush2.msra.mxu0 0.0
    %3342 = vmatprep.subr.mxu0 0.0
    %3343 = vmatpush2.msra.mxu0 0.0
    %3344 = vmatprep.subr.mxu0 0.0
    %3345 = vmatpush2.msra.mxu0 0.0
    %3346 = vmatprep.subr.mxu0 0.0
    %3347 = vmatpush2.msra.mxu0 0.0
    %3348 = vmatprep.subr.mxu0 0.0
    %3349 = vmatpush2.msra.mxu0 0.0
    %3350 = vmatprep.subr.mxu0 0.0
    %3351 = vmatpush2.msra.mxu0 0.0
    %3352 = vmatprep.subr.mxu0 0.0
    %3353 = vmatpush2.msra.mxu0 0.0
    %3354 = vmatprep.subr.mxu0 0.0
    %3355 = vmatpush2.msra.mxu0 0.0
    %3356 = vmatprep.subr.mxu0 0.0
    %3357 = vmatpush2.msra.mxu0 0.0
    %3358 = vmatprep.subr.mxu0 0.0
    %3359 = vmatpush2.msra.mxu0 0.0
    %3360 = vmatprep.mubr.f32.mxu0 0.0
    %3361 = vmatmul.mubr.f32.gmra.mxu0 %v457
    %v3362 = vpop.f32.mrf.mxu0
    %v3363 = vadd.f32 0.0, %v3362
    %v3364 = vpop.f32.mrf.mxu0
    %3365 = vdwg.mxu0
    %v3366 = vmul.f32 %v3363, 0.0078125
    %v3367 = vadd.f32 %v3366, 1e-05
    %v3368 = vrsqrt.pop %v3367
    %v3370 = vsel %vm543, %v3368, 0
    %3372 = vmatprep.subr.mxu0 0.0
    %3373 = vmatpush1.msra.mxu0 0.0
    %3374 = vmatprep.subr.mxu0 0.0
    %3375 = vmatpush1.msra.mxu0 0.0
    %3376 = vmatprep.subr.mxu0 0.0
    %3377 = vmatpush1.msra.mxu0 0.0
    %3378 = vmatprep.subr.mxu0 0.0
    %3379 = vmatpush1.msra.mxu0 0.0
    %3380 = vmatprep.subr.mxu0 0.0
    %3381 = vmatpush1.msra.mxu0 0.0
    %3382 = vmatprep.subr.mxu0 0.0
    %3383 = vmatpush1.msra.mxu0 0.0
    %3384 = vmatprep.subr.mxu0 0.0
    %3385 = vmatpush1.msra.mxu0 0.0
    %3386 = vmatprep.subr.mxu0 0.0
    %3387 = vmatpush1.msra.mxu0 0.0
    %3388 = vmatprep.subr.mxu0 0.0
    %3389 = vmatpush1.msra.mxu0 0.0
    %3390 = vmatprep.subr.mxu0 0.0
    %3391 = vmatpush1.msra.mxu0 0.0
    %3392 = vmatprep.subr.mxu0 0.0
    %3393 = vmatpush1.msra.mxu0 0.0
    %3394 = vmatprep.subr.mxu0 0.0
    %3395 = vmatpush1.msra.mxu0 0.0
    %3396 = vmatprep.subr.mxu0 0.0
    %3397 = vmatpush1.msra.mxu0 0.0
    %3398 = vmatprep.subr.mxu0 0.0
    %3399 = vmatpush1.msra.mxu0 0.0
    %3400 = vmatprep.subr.mxu0 0.0
    %3401 = vmatpush1.msra.mxu0 0.0
    %3402 = vmatprep.subr.mxu0 0.0
    %3403 = vmatpush1.msra.mxu0 %v3370
    %3404 = vmatprep.subr.mxu0 0.0
    %3405 = vmatpush2.msra.mxu0 0.0
    %3406 = vmatprep.subr.mxu0 0.0
    %3407 = vmatpush2.msra.mxu0 0.0
    %3408 = vmatprep.subr.mxu0 0.0
    %3409 = vmatpush2.msra.mxu0 0.0
    %3410 = vmatprep.subr.mxu0 0.0
    %3411 = vmatpush2.msra.mxu0 0.0
    %3412 = vmatprep.subr.mxu0 0.0
    %3413 = vmatpush2.msra.mxu0 0.0
    %3414 = vmatprep.subr.mxu0 0.0
    %3415 = vmatpush2.msra.mxu0 0.0
    %3416 = vmatprep.subr.mxu0 0.0
    %3417 = vmatpush2.msra.mxu0 0.0
    %3418 = vmatprep.subr.mxu0 0.0
    %3419 = vmatpush2.msra.mxu0 0.0
    %3420 = vmatprep.subr.mxu0 0.0
    %3421 = vmatpush2.msra.mxu0 0.0
    %3422 = vmatprep.subr.mxu0 0.0
    %3423 = vmatpush2.msra.mxu0 0.0
    %3424 = vmatprep.subr.mxu0 0.0
    %3425 = vmatpush2.msra.mxu0 0.0
    %3426 = vmatprep.subr.mxu0 0.0
    %3427 = vmatpush2.msra.mxu0 0.0
    %3428 = vmatprep.subr.mxu0 0.0
    %3429 = vmatpush2.msra.mxu0 0.0
    %3430 = vmatprep.subr.mxu0 0.0
    %3431 = vmatpush2.msra.mxu0 0.0
    %3432 = vmatprep.subr.mxu0 0.0
    %3433 = vmatpush2.msra.mxu0 0.0
    %3434 = vmatprep.subr.mxu0 0.0
    %3435 = vmatpush2.msra.mxu0 0.0
    %3436 = vmatprep.mubr.f32.mxu0 0.0
    %3437 = vmatmul.mubr.f32.gmra.mxu0 %v532
    %v3438 = vpop.f32.mrf.mxu0
    %v3439 = vadd.f32 0.0, %v3438
    %v3440 = vpop.f32.mrf.mxu0
    %3441 = vmatprep.mubr.f32.mxu0 0.0
    %3442 = vmatmul.mubr.f32.gmra.mxu0 %v535
    %v3443 = vpop.f32.mrf.mxu0
    %v3444 = vadd.f32 0.0, %v3443
    %v3445 = vpop.f32.mrf.mxu0
    %3446 = vmatprep.mubr.f32.mxu0 0.0
    %3447 = vmatmul.mubr.f32.gmra.mxu0 %v538
    %v3448 = vpop.f32.mrf.mxu0
    %v3449 = vadd.f32 0.0, %v3448
    %v3450 = vpop.f32.mrf.mxu0
    %3451 = vmatprep.mubr.f32.mxu0 0.0
    %3452 = vmatmul.mubr.f32.gmra.mxu0 %v541
    %v3453 = vpop.f32.mrf.mxu0
    %v3454 = vadd.f32 0.0, %v3453
    %v3455 = vpop.f32.mrf.mxu0
    %3456 = vdwg.mxu0
    %v3457 = vmul.f32 %v3439, %v834
    %v3458 = vmul.f32 %v3444, %v836
    %v3459 = vmul.f32 %v3449, %v838
    %v3460 = vmul.f32 %v3454, %v840
    %3462 = vset.pattern.permute.xlu0 0
    %3463 = vperm.xlu0 %3462, %v3457
    %v3464 = vpop.permute.xlu0 %3463
    %3467 = vset.pattern.permute.xlu0 0
    %3468 = vperm.xlu0 %3467, %v3458
    %v3469 = vpop.permute.xlu0 %3468
    %3472 = vset.pattern.permute.xlu0 0
    %3473 = vperm.xlu0 %3472, %v3459
    %v3474 = vpop.permute.xlu0 %3473
    %3477 = vset.pattern.permute.xlu0 0
    %3478 = vperm.xlu0 %3477, %v3460
    %v3479 = vpop.permute.xlu0 %3478
    %v3481 = vmul.f32 %v3260, %v3464
    %v3482 = vmul.f32 %v3261, %v3469
    %v3483 = vmul.f32 %v3262, %v3474
    %v3484 = vmul.f32 %v3263, %v3479
    %v3485 = vadd.f32 %v3481, %v875
    %v3486 = vadd.f32 %v3482, %v879
    %v3487 = vadd.f32 %v3483, %v883
    %v3488 = vadd.f32 %v3484, %v887
    %3489 = vrot.lane.b32.xlu0 %v439, 16
    %v3490 = vpop.permute.xlu0 %3489
    %3491 = vrot.lane.b32.xlu0 %v440, 16
    %v3492 = vpop.permute.xlu0 %3491
    %3493 = vrot.lane.b32.xlu0 %v441, 16
    %v3494 = vpop.permute.xlu0 %3493
    %3495 = vrot.lane.b32.xlu0 %v442, 16
    %v3496 = vpop.permute.xlu0 %3495
    %v3501 = vsel %vm443, %v3490, 0.0
    %3502 = vadd.xlane.f32.xlu0 %v3501
    %v3503 = vpop.xlane.xlu0 %3502
    %v3504 = vsel %vm443, %v3492, 0.0
    %3505 = vadd.xlane.f32.xlu0 %v3504
    %v3506 = vpop.xlane.xlu0 %3505
    %v3507 = vsel %vm443, %v3494, 0.0
    %3508 = vadd.xlane.f32.xlu0 %v3507
    %v3509 = vpop.xlane.xlu0 %3508
    %v3510 = vsel %vm443, %v3496, 0.0
    %3511 = vadd.xlane.f32.xlu0 %v3510
    %v3512 = vpop.xlane.xlu0 %3511
    %3513 = vmatprep.subr.mxu0 0.0
    %3514 = vmatpush1.msra.mxu0 0.0
    %3515 = vmatprep.subr.mxu0 0.0
    %3516 = vmatpush1.msra.mxu0 0.0
    %3517 = vmatprep.subr.mxu0 0.0
    %3518 = vmatpush1.msra.mxu0 0.0
    %3519 = vmatprep.subr.mxu0 0.0
    %3520 = vmatpush1.msra.mxu0 0.0
    %3521 = vmatprep.subr.mxu0 0.0
    %3522 = vmatpush1.msra.mxu0 0.0
    %3523 = vmatprep.subr.mxu0 0.0
    %3524 = vmatpush1.msra.mxu0 0.0
    %3525 = vmatprep.subr.mxu0 0.0
    %3526 = vmatpush1.msra.mxu0 0.0
    %3527 = vmatprep.subr.mxu0 0.0
    %3528 = vmatpush1.msra.mxu0 0.0
    %3529 = vmatprep.subr.mxu0 0.0
    %3530 = vmatpush1.msra.mxu0 0.0
    %3531 = vmatprep.subr.mxu0 0.0
    %3532 = vmatpush1.msra.mxu0 0.0
    %3533 = vmatprep.subr.mxu0 0.0
    %3534 = vmatpush1.msra.mxu0 0.0
    %3535 = vmatprep.subr.mxu0 0.0
    %3536 = vmatpush1.msra.mxu0 0.0
    %3537 = vmatprep.subr.mxu0 0.0
    %3538 = vmatpush1.msra.mxu0 %v3512
    %3539 = vmatprep.subr.mxu0 0.0
    %3540 = vmatpush1.msra.mxu0 %v3509
    %3541 = vmatprep.subr.mxu0 0.0
    %3542 = vmatpush1.msra.mxu0 %v3506
    %3543 = vmatprep.subr.mxu0 0.0
    %3544 = vmatpush1.msra.mxu0 %v3503
    %3545 = vmatprep.subr.mxu0 0.0
    %3546 = vmatpush2.msra.mxu0 0.0
    %3547 = vmatprep.subr.mxu0 0.0
    %3548 = vmatpush2.msra.mxu0 0.0
    %3549 = vmatprep.subr.mxu0 0.0
    %3550 = vmatpush2.msra.mxu0 0.0
    %3551 = vmatprep.subr.mxu0 0.0
    %3552 = vmatpush2.msra.mxu0 0.0
    %3553 = vmatprep.subr.mxu0 0.0
    %3554 = vmatpush2.msra.mxu0 0.0
    %3555 = vmatprep.subr.mxu0 0.0
    %3556 = vmatpush2.msra.mxu0 0.0
    %3557 = vmatprep.subr.mxu0 0.0
    %3558 = vmatpush2.msra.mxu0 0.0
    %3559 = vmatprep.subr.mxu0 0.0
    %3560 = vmatpush2.msra.mxu0 0.0
    %3561 = vmatprep.subr.mxu0 0.0
    %3562 = vmatpush2.msra.mxu0 0.0
    %3563 = vmatprep.subr.mxu0 0.0
    %3564 = vmatpush2.msra.mxu0 0.0
    %3565 = vmatprep.subr.mxu0 0.0
    %3566 = vmatpush2.msra.mxu0 0.0
    %3567 = vmatprep.subr.mxu0 0.0
    %3568 = vmatpush2.msra.mxu0 0.0
    %3569 = vmatprep.subr.mxu0 0.0
    %3570 = vmatpush2.msra.mxu0 0.0
    %3571 = vmatprep.subr.mxu0 0.0
    %3572 = vmatpush2.msra.mxu0 0.0
    %3573 = vmatprep.subr.mxu0 0.0
    %3574 = vmatpush2.msra.mxu0 0.0
    %3575 = vmatprep.subr.mxu0 0.0
    %3576 = vmatpush2.msra.mxu0 0.0
    %3577 = vmatprep.mubr.f32.mxu0 0.0
    %3578 = vmatmul.mubr.f32.gmra.mxu0 %v457
    %v3579 = vpop.f32.mrf.mxu0
    %v3580 = vadd.f32 0.0, %v3579
    %v3581 = vpop.f32.mrf.mxu0
    %3582 = vdwg.mxu0
    %v3583 = vmul.f32 %v3580, 0.0078125
    %v3585 = vsel %vm543, %v3583, 0
    %3587 = vmatprep.subr.mxu0 0.0
    %3588 = vmatpush1.msra.mxu0 0.0
    %3589 = vmatprep.subr.mxu0 0.0
    %3590 = vmatpush1.msra.mxu0 0.0
    %3591 = vmatprep.subr.mxu0 0.0
    %3592 = vmatpush1.msra.mxu0 0.0
    %3593 = vmatprep.subr.mxu0 0.0
    %3594 = vmatpush1.msra.mxu0 0.0
    %3595 = vmatprep.subr.mxu0 0.0
    %3596 = vmatpush1.msra.mxu0 0.0
    %3597 = vmatprep.subr.mxu0 0.0
    %3598 = vmatpush1.msra.mxu0 0.0
    %3599 = vmatprep.subr.mxu0 0.0
    %3600 = vmatpush1.msra.mxu0 0.0
    %3601 = vmatprep.subr.mxu0 0.0
    %3602 = vmatpush1.msra.mxu0 0.0
    %3603 = vmatprep.subr.mxu0 0.0
    %3604 = vmatpush1.msra.mxu0 0.0
    %3605 = vmatprep.subr.mxu0 0.0
    %3606 = vmatpush1.msra.mxu0 0.0
    %3607 = vmatprep.subr.mxu0 0.0
    %3608 = vmatpush1.msra.mxu0 0.0
    %3609 = vmatprep.subr.mxu0 0.0
    %3610 = vmatpush1.msra.mxu0 0.0
    %3611 = vmatprep.subr.mxu0 0.0
    %3612 = vmatpush1.msra.mxu0 0.0
    %3613 = vmatprep.subr.mxu0 0.0
    %3614 = vmatpush1.msra.mxu0 0.0
    %3615 = vmatprep.subr.mxu0 0.0
    %3616 = vmatpush1.msra.mxu0 0.0
    %3617 = vmatprep.subr.mxu0 0.0
    %3618 = vmatpush1.msra.mxu0 %v3585
    %3619 = vmatprep.subr.mxu0 0.0
    %3620 = vmatpush2.msra.mxu0 0.0
    %3621 = vmatprep.subr.mxu0 0.0
    %3622 = vmatpush2.msra.mxu0 0.0
    %3623 = vmatprep.subr.mxu0 0.0
    %3624 = vmatpush2.msra.mxu0 0.0
    %3625 = vmatprep.subr.mxu0 0.0
    %3626 = vmatpush2.msra.mxu0 0.0
    %3627 = vmatprep.subr.mxu0 0.0
    %3628 = vmatpush2.msra.mxu0 0.0
    %3629 = vmatprep.subr.mxu0 0.0
    %3630 = vmatpush2.msra.mxu0 0.0
    %3631 = vmatprep.subr.mxu0 0.0
    %3632 = vmatpush2.msra.mxu0 0.0
    %3633 = vmatprep.subr.mxu0 0.0
    %3634 = vmatpush2.msra.mxu0 0.0
    %3635 = vmatprep.subr.mxu0 0.0
    %3636 = vmatpush2.msra.mxu0 0.0
    %3637 = vmatprep.subr.mxu0 0.0
    %3638 = vmatpush2.msra.mxu0 0.0
    %3639 = vmatprep.subr.mxu0 0.0
    %3640 = vmatpush2.msra.mxu0 0.0
    %3641 = vmatprep.subr.mxu0 0.0
    %3642 = vmatpush2.msra.mxu0 0.0
    %3643 = vmatprep.subr.mxu0 0.0
    %3644 = vmatpush2.msra.mxu0 0.0
    %3645 = vmatprep.subr.mxu0 0.0
    %3646 = vmatpush2.msra.mxu0 0.0
    %3647 = vmatprep.subr.mxu0 0.0
    %3648 = vmatpush2.msra.mxu0 0.0
    %3649 = vmatprep.subr.mxu0 0.0
    %3650 = vmatpush2.msra.mxu0 0.0
    %3651 = vmatprep.mubr.f32.mxu0 0.0
    %3652 = vmatmul.mubr.f32.gmra.mxu0 %v532
    %v3653 = vpop.f32.mrf.mxu0
    %v3654 = vadd.f32 0.0, %v3653
    %v3655 = vpop.f32.mrf.mxu0
    %3656 = vmatprep.mubr.f32.mxu0 0.0
    %3657 = vmatmul.mubr.f32.gmra.mxu0 %v535
    %v3658 = vpop.f32.mrf.mxu0
    %v3659 = vadd.f32 0.0, %v3658
    %v3660 = vpop.f32.mrf.mxu0
    %3661 = vmatprep.mubr.f32.mxu0 0.0
    %3662 = vmatmul.mubr.f32.gmra.mxu0 %v538
    %v3663 = vpop.f32.mrf.mxu0
    %v3664 = vadd.f32 0.0, %v3663
    %v3665 = vpop.f32.mrf.mxu0
    %3666 = vmatprep.mubr.f32.mxu0 0.0
    %3667 = vmatmul.mubr.f32.gmra.mxu0 %v541
    %v3668 = vpop.f32.mrf.mxu0
    %v3669 = vadd.f32 0.0, %v3668
    %v3670 = vpop.f32.mrf.mxu0
    %3671 = vdwg.mxu0
    %3673 = vset.pattern.permute.xlu0 0
    %3674 = vperm.xlu0 %3673, %v3654
    %v3675 = vpop.permute.xlu0 %3674
    %3678 = vset.pattern.permute.xlu0 0
    %3679 = vperm.xlu0 %3678, %v3659
    %v3680 = vpop.permute.xlu0 %3679
    %3683 = vset.pattern.permute.xlu0 0
    %3684 = vperm.xlu0 %3683, %v3664
    %v3685 = vpop.permute.xlu0 %3684
    %3688 = vset.pattern.permute.xlu0 0
    %3689 = vperm.xlu0 %3688, %v3669
    %v3690 = vpop.permute.xlu0 %3689
    %v3692 = vsub.f32 %v439, %v3675
    %v3693 = vsub.f32 %v440, %v3680
    %v3694 = vsub.f32 %v441, %v3685
    %v3695 = vsub.f32 %v442, %v3690
    %v3696 = vmul.f32 %v3692, %v3692
    %v3697 = vmul.f32 %v3693, %v3693
    %v3698 = vmul.f32 %v3694, %v3694
    %v3699 = vmul.f32 %v3695, %v3695
    %3704 = vrot.lane.b32.xlu0 %v3696, 16
    %v3705 = vpop.permute.xlu0 %3704
    %3706 = vrot.lane.b32.xlu0 %v3697, 16
    %v3707 = vpop.permute.xlu0 %3706
    %3708 = vrot.lane.b32.xlu0 %v3698, 16
    %v3709 = vpop.permute.xlu0 %3708
    %3710 = vrot.lane.b32.xlu0 %v3699, 16
    %v3711 = vpop.permute.xlu0 %3710
    %v3716 = vsel %vm443, %v3705, 0.0
    %3717 = vadd.xlane.f32.xlu0 %v3716
    %v3718 = vpop.xlane.xlu0 %3717
    %v3719 = vsel %vm443, %v3707, 0.0
    %3720 = vadd.xlane.f32.xlu0 %v3719
    %v3721 = vpop.xlane.xlu0 %3720
    %v3722 = vsel %vm443, %v3709, 0.0
    %3723 = vadd.xlane.f32.xlu0 %v3722
    %v3724 = vpop.xlane.xlu0 %3723
    %v3725 = vsel %vm443, %v3711, 0.0
    %3726 = vadd.xlane.f32.xlu0 %v3725
    %v3727 = vpop.xlane.xlu0 %3726
    %3728 = vmatprep.subr.mxu0 0.0
    %3729 = vmatpush1.msra.mxu0 0.0
    %3730 = vmatprep.subr.mxu0 0.0
    %3731 = vmatpush1.msra.mxu0 0.0
    %3732 = vmatprep.subr.mxu0 0.0
    %3733 = vmatpush1.msra.mxu0 0.0
    %3734 = vmatprep.subr.mxu0 0.0
    %3735 = vmatpush1.msra.mxu0 0.0
    %3736 = vmatprep.subr.mxu0 0.0
    %3737 = vmatpush1.msra.mxu0 0.0
    %3738 = vmatprep.subr.mxu0 0.0
    %3739 = vmatpush1.msra.mxu0 0.0
    %3740 = vmatprep.subr.mxu0 0.0
    %3741 = vmatpush1.msra.mxu0 0.0
    %3742 = vmatprep.subr.mxu0 0.0
    %3743 = vmatpush1.msra.mxu0 0.0
    %3744 = vmatprep.subr.mxu0 0.0
    %3745 = vmatpush1.msra.mxu0 0.0
    %3746 = vmatprep.subr.mxu0 0.0
    %3747 = vmatpush1.msra.mxu0 0.0
    %3748 = vmatprep.subr.mxu0 0.0
    %3749 = vmatpush1.msra.mxu0 0.0
    %3750 = vmatprep.subr.mxu0 0.0
    %3751 = vmatpush1.msra.mxu0 0.0
    %3752 = vmatprep.subr.mxu0 0.0
    %3753 = vmatpush1.msra.mxu0 %v3727
    %3754 = vmatprep.subr.mxu0 0.0
    %3755 = vmatpush1.msra.mxu0 %v3724
    %3756 = vmatprep.subr.mxu0 0.0
    %3757 = vmatpush1.msra.mxu0 %v3721
    %3758 = vmatprep.subr.mxu0 0.0
    %3759 = vmatpush1.msra.mxu0 %v3718
    %3760 = vmatprep.subr.mxu0 0.0
    %3761 = vmatpush2.msra.mxu0 0.0
    %3762 = vmatprep.subr.mxu0 0.0
    %3763 = vmatpush2.msra.mxu0 0.0
    %3764 = vmatprep.subr.mxu0 0.0
    %3765 = vmatpush2.msra.mxu0 0.0
    %3766 = vmatprep.subr.mxu0 0.0
    %3767 = vmatpush2.msra.mxu0 0.0
    %3768 = vmatprep.subr.mxu0 0.0
    %3769 = vmatpush2.msra.mxu0 0.0
    %3770 = vmatprep.subr.mxu0 0.0
    %3771 = vmatpush2.msra.mxu0 0.0
    %3772 = vmatprep.subr.mxu0 0.0
    %3773 = vmatpush2.msra.mxu0 0.0
    %3774 = vmatprep.subr.mxu0 0.0
    %3775 = vmatpush2.msra.mxu0 0.0
    %3776 = vmatprep.subr.mxu0 0.0
    %3777 = vmatpush2.msra.mxu0 0.0
    %3778 = vmatprep.subr.mxu0 0.0
    %3779 = vmatpush2.msra.mxu0 0.0
    %3780 = vmatprep.subr.mxu0 0.0
    %3781 = vmatpush2.msra.mxu0 0.0
    %3782 = vmatprep.subr.mxu0 0.0
    %3783 = vmatpush2.msra.mxu0 0.0
    %3784 = vmatprep.subr.mxu0 0.0
    %3785 = vmatpush2.msra.mxu0 0.0
    %3786 = vmatprep.subr.mxu0 0.0
    %3787 = vmatpush2.msra.mxu0 0.0
    %3788 = vmatprep.subr.mxu0 0.0
    %3789 = vmatpush2.msra.mxu0 0.0
    %3790 = vmatprep.subr.mxu0 0.0
    %3791 = vmatpush2.msra.mxu0 0.0
    %3792 = vmatprep.mubr.f32.mxu0 0.0
    %3793 = vmatmul.mubr.f32.gmra.mxu0 %v457
    %v3794 = vpop.f32.mrf.mxu0
    %v3795 = vadd.f32 0.0, %v3794
    %v3796 = vpop.f32.mrf.mxu0
    %3797 = vdwg.mxu0
    %v3798 = vmul.f32 %v3795, 0.0078125
    %v3799 = vadd.f32 %v3798, 1e-05
    %v3800 = vrsqrt.pop %v3799
    %v3802 = vsel %vm543, %v3800, 0
    %3804 = vmatprep.subr.mxu0 0.0
    %3805 = vmatpush1.msra.mxu0 0.0
    %3806 = vmatprep.subr.mxu0 0.0
    %3807 = vmatpush1.msra.mxu0 0.0
    %3808 = vmatprep.subr.mxu0 0.0
    %3809 = vmatpush1.msra.mxu0 0.0
    %3810 = vmatprep.subr.mxu0 0.0
    %3811 = vmatpush1.msra.mxu0 0.0
    %3812 = vmatprep.subr.mxu0 0.0
    %3813 = vmatpush1.msra.mxu0 0.0
    %3814 = vmatprep.subr.mxu0 0.0
    %3815 = vmatpush1.msra.mxu0 0.0
    %3816 = vmatprep.subr.mxu0 0.0
    %3817 = vmatpush1.msra.mxu0 0.0
    %3818 = vmatprep.subr.mxu0 0.0
    %3819 = vmatpush1.msra.mxu0 0.0
    %3820 = vmatprep.subr.mxu0 0.0
    %3821 = vmatpush1.msra.mxu0 0.0
    %3822 = vmatprep.subr.mxu0 0.0
    %3823 = vmatpush1.msra.mxu0 0.0
    %3824 = vmatprep.subr.mxu0 0.0
    %3825 = vmatpush1.msra.mxu0 0.0
    %3826 = vmatprep.subr.mxu0 0.0
    %3827 = vmatpush1.msra.mxu0 0.0
    %3828 = vmatprep.subr.mxu0 0.0
    %3829 = vmatpush1.msra.mxu0 0.0
    %3830 = vmatprep.subr.mxu0 0.0
    %3831 = vmatpush1.msra.mxu0 0.0
    %3832 = vmatprep.subr.mxu0 0.0
    %3833 = vmatpush1.msra.mxu0 0.0
    %3834 = vmatprep.subr.mxu0 0.0
    %3835 = vmatpush1.msra.mxu0 %v3802
    %3836 = vmatprep.subr.mxu0 0.0
    %3837 = vmatpush2.msra.mxu0 0.0
    %3838 = vmatprep.subr.mxu0 0.0
    %3839 = vmatpush2.msra.mxu0 0.0
    %3840 = vmatprep.subr.mxu0 0.0
    %3841 = vmatpush2.msra.mxu0 0.0
    %3842 = vmatprep.subr.mxu0 0.0
    %3843 = vmatpush2.msra.mxu0 0.0
    %3844 = vmatprep.subr.mxu0 0.0
    %3845 = vmatpush2.msra.mxu0 0.0
    %3846 = vmatprep.subr.mxu0 0.0
    %3847 = vmatpush2.msra.mxu0 0.0
    %3848 = vmatprep.subr.mxu0 0.0
    %3849 = vmatpush2.msra.mxu0 0.0
    %3850 = vmatprep.subr.mxu0 0.0
    %3851 = vmatpush2.msra.mxu0 0.0
    %3852 = vmatprep.subr.mxu0 0.0
    %3853 = vmatpush2.msra.mxu0 0.0
    %3854 = vmatprep.subr.mxu0 0.0
    %3855 = vmatpush2.msra.mxu0 0.0
    %3856 = vmatprep.subr.mxu0 0.0
    %3857 = vmatpush2.msra.mxu0 0.0
    %3858 = vmatprep.subr.mxu0 0.0
    %3859 = vmatpush2.msra.mxu0 0.0
    %3860 = vmatprep.subr.mxu0 0.0
    %3861 = vmatpush2.msra.mxu0 0.0
    %3862 = vmatprep.subr.mxu0 0.0
    %3863 = vmatpush2.msra.mxu0 0.0
    %3864 = vmatprep.subr.mxu0 0.0
    %3865 = vmatpush2.msra.mxu0 0.0
    %3866 = vmatprep.subr.mxu0 0.0
    %3867 = vmatpush2.msra.mxu0 0.0
    %3868 = vmatprep.mubr.f32.mxu0 0.0
    %3869 = vmatmul.mubr.f32.gmra.mxu0 %v532
    %v3870 = vpop.f32.mrf.mxu0
    %v3871 = vadd.f32 0.0, %v3870
    %v3872 = vpop.f32.mrf.mxu0
    %3873 = vmatprep.mubr.f32.mxu0 0.0
    %3874 = vmatmul.mubr.f32.gmra.mxu0 %v535
    %v3875 = vpop.f32.mrf.mxu0
    %v3876 = vadd.f32 0.0, %v3875
    %v3877 = vpop.f32.mrf.mxu0
    %3878 = vmatprep.mubr.f32.mxu0 0.0
    %3879 = vmatmul.mubr.f32.gmra.mxu0 %v538
    %v3880 = vpop.f32.mrf.mxu0
    %v3881 = vadd.f32 0.0, %v3880
    %v3882 = vpop.f32.mrf.mxu0
    %3883 = vmatprep.mubr.f32.mxu0 0.0
    %3884 = vmatmul.mubr.f32.gmra.mxu0 %v541
    %v3885 = vpop.f32.mrf.mxu0
    %v3886 = vadd.f32 0.0, %v3885
    %v3887 = vpop.f32.mrf.mxu0
    %3888 = vdwg.mxu0
    %v3889 = vmul.f32 %v3871, %v834
    %v3890 = vmul.f32 %v3876, %v836
    %v3891 = vmul.f32 %v3881, %v838
    %v3892 = vmul.f32 %v3886, %v840
    %3894 = vset.pattern.permute.xlu0 0
    %3895 = vperm.xlu0 %3894, %v3889
    %v3896 = vpop.permute.xlu0 %3895
    %3899 = vset.pattern.permute.xlu0 0
    %3900 = vperm.xlu0 %3899, %v3890
    %v3901 = vpop.permute.xlu0 %3900
    %3904 = vset.pattern.permute.xlu0 0
    %3905 = vperm.xlu0 %3904, %v3891
    %v3906 = vpop.permute.xlu0 %3905
    %3909 = vset.pattern.permute.xlu0 0
    %3910 = vperm.xlu0 %3909, %v3892
    %v3911 = vpop.permute.xlu0 %3910
    %v3913 = vmul.f32 %v3692, %v3896
    %v3914 = vmul.f32 %v3693, %v3901
    %v3915 = vmul.f32 %v3694, %v3906
    %v3916 = vmul.f32 %v3695, %v3911
    %v3917 = vadd.f32 %v3913, %v875
    %v3918 = vadd.f32 %v3914, %v879
    %v3919 = vadd.f32 %v3915, %v883
    %v3920 = vadd.f32 %v3916, %v887
    %v3921 = vsel %vm443, %v889, %v1325
    %v3922 = vsel %vm443, %v890, %v1326
    %v3923 = vsel %vm443, %v891, %v1327
    %v3924 = vsel %vm443, %v892, %v1328
    %v3925 = vsel %vm118, %v3921, %v1757
    %v3926 = vsel %vm118, %v3922, %v1758
    %v3927 = vsel %vm118, %v3923, %v1759
    %v3928 = vsel %vm118, %v3924, %v1760
    %vm3929 = vcmask 392192
    %v3930 = vsel %vm3929, %v3925, %v2189
    %v3931 = vsel %vm3929, %v3926, %v2190
    %v3932 = vsel %vm3929, %v3927, %v2191
    %v3933 = vsel %vm3929, %v3928, %v2192
    %vm3934 = vcmask 523264
    %v3935 = vsel %vm3934, %v3930, %v2621
    %v3936 = vsel %vm3934, %v3931, %v2622
    %v3937 = vsel %vm3934, %v3932, %v2623
    %v3938 = vsel %vm3934, %v3933, %v2624
    %vm3939 = vcmask 654336
    %v3940 = vsel %vm3939, %v3935, %v3053
    %v3941 = vsel %vm3939, %v3936, %v3054
    %v3942 = vsel %vm3939, %v3937, %v3055
    %v3943 = vsel %vm3939, %v3938, %v3056
    %vm3944 = vcmask 785408
    %v3945 = vsel %vm3944, %v3940, %v3485
    %v3946 = vsel %vm3944, %v3941, %v3486
    %v3947 = vsel %vm3944, %v3942, %v3487
    %v3948 = vsel %vm3944, %v3943, %v3488
    %vm3949 = vcmask 916480
    %v3950 = vsel %vm3949, %v3945, %v3917
    %v3951 = vsel %vm3949, %v3946, %v3918
    %v3952 = vsel %vm3949, %v3947, %v3919
    %v3953 = vsel %vm3949, %v3948, %v3920
    %v3954 = vmax.f32 %v3950, 0.0
    %v3955 = vmax.f32 %v3951, 0.0
    %v3956 = vmax.f32 %v3952, 0.0
    %v3957 = vmax.f32 %v3953, 0.0
    %3958 = vrot.lane.b32.xlu0 %v3954, 1
    %v3959 = vpop.permute.xlu0 %3958
    %3960 = vrot.lane.b32.xlu0 %v3955, 1
    %v3961 = vpop.permute.xlu0 %3960
    %3962 = vrot.lane.b32.xlu0 %v3956, 1
    %v3963 = vpop.permute.xlu0 %3962
    %3964 = vrot.lane.b32.xlu0 %v3957, 1
    %v3965 = vpop.permute.xlu0 %3964
    %v3966 = vmul.f32 %v3959, %v85
    %v3967 = vmul.f32 %v3961, %v85
    %v3968 = vmul.f32 %v3963, %v85
    %v3969 = vmul.f32 %v3965, %v85
    %3970 = vrot.lane.b32.xlu0 %v3954, 127
    %v3971 = vpop.permute.xlu0 %3970
    %3972 = vrot.lane.b32.xlu0 %v3955, 127
    %v3973 = vpop.permute.xlu0 %3972
    %3974 = vrot.lane.b32.xlu0 %v3956, 127
    %v3975 = vpop.permute.xlu0 %3974
    %3976 = vrot.lane.b32.xlu0 %v3957, 127
    %v3977 = vpop.permute.xlu0 %3976
    %v3978 = vmul.f32 %v3971, %v103
    %v3979 = vmul.f32 %v3973, %v103
    %v3980 = vmul.f32 %v3975, %v103
    %v3981 = vmul.f32 %v3977, %v103
    %v3982 = vld [vmem:[#allocation5] sm:$0xff]
    %v3983 = vld [vmem:[#allocation5 + $0x8] sm:$0xff]
    %v3984 = vld [vmem:[#allocation5 + $0x10] sm:$0xff]
    %v3985 = vld [vmem:[#allocation5 + $0x18] sm:$0xff]
    %s3986 = scalar_lea.vmem [#allocation5], 32
    %v3987 = vld [vmem:[%s3986] sm:$0xff]
    %v3988 = vld [vmem:[%s3986 + $0x8] sm:$0xff]
    %v3989 = vld [vmem:[%s3986 + $0x10] sm:$0xff]
    %v3990 = vld [vmem:[%s3986 + $0x18] sm:$0xff]
    %v3992 = vsel %vm118, %v3987, 0
    %v3995 = vsel %vm118, %v3988, 0
    %v3998 = vsel %vm118, %v3989, 0
    %v4001 = vsel %vm118, %v3990, 0
    %4003 = vmatprep.subr.mxu0 0.0
    %4004 = vmatpush1.msra.mxu0 0.0
    %4005 = vmatprep.subr.mxu0 0.0
    %4006 = vmatpush1.msra.mxu0 0.0
    %4007 = vmatprep.subr.mxu0 0.0
    %4008 = vmatpush1.msra.mxu0 0.0
    %4009 = vmatprep.subr.mxu0 0.0
    %4010 = vmatpush1.msra.mxu0 0.0
    %4011 = vmatprep.subr.mxu0 0.0
    %4012 = vmatpush1.msra.mxu0 0.0
    %4013 = vmatprep.subr.mxu0 0.0
    %4014 = vmatpush1.msra.mxu0 0.0
    %4015 = vmatprep.subr.mxu0 0.0
    %4016 = vmatpush1.msra.mxu0 0.0
    %4017 = vmatprep.subr.mxu0 0.0
    %4018 = vmatpush1.msra.mxu0 0.0
    %4019 = vmatprep.subr.mxu0 0.0
    %4020 = vmatpush1.msra.mxu0 0.0
    %4021 = vmatprep.subr.mxu0 0.0
    %4022 = vmatpush1.msra.mxu0 0.0
    %4023 = vmatprep.subr.mxu0 0.0
    %4024 = vmatpush1.msra.mxu0 0.0
    %4025 = vmatprep.subr.mxu0 0.0
    %4026 = vmatpush1.msra.mxu0 0.0
    %4027 = vmatprep.subr.mxu0 0.0
    %4028 = vmatpush1.msra.mxu0 %v3957
    %4029 = vmatprep.subr.mxu0 0.0
    %4030 = vmatpush1.msra.mxu0 %v3956
    %4031 = vmatprep.subr.mxu0 0.0
    %4032 = vmatpush1.msra.mxu0 %v3955
    %4033 = vmatprep.subr.mxu0 0.0
    %4034 = vmatpush1.msra.mxu0 %v3954
    %4035 = vmatprep.subr.mxu0 0.0
    %4036 = vmatpush2.msra.mxu0 0.0
    %4037 = vmatprep.subr.mxu0 0.0
    %4038 = vmatpush2.msra.mxu0 0.0
    %4039 = vmatprep.subr.mxu0 0.0
    %4040 = vmatpush2.msra.mxu0 0.0
    %4041 = vmatprep.subr.mxu0 0.0
    %4042 = vmatpush2.msra.mxu0 0.0
    %4043 = vmatprep.subr.mxu0 0.0
    %4044 = vmatpush2.msra.mxu0 0.0
    %4045 = vmatprep.subr.mxu0 0.0
    %4046 = vmatpush2.msra.mxu0 0.0
    %4047 = vmatprep.subr.mxu0 0.0
    %4048 = vmatpush2.msra.mxu0 0.0
    %4049 = vmatprep.subr.mxu0 0.0
    %4050 = vmatpush2.msra.mxu0 0.0
    %4051 = vmatprep.subr.mxu0 0.0
    %4052 = vmatpush2.msra.mxu0 0.0
    %4053 = vmatprep.subr.mxu0 0.0
    %4054 = vmatpush2.msra.mxu0 0.0
    %4055 = vmatprep.subr.mxu0 0.0
    %4056 = vmatpush2.msra.mxu0 0.0
    %4057 = vmatprep.subr.mxu0 0.0
    %4058 = vmatpush2.msra.mxu0 0.0
    %4059 = vmatprep.subr.mxu0 0.0
    %4060 = vmatpush2.msra.mxu0 0.0
    %4061 = vmatprep.subr.mxu0 0.0
    %4062 = vmatpush2.msra.mxu0 0.0
    %4063 = vmatprep.subr.mxu0 0.0
    %4064 = vmatpush2.msra.mxu0 0.0
    %4065 = vmatprep.subr.mxu0 0.0
    %4066 = vmatpush2.msra.mxu0 0.0
    %4067 = vmatprep.mubr.f32.mxu0 0.0
    %4068 = vmatmul.mubr.f32.gmra.mxu0 %v3992
    %v4069 = vpop.f32.mrf.mxu0
    %v4070 = vadd.f32 0.0, %v4069
    %v4071 = vpop.f32.mrf.mxu0
    %4072 = vmatprep.mubr.f32.mxu0 0.0
    %4073 = vmatmul.mubr.f32.gmra.mxu0 %v3995
    %v4074 = vpop.f32.mrf.mxu0
    %v4075 = vadd.f32 0.0, %v4074
    %v4076 = vpop.f32.mrf.mxu0
    %4077 = vmatprep.mubr.f32.mxu0 0.0
    %4078 = vmatmul.mubr.f32.gmra.mxu0 %v3998
    %v4079 = vpop.f32.mrf.mxu0
    %v4080 = vadd.f32 0.0, %v4079
    %v4081 = vpop.f32.mrf.mxu0
    %4082 = vmatprep.mubr.f32.mxu0 0.0
    %4083 = vmatmul.mubr.f32.gmra.mxu0 %v4001
    %v4084 = vpop.f32.mrf.mxu0
    %v4085 = vadd.f32 0.0, %v4084
    %v4086 = vpop.f32.mrf.mxu0
    %4087 = vdwg.mxu0
    %v4089 = vsel %vm118, %v3982, 0
    %v4092 = vsel %vm118, %v3983, 0
    %v4095 = vsel %vm118, %v3984, 0
    %v4098 = vsel %vm118, %v3985, 0
    %4100 = vmatprep.subr.mxu0 0.0
    %4101 = vmatpush1.msra.mxu0 0.0
    %4102 = vmatprep.subr.mxu0 0.0
    %4103 = vmatpush1.msra.mxu0 0.0
    %4104 = vmatprep.subr.mxu0 0.0
    %4105 = vmatpush1.msra.mxu0 0.0
    %4106 = vmatprep.subr.mxu0 0.0
    %4107 = vmatpush1.msra.mxu0 0.0
    %4108 = vmatprep.subr.mxu0 0.0
    %4109 = vmatpush1.msra.mxu0 0.0
    %4110 = vmatprep.subr.mxu0 0.0
    %4111 = vmatpush1.msra.mxu0 0.0
    %4112 = vmatprep.subr.mxu0 0.0
    %4113 = vmatpush1.msra.mxu0 0.0
    %4114 = vmatprep.subr.mxu0 0.0
    %4115 = vmatpush1.msra.mxu0 0.0
    %4116 = vmatprep.subr.mxu0 0.0
    %4117 = vmatpush1.msra.mxu0 0.0
    %4118 = vmatprep.subr.mxu0 0.0
    %4119 = vmatpush1.msra.mxu0 0.0
    %4120 = vmatprep.subr.mxu0 0.0
    %4121 = vmatpush1.msra.mxu0 0.0
    %4122 = vmatprep.subr.mxu0 0.0
    %4123 = vmatpush1.msra.mxu0 0.0
    %4124 = vmatprep.subr.mxu0 0.0
    %4125 = vmatpush1.msra.mxu0 %v3969
    %4126 = vmatprep.subr.mxu0 0.0
    %4127 = vmatpush1.msra.mxu0 %v3968
    %4128 = vmatprep.subr.mxu0 0.0
    %4129 = vmatpush1.msra.mxu0 %v3967
    %4130 = vmatprep.subr.mxu0 0.0
    %4131 = vmatpush1.msra.mxu0 %v3966
    %4132 = vmatprep.subr.mxu0 0.0
    %4133 = vmatpush2.msra.mxu0 0.0
    %4134 = vmatprep.subr.mxu0 0.0
    %4135 = vmatpush2.msra.mxu0 0.0
    %4136 = vmatprep.subr.mxu0 0.0
    %4137 = vmatpush2.msra.mxu0 0.0
    %4138 = vmatprep.subr.mxu0 0.0
    %4139 = vmatpush2.msra.mxu0 0.0
    %4140 = vmatprep.subr.mxu0 0.0
    %4141 = vmatpush2.msra.mxu0 0.0
    %4142 = vmatprep.subr.mxu0 0.0
    %4143 = vmatpush2.msra.mxu0 0.0
    %4144 = vmatprep.subr.mxu0 0.0
    %4145 = vmatpush2.msra.mxu0 0.0
    %4146 = vmatprep.subr.mxu0 0.0
    %4147 = vmatpush2.msra.mxu0 0.0
    %4148 = vmatprep.subr.mxu0 0.0
    %4149 = vmatpush2.msra.mxu0 0.0
    %4150 = vmatprep.subr.mxu0 0.0
    %4151 = vmatpush2.msra.mxu0 0.0
    %4152 = vmatprep.subr.mxu0 0.0
    %4153 = vmatpush2.msra.mxu0 0.0
    %4154 = vmatprep.subr.mxu0 0.0
    %4155 = vmatpush2.msra.mxu0 0.0
    %4156 = vmatprep.subr.mxu0 0.0
    %4157 = vmatpush2.msra.mxu0 0.0
    %4158 = vmatprep.subr.mxu0 0.0
    %4159 = vmatpush2.msra.mxu0 0.0
    %4160 = vmatprep.subr.mxu0 0.0
    %4161 = vmatpush2.msra.mxu0 0.0
    %4162 = vmatprep.subr.mxu0 0.0
    %4163 = vmatpush2.msra.mxu0 0.0
    %4164 = vmatprep.mubr.f32.mxu0 0.0
    %4165 = vmatmul.mubr.f32.gmra.mxu0 %v4089
    %v4166 = vpop.f32.mrf.mxu0
    %v4167 = vadd.f32 %v4070, %v4166
    %v4168 = vpop.f32.mrf.mxu0
    %4169 = vmatprep.mubr.f32.mxu0 0.0
    %4170 = vmatmul.mubr.f32.gmra.mxu0 %v4092
    %v4171 = vpop.f32.mrf.mxu0
    %v4172 = vadd.f32 %v4075, %v4171
    %v4173 = vpop.f32.mrf.mxu0
    %4174 = vmatprep.mubr.f32.mxu0 0.0
    %4175 = vmatmul.mubr.f32.gmra.mxu0 %v4095
    %v4176 = vpop.f32.mrf.mxu0
    %v4177 = vadd.f32 %v4080, %v4176
    %v4178 = vpop.f32.mrf.mxu0
    %4179 = vmatprep.mubr.f32.mxu0 0.0
    %4180 = vmatmul.mubr.f32.gmra.mxu0 %v4098
    %v4181 = vpop.f32.mrf.mxu0
    %v4182 = vadd.f32 %v4085, %v4181
    %v4183 = vpop.f32.mrf.mxu0
    %4184 = vdwg.mxu0
    %s4185 = scalar_lea.vmem [#allocation5], 64
    %v4186 = vld [vmem:[%s4185] sm:$0xff]
    %v4187 = vld [vmem:[%s4185 + $0x8] sm:$0xff]
    %v4188 = vld [vmem:[%s4185 + $0x10] sm:$0xff]
    %v4189 = vld [vmem:[%s4185 + $0x18] sm:$0xff]
    %v4191 = vsel %vm118, %v4186, 0
    %v4194 = vsel %vm118, %v4187, 0
    %v4197 = vsel %vm118, %v4188, 0
    %v4200 = vsel %vm118, %v4189, 0
    %4202 = vmatprep.subr.mxu0 0.0
    %4203 = vmatpush1.msra.mxu0 0.0
    %4204 = vmatprep.subr.mxu0 0.0
    %4205 = vmatpush1.msra.mxu0 0.0
    %4206 = vmatprep.subr.mxu0 0.0
    %4207 = vmatpush1.msra.mxu0 0.0
    %4208 = vmatprep.subr.mxu0 0.0
    %4209 = vmatpush1.msra.mxu0 0.0
    %4210 = vmatprep.subr.mxu0 0.0
    %4211 = vmatpush1.msra.mxu0 0.0
    %4212 = vmatprep.subr.mxu0 0.0
    %4213 = vmatpush1.msra.mxu0 0.0
    %4214 = vmatprep.subr.mxu0 0.0
    %4215 = vmatpush1.msra.mxu0 0.0
    %4216 = vmatprep.subr.mxu0 0.0
    %4217 = vmatpush1.msra.mxu0 0.0
    %4218 = vmatprep.subr.mxu0 0.0
    %4219 = vmatpush1.msra.mxu0 0.0
    %4220 = vmatprep.subr.mxu0 0.0
    %4221 = vmatpush1.msra.mxu0 0.0
    %4222 = vmatprep.subr.mxu0 0.0
    %4223 = vmatpush1.msra.mxu0 0.0
    %4224 = vmatprep.subr.mxu0 0.0
    %4225 = vmatpush1.msra.mxu0 0.0
    %4226 = vmatprep.subr.mxu0 0.0
    %4227 = vmatpush1.msra.mxu0 %v3981
    %4228 = vmatprep.subr.mxu0 0.0
    %4229 = vmatpush1.msra.mxu0 %v3980
    %4230 = vmatprep.subr.mxu0 0.0
    %4231 = vmatpush1.msra.mxu0 %v3979
    %4232 = vmatprep.subr.mxu0 0.0
    %4233 = vmatpush1.msra.mxu0 %v3978
    %4234 = vmatprep.subr.mxu0 0.0
    %4235 = vmatpush2.msra.mxu0 0.0
    %4236 = vmatprep.subr.mxu0 0.0
    %4237 = vmatpush2.msra.mxu0 0.0
    %4238 = vmatprep.subr.mxu0 0.0
    %4239 = vmatpush2.msra.mxu0 0.0
    %4240 = vmatprep.subr.mxu0 0.0
    %4241 = vmatpush2.msra.mxu0 0.0
    %4242 = vmatprep.subr.mxu0 0.0
    %4243 = vmatpush2.msra.mxu0 0.0
    %4244 = vmatprep.subr.mxu0 0.0
    %4245 = vmatpush2.msra.mxu0 0.0
    %4246 = vmatprep.subr.mxu0 0.0
    %4247 = vmatpush2.msra.mxu0 0.0
    %4248 = vmatprep.subr.mxu0 0.0
    %4249 = vmatpush2.msra.mxu0 0.0
    %4250 = vmatprep.subr.mxu0 0.0
    %4251 = vmatpush2.msra.mxu0 0.0
    %4252 = vmatprep.subr.mxu0 0.0
    %4253 = vmatpush2.msra.mxu0 0.0
    %4254 = vmatprep.subr.mxu0 0.0
    %4255 = vmatpush2.msra.mxu0 0.0
    %4256 = vmatprep.subr.mxu0 0.0
    %4257 = vmatpush2.msra.mxu0 0.0
    %4258 = vmatprep.subr.mxu0 0.0
    %4259 = vmatpush2.msra.mxu0 0.0
    %4260 = vmatprep.subr.mxu0 0.0
    %4261 = vmatpush2.msra.mxu0 0.0
    %4262 = vmatprep.subr.mxu0 0.0
    %4263 = vmatpush2.msra.mxu0 0.0
    %4264 = vmatprep.subr.mxu0 0.0
    %4265 = vmatpush2.msra.mxu0 0.0
    %4266 = vmatprep.mubr.f32.mxu0 0.0
    %4267 = vmatmul.mubr.f32.gmra.mxu0 %v4191
    %v4268 = vpop.f32.mrf.mxu0
    %v4269 = vadd.f32 0.0, %v4268
    %v4270 = vpop.f32.mrf.mxu0
    %4271 = vmatprep.mubr.f32.mxu0 0.0
    %4272 = vmatmul.mubr.f32.gmra.mxu0 %v4194
    %v4273 = vpop.f32.mrf.mxu0
    %v4274 = vadd.f32 0.0, %v4273
    %v4275 = vpop.f32.mrf.mxu0
    %4276 = vmatprep.mubr.f32.mxu0 0.0
    %4277 = vmatmul.mubr.f32.gmra.mxu0 %v4197
    %v4278 = vpop.f32.mrf.mxu0
    %v4279 = vadd.f32 0.0, %v4278
    %v4280 = vpop.f32.mrf.mxu0
    %4281 = vmatprep.mubr.f32.mxu0 0.0
    %4282 = vmatmul.mubr.f32.gmra.mxu0 %v4200
    %v4283 = vpop.f32.mrf.mxu0
    %v4284 = vadd.f32 0.0, %v4283
    %v4285 = vpop.f32.mrf.mxu0
    %4286 = vdwg.mxu0
    %v4287 = vadd.f32 %v4167, %v4269
    %v4288 = vadd.f32 %v4172, %v4274
    %v4289 = vadd.f32 %v4177, %v4279
    %v4290 = vadd.f32 %v4182, %v4284
    %4291 = vset.pattern.permute.xlu0 3
    %4292 = vperm.xlu0 %4291, %v58
    %v4293 = vpop.permute.xlu0 %4292
    %4295 = vset.pattern.permute.xlu0 3
    %4296 = vperm.xlu0 %4295, %v59
    %v4297 = vpop.permute.xlu0 %4296
    %4299 = vset.pattern.permute.xlu0 3
    %4300 = vperm.xlu0 %4299, %v60
    %v4301 = vpop.permute.xlu0 %4300
    %4303 = vset.pattern.permute.xlu0 3
    %4304 = vperm.xlu0 %4303, %v61
    %v4305 = vpop.permute.xlu0 %4304
    %v4307 = vadd.f32 %v4287, %v4293
    %v4308 = vadd.f32 %v4288, %v4297
    %v4309 = vadd.f32 %v4289, %v4301
    %v4310 = vadd.f32 %v4290, %v4305
    %v4311 = vsel %vm443, %v4307, 0.0
    %4312 = vadd.xlane.f32.xlu0 %v4311
    %v4313 = vpop.xlane.xlu0 %4312
    %v4314 = vsel %vm443, %v4308, 0.0
    %4315 = vadd.xlane.f32.xlu0 %v4314
    %v4316 = vpop.xlane.xlu0 %4315
    %v4317 = vsel %vm443, %v4309, 0.0
    %4318 = vadd.xlane.f32.xlu0 %v4317
    %v4319 = vpop.xlane.xlu0 %4318
    %v4320 = vsel %vm443, %v4310, 0.0
    %4321 = vadd.xlane.f32.xlu0 %v4320
    %v4322 = vpop.xlane.xlu0 %4321
    %4323 = vmatprep.subr.mxu0 0.0
    %4324 = vmatpush1.msra.mxu0 0.0
    %4325 = vmatprep.subr.mxu0 0.0
    %4326 = vmatpush1.msra.mxu0 0.0
    %4327 = vmatprep.subr.mxu0 0.0
    %4328 = vmatpush1.msra.mxu0 0.0
    %4329 = vmatprep.subr.mxu0 0.0
    %4330 = vmatpush1.msra.mxu0 0.0
    %4331 = vmatprep.subr.mxu0 0.0
    %4332 = vmatpush1.msra.mxu0 0.0
    %4333 = vmatprep.subr.mxu0 0.0
    %4334 = vmatpush1.msra.mxu0 0.0
    %4335 = vmatprep.subr.mxu0 0.0
    %4336 = vmatpush1.msra.mxu0 0.0
    %4337 = vmatprep.subr.mxu0 0.0
    %4338 = vmatpush1.msra.mxu0 0.0
    %4339 = vmatprep.subr.mxu0 0.0
    %4340 = vmatpush1.msra.mxu0 0.0
    %4341 = vmatprep.subr.mxu0 0.0
    %4342 = vmatpush1.msra.mxu0 0.0
    %4343 = vmatprep.subr.mxu0 0.0
    %4344 = vmatpush1.msra.mxu0 0.0
    %4345 = vmatprep.subr.mxu0 0.0
    %4346 = vmatpush1.msra.mxu0 0.0
    %4347 = vmatprep.subr.mxu0 0.0
    %4348 = vmatpush1.msra.mxu0 %v4322
    %4349 = vmatprep.subr.mxu0 0.0
    %4350 = vmatpush1.msra.mxu0 %v4319
    %4351 = vmatprep.subr.mxu0 0.0
    %4352 = vmatpush1.msra.mxu0 %v4316
    %4353 = vmatprep.subr.mxu0 0.0
    %4354 = vmatpush1.msra.mxu0 %v4313
    %4355 = vmatprep.subr.mxu0 0.0
    %4356 = vmatpush2.msra.mxu0 0.0
    %4357 = vmatprep.subr.mxu0 0.0
    %4358 = vmatpush2.msra.mxu0 0.0
    %4359 = vmatprep.subr.mxu0 0.0
    %4360 = vmatpush2.msra.mxu0 0.0
    %4361 = vmatprep.subr.mxu0 0.0
    %4362 = vmatpush2.msra.mxu0 0.0
    %4363 = vmatprep.subr.mxu0 0.0
    %4364 = vmatpush2.msra.mxu0 0.0
    %4365 = vmatprep.subr.mxu0 0.0
    %4366 = vmatpush2.msra.mxu0 0.0
    %4367 = vmatprep.subr.mxu0 0.0
    %4368 = vmatpush2.msra.mxu0 0.0
    %4369 = vmatprep.subr.mxu0 0.0
    %4370 = vmatpush2.msra.mxu0 0.0
    %4371 = vmatprep.subr.mxu0 0.0
    %4372 = vmatpush2.msra.mxu0 0.0
    %4373 = vmatprep.subr.mxu0 0.0
    %4374 = vmatpush2.msra.mxu0 0.0
    %4375 = vmatprep.subr.mxu0 0.0
    %4376 = vmatpush2.msra.mxu0 0.0
    %4377 = vmatprep.subr.mxu0 0.0
    %4378 = vmatpush2.msra.mxu0 0.0
    %4379 = vmatprep.subr.mxu0 0.0
    %4380 = vmatpush2.msra.mxu0 0.0
    %4381 = vmatprep.subr.mxu0 0.0
    %4382 = vmatpush2.msra.mxu0 0.0
    %4383 = vmatprep.subr.mxu0 0.0
    %4384 = vmatpush2.msra.mxu0 0.0
    %4385 = vmatprep.subr.mxu0 0.0
    %4386 = vmatpush2.msra.mxu0 0.0
    %4387 = vmatprep.mubr.f32.mxu0 0.0
    %4388 = vmatmul.mubr.f32.gmra.mxu0 %v457
    %v4389 = vpop.f32.mrf.mxu0
    %v4390 = vadd.f32 0.0, %v4389
    %v4391 = vpop.f32.mrf.mxu0
    %4392 = vdwg.mxu0
    %v4393 = vmul.f32 %v4390, 0.0078125
    %v4395 = vsel %vm543, %v4393, 0
    %4397 = vmatprep.subr.mxu0 0.0
    %4398 = vmatpush1.msra.mxu0 0.0
    %4399 = vmatprep.subr.mxu0 0.0
    %4400 = vmatpush1.msra.mxu0 0.0
    %4401 = vmatprep.subr.mxu0 0.0
    %4402 = vmatpush1.msra.mxu0 0.0
    %4403 = vmatprep.subr.mxu0 0.0
    %4404 = vmatpush1.msra.mxu0 0.0
    %4405 = vmatprep.subr.mxu0 0.0
    %4406 = vmatpush1.msra.mxu0 0.0
    %4407 = vmatprep.subr.mxu0 0.0
    %4408 = vmatpush1.msra.mxu0 0.0
    %4409 = vmatprep.subr.mxu0 0.0
    %4410 = vmatpush1.msra.mxu0 0.0
    %4411 = vmatprep.subr.mxu0 0.0
    %4412 = vmatpush1.msra.mxu0 0.0
    %4413 = vmatprep.subr.mxu0 0.0
    %4414 = vmatpush1.msra.mxu0 0.0
    %4415 = vmatprep.subr.mxu0 0.0
    %4416 = vmatpush1.msra.mxu0 0.0
    %4417 = vmatprep.subr.mxu0 0.0
    %4418 = vmatpush1.msra.mxu0 0.0
    %4419 = vmatprep.subr.mxu0 0.0
    %4420 = vmatpush1.msra.mxu0 0.0
    %4421 = vmatprep.subr.mxu0 0.0
    %4422 = vmatpush1.msra.mxu0 0.0
    %4423 = vmatprep.subr.mxu0 0.0
    %4424 = vmatpush1.msra.mxu0 0.0
    %4425 = vmatprep.subr.mxu0 0.0
    %4426 = vmatpush1.msra.mxu0 0.0
    %4427 = vmatprep.subr.mxu0 0.0
    %4428 = vmatpush1.msra.mxu0 %v4395
    %4429 = vmatprep.subr.mxu0 0.0
    %4430 = vmatpush2.msra.mxu0 0.0
    %4431 = vmatprep.subr.mxu0 0.0
    %4432 = vmatpush2.msra.mxu0 0.0
    %4433 = vmatprep.subr.mxu0 0.0
    %4434 = vmatpush2.msra.mxu0 0.0
    %4435 = vmatprep.subr.mxu0 0.0
    %4436 = vmatpush2.msra.mxu0 0.0
    %4437 = vmatprep.subr.mxu0 0.0
    %4438 = vmatpush2.msra.mxu0 0.0
    %4439 = vmatprep.subr.mxu0 0.0
    %4440 = vmatpush2.msra.mxu0 0.0
    %4441 = vmatprep.subr.mxu0 0.0
    %4442 = vmatpush2.msra.mxu0 0.0
    %4443 = vmatprep.subr.mxu0 0.0
    %4444 = vmatpush2.msra.mxu0 0.0
    %4445 = vmatprep.subr.mxu0 0.0
    %4446 = vmatpush2.msra.mxu0 0.0
    %4447 = vmatprep.subr.mxu0 0.0
    %4448 = vmatpush2.msra.mxu0 0.0
    %4449 = vmatprep.subr.mxu0 0.0
    %4450 = vmatpush2.msra.mxu0 0.0
    %4451 = vmatprep.subr.mxu0 0.0
    %4452 = vmatpush2.msra.mxu0 0.0
    %4453 = vmatprep.subr.mxu0 0.0
    %4454 = vmatpush2.msra.mxu0 0.0
    %4455 = vmatprep.subr.mxu0 0.0
    %4456 = vmatpush2.msra.mxu0 0.0
    %4457 = vmatprep.subr.mxu0 0.0
    %4458 = vmatpush2.msra.mxu0 0.0
    %4459 = vmatprep.subr.mxu0 0.0
    %4460 = vmatpush2.msra.mxu0 0.0
    %4461 = vmatprep.mubr.f32.mxu0 0.0
    %4462 = vmatmul.mubr.f32.gmra.mxu0 %v532
    %v4463 = vpop.f32.mrf.mxu0
    %v4464 = vadd.f32 0.0, %v4463
    %v4465 = vpop.f32.mrf.mxu0
    %4466 = vmatprep.mubr.f32.mxu0 0.0
    %4467 = vmatmul.mubr.f32.gmra.mxu0 %v535
    %v4468 = vpop.f32.mrf.mxu0
    %v4469 = vadd.f32 0.0, %v4468
    %v4470 = vpop.f32.mrf.mxu0
    %4471 = vmatprep.mubr.f32.mxu0 0.0
    %4472 = vmatmul.mubr.f32.gmra.mxu0 %v538
    %v4473 = vpop.f32.mrf.mxu0
    %v4474 = vadd.f32 0.0, %v4473
    %v4475 = vpop.f32.mrf.mxu0
    %4476 = vmatprep.mubr.f32.mxu0 0.0
    %4477 = vmatmul.mubr.f32.gmra.mxu0 %v541
    %v4478 = vpop.f32.mrf.mxu0
    %v4479 = vadd.f32 0.0, %v4478
    %v4480 = vpop.f32.mrf.mxu0
    %4481 = vdwg.mxu0
    %4483 = vset.pattern.permute.xlu0 0
    %4484 = vperm.xlu0 %4483, %v4464
    %v4485 = vpop.permute.xlu0 %4484
    %4488 = vset.pattern.permute.xlu0 0
    %4489 = vperm.xlu0 %4488, %v4469
    %v4490 = vpop.permute.xlu0 %4489
    %4493 = vset.pattern.permute.xlu0 0
    %4494 = vperm.xlu0 %4493, %v4474
    %v4495 = vpop.permute.xlu0 %4494
    %4498 = vset.pattern.permute.xlu0 0
    %4499 = vperm.xlu0 %4498, %v4479
    %v4500 = vpop.permute.xlu0 %4499
    %v4502 = vsub.f32 %v4307, %v4485
    %v4503 = vsub.f32 %v4308, %v4490
    %v4504 = vsub.f32 %v4309, %v4495
    %v4505 = vsub.f32 %v4310, %v4500
    %v4506 = vmul.f32 %v4502, %v4502
    %v4507 = vmul.f32 %v4503, %v4503
    %v4508 = vmul.f32 %v4504, %v4504
    %v4509 = vmul.f32 %v4505, %v4505
    %v4510 = vsel %vm443, %v4506, 0.0
    %4511 = vadd.xlane.f32.xlu0 %v4510
    %v4512 = vpop.xlane.xlu0 %4511
    %v4513 = vsel %vm443, %v4507, 0.0
    %4514 = vadd.xlane.f32.xlu0 %v4513
    %v4515 = vpop.xlane.xlu0 %4514
    %v4516 = vsel %vm443, %v4508, 0.0
    %4517 = vadd.xlane.f32.xlu0 %v4516
    %v4518 = vpop.xlane.xlu0 %4517
    %v4519 = vsel %vm443, %v4509, 0.0
    %4520 = vadd.xlane.f32.xlu0 %v4519
    %v4521 = vpop.xlane.xlu0 %4520
    %4522 = vmatprep.subr.mxu0 0.0
    %4523 = vmatpush1.msra.mxu0 0.0
    %4524 = vmatprep.subr.mxu0 0.0
    %4525 = vmatpush1.msra.mxu0 0.0
    %4526 = vmatprep.subr.mxu0 0.0
    %4527 = vmatpush1.msra.mxu0 0.0
    %4528 = vmatprep.subr.mxu0 0.0
    %4529 = vmatpush1.msra.mxu0 0.0
    %4530 = vmatprep.subr.mxu0 0.0
    %4531 = vmatpush1.msra.mxu0 0.0
    %4532 = vmatprep.subr.mxu0 0.0
    %4533 = vmatpush1.msra.mxu0 0.0
    %4534 = vmatprep.subr.mxu0 0.0
    %4535 = vmatpush1.msra.mxu0 0.0
    %4536 = vmatprep.subr.mxu0 0.0
    %4537 = vmatpush1.msra.mxu0 0.0
    %4538 = vmatprep.subr.mxu0 0.0
    %4539 = vmatpush1.msra.mxu0 0.0
    %4540 = vmatprep.subr.mxu0 0.0
    %4541 = vmatpush1.msra.mxu0 0.0
    %4542 = vmatprep.subr.mxu0 0.0
    %4543 = vmatpush1.msra.mxu0 0.0
    %4544 = vmatprep.subr.mxu0 0.0
    %4545 = vmatpush1.msra.mxu0 0.0
    %4546 = vmatprep.subr.mxu0 0.0
    %4547 = vmatpush1.msra.mxu0 %v4521
    %4548 = vmatprep.subr.mxu0 0.0
    %4549 = vmatpush1.msra.mxu0 %v4518
    %4550 = vmatprep.subr.mxu0 0.0
    %4551 = vmatpush1.msra.mxu0 %v4515
    %4552 = vmatprep.subr.mxu0 0.0
    %4553 = vmatpush1.msra.mxu0 %v4512
    %4554 = vmatprep.subr.mxu0 0.0
    %4555 = vmatpush2.msra.mxu0 0.0
    %4556 = vmatprep.subr.mxu0 0.0
    %4557 = vmatpush2.msra.mxu0 0.0
    %4558 = vmatprep.subr.mxu0 0.0
    %4559 = vmatpush2.msra.mxu0 0.0
    %4560 = vmatprep.subr.mxu0 0.0
    %4561 = vmatpush2.msra.mxu0 0.0
    %4562 = vmatprep.subr.mxu0 0.0
    %4563 = vmatpush2.msra.mxu0 0.0
    %4564 = vmatprep.subr.mxu0 0.0
    %4565 = vmatpush2.msra.mxu0 0.0
    %4566 = vmatprep.subr.mxu0 0.0
    %4567 = vmatpush2.msra.mxu0 0.0
    %4568 = vmatprep.subr.mxu0 0.0
    %4569 = vmatpush2.msra.mxu0 0.0
    %4570 = vmatprep.subr.mxu0 0.0
    %4571 = vmatpush2.msra.mxu0 0.0
    %4572 = vmatprep.subr.mxu0 0.0
    %4573 = vmatpush2.msra.mxu0 0.0
    %4574 = vmatprep.subr.mxu0 0.0
    %4575 = vmatpush2.msra.mxu0 0.0
    %4576 = vmatprep.subr.mxu0 0.0
    %4577 = vmatpush2.msra.mxu0 0.0
    %4578 = vmatprep.subr.mxu0 0.0
    %4579 = vmatpush2.msra.mxu0 0.0
    %4580 = vmatprep.subr.mxu0 0.0
    %4581 = vmatpush2.msra.mxu0 0.0
    %4582 = vmatprep.subr.mxu0 0.0
    %4583 = vmatpush2.msra.mxu0 0.0
    %4584 = vmatprep.subr.mxu0 0.0
    %4585 = vmatpush2.msra.mxu0 0.0
    %4586 = vmatprep.mubr.f32.mxu0 0.0
    %4587 = vmatmul.mubr.f32.gmra.mxu0 %v457
    %v4588 = vpop.f32.mrf.mxu0
    %v4589 = vadd.f32 0.0, %v4588
    %v4590 = vpop.f32.mrf.mxu0
    %4591 = vdwg.mxu0
    %v4592 = vmul.f32 %v4589, 0.0078125
    %v4593 = vadd.f32 %v4592, 1e-05
    %v4594 = vrsqrt.pop %v4593
    %v4596 = vsel %vm543, %v4594, 0
    %4598 = vmatprep.subr.mxu0 0.0
    %4599 = vmatpush1.msra.mxu0 0.0
    %4600 = vmatprep.subr.mxu0 0.0
    %4601 = vmatpush1.msra.mxu0 0.0
    %4602 = vmatprep.subr.mxu0 0.0
    %4603 = vmatpush1.msra.mxu0 0.0
    %4604 = vmatprep.subr.mxu0 0.0
    %4605 = vmatpush1.msra.mxu0 0.0
    %4606 = vmatprep.subr.mxu0 0.0
    %4607 = vmatpush1.msra.mxu0 0.0
    %4608 = vmatprep.subr.mxu0 0.0
    %4609 = vmatpush1.msra.mxu0 0.0
    %4610 = vmatprep.subr.mxu0 0.0
    %4611 = vmatpush1.msra.mxu0 0.0
    %4612 = vmatprep.subr.mxu0 0.0
    %4613 = vmatpush1.msra.mxu0 0.0
    %4614 = vmatprep.subr.mxu0 0.0
    %4615 = vmatpush1.msra.mxu0 0.0
    %4616 = vmatprep.subr.mxu0 0.0
    %4617 = vmatpush1.msra.mxu0 0.0
    %4618 = vmatprep.subr.mxu0 0.0
    %4619 = vmatpush1.msra.mxu0 0.0
    %4620 = vmatprep.subr.mxu0 0.0
    %4621 = vmatpush1.msra.mxu0 0.0
    %4622 = vmatprep.subr.mxu0 0.0
    %4623 = vmatpush1.msra.mxu0 0.0
    %4624 = vmatprep.subr.mxu0 0.0
    %4625 = vmatpush1.msra.mxu0 0.0
    %4626 = vmatprep.subr.mxu0 0.0
    %4627 = vmatpush1.msra.mxu0 0.0
    %4628 = vmatprep.subr.mxu0 0.0
    %4629 = vmatpush1.msra.mxu0 %v4596
    %4630 = vmatprep.subr.mxu0 0.0
    %4631 = vmatpush2.msra.mxu0 0.0
    %4632 = vmatprep.subr.mxu0 0.0
    %4633 = vmatpush2.msra.mxu0 0.0
    %4634 = vmatprep.subr.mxu0 0.0
    %4635 = vmatpush2.msra.mxu0 0.0
    %4636 = vmatprep.subr.mxu0 0.0
    %4637 = vmatpush2.msra.mxu0 0.0
    %4638 = vmatprep.subr.mxu0 0.0
    %4639 = vmatpush2.msra.mxu0 0.0
    %4640 = vmatprep.subr.mxu0 0.0
    %4641 = vmatpush2.msra.mxu0 0.0
    %4642 = vmatprep.subr.mxu0 0.0
    %4643 = vmatpush2.msra.mxu0 0.0
    %4644 = vmatprep.subr.mxu0 0.0
    %4645 = vmatpush2.msra.mxu0 0.0
    %4646 = vmatprep.subr.mxu0 0.0
    %4647 = vmatpush2.msra.mxu0 0.0
    %4648 = vmatprep.subr.mxu0 0.0
    %4649 = vmatpush2.msra.mxu0 0.0
    %4650 = vmatprep.subr.mxu0 0.0
    %4651 = vmatpush2.msra.mxu0 0.0
    %4652 = vmatprep.subr.mxu0 0.0
    %4653 = vmatpush2.msra.mxu0 0.0
    %4654 = vmatprep.subr.mxu0 0.0
    %4655 = vmatpush2.msra.mxu0 0.0
    %4656 = vmatprep.subr.mxu0 0.0
    %4657 = vmatpush2.msra.mxu0 0.0
    %4658 = vmatprep.subr.mxu0 0.0
    %4659 = vmatpush2.msra.mxu0 0.0
    %4660 = vmatprep.subr.mxu0 0.0
    %4661 = vmatpush2.msra.mxu0 0.0
    %4662 = vmatprep.mubr.f32.mxu0 0.0
    %4663 = vmatmul.mubr.f32.gmra.mxu0 %v532
    %v4664 = vpop.f32.mrf.mxu0
    %v4665 = vadd.f32 0.0, %v4664
    %v4666 = vpop.f32.mrf.mxu0
    %4667 = vmatprep.mubr.f32.mxu0 0.0
    %4668 = vmatmul.mubr.f32.gmra.mxu0 %v535
    %v4669 = vpop.f32.mrf.mxu0
    %v4670 = vadd.f32 0.0, %v4669
    %v4671 = vpop.f32.mrf.mxu0
    %4672 = vmatprep.mubr.f32.mxu0 0.0
    %4673 = vmatmul.mubr.f32.gmra.mxu0 %v538
    %v4674 = vpop.f32.mrf.mxu0
    %v4675 = vadd.f32 0.0, %v4674
    %v4676 = vpop.f32.mrf.mxu0
    %4677 = vmatprep.mubr.f32.mxu0 0.0
    %4678 = vmatmul.mubr.f32.gmra.mxu0 %v541
    %v4679 = vpop.f32.mrf.mxu0
    %v4680 = vadd.f32 0.0, %v4679
    %v4681 = vpop.f32.mrf.mxu0
    %4682 = vdwg.mxu0
    %4683 = vrot.lane.b32.xlu0 %v58, 124
    %v4684 = vpop.permute.xlu0 %4683
    %4685 = vrot.lane.b32.xlu0 %v59, 124
    %v4686 = vpop.permute.xlu0 %4685
    %4687 = vrot.lane.b32.xlu0 %v60, 124
    %v4688 = vpop.permute.xlu0 %4687
    %4689 = vrot.lane.b32.xlu0 %v61, 124
    %v4690 = vpop.permute.xlu0 %4689
    %v4695 = vmul.f32 %v4665, %v4684
    %v4696 = vmul.f32 %v4670, %v4686
    %v4697 = vmul.f32 %v4675, %v4688
    %v4698 = vmul.f32 %v4680, %v4690
    %4700 = vset.pattern.permute.xlu0 0
    %4701 = vperm.xlu0 %4700, %v4695
    %v4702 = vpop.permute.xlu0 %4701
    %4705 = vset.pattern.permute.xlu0 0
    %4706 = vperm.xlu0 %4705, %v4696
    %v4707 = vpop.permute.xlu0 %4706
    %4710 = vset.pattern.permute.xlu0 0
    %4711 = vperm.xlu0 %4710, %v4697
    %v4712 = vpop.permute.xlu0 %4711
    %4715 = vset.pattern.permute.xlu0 0
    %4716 = vperm.xlu0 %4715, %v4698
    %v4717 = vpop.permute.xlu0 %4716
    %v4719 = vmul.f32 %v4502, %v4702
    %v4720 = vmul.f32 %v4503, %v4707
    %v4721 = vmul.f32 %v4504, %v4712
    %v4722 = vmul.f32 %v4505, %v4717
    %4723 = vset.pattern.permute.xlu0 5
    %4724 = vperm.xlu0 %4723, %v58
    %v4725 = vpop.permute.xlu0 %4724
    %4727 = vset.pattern.permute.xlu0 5
    %4728 = vperm.xlu0 %4727, %v59
    %v4729 = vpop.permute.xlu0 %4728
    %4731 = vset.pattern.permute.xlu0 5
    %4732 = vperm.xlu0 %4731, %v60
    %v4733 = vpop.permute.xlu0 %4732
    %4735 = vset.pattern.permute.xlu0 5
    %4736 = vperm.xlu0 %4735, %v61
    %v4737 = vpop.permute.xlu0 %4736
    %v4739 = vadd.f32 %v4719, %v4725
    %v4740 = vadd.f32 %v4720, %v4729
    %v4741 = vadd.f32 %v4721, %v4733
    %v4742 = vadd.f32 %v4722, %v4737
    %4747 = vrot.lane.b32.xlu0 %v4307, 112
    %v4748 = vpop.permute.xlu0 %4747
    %4749 = vrot.lane.b32.xlu0 %v4308, 112
    %v4750 = vpop.permute.xlu0 %4749
    %4751 = vrot.lane.b32.xlu0 %v4309, 112
    %v4752 = vpop.permute.xlu0 %4751
    %4753 = vrot.lane.b32.xlu0 %v4310, 112
    %v4754 = vpop.permute.xlu0 %4753
    %v4759 = vsel %vm443, %v4748, 0.0
    %4760 = vadd.xlane.f32.xlu0 %v4759
    %v4761 = vpop.xlane.xlu0 %4760
    %v4762 = vsel %vm443, %v4750, 0.0
    %4763 = vadd.xlane.f32.xlu0 %v4762
    %v4764 = vpop.xlane.xlu0 %4763
    %v4765 = vsel %vm443, %v4752, 0.0
    %4766 = vadd.xlane.f32.xlu0 %v4765
    %v4767 = vpop.xlane.xlu0 %4766
    %v4768 = vsel %vm443, %v4754, 0.0
    %4769 = vadd.xlane.f32.xlu0 %v4768
    %v4770 = vpop.xlane.xlu0 %4769
    %4771 = vmatprep.subr.mxu0 0.0
    %4772 = vmatpush1.msra.mxu0 0.0
    %4773 = vmatprep.subr.mxu0 0.0
    %4774 = vmatpush1.msra.mxu0 0.0
    %4775 = vmatprep.subr.mxu0 0.0
    %4776 = vmatpush1.msra.mxu0 0.0
    %4777 = vmatprep.subr.mxu0 0.0
    %4778 = vmatpush1.msra.mxu0 0.0
    %4779 = vmatprep.subr.mxu0 0.0
    %4780 = vmatpush1.msra.mxu0 0.0
    %4781 = vmatprep.subr.mxu0 0.0
    %4782 = vmatpush1.msra.mxu0 0.0
    %4783 = vmatprep.subr.mxu0 0.0
    %4784 = vmatpush1.msra.mxu0 0.0
    %4785 = vmatprep.subr.mxu0 0.0
    %4786 = vmatpush1.msra.mxu0 0.0
    %4787 = vmatprep.subr.mxu0 0.0
    %4788 = vmatpush1.msra.mxu0 0.0
    %4789 = vmatprep.subr.mxu0 0.0
    %4790 = vmatpush1.msra.mxu0 0.0
    %4791 = vmatprep.subr.mxu0 0.0
    %4792 = vmatpush1.msra.mxu0 0.0
    %4793 = vmatprep.subr.mxu0 0.0
    %4794 = vmatpush1.msra.mxu0 0.0
    %4795 = vmatprep.subr.mxu0 0.0
    %4796 = vmatpush1.msra.mxu0 %v4770
    %4797 = vmatprep.subr.mxu0 0.0
    %4798 = vmatpush1.msra.mxu0 %v4767
    %4799 = vmatprep.subr.mxu0 0.0
    %4800 = vmatpush1.msra.mxu0 %v4764
    %4801 = vmatprep.subr.mxu0 0.0
    %4802 = vmatpush1.msra.mxu0 %v4761
    %4803 = vmatprep.subr.mxu0 0.0
    %4804 = vmatpush2.msra.mxu0 0.0
    %4805 = vmatprep.subr.mxu0 0.0
    %4806 = vmatpush2.msra.mxu0 0.0
    %4807 = vmatprep.subr.mxu0 0.0
    %4808 = vmatpush2.msra.mxu0 0.0
    %4809 = vmatprep.subr.mxu0 0.0
    %4810 = vmatpush2.msra.mxu0 0.0
    %4811 = vmatprep.subr.mxu0 0.0
    %4812 = vmatpush2.msra.mxu0 0.0
    %4813 = vmatprep.subr.mxu0 0.0
    %4814 = vmatpush2.msra.mxu0 0.0
    %4815 = vmatprep.subr.mxu0 0.0
    %4816 = vmatpush2.msra.mxu0 0.0
    %4817 = vmatprep.subr.mxu0 0.0
    %4818 = vmatpush2.msra.mxu0 0.0
    %4819 = vmatprep.subr.mxu0 0.0
    %4820 = vmatpush2.msra.mxu0 0.0
    %4821 = vmatprep.subr.mxu0 0.0
    %4822 = vmatpush2.msra.mxu0 0.0
    %4823 = vmatprep.subr.mxu0 0.0
    %4824 = vmatpush2.msra.mxu0 0.0
    %4825 = vmatprep.subr.mxu0 0.0
    %4826 = vmatpush2.msra.mxu0 0.0
    %4827 = vmatprep.subr.mxu0 0.0
    %4828 = vmatpush2.msra.mxu0 0.0
    %4829 = vmatprep.subr.mxu0 0.0
    %4830 = vmatpush2.msra.mxu0 0.0
    %4831 = vmatprep.subr.mxu0 0.0
    %4832 = vmatpush2.msra.mxu0 0.0
    %4833 = vmatprep.subr.mxu0 0.0
    %4834 = vmatpush2.msra.mxu0 0.0
    %4835 = vmatprep.mubr.f32.mxu0 0.0
    %4836 = vmatmul.mubr.f32.gmra.mxu0 %v457
    %v4837 = vpop.f32.mrf.mxu0
    %v4838 = vadd.f32 0.0, %v4837
    %v4839 = vpop.f32.mrf.mxu0
    %4840 = vdwg.mxu0
    %v4841 = vmul.f32 %v4838, 0.0078125
    %v4843 = vsel %vm543, %v4841, 0
    %4845 = vmatprep.subr.mxu0 0.0
    %4846 = vmatpush1.msra.mxu0 0.0
    %4847 = vmatprep.subr.mxu0 0.0
    %4848 = vmatpush1.msra.mxu0 0.0
    %4849 = vmatprep.subr.mxu0 0.0
    %4850 = vmatpush1.msra.mxu0 0.0
    %4851 = vmatprep.subr.mxu0 0.0
    %4852 = vmatpush1.msra.mxu0 0.0
    %4853 = vmatprep.subr.mxu0 0.0
    %4854 = vmatpush1.msra.mxu0 0.0
    %4855 = vmatprep.subr.mxu0 0.0
    %4856 = vmatpush1.msra.mxu0 0.0
    %4857 = vmatprep.subr.mxu0 0.0
    %4858 = vmatpush1.msra.mxu0 0.0
    %4859 = vmatprep.subr.mxu0 0.0
    %4860 = vmatpush1.msra.mxu0 0.0
    %4861 = vmatprep.subr.mxu0 0.0
    %4862 = vmatpush1.msra.mxu0 0.0
    %4863 = vmatprep.subr.mxu0 0.0
    %4864 = vmatpush1.msra.mxu0 0.0
    %4865 = vmatprep.subr.mxu0 0.0
    %4866 = vmatpush1.msra.mxu0 0.0
    %4867 = vmatprep.subr.mxu0 0.0
    %4868 = vmatpush1.msra.mxu0 0.0
    %4869 = vmatprep.subr.mxu0 0.0
    %4870 = vmatpush1.msra.mxu0 0.0
    %4871 = vmatprep.subr.mxu0 0.0
    %4872 = vmatpush1.msra.mxu0 0.0
    %4873 = vmatprep.subr.mxu0 0.0
    %4874 = vmatpush1.msra.mxu0 0.0
    %4875 = vmatprep.subr.mxu0 0.0
    %4876 = vmatpush1.msra.mxu0 %v4843
    %4877 = vmatprep.subr.mxu0 0.0
    %4878 = vmatpush2.msra.mxu0 0.0
    %4879 = vmatprep.subr.mxu0 0.0
    %4880 = vmatpush2.msra.mxu0 0.0
    %4881 = vmatprep.subr.mxu0 0.0
    %4882 = vmatpush2.msra.mxu0 0.0
    %4883 = vmatprep.subr.mxu0 0.0
    %4884 = vmatpush2.msra.mxu0 0.0
    %4885 = vmatprep.subr.mxu0 0.0
    %4886 = vmatpush2.msra.mxu0 0.0
    %4887 = vmatprep.subr.mxu0 0.0
    %4888 = vmatpush2.msra.mxu0 0.0
    %4889 = vmatprep.subr.mxu0 0.0
    %4890 = vmatpush2.msra.mxu0 0.0
    %4891 = vmatprep.subr.mxu0 0.0
    %4892 = vmatpush2.msra.mxu0 0.0
    %4893 = vmatprep.subr.mxu0 0.0
    %4894 = vmatpush2.msra.mxu0 0.0
    %4895 = vmatprep.subr.mxu0 0.0
    %4896 = vmatpush2.msra.mxu0 0.0
    %4897 = vmatprep.subr.mxu0 0.0
    %4898 = vmatpush2.msra.mxu0 0.0
    %4899 = vmatprep.subr.mxu0 0.0
    %4900 = vmatpush2.msra.mxu0 0.0
    %4901 = vmatprep.subr.mxu0 0.0
    %4902 = vmatpush2.msra.mxu0 0.0
    %4903 = vmatprep.subr.mxu0 0.0
    %4904 = vmatpush2.msra.mxu0 0.0
    %4905 = vmatprep.subr.mxu0 0.0
    %4906 = vmatpush2.msra.mxu0 0.0
    %4907 = vmatprep.subr.mxu0 0.0
    %4908 = vmatpush2.msra.mxu0 0.0
    %4909 = vmatprep.mubr.f32.mxu0 0.0
    %4910 = vmatmul.mubr.f32.gmra.mxu0 %v532
    %v4911 = vpop.f32.mrf.mxu0
    %v4912 = vadd.f32 0.0, %v4911
    %v4913 = vpop.f32.mrf.mxu0
    %4914 = vmatprep.mubr.f32.mxu0 0.0
    %4915 = vmatmul.mubr.f32.gmra.mxu0 %v535
    %v4916 = vpop.f32.mrf.mxu0
    %v4917 = vadd.f32 0.0, %v4916
    %v4918 = vpop.f32.mrf.mxu0
    %4919 = vmatprep.mubr.f32.mxu0 0.0
    %4920 = vmatmul.mubr.f32.gmra.mxu0 %v538
    %v4921 = vpop.f32.mrf.mxu0
    %v4922 = vadd.f32 0.0, %v4921
    %v4923 = vpop.f32.mrf.mxu0
    %4924 = vmatprep.mubr.f32.mxu0 0.0
    %4925 = vmatmul.mubr.f32.gmra.mxu0 %v541
    %v4926 = vpop.f32.mrf.mxu0
    %v4927 = vadd.f32 0.0, %v4926
    %v4928 = vpop.f32.mrf.mxu0
    %4929 = vdwg.mxu0
    %4931 = vset.pattern.permute.xlu0 0
    %4932 = vperm.xlu0 %4931, %v4912
    %v4933 = vpop.permute.xlu0 %4932
    %4936 = vset.pattern.permute.xlu0 0
    %4937 = vperm.xlu0 %4936, %v4917
    %v4938 = vpop.permute.xlu0 %4937
    %4941 = vset.pattern.permute.xlu0 0
    %4942 = vperm.xlu0 %4941, %v4922
    %v4943 = vpop.permute.xlu0 %4942
    %4946 = vset.pattern.permute.xlu0 0
    %4947 = vperm.xlu0 %4946, %v4927
    %v4948 = vpop.permute.xlu0 %4947
    %v4950 = vsub.f32 %v4307, %v4933
    %v4951 = vsub.f32 %v4308, %v4938
    %v4952 = vsub.f32 %v4309, %v4943
    %v4953 = vsub.f32 %v4310, %v4948
    %v4954 = vmul.f32 %v4950, %v4950
    %v4955 = vmul.f32 %v4951, %v4951
    %v4956 = vmul.f32 %v4952, %v4952
    %v4957 = vmul.f32 %v4953, %v4953
    %4962 = vrot.lane.b32.xlu0 %v4954, 112
    %v4963 = vpop.permute.xlu0 %4962
    %4964 = vrot.lane.b32.xlu0 %v4955, 112
    %v4965 = vpop.permute.xlu0 %4964
    %4966 = vrot.lane.b32.xlu0 %v4956, 112
    %v4967 = vpop.permute.xlu0 %4966
    %4968 = vrot.lane.b32.xlu0 %v4957, 112
    %v4969 = vpop.permute.xlu0 %4968
    %v4974 = vsel %vm443, %v4963, 0.0
    %4975 = vadd.xlane.f32.xlu0 %v4974
    %v4976 = vpop.xlane.xlu0 %4975
    %v4977 = vsel %vm443, %v4965, 0.0
    %4978 = vadd.xlane.f32.xlu0 %v4977
    %v4979 = vpop.xlane.xlu0 %4978
    %v4980 = vsel %vm443, %v4967, 0.0
    %4981 = vadd.xlane.f32.xlu0 %v4980
    %v4982 = vpop.xlane.xlu0 %4981
    %v4983 = vsel %vm443, %v4969, 0.0
    %4984 = vadd.xlane.f32.xlu0 %v4983
    %v4985 = vpop.xlane.xlu0 %4984
    %4986 = vmatprep.subr.mxu0 0.0
    %4987 = vmatpush1.msra.mxu0 0.0
    %4988 = vmatprep.subr.mxu0 0.0
    %4989 = vmatpush1.msra.mxu0 0.0
    %4990 = vmatprep.subr.mxu0 0.0
    %4991 = vmatpush1.msra.mxu0 0.0
    %4992 = vmatprep.subr.mxu0 0.0
    %4993 = vmatpush1.msra.mxu0 0.0
    %4994 = vmatprep.subr.mxu0 0.0
    %4995 = vmatpush1.msra.mxu0 0.0
    %4996 = vmatprep.subr.mxu0 0.0
    %4997 = vmatpush1.msra.mxu0 0.0
    %4998 = vmatprep.subr.mxu0 0.0
    %4999 = vmatpush1.msra.mxu0 0.0
    %5000 = vmatprep.subr.mxu0 0.0
    %5001 = vmatpush1.msra.mxu0 0.0
    %5002 = vmatprep.subr.mxu0 0.0
    %5003 = vmatpush1.msra.mxu0 0.0
    %5004 = vmatprep.subr.mxu0 0.0
    %5005 = vmatpush1.msra.mxu0 0.0
    %5006 = vmatprep.subr.mxu0 0.0
    %5007 = vmatpush1.msra.mxu0 0.0
    %5008 = vmatprep.subr.mxu0 0.0
    %5009 = vmatpush1.msra.mxu0 0.0
    %5010 = vmatprep.subr.mxu0 0.0
    %5011 = vmatpush1.msra.mxu0 %v4985
    %5012 = vmatprep.subr.mxu0 0.0
    %5013 = vmatpush1.msra.mxu0 %v4982
    %5014 = vmatprep.subr.mxu0 0.0
    %5015 = vmatpush1.msra.mxu0 %v4979
    %5016 = vmatprep.subr.mxu0 0.0
    %5017 = vmatpush1.msra.mxu0 %v4976
    %5018 = vmatprep.subr.mxu0 0.0
    %5019 = vmatpush2.msra.mxu0 0.0
    %5020 = vmatprep.subr.mxu0 0.0
    %5021 = vmatpush2.msra.mxu0 0.0
    %5022 = vmatprep.subr.mxu0 0.0
    %5023 = vmatpush2.msra.mxu0 0.0
    %5024 = vmatprep.subr.mxu0 0.0
    %5025 = vmatpush2.msra.mxu0 0.0
    %5026 = vmatprep.subr.mxu0 0.0
    %5027 = vmatpush2.msra.mxu0 0.0
    %5028 = vmatprep.subr.mxu0 0.0
    %5029 = vmatpush2.msra.mxu0 0.0
    %5030 = vmatprep.subr.mxu0 0.0
    %5031 = vmatpush2.msra.mxu0 0.0
    %5032 = vmatprep.subr.mxu0 0.0
    %5033 = vmatpush2.msra.mxu0 0.0
    %5034 = vmatprep.subr.mxu0 0.0
    %5035 = vmatpush2.msra.mxu0 0.0
    %5036 = vmatprep.subr.mxu0 0.0
    %5037 = vmatpush2.msra.mxu0 0.0
    %5038 = vmatprep.subr.mxu0 0.0
    %5039 = vmatpush2.msra.mxu0 0.0
    %5040 = vmatprep.subr.mxu0 0.0
    %5041 = vmatpush2.msra.mxu0 0.0
    %5042 = vmatprep.subr.mxu0 0.0
    %5043 = vmatpush2.msra.mxu0 0.0
    %5044 = vmatprep.subr.mxu0 0.0
    %5045 = vmatpush2.msra.mxu0 0.0
    %5046 = vmatprep.subr.mxu0 0.0
    %5047 = vmatpush2.msra.mxu0 0.0
    %5048 = vmatprep.subr.mxu0 0.0
    %5049 = vmatpush2.msra.mxu0 0.0
    %5050 = vmatprep.mubr.f32.mxu0 0.0
    %5051 = vmatmul.mubr.f32.gmra.mxu0 %v457
    %v5052 = vpop.f32.mrf.mxu0
    %v5053 = vadd.f32 0.0, %v5052
    %v5054 = vpop.f32.mrf.mxu0
    %5055 = vdwg.mxu0
    %v5056 = vmul.f32 %v5053, 0.0078125
    %v5057 = vadd.f32 %v5056, 1e-05
    %v5058 = vrsqrt.pop %v5057
    %v5060 = vsel %vm543, %v5058, 0
    %5062 = vmatprep.subr.mxu0 0.0
    %5063 = vmatpush1.msra.mxu0 0.0
    %5064 = vmatprep.subr.mxu0 0.0
    %5065 = vmatpush1.msra.mxu0 0.0
    %5066 = vmatprep.subr.mxu0 0.0
    %5067 = vmatpush1.msra.mxu0 0.0
    %5068 = vmatprep.subr.mxu0 0.0
    %5069 = vmatpush1.msra.mxu0 0.0
    %5070 = vmatprep.subr.mxu0 0.0
    %5071 = vmatpush1.msra.mxu0 0.0
    %5072 = vmatprep.subr.mxu0 0.0
    %5073 = vmatpush1.msra.mxu0 0.0
    %5074 = vmatprep.subr.mxu0 0.0
    %5075 = vmatpush1.msra.mxu0 0.0
    %5076 = vmatprep.subr.mxu0 0.0
    %5077 = vmatpush1.msra.mxu0 0.0
    %5078 = vmatprep.subr.mxu0 0.0
    %5079 = vmatpush1.msra.mxu0 0.0
    %5080 = vmatprep.subr.mxu0 0.0
    %5081 = vmatpush1.msra.mxu0 0.0
    %5082 = vmatprep.subr.mxu0 0.0
    %5083 = vmatpush1.msra.mxu0 0.0
    %5084 = vmatprep.subr.mxu0 0.0
    %5085 = vmatpush1.msra.mxu0 0.0
    %5086 = vmatprep.subr.mxu0 0.0
    %5087 = vmatpush1.msra.mxu0 0.0
    %5088 = vmatprep.subr.mxu0 0.0
    %5089 = vmatpush1.msra.mxu0 0.0
    %5090 = vmatprep.subr.mxu0 0.0
    %5091 = vmatpush1.msra.mxu0 0.0
    %5092 = vmatprep.subr.mxu0 0.0
    %5093 = vmatpush1.msra.mxu0 %v5060
    %5094 = vmatprep.subr.mxu0 0.0
    %5095 = vmatpush2.msra.mxu0 0.0
    %5096 = vmatprep.subr.mxu0 0.0
    %5097 = vmatpush2.msra.mxu0 0.0
    %5098 = vmatprep.subr.mxu0 0.0
    %5099 = vmatpush2.msra.mxu0 0.0
    %5100 = vmatprep.subr.mxu0 0.0
    %5101 = vmatpush2.msra.mxu0 0.0
    %5102 = vmatprep.subr.mxu0 0.0
    %5103 = vmatpush2.msra.mxu0 0.0
    %5104 = vmatprep.subr.mxu0 0.0
    %5105 = vmatpush2.msra.mxu0 0.0
    %5106 = vmatprep.subr.mxu0 0.0
    %5107 = vmatpush2.msra.mxu0 0.0
    %5108 = vmatprep.subr.mxu0 0.0
    %5109 = vmatpush2.msra.mxu0 0.0
    %5110 = vmatprep.subr.mxu0 0.0
    %5111 = vmatpush2.msra.mxu0 0.0
    %5112 = vmatprep.subr.mxu0 0.0
    %5113 = vmatpush2.msra.mxu0 0.0
    %5114 = vmatprep.subr.mxu0 0.0
    %5115 = vmatpush2.msra.mxu0 0.0
    %5116 = vmatprep.subr.mxu0 0.0
    %5117 = vmatpush2.msra.mxu0 0.0
    %5118 = vmatprep.subr.mxu0 0.0
    %5119 = vmatpush2.msra.mxu0 0.0
    %5120 = vmatprep.subr.mxu0 0.0
    %5121 = vmatpush2.msra.mxu0 0.0
    %5122 = vmatprep.subr.mxu0 0.0
    %5123 = vmatpush2.msra.mxu0 0.0
    %5124 = vmatprep.subr.mxu0 0.0
    %5125 = vmatpush2.msra.mxu0 0.0
    %5126 = vmatprep.mubr.f32.mxu0 0.0
    %5127 = vmatmul.mubr.f32.gmra.mxu0 %v532
    %v5128 = vpop.f32.mrf.mxu0
    %v5129 = vadd.f32 0.0, %v5128
    %v5130 = vpop.f32.mrf.mxu0
    %5131 = vmatprep.mubr.f32.mxu0 0.0
    %5132 = vmatmul.mubr.f32.gmra.mxu0 %v535
    %v5133 = vpop.f32.mrf.mxu0
    %v5134 = vadd.f32 0.0, %v5133
    %v5135 = vpop.f32.mrf.mxu0
    %5136 = vmatprep.mubr.f32.mxu0 0.0
    %5137 = vmatmul.mubr.f32.gmra.mxu0 %v538
    %v5138 = vpop.f32.mrf.mxu0
    %v5139 = vadd.f32 0.0, %v5138
    %v5140 = vpop.f32.mrf.mxu0
    %5141 = vmatprep.mubr.f32.mxu0 0.0
    %5142 = vmatmul.mubr.f32.gmra.mxu0 %v541
    %v5143 = vpop.f32.mrf.mxu0
    %v5144 = vadd.f32 0.0, %v5143
    %v5145 = vpop.f32.mrf.mxu0
    %5146 = vdwg.mxu0
    %v5147 = vmul.f32 %v5129, %v4684
    %v5148 = vmul.f32 %v5134, %v4686
    %v5149 = vmul.f32 %v5139, %v4688
    %v5150 = vmul.f32 %v5144, %v4690
    %5152 = vset.pattern.permute.xlu0 0
    %5153 = vperm.xlu0 %5152, %v5147
    %v5154 = vpop.permute.xlu0 %5153
    %5157 = vset.pattern.permute.xlu0 0
    %5158 = vperm.xlu0 %5157, %v5148
    %v5159 = vpop.permute.xlu0 %5158
    %5162 = vset.pattern.permute.xlu0 0
    %5163 = vperm.xlu0 %5162, %v5149
    %v5164 = vpop.permute.xlu0 %5163
    %5167 = vset.pattern.permute.xlu0 0
    %5168 = vperm.xlu0 %5167, %v5150
    %v5169 = vpop.permute.xlu0 %5168
    %v5171 = vmul.f32 %v4950, %v5154
    %v5172 = vmul.f32 %v4951, %v5159
    %v5173 = vmul.f32 %v4952, %v5164
    %v5174 = vmul.f32 %v4953, %v5169
    %v5175 = vadd.f32 %v5171, %v4725
    %v5176 = vadd.f32 %v5172, %v4729
    %v5177 = vadd.f32 %v5173, %v4733
    %v5178 = vadd.f32 %v5174, %v4737
    %5179 = vrot.lane.b32.xlu0 %v4307, 96
    %v5180 = vpop.permute.xlu0 %5179
    %5181 = vrot.lane.b32.xlu0 %v4308, 96
    %v5182 = vpop.permute.xlu0 %5181
    %5183 = vrot.lane.b32.xlu0 %v4309, 96
    %v5184 = vpop.permute.xlu0 %5183
    %5185 = vrot.lane.b32.xlu0 %v4310, 96
    %v5186 = vpop.permute.xlu0 %5185
    %v5191 = vsel %vm443, %v5180, 0.0
    %5192 = vadd.xlane.f32.xlu0 %v5191
    %v5193 = vpop.xlane.xlu0 %5192
    %v5194 = vsel %vm443, %v5182, 0.0
    %5195 = vadd.xlane.f32.xlu0 %v5194
    %v5196 = vpop.xlane.xlu0 %5195
    %v5197 = vsel %vm443, %v5184, 0.0
    %5198 = vadd.xlane.f32.xlu0 %v5197
    %v5199 = vpop.xlane.xlu0 %5198
    %v5200 = vsel %vm443, %v5186, 0.0
    %5201 = vadd.xlane.f32.xlu0 %v5200
    %v5202 = vpop.xlane.xlu0 %5201
    %5203 = vmatprep.subr.mxu0 0.0
    %5204 = vmatpush1.msra.mxu0 0.0
    %5205 = vmatprep.subr.mxu0 0.0
    %5206 = vmatpush1.msra.mxu0 0.0
    %5207 = vmatprep.subr.mxu0 0.0
    %5208 = vmatpush1.msra.mxu0 0.0
    %5209 = vmatprep.subr.mxu0 0.0
    %5210 = vmatpush1.msra.mxu0 0.0
    %5211 = vmatprep.subr.mxu0 0.0
    %5212 = vmatpush1.msra.mxu0 0.0
    %5213 = vmatprep.subr.mxu0 0.0
    %5214 = vmatpush1.msra.mxu0 0.0
    %5215 = vmatprep.subr.mxu0 0.0
    %5216 = vmatpush1.msra.mxu0 0.0
    %5217 = vmatprep.subr.mxu0 0.0
    %5218 = vmatpush1.msra.mxu0 0.0
    %5219 = vmatprep.subr.mxu0 0.0
    %5220 = vmatpush1.msra.mxu0 0.0
    %5221 = vmatprep.subr.mxu0 0.0
    %5222 = vmatpush1.msra.mxu0 0.0
    %5223 = vmatprep.subr.mxu0 0.0
    %5224 = vmatpush1.msra.mxu0 0.0
    %5225 = vmatprep.subr.mxu0 0.0
    %5226 = vmatpush1.msra.mxu0 0.0
    %5227 = vmatprep.subr.mxu0 0.0
    %5228 = vmatpush1.msra.mxu0 %v5202
    %5229 = vmatprep.subr.mxu0 0.0
    %5230 = vmatpush1.msra.mxu0 %v5199
    %5231 = vmatprep.subr.mxu0 0.0
    %5232 = vmatpush1.msra.mxu0 %v5196
    %5233 = vmatprep.subr.mxu0 0.0
    %5234 = vmatpush1.msra.mxu0 %v5193
    %5235 = vmatprep.subr.mxu0 0.0
    %5236 = vmatpush2.msra.mxu0 0.0
    %5237 = vmatprep.subr.mxu0 0.0
    %5238 = vmatpush2.msra.mxu0 0.0
    %5239 = vmatprep.subr.mxu0 0.0
    %5240 = vmatpush2.msra.mxu0 0.0
    %5241 = vmatprep.subr.mxu0 0.0
    %5242 = vmatpush2.msra.mxu0 0.0
    %5243 = vmatprep.subr.mxu0 0.0
    %5244 = vmatpush2.msra.mxu0 0.0
    %5245 = vmatprep.subr.mxu0 0.0
    %5246 = vmatpush2.msra.mxu0 0.0
    %5247 = vmatprep.subr.mxu0 0.0
    %5248 = vmatpush2.msra.mxu0 0.0
    %5249 = vmatprep.subr.mxu0 0.0
    %5250 = vmatpush2.msra.mxu0 0.0
    %5251 = vmatprep.subr.mxu0 0.0
    %5252 = vmatpush2.msra.mxu0 0.0
    %5253 = vmatprep.subr.mxu0 0.0
    %5254 = vmatpush2.msra.mxu0 0.0
    %5255 = vmatprep.subr.mxu0 0.0
    %5256 = vmatpush2.msra.mxu0 0.0
    %5257 = vmatprep.subr.mxu0 0.0
    %5258 = vmatpush2.msra.mxu0 0.0
    %5259 = vmatprep.subr.mxu0 0.0
    %5260 = vmatpush2.msra.mxu0 0.0
    %5261 = vmatprep.subr.mxu0 0.0
    %5262 = vmatpush2.msra.mxu0 0.0
    %5263 = vmatprep.subr.mxu0 0.0
    %5264 = vmatpush2.msra.mxu0 0.0
    %5265 = vmatprep.subr.mxu0 0.0
    %5266 = vmatpush2.msra.mxu0 0.0
    %5267 = vmatprep.mubr.f32.mxu0 0.0
    %5268 = vmatmul.mubr.f32.gmra.mxu0 %v457
    %v5269 = vpop.f32.mrf.mxu0
    %v5270 = vadd.f32 0.0, %v5269
    %v5271 = vpop.f32.mrf.mxu0
    %5272 = vdwg.mxu0
    %v5273 = vmul.f32 %v5270, 0.0078125
    %v5275 = vsel %vm543, %v5273, 0
    %5277 = vmatprep.subr.mxu0 0.0
    %5278 = vmatpush1.msra.mxu0 0.0
    %5279 = vmatprep.subr.mxu0 0.0
    %5280 = vmatpush1.msra.mxu0 0.0
    %5281 = vmatprep.subr.mxu0 0.0
    %5282 = vmatpush1.msra.mxu0 0.0
    %5283 = vmatprep.subr.mxu0 0.0
    %5284 = vmatpush1.msra.mxu0 0.0
    %5285 = vmatprep.subr.mxu0 0.0
    %5286 = vmatpush1.msra.mxu0 0.0
    %5287 = vmatprep.subr.mxu0 0.0
    %5288 = vmatpush1.msra.mxu0 0.0
    %5289 = vmatprep.subr.mxu0 0.0
    %5290 = vmatpush1.msra.mxu0 0.0
    %5291 = vmatprep.subr.mxu0 0.0
    %5292 = vmatpush1.msra.mxu0 0.0
    %5293 = vmatprep.subr.mxu0 0.0
    %5294 = vmatpush1.msra.mxu0 0.0
    %5295 = vmatprep.subr.mxu0 0.0
    %5296 = vmatpush1.msra.mxu0 0.0
    %5297 = vmatprep.subr.mxu0 0.0
    %5298 = vmatpush1.msra.mxu0 0.0
    %5299 = vmatprep.subr.mxu0 0.0
    %5300 = vmatpush1.msra.mxu0 0.0
    %5301 = vmatprep.subr.mxu0 0.0
    %5302 = vmatpush1.msra.mxu0 0.0
    %5303 = vmatprep.subr.mxu0 0.0
    %5304 = vmatpush1.msra.mxu0 0.0
    %5305 = vmatprep.subr.mxu0 0.0
    %5306 = vmatpush1.msra.mxu0 0.0
    %5307 = vmatprep.subr.mxu0 0.0
    %5308 = vmatpush1.msra.mxu0 %v5275
    %5309 = vmatprep.subr.mxu0 0.0
    %5310 = vmatpush2.msra.mxu0 0.0
    %5311 = vmatprep.subr.mxu0 0.0
    %5312 = vmatpush2.msra.mxu0 0.0
    %5313 = vmatprep.subr.mxu0 0.0
    %5314 = vmatpush2.msra.mxu0 0.0
    %5315 = vmatprep.subr.mxu0 0.0
    %5316 = vmatpush2.msra.mxu0 0.0
    %5317 = vmatprep.subr.mxu0 0.0
    %5318 = vmatpush2.msra.mxu0 0.0
    %5319 = vmatprep.subr.mxu0 0.0
    %5320 = vmatpush2.msra.mxu0 0.0
    %5321 = vmatprep.subr.mxu0 0.0
    %5322 = vmatpush2.msra.mxu0 0.0
    %5323 = vmatprep.subr.mxu0 0.0
    %5324 = vmatpush2.msra.mxu0 0.0
    %5325 = vmatprep.subr.mxu0 0.0
    %5326 = vmatpush2.msra.mxu0 0.0
    %5327 = vmatprep.subr.mxu0 0.0
    %5328 = vmatpush2.msra.mxu0 0.0
    %5329 = vmatprep.subr.mxu0 0.0
    %5330 = vmatpush2.msra.mxu0 0.0
    %5331 = vmatprep.subr.mxu0 0.0
    %5332 = vmatpush2.msra.mxu0 0.0
    %5333 = vmatprep.subr.mxu0 0.0
    %5334 = vmatpush2.msra.mxu0 0.0
    %5335 = vmatprep.subr.mxu0 0.0
    %5336 = vmatpush2.msra.mxu0 0.0
    %5337 = vmatprep.subr.mxu0 0.0
    %5338 = vmatpush2.msra.mxu0 0.0
    %5339 = vmatprep.subr.mxu0 0.0
    %5340 = vmatpush2.msra.mxu0 0.0
    %5341 = vmatprep.mubr.f32.mxu0 0.0
    %5342 = vmatmul.mubr.f32.gmra.mxu0 %v532
    %v5343 = vpop.f32.mrf.mxu0
    %v5344 = vadd.f32 0.0, %v5343
    %v5345 = vpop.f32.mrf.mxu0
    %5346 = vmatprep.mubr.f32.mxu0 0.0
    %5347 = vmatmul.mubr.f32.gmra.mxu0 %v535
    %v5348 = vpop.f32.mrf.mxu0
    %v5349 = vadd.f32 0.0, %v5348
    %v5350 = vpop.f32.mrf.mxu0
    %5351 = vmatprep.mubr.f32.mxu0 0.0
    %5352 = vmatmul.mubr.f32.gmra.mxu0 %v538
    %v5353 = vpop.f32.mrf.mxu0
    %v5354 = vadd.f32 0.0, %v5353
    %v5355 = vpop.f32.mrf.mxu0
    %5356 = vmatprep.mubr.f32.mxu0 0.0
    %5357 = vmatmul.mubr.f32.gmra.mxu0 %v541
    %v5358 = vpop.f32.mrf.mxu0
    %v5359 = vadd.f32 0.0, %v5358
    %v5360 = vpop.f32.mrf.mxu0
    %5361 = vdwg.mxu0
    %5363 = vset.pattern.permute.xlu0 0
    %5364 = vperm.xlu0 %5363, %v5344
    %v5365 = vpop.permute.xlu0 %5364
    %5368 = vset.pattern.permute.xlu0 0
    %5369 = vperm.xlu0 %5368, %v5349
    %v5370 = vpop.permute.xlu0 %5369
    %5373 = vset.pattern.permute.xlu0 0
    %5374 = vperm.xlu0 %5373, %v5354
    %v5375 = vpop.permute.xlu0 %5374
    %5378 = vset.pattern.permute.xlu0 0
    %5379 = vperm.xlu0 %5378, %v5359
    %v5380 = vpop.permute.xlu0 %5379
    %v5382 = vsub.f32 %v4307, %v5365
    %v5383 = vsub.f32 %v4308, %v5370
    %v5384 = vsub.f32 %v4309, %v5375
    %v5385 = vsub.f32 %v4310, %v5380
    %v5386 = vmul.f32 %v5382, %v5382
    %v5387 = vmul.f32 %v5383, %v5383
    %v5388 = vmul.f32 %v5384, %v5384
    %v5389 = vmul.f32 %v5385, %v5385
    %5394 = vrot.lane.b32.xlu0 %v5386, 96
    %v5395 = vpop.permute.xlu0 %5394
    %5396 = vrot.lane.b32.xlu0 %v5387, 96
    %v5397 = vpop.permute.xlu0 %5396
    %5398 = vrot.lane.b32.xlu0 %v5388, 96
    %v5399 = vpop.permute.xlu0 %5398
    %5400 = vrot.lane.b32.xlu0 %v5389, 96
    %v5401 = vpop.permute.xlu0 %5400
    %v5406 = vsel %vm443, %v5395, 0.0
    %5407 = vadd.xlane.f32.xlu0 %v5406
    %v5408 = vpop.xlane.xlu0 %5407
    %v5409 = vsel %vm443, %v5397, 0.0
    %5410 = vadd.xlane.f32.xlu0 %v5409
    %v5411 = vpop.xlane.xlu0 %5410
    %v5412 = vsel %vm443, %v5399, 0.0
    %5413 = vadd.xlane.f32.xlu0 %v5412
    %v5414 = vpop.xlane.xlu0 %5413
    %v5415 = vsel %vm443, %v5401, 0.0
    %5416 = vadd.xlane.f32.xlu0 %v5415
    %v5417 = vpop.xlane.xlu0 %5416
    %5418 = vmatprep.subr.mxu0 0.0
    %5419 = vmatpush1.msra.mxu0 0.0
    %5420 = vmatprep.subr.mxu0 0.0
    %5421 = vmatpush1.msra.mxu0 0.0
    %5422 = vmatprep.subr.mxu0 0.0
    %5423 = vmatpush1.msra.mxu0 0.0
    %5424 = vmatprep.subr.mxu0 0.0
    %5425 = vmatpush1.msra.mxu0 0.0
    %5426 = vmatprep.subr.mxu0 0.0
    %5427 = vmatpush1.msra.mxu0 0.0
    %5428 = vmatprep.subr.mxu0 0.0
    %5429 = vmatpush1.msra.mxu0 0.0
    %5430 = vmatprep.subr.mxu0 0.0
    %5431 = vmatpush1.msra.mxu0 0.0
    %5432 = vmatprep.subr.mxu0 0.0
    %5433 = vmatpush1.msra.mxu0 0.0
    %5434 = vmatprep.subr.mxu0 0.0
    %5435 = vmatpush1.msra.mxu0 0.0
    %5436 = vmatprep.subr.mxu0 0.0
    %5437 = vmatpush1.msra.mxu0 0.0
    %5438 = vmatprep.subr.mxu0 0.0
    %5439 = vmatpush1.msra.mxu0 0.0
    %5440 = vmatprep.subr.mxu0 0.0
    %5441 = vmatpush1.msra.mxu0 0.0
    %5442 = vmatprep.subr.mxu0 0.0
    %5443 = vmatpush1.msra.mxu0 %v5417
    %5444 = vmatprep.subr.mxu0 0.0
    %5445 = vmatpush1.msra.mxu0 %v5414
    %5446 = vmatprep.subr.mxu0 0.0
    %5447 = vmatpush1.msra.mxu0 %v5411
    %5448 = vmatprep.subr.mxu0 0.0
    %5449 = vmatpush1.msra.mxu0 %v5408
    %5450 = vmatprep.subr.mxu0 0.0
    %5451 = vmatpush2.msra.mxu0 0.0
    %5452 = vmatprep.subr.mxu0 0.0
    %5453 = vmatpush2.msra.mxu0 0.0
    %5454 = vmatprep.subr.mxu0 0.0
    %5455 = vmatpush2.msra.mxu0 0.0
    %5456 = vmatprep.subr.mxu0 0.0
    %5457 = vmatpush2.msra.mxu0 0.0
    %5458 = vmatprep.subr.mxu0 0.0
    %5459 = vmatpush2.msra.mxu0 0.0
    %5460 = vmatprep.subr.mxu0 0.0
    %5461 = vmatpush2.msra.mxu0 0.0
    %5462 = vmatprep.subr.mxu0 0.0
    %5463 = vmatpush2.msra.mxu0 0.0
    %5464 = vmatprep.subr.mxu0 0.0
    %5465 = vmatpush2.msra.mxu0 0.0
    %5466 = vmatprep.subr.mxu0 0.0
    %5467 = vmatpush2.msra.mxu0 0.0
    %5468 = vmatprep.subr.mxu0 0.0
    %5469 = vmatpush2.msra.mxu0 0.0
    %5470 = vmatprep.subr.mxu0 0.0
    %5471 = vmatpush2.msra.mxu0 0.0
    %5472 = vmatprep.subr.mxu0 0.0
    %5473 = vmatpush2.msra.mxu0 0.0
    %5474 = vmatprep.subr.mxu0 0.0
    %5475 = vmatpush2.msra.mxu0 0.0
    %5476 = vmatprep.subr.mxu0 0.0
    %5477 = vmatpush2.msra.mxu0 0.0
    %5478 = vmatprep.subr.mxu0 0.0
    %5479 = vmatpush2.msra.mxu0 0.0
    %5480 = vmatprep.subr.mxu0 0.0
    %5481 = vmatpush2.msra.mxu0 0.0
    %5482 = vmatprep.mubr.f32.mxu0 0.0
    %5483 = vmatmul.mubr.f32.gmra.mxu0 %v457
    %v5484 = vpop.f32.mrf.mxu0
    %v5485 = vadd.f32 0.0, %v5484
    %v5486 = vpop.f32.mrf.mxu0
    %5487 = vdwg.mxu0
    %v5488 = vmul.f32 %v5485, 0.0078125
    %v5489 = vadd.f32 %v5488, 1e-05
    %v5490 = vrsqrt.pop %v5489
    %v5492 = vsel %vm543, %v5490, 0
    %5494 = vmatprep.subr.mxu0 0.0
    %5495 = vmatpush1.msra.mxu0 0.0
    %5496 = vmatprep.subr.mxu0 0.0
    %5497 = vmatpush1.msra.mxu0 0.0
    %5498 = vmatprep.subr.mxu0 0.0
    %5499 = vmatpush1.msra.mxu0 0.0
    %5500 = vmatprep.subr.mxu0 0.0
    %5501 = vmatpush1.msra.mxu0 0.0
    %5502 = vmatprep.subr.mxu0 0.0
    %5503 = vmatpush1.msra.mxu0 0.0
    %5504 = vmatprep.subr.mxu0 0.0
    %5505 = vmatpush1.msra.mxu0 0.0
    %5506 = vmatprep.subr.mxu0 0.0
    %5507 = vmatpush1.msra.mxu0 0.0
    %5508 = vmatprep.subr.mxu0 0.0
    %5509 = vmatpush1.msra.mxu0 0.0
    %5510 = vmatprep.subr.mxu0 0.0
    %5511 = vmatpush1.msra.mxu0 0.0
    %5512 = vmatprep.subr.mxu0 0.0
    %5513 = vmatpush1.msra.mxu0 0.0
    %5514 = vmatprep.subr.mxu0 0.0
    %5515 = vmatpush1.msra.mxu0 0.0
    %5516 = vmatprep.subr.mxu0 0.0
    %5517 = vmatpush1.msra.mxu0 0.0
    %5518 = vmatprep.subr.mxu0 0.0
    %5519 = vmatpush1.msra.mxu0 0.0
    %5520 = vmatprep.subr.mxu0 0.0
    %5521 = vmatpush1.msra.mxu0 0.0
    %5522 = vmatprep.subr.mxu0 0.0
    %5523 = vmatpush1.msra.mxu0 0.0
    %5524 = vmatprep.subr.mxu0 0.0
    %5525 = vmatpush1.msra.mxu0 %v5492
    %5526 = vmatprep.subr.mxu0 0.0
    %5527 = vmatpush2.msra.mxu0 0.0
    %5528 = vmatprep.subr.mxu0 0.0
    %5529 = vmatpush2.msra.mxu0 0.0
    %5530 = vmatprep.subr.mxu0 0.0
    %5531 = vmatpush2.msra.mxu0 0.0
    %5532 = vmatprep.subr.mxu0 0.0
    %5533 = vmatpush2.msra.mxu0 0.0
    %5534 = vmatprep.subr.mxu0 0.0
    %5535 = vmatpush2.msra.mxu0 0.0
    %5536 = vmatprep.subr.mxu0 0.0
    %5537 = vmatpush2.msra.mxu0 0.0
    %5538 = vmatprep.subr.mxu0 0.0
    %5539 = vmatpush2.msra.mxu0 0.0
    %5540 = vmatprep.subr.mxu0 0.0
    %5541 = vmatpush2.msra.mxu0 0.0
    %5542 = vmatprep.subr.mxu0 0.0
    %5543 = vmatpush2.msra.mxu0 0.0
    %5544 = vmatprep.subr.mxu0 0.0
    %5545 = vmatpush2.msra.mxu0 0.0
    %5546 = vmatprep.subr.mxu0 0.0
    %5547 = vmatpush2.msra.mxu0 0.0
    %5548 = vmatprep.subr.mxu0 0.0
    %5549 = vmatpush2.msra.mxu0 0.0
    %5550 = vmatprep.subr.mxu0 0.0
    %5551 = vmatpush2.msra.mxu0 0.0
    %5552 = vmatprep.subr.mxu0 0.0
    %5553 = vmatpush2.msra.mxu0 0.0
    %5554 = vmatprep.subr.mxu0 0.0
    %5555 = vmatpush2.msra.mxu0 0.0
    %5556 = vmatprep.subr.mxu0 0.0
    %5557 = vmatpush2.msra.mxu0 0.0
    %5558 = vmatprep.mubr.f32.mxu0 0.0
    %5559 = vmatmul.mubr.f32.gmra.mxu0 %v532
    %v5560 = vpop.f32.mrf.mxu0
    %v5561 = vadd.f32 0.0, %v5560
    %v5562 = vpop.f32.mrf.mxu0
    %5563 = vmatprep.mubr.f32.mxu0 0.0
    %5564 = vmatmul.mubr.f32.gmra.mxu0 %v535
    %v5565 = vpop.f32.mrf.mxu0
    %v5566 = vadd.f32 0.0, %v5565
    %v5567 = vpop.f32.mrf.mxu0
    %5568 = vmatprep.mubr.f32.mxu0 0.0
    %5569 = vmatmul.mubr.f32.gmra.mxu0 %v538
    %v5570 = vpop.f32.mrf.mxu0
    %v5571 = vadd.f32 0.0, %v5570
    %v5572 = vpop.f32.mrf.mxu0
    %5573 = vmatprep.mubr.f32.mxu0 0.0
    %5574 = vmatmul.mubr.f32.gmra.mxu0 %v541
    %v5575 = vpop.f32.mrf.mxu0
    %v5576 = vadd.f32 0.0, %v5575
    %v5577 = vpop.f32.mrf.mxu0
    %5578 = vdwg.mxu0
    %v5579 = vmul.f32 %v5561, %v4684
    %v5580 = vmul.f32 %v5566, %v4686
    %v5581 = vmul.f32 %v5571, %v4688
    %v5582 = vmul.f32 %v5576, %v4690
    %5584 = vset.pattern.permute.xlu0 0
    %5585 = vperm.xlu0 %5584, %v5579
    %v5586 = vpop.permute.xlu0 %5585
    %5589 = vset.pattern.permute.xlu0 0
    %5590 = vperm.xlu0 %5589, %v5580
    %v5591 = vpop.permute.xlu0 %5590
    %5594 = vset.pattern.permute.xlu0 0
    %5595 = vperm.xlu0 %5594, %v5581
    %v5596 = vpop.permute.xlu0 %5595
    %5599 = vset.pattern.permute.xlu0 0
    %5600 = vperm.xlu0 %5599, %v5582
    %v5601 = vpop.permute.xlu0 %5600
    %v5603 = vmul.f32 %v5382, %v5586
    %v5604 = vmul.f32 %v5383, %v5591
    %v5605 = vmul.f32 %v5384, %v5596
    %v5606 = vmul.f32 %v5385, %v5601
    %v5607 = vadd.f32 %v5603, %v4725
    %v5608 = vadd.f32 %v5604, %v4729
    %v5609 = vadd.f32 %v5605, %v4733
    %v5610 = vadd.f32 %v5606, %v4737
    %5611 = vrot.lane.b32.xlu0 %v4307, 80
    %v5612 = vpop.permute.xlu0 %5611
    %5613 = vrot.lane.b32.xlu0 %v4308, 80
    %v5614 = vpop.permute.xlu0 %5613
    %5615 = vrot.lane.b32.xlu0 %v4309, 80
    %v5616 = vpop.permute.xlu0 %5615
    %5617 = vrot.lane.b32.xlu0 %v4310, 80
    %v5618 = vpop.permute.xlu0 %5617
    %v5623 = vsel %vm443, %v5612, 0.0
    %5624 = vadd.xlane.f32.xlu0 %v5623
    %v5625 = vpop.xlane.xlu0 %5624
    %v5626 = vsel %vm443, %v5614, 0.0
    %5627 = vadd.xlane.f32.xlu0 %v5626
    %v5628 = vpop.xlane.xlu0 %5627
    %v5629 = vsel %vm443, %v5616, 0.0
    %5630 = vadd.xlane.f32.xlu0 %v5629
    %v5631 = vpop.xlane.xlu0 %5630
    %v5632 = vsel %vm443, %v5618, 0.0
    %5633 = vadd.xlane.f32.xlu0 %v5632
    %v5634 = vpop.xlane.xlu0 %5633
    %5635 = vmatprep.subr.mxu0 0.0
    %5636 = vmatpush1.msra.mxu0 0.0
    %5637 = vmatprep.subr.mxu0 0.0
    %5638 = vmatpush1.msra.mxu0 0.0
    %5639 = vmatprep.subr.mxu0 0.0
    %5640 = vmatpush1.msra.mxu0 0.0
    %5641 = vmatprep.subr.mxu0 0.0
    %5642 = vmatpush1.msra.mxu0 0.0
    %5643 = vmatprep.subr.mxu0 0.0
    %5644 = vmatpush1.msra.mxu0 0.0
    %5645 = vmatprep.subr.mxu0 0.0
    %5646 = vmatpush1.msra.mxu0 0.0
    %5647 = vmatprep.subr.mxu0 0.0
    %5648 = vmatpush1.msra.mxu0 0.0
    %5649 = vmatprep.subr.mxu0 0.0
    %5650 = vmatpush1.msra.mxu0 0.0
    %5651 = vmatprep.subr.mxu0 0.0
    %5652 = vmatpush1.msra.mxu0 0.0
    %5653 = vmatprep.subr.mxu0 0.0
    %5654 = vmatpush1.msra.mxu0 0.0
    %5655 = vmatprep.subr.mxu0 0.0
    %5656 = vmatpush1.msra.mxu0 0.0
    %5657 = vmatprep.subr.mxu0 0.0
    %5658 = vmatpush1.msra.mxu0 0.0
    %5659 = vmatprep.subr.mxu0 0.0
    %5660 = vmatpush1.msra.mxu0 %v5634
    %5661 = vmatprep.subr.mxu0 0.0
    %5662 = vmatpush1.msra.mxu0 %v5631
    %5663 = vmatprep.subr.mxu0 0.0
    %5664 = vmatpush1.msra.mxu0 %v5628
    %5665 = vmatprep.subr.mxu0 0.0
    %5666 = vmatpush1.msra.mxu0 %v5625
    %5667 = vmatprep.subr.mxu0 0.0
    %5668 = vmatpush2.msra.mxu0 0.0
    %5669 = vmatprep.subr.mxu0 0.0
    %5670 = vmatpush2.msra.mxu0 0.0
    %5671 = vmatprep.subr.mxu0 0.0
    %5672 = vmatpush2.msra.mxu0 0.0
    %5673 = vmatprep.subr.mxu0 0.0
    %5674 = vmatpush2.msra.mxu0 0.0
    %5675 = vmatprep.subr.mxu0 0.0
    %5676 = vmatpush2.msra.mxu0 0.0
    %5677 = vmatprep.subr.mxu0 0.0
    %5678 = vmatpush2.msra.mxu0 0.0
    %5679 = vmatprep.subr.mxu0 0.0
    %5680 = vmatpush2.msra.mxu0 0.0
    %5681 = vmatprep.subr.mxu0 0.0
    %5682 = vmatpush2.msra.mxu0 0.0
    %5683 = vmatprep.subr.mxu0 0.0
    %5684 = vmatpush2.msra.mxu0 0.0
    %5685 = vmatprep.subr.mxu0 0.0
    %5686 = vmatpush2.msra.mxu0 0.0
    %5687 = vmatprep.subr.mxu0 0.0
    %5688 = vmatpush2.msra.mxu0 0.0
    %5689 = vmatprep.subr.mxu0 0.0
    %5690 = vmatpush2.msra.mxu0 0.0
    %5691 = vmatprep.subr.mxu0 0.0
    %5692 = vmatpush2.msra.mxu0 0.0
    %5693 = vmatprep.subr.mxu0 0.0
    %5694 = vmatpush2.msra.mxu0 0.0
    %5695 = vmatprep.subr.mxu0 0.0
    %5696 = vmatpush2.msra.mxu0 0.0
    %5697 = vmatprep.subr.mxu0 0.0
    %5698 = vmatpush2.msra.mxu0 0.0
    %5699 = vmatprep.mubr.f32.mxu0 0.0
    %5700 = vmatmul.mubr.f32.gmra.mxu0 %v457
    %v5701 = vpop.f32.mrf.mxu0
    %v5702 = vadd.f32 0.0, %v5701
    %v5703 = vpop.f32.mrf.mxu0
    %5704 = vdwg.mxu0
    %v5705 = vmul.f32 %v5702, 0.0078125
    %v5707 = vsel %vm543, %v5705, 0
    %5709 = vmatprep.subr.mxu0 0.0
    %5710 = vmatpush1.msra.mxu0 0.0
    %5711 = vmatprep.subr.mxu0 0.0
    %5712 = vmatpush1.msra.mxu0 0.0
    %5713 = vmatprep.subr.mxu0 0.0
    %5714 = vmatpush1.msra.mxu0 0.0
    %5715 = vmatprep.subr.mxu0 0.0
    %5716 = vmatpush1.msra.mxu0 0.0
    %5717 = vmatprep.subr.mxu0 0.0
    %5718 = vmatpush1.msra.mxu0 0.0
    %5719 = vmatprep.subr.mxu0 0.0
    %5720 = vmatpush1.msra.mxu0 0.0
    %5721 = vmatprep.subr.mxu0 0.0
    %5722 = vmatpush1.msra.mxu0 0.0
    %5723 = vmatprep.subr.mxu0 0.0
    %5724 = vmatpush1.msra.mxu0 0.0
    %5725 = vmatprep.subr.mxu0 0.0
    %5726 = vmatpush1.msra.mxu0 0.0
    %5727 = vmatprep.subr.mxu0 0.0
    %5728 = vmatpush1.msra.mxu0 0.0
    %5729 = vmatprep.subr.mxu0 0.0
    %5730 = vmatpush1.msra.mxu0 0.0
    %5731 = vmatprep.subr.mxu0 0.0
    %5732 = vmatpush1.msra.mxu0 0.0
    %5733 = vmatprep.subr.mxu0 0.0
    %5734 = vmatpush1.msra.mxu0 0.0
    %5735 = vmatprep.subr.mxu0 0.0
    %5736 = vmatpush1.msra.mxu0 0.0
    %5737 = vmatprep.subr.mxu0 0.0
    %5738 = vmatpush1.msra.mxu0 0.0
    %5739 = vmatprep.subr.mxu0 0.0
    %5740 = vmatpush1.msra.mxu0 %v5707
    %5741 = vmatprep.subr.mxu0 0.0
    %5742 = vmatpush2.msra.mxu0 0.0
    %5743 = vmatprep.subr.mxu0 0.0
    %5744 = vmatpush2.msra.mxu0 0.0
    %5745 = vmatprep.subr.mxu0 0.0
    %5746 = vmatpush2.msra.mxu0 0.0
    %5747 = vmatprep.subr.mxu0 0.0
    %5748 = vmatpush2.msra.mxu0 0.0
    %5749 = vmatprep.subr.mxu0 0.0
    %5750 = vmatpush2.msra.mxu0 0.0
    %5751 = vmatprep.subr.mxu0 0.0
    %5752 = vmatpush2.msra.mxu0 0.0
    %5753 = vmatprep.subr.mxu0 0.0
    %5754 = vmatpush2.msra.mxu0 0.0
    %5755 = vmatprep.subr.mxu0 0.0
    %5756 = vmatpush2.msra.mxu0 0.0
    %5757 = vmatprep.subr.mxu0 0.0
    %5758 = vmatpush2.msra.mxu0 0.0
    %5759 = vmatprep.subr.mxu0 0.0
    %5760 = vmatpush2.msra.mxu0 0.0
    %5761 = vmatprep.subr.mxu0 0.0
    %5762 = vmatpush2.msra.mxu0 0.0
    %5763 = vmatprep.subr.mxu0 0.0
    %5764 = vmatpush2.msra.mxu0 0.0
    %5765 = vmatprep.subr.mxu0 0.0
    %5766 = vmatpush2.msra.mxu0 0.0
    %5767 = vmatprep.subr.mxu0 0.0
    %5768 = vmatpush2.msra.mxu0 0.0
    %5769 = vmatprep.subr.mxu0 0.0
    %5770 = vmatpush2.msra.mxu0 0.0
    %5771 = vmatprep.subr.mxu0 0.0
    %5772 = vmatpush2.msra.mxu0 0.0
    %5773 = vmatprep.mubr.f32.mxu0 0.0
    %5774 = vmatmul.mubr.f32.gmra.mxu0 %v532
    %v5775 = vpop.f32.mrf.mxu0
    %v5776 = vadd.f32 0.0, %v5775
    %v5777 = vpop.f32.mrf.mxu0
    %5778 = vmatprep.mubr.f32.mxu0 0.0
    %5779 = vmatmul.mubr.f32.gmra.mxu0 %v535
    %v5780 = vpop.f32.mrf.mxu0
    %v5781 = vadd.f32 0.0, %v5780
    %v5782 = vpop.f32.mrf.mxu0
    %5783 = vmatprep.mubr.f32.mxu0 0.0
    %5784 = vmatmul.mubr.f32.gmra.mxu0 %v538
    %v5785 = vpop.f32.mrf.mxu0
    %v5786 = vadd.f32 0.0, %v5785
    %v5787 = vpop.f32.mrf.mxu0
    %5788 = vmatprep.mubr.f32.mxu0 0.0
    %5789 = vmatmul.mubr.f32.gmra.mxu0 %v541
    %v5790 = vpop.f32.mrf.mxu0
    %v5791 = vadd.f32 0.0, %v5790
    %v5792 = vpop.f32.mrf.mxu0
    %5793 = vdwg.mxu0
    %5795 = vset.pattern.permute.xlu0 0
    %5796 = vperm.xlu0 %5795, %v5776
    %v5797 = vpop.permute.xlu0 %5796
    %5800 = vset.pattern.permute.xlu0 0
    %5801 = vperm.xlu0 %5800, %v5781
    %v5802 = vpop.permute.xlu0 %5801
    %5805 = vset.pattern.permute.xlu0 0
    %5806 = vperm.xlu0 %5805, %v5786
    %v5807 = vpop.permute.xlu0 %5806
    %5810 = vset.pattern.permute.xlu0 0
    %5811 = vperm.xlu0 %5810, %v5791
    %v5812 = vpop.permute.xlu0 %5811
    %v5814 = vsub.f32 %v4307, %v5797
    %v5815 = vsub.f32 %v4308, %v5802
    %v5816 = vsub.f32 %v4309, %v5807
    %v5817 = vsub.f32 %v4310, %v5812
    %v5818 = vmul.f32 %v5814, %v5814
    %v5819 = vmul.f32 %v5815, %v5815
    %v5820 = vmul.f32 %v5816, %v5816
    %v5821 = vmul.f32 %v5817, %v5817
    %5826 = vrot.lane.b32.xlu0 %v5818, 80
    %v5827 = vpop.permute.xlu0 %5826
    %5828 = vrot.lane.b32.xlu0 %v5819, 80
    %v5829 = vpop.permute.xlu0 %5828
    %5830 = vrot.lane.b32.xlu0 %v5820, 80
    %v5831 = vpop.permute.xlu0 %5830
    %5832 = vrot.lane.b32.xlu0 %v5821, 80
    %v5833 = vpop.permute.xlu0 %5832
    %v5838 = vsel %vm443, %v5827, 0.0
    %5839 = vadd.xlane.f32.xlu0 %v5838
    %v5840 = vpop.xlane.xlu0 %5839
    %v5841 = vsel %vm443, %v5829, 0.0
    %5842 = vadd.xlane.f32.xlu0 %v5841
    %v5843 = vpop.xlane.xlu0 %5842
    %v5844 = vsel %vm443, %v5831, 0.0
    %5845 = vadd.xlane.f32.xlu0 %v5844
    %v5846 = vpop.xlane.xlu0 %5845
    %v5847 = vsel %vm443, %v5833, 0.0
    %5848 = vadd.xlane.f32.xlu0 %v5847
    %v5849 = vpop.xlane.xlu0 %5848
    %5850 = vmatprep.subr.mxu0 0.0
    %5851 = vmatpush1.msra.mxu0 0.0
    %5852 = vmatprep.subr.mxu0 0.0
    %5853 = vmatpush1.msra.mxu0 0.0
    %5854 = vmatprep.subr.mxu0 0.0
    %5855 = vmatpush1.msra.mxu0 0.0
    %5856 = vmatprep.subr.mxu0 0.0
    %5857 = vmatpush1.msra.mxu0 0.0
    %5858 = vmatprep.subr.mxu0 0.0
    %5859 = vmatpush1.msra.mxu0 0.0
    %5860 = vmatprep.subr.mxu0 0.0
    %5861 = vmatpush1.msra.mxu0 0.0
    %5862 = vmatprep.subr.mxu0 0.0
    %5863 = vmatpush1.msra.mxu0 0.0
    %5864 = vmatprep.subr.mxu0 0.0
    %5865 = vmatpush1.msra.mxu0 0.0
    %5866 = vmatprep.subr.mxu0 0.0
    %5867 = vmatpush1.msra.mxu0 0.0
    %5868 = vmatprep.subr.mxu0 0.0
    %5869 = vmatpush1.msra.mxu0 0.0
    %5870 = vmatprep.subr.mxu0 0.0
    %5871 = vmatpush1.msra.mxu0 0.0
    %5872 = vmatprep.subr.mxu0 0.0
    %5873 = vmatpush1.msra.mxu0 0.0
    %5874 = vmatprep.subr.mxu0 0.0
    %5875 = vmatpush1.msra.mxu0 %v5849
    %5876 = vmatprep.subr.mxu0 0.0
    %5877 = vmatpush1.msra.mxu0 %v5846
    %5878 = vmatprep.subr.mxu0 0.0
    %5879 = vmatpush1.msra.mxu0 %v5843
    %5880 = vmatprep.subr.mxu0 0.0
    %5881 = vmatpush1.msra.mxu0 %v5840
    %5882 = vmatprep.subr.mxu0 0.0
    %5883 = vmatpush2.msra.mxu0 0.0
    %5884 = vmatprep.subr.mxu0 0.0
    %5885 = vmatpush2.msra.mxu0 0.0
    %5886 = vmatprep.subr.mxu0 0.0
    %5887 = vmatpush2.msra.mxu0 0.0
    %5888 = vmatprep.subr.mxu0 0.0
    %5889 = vmatpush2.msra.mxu0 0.0
    %5890 = vmatprep.subr.mxu0 0.0
    %5891 = vmatpush2.msra.mxu0 0.0
    %5892 = vmatprep.subr.mxu0 0.0
    %5893 = vmatpush2.msra.mxu0 0.0
    %5894 = vmatprep.subr.mxu0 0.0
    %5895 = vmatpush2.msra.mxu0 0.0
    %5896 = vmatprep.subr.mxu0 0.0
    %5897 = vmatpush2.msra.mxu0 0.0
    %5898 = vmatprep.subr.mxu0 0.0
    %5899 = vmatpush2.msra.mxu0 0.0
    %5900 = vmatprep.subr.mxu0 0.0
    %5901 = vmatpush2.msra.mxu0 0.0
    %5902 = vmatprep.subr.mxu0 0.0
    %5903 = vmatpush2.msra.mxu0 0.0
    %5904 = vmatprep.subr.mxu0 0.0
    %5905 = vmatpush2.msra.mxu0 0.0
    %5906 = vmatprep.subr.mxu0 0.0
    %5907 = vmatpush2.msra.mxu0 0.0
    %5908 = vmatprep.subr.mxu0 0.0
    %5909 = vmatpush2.msra.mxu0 0.0
    %5910 = vmatprep.subr.mxu0 0.0
    %5911 = vmatpush2.msra.mxu0 0.0
    %5912 = vmatprep.subr.mxu0 0.0
    %5913 = vmatpush2.msra.mxu0 0.0
    %5914 = vmatprep.mubr.f32.mxu0 0.0
    %5915 = vmatmul.mubr.f32.gmra.mxu0 %v457
    %v5916 = vpop.f32.mrf.mxu0
    %v5917 = vadd.f32 0.0, %v5916
    %v5918 = vpop.f32.mrf.mxu0
    %5919 = vdwg.mxu0
    %v5920 = vmul.f32 %v5917, 0.0078125
    %v5921 = vadd.f32 %v5920, 1e-05
    %v5922 = vrsqrt.pop %v5921
    %v5924 = vsel %vm543, %v5922, 0
    %5926 = vmatprep.subr.mxu0 0.0
    %5927 = vmatpush1.msra.mxu0 0.0
    %5928 = vmatprep.subr.mxu0 0.0
    %5929 = vmatpush1.msra.mxu0 0.0
    %5930 = vmatprep.subr.mxu0 0.0
    %5931 = vmatpush1.msra.mxu0 0.0
    %5932 = vmatprep.subr.mxu0 0.0
    %5933 = vmatpush1.msra.mxu0 0.0
    %5934 = vmatprep.subr.mxu0 0.0
    %5935 = vmatpush1.msra.mxu0 0.0
    %5936 = vmatprep.subr.mxu0 0.0
    %5937 = vmatpush1.msra.mxu0 0.0
    %5938 = vmatprep.subr.mxu0 0.0
    %5939 = vmatpush1.msra.mxu0 0.0
    %5940 = vmatprep.subr.mxu0 0.0
    %5941 = vmatpush1.msra.mxu0 0.0
    %5942 = vmatprep.subr.mxu0 0.0
    %5943 = vmatpush1.msra.mxu0 0.0
    %5944 = vmatprep.subr.mxu0 0.0
    %5945 = vmatpush1.msra.mxu0 0.0
    %5946 = vmatprep.subr.mxu0 0.0
    %5947 = vmatpush1.msra.mxu0 0.0
    %5948 = vmatprep.subr.mxu0 0.0
    %5949 = vmatpush1.msra.mxu0 0.0
    %5950 = vmatprep.subr.mxu0 0.0
    %5951 = vmatpush1.msra.mxu0 0.0
    %5952 = vmatprep.subr.mxu0 0.0
    %5953 = vmatpush1.msra.mxu0 0.0
    %5954 = vmatprep.subr.mxu0 0.0
    %5955 = vmatpush1.msra.mxu0 0.0
    %5956 = vmatprep.subr.mxu0 0.0
    %5957 = vmatpush1.msra.mxu0 %v5924
    %5958 = vmatprep.subr.mxu0 0.0
    %5959 = vmatpush2.msra.mxu0 0.0
    %5960 = vmatprep.subr.mxu0 0.0
    %5961 = vmatpush2.msra.mxu0 0.0
    %5962 = vmatprep.subr.mxu0 0.0
    %5963 = vmatpush2.msra.mxu0 0.0
    %5964 = vmatprep.subr.mxu0 0.0
    %5965 = vmatpush2.msra.mxu0 0.0
    %5966 = vmatprep.subr.mxu0 0.0
    %5967 = vmatpush2.msra.mxu0 0.0
    %5968 = vmatprep.subr.mxu0 0.0
    %5969 = vmatpush2.msra.mxu0 0.0
    %5970 = vmatprep.subr.mxu0 0.0
    %5971 = vmatpush2.msra.mxu0 0.0
    %5972 = vmatprep.subr.mxu0 0.0
    %5973 = vmatpush2.msra.mxu0 0.0
    %5974 = vmatprep.subr.mxu0 0.0
    %5975 = vmatpush2.msra.mxu0 0.0
    %5976 = vmatprep.subr.mxu0 0.0
    %5977 = vmatpush2.msra.mxu0 0.0
    %5978 = vmatprep.subr.mxu0 0.0
    %5979 = vmatpush2.msra.mxu0 0.0
    %5980 = vmatprep.subr.mxu0 0.0
    %5981 = vmatpush2.msra.mxu0 0.0
    %5982 = vmatprep.subr.mxu0 0.0
    %5983 = vmatpush2.msra.mxu0 0.0
    %5984 = vmatprep.subr.mxu0 0.0
    %5985 = vmatpush2.msra.mxu0 0.0
    %5986 = vmatprep.subr.mxu0 0.0
    %5987 = vmatpush2.msra.mxu0 0.0
    %5988 = vmatprep.subr.mxu0 0.0
    %5989 = vmatpush2.msra.mxu0 0.0
    %5990 = vmatprep.mubr.f32.mxu0 0.0
    %5991 = vmatmul.mubr.f32.gmra.mxu0 %v532
    %v5992 = vpop.f32.mrf.mxu0
    %v5993 = vadd.f32 0.0, %v5992
    %v5994 = vpop.f32.mrf.mxu0
    %5995 = vmatprep.mubr.f32.mxu0 0.0
    %5996 = vmatmul.mubr.f32.gmra.mxu0 %v535
    %v5997 = vpop.f32.mrf.mxu0
    %v5998 = vadd.f32 0.0, %v5997
    %v5999 = vpop.f32.mrf.mxu0
    %6000 = vmatprep.mubr.f32.mxu0 0.0
    %6001 = vmatmul.mubr.f32.gmra.mxu0 %v538
    %v6002 = vpop.f32.mrf.mxu0
    %v6003 = vadd.f32 0.0, %v6002
    %v6004 = vpop.f32.mrf.mxu0
    %6005 = vmatprep.mubr.f32.mxu0 0.0
    %6006 = vmatmul.mubr.f32.gmra.mxu0 %v541
    %v6007 = vpop.f32.mrf.mxu0
    %v6008 = vadd.f32 0.0, %v6007
    %v6009 = vpop.f32.mrf.mxu0
    %6010 = vdwg.mxu0
    %v6011 = vmul.f32 %v5993, %v4684
    %v6012 = vmul.f32 %v5998, %v4686
    %v6013 = vmul.f32 %v6003, %v4688
    %v6014 = vmul.f32 %v6008, %v4690
    %6016 = vset.pattern.permute.xlu0 0
    %6017 = vperm.xlu0 %6016, %v6011
    %v6018 = vpop.permute.xlu0 %6017
    %6021 = vset.pattern.permute.xlu0 0
    %6022 = vperm.xlu0 %6021, %v6012
    %v6023 = vpop.permute.xlu0 %6022
    %6026 = vset.pattern.permute.xlu0 0
    %6027 = vperm.xlu0 %6026, %v6013
    %v6028 = vpop.permute.xlu0 %6027
    %6031 = vset.pattern.permute.xlu0 0
    %6032 = vperm.xlu0 %6031, %v6014
    %v6033 = vpop.permute.xlu0 %6032
    %v6035 = vmul.f32 %v5814, %v6018
    %v6036 = vmul.f32 %v5815, %v6023
    %v6037 = vmul.f32 %v5816, %v6028
    %v6038 = vmul.f32 %v5817, %v6033
    %v6039 = vadd.f32 %v6035, %v4725
    %v6040 = vadd.f32 %v6036, %v4729
    %v6041 = vadd.f32 %v6037, %v4733
    %v6042 = vadd.f32 %v6038, %v4737
    %6043 = vrot.lane.b32.xlu0 %v4307, 64
    %v6044 = vpop.permute.xlu0 %6043
    %6045 = vrot.lane.b32.xlu0 %v4308, 64
    %v6046 = vpop.permute.xlu0 %6045
    %6047 = vrot.lane.b32.xlu0 %v4309, 64
    %v6048 = vpop.permute.xlu0 %6047
    %6049 = vrot.lane.b32.xlu0 %v4310, 64
    %v6050 = vpop.permute.xlu0 %6049
    %v6055 = vsel %vm443, %v6044, 0.0
    %6056 = vadd.xlane.f32.xlu0 %v6055
    %v6057 = vpop.xlane.xlu0 %6056
    %v6058 = vsel %vm443, %v6046, 0.0
    %6059 = vadd.xlane.f32.xlu0 %v6058
    %v6060 = vpop.xlane.xlu0 %6059
    %v6061 = vsel %vm443, %v6048, 0.0
    %6062 = vadd.xlane.f32.xlu0 %v6061
    %v6063 = vpop.xlane.xlu0 %6062
    %v6064 = vsel %vm443, %v6050, 0.0
    %6065 = vadd.xlane.f32.xlu0 %v6064
    %v6066 = vpop.xlane.xlu0 %6065
    %6067 = vmatprep.subr.mxu0 0.0
    %6068 = vmatpush1.msra.mxu0 0.0
    %6069 = vmatprep.subr.mxu0 0.0
    %6070 = vmatpush1.msra.mxu0 0.0
    %6071 = vmatprep.subr.mxu0 0.0
    %6072 = vmatpush1.msra.mxu0 0.0
    %6073 = vmatprep.subr.mxu0 0.0
    %6074 = vmatpush1.msra.mxu0 0.0
    %6075 = vmatprep.subr.mxu0 0.0
    %6076 = vmatpush1.msra.mxu0 0.0
    %6077 = vmatprep.subr.mxu0 0.0
    %6078 = vmatpush1.msra.mxu0 0.0
    %6079 = vmatprep.subr.mxu0 0.0
    %6080 = vmatpush1.msra.mxu0 0.0
    %6081 = vmatprep.subr.mxu0 0.0
    %6082 = vmatpush1.msra.mxu0 0.0
    %6083 = vmatprep.subr.mxu0 0.0
    %6084 = vmatpush1.msra.mxu0 0.0
    %6085 = vmatprep.subr.mxu0 0.0
    %6086 = vmatpush1.msra.mxu0 0.0
    %6087 = vmatprep.subr.mxu0 0.0
    %6088 = vmatpush1.msra.mxu0 0.0
    %6089 = vmatprep.subr.mxu0 0.0
    %6090 = vmatpush1.msra.mxu0 0.0
    %6091 = vmatprep.subr.mxu0 0.0
    %6092 = vmatpush1.msra.mxu0 %v6066
    %6093 = vmatprep.subr.mxu0 0.0
    %6094 = vmatpush1.msra.mxu0 %v6063
    %6095 = vmatprep.subr.mxu0 0.0
    %6096 = vmatpush1.msra.mxu0 %v6060
    %6097 = vmatprep.subr.mxu0 0.0
    %6098 = vmatpush1.msra.mxu0 %v6057
    %6099 = vmatprep.subr.mxu0 0.0
    %6100 = vmatpush2.msra.mxu0 0.0
    %6101 = vmatprep.subr.mxu0 0.0
    %6102 = vmatpush2.msra.mxu0 0.0
    %6103 = vmatprep.subr.mxu0 0.0
    %6104 = vmatpush2.msra.mxu0 0.0
    %6105 = vmatprep.subr.mxu0 0.0
    %6106 = vmatpush2.msra.mxu0 0.0
    %6107 = vmatprep.subr.mxu0 0.0
    %6108 = vmatpush2.msra.mxu0 0.0
    %6109 = vmatprep.subr.mxu0 0.0
    %6110 = vmatpush2.msra.mxu0 0.0
    %6111 = vmatprep.subr.mxu0 0.0
    %6112 = vmatpush2.msra.mxu0 0.0
    %6113 = vmatprep.subr.mxu0 0.0
    %6114 = vmatpush2.msra.mxu0 0.0
    %6115 = vmatprep.subr.mxu0 0.0
    %6116 = vmatpush2.msra.mxu0 0.0
    %6117 = vmatprep.subr.mxu0 0.0
    %6118 = vmatpush2.msra.mxu0 0.0
    %6119 = vmatprep.subr.mxu0 0.0
    %6120 = vmatpush2.msra.mxu0 0.0
    %6121 = vmatprep.subr.mxu0 0.0
    %6122 = vmatpush2.msra.mxu0 0.0
    %6123 = vmatprep.subr.mxu0 0.0
    %6124 = vmatpush2.msra.mxu0 0.0
    %6125 = vmatprep.subr.mxu0 0.0
    %6126 = vmatpush2.msra.mxu0 0.0
    %6127 = vmatprep.subr.mxu0 0.0
    %6128 = vmatpush2.msra.mxu0 0.0
    %6129 = vmatprep.subr.mxu0 0.0
    %6130 = vmatpush2.msra.mxu0 0.0
    %6131 = vmatprep.mubr.f32.mxu0 0.0
    %6132 = vmatmul.mubr.f32.gmra.mxu0 %v457
    %v6133 = vpop.f32.mrf.mxu0
    %v6134 = vadd.f32 0.0, %v6133
    %v6135 = vpop.f32.mrf.mxu0
    %6136 = vdwg.mxu0
    %v6137 = vmul.f32 %v6134, 0.0078125
    %v6139 = vsel %vm543, %v6137, 0
    %6141 = vmatprep.subr.mxu0 0.0
    %6142 = vmatpush1.msra.mxu0 0.0
    %6143 = vmatprep.subr.mxu0 0.0
    %6144 = vmatpush1.msra.mxu0 0.0
    %6145 = vmatprep.subr.mxu0 0.0
    %6146 = vmatpush1.msra.mxu0 0.0
    %6147 = vmatprep.subr.mxu0 0.0
    %6148 = vmatpush1.msra.mxu0 0.0
    %6149 = vmatprep.subr.mxu0 0.0
    %6150 = vmatpush1.msra.mxu0 0.0
    %6151 = vmatprep.subr.mxu0 0.0
    %6152 = vmatpush1.msra.mxu0 0.0
    %6153 = vmatprep.subr.mxu0 0.0
    %6154 = vmatpush1.msra.mxu0 0.0
    %6155 = vmatprep.subr.mxu0 0.0
    %6156 = vmatpush1.msra.mxu0 0.0
    %6157 = vmatprep.subr.mxu0 0.0
    %6158 = vmatpush1.msra.mxu0 0.0
    %6159 = vmatprep.subr.mxu0 0.0
    %6160 = vmatpush1.msra.mxu0 0.0
    %6161 = vmatprep.subr.mxu0 0.0
    %6162 = vmatpush1.msra.mxu0 0.0
    %6163 = vmatprep.subr.mxu0 0.0
    %6164 = vmatpush1.msra.mxu0 0.0
    %6165 = vmatprep.subr.mxu0 0.0
    %6166 = vmatpush1.msra.mxu0 0.0
    %6167 = vmatprep.subr.mxu0 0.0
    %6168 = vmatpush1.msra.mxu0 0.0
    %6169 = vmatprep.subr.mxu0 0.0
    %6170 = vmatpush1.msra.mxu0 0.0
    %6171 = vmatprep.subr.mxu0 0.0
    %6172 = vmatpush1.msra.mxu0 %v6139
    %6173 = vmatprep.subr.mxu0 0.0
    %6174 = vmatpush2.msra.mxu0 0.0
    %6175 = vmatprep.subr.mxu0 0.0
    %6176 = vmatpush2.msra.mxu0 0.0
    %6177 = vmatprep.subr.mxu0 0.0
    %6178 = vmatpush2.msra.mxu0 0.0
    %6179 = vmatprep.subr.mxu0 0.0
    %6180 = vmatpush2.msra.mxu0 0.0
    %6181 = vmatprep.subr.mxu0 0.0
    %6182 = vmatpush2.msra.mxu0 0.0
    %6183 = vmatprep.subr.mxu0 0.0
    %6184 = vmatpush2.msra.mxu0 0.0
    %6185 = vmatprep.subr.mxu0 0.0
    %6186 = vmatpush2.msra.mxu0 0.0
    %6187 = vmatprep.subr.mxu0 0.0
    %6188 = vmatpush2.msra.mxu0 0.0
    %6189 = vmatprep.subr.mxu0 0.0
    %6190 = vmatpush2.msra.mxu0 0.0
    %6191 = vmatprep.subr.mxu0 0.0
    %6192 = vmatpush2.msra.mxu0 0.0
    %6193 = vmatprep.subr.mxu0 0.0
    %6194 = vmatpush2.msra.mxu0 0.0
    %6195 = vmatprep.subr.mxu0 0.0
    %6196 = vmatpush2.msra.mxu0 0.0
    %6197 = vmatprep.subr.mxu0 0.0
    %6198 = vmatpush2.msra.mxu0 0.0
    %6199 = vmatprep.subr.mxu0 0.0
    %6200 = vmatpush2.msra.mxu0 0.0
    %6201 = vmatprep.subr.mxu0 0.0
    %6202 = vmatpush2.msra.mxu0 0.0
    %6203 = vmatprep.subr.mxu0 0.0
    %6204 = vmatpush2.msra.mxu0 0.0
    %6205 = vmatprep.mubr.f32.mxu0 0.0
    %6206 = vmatmul.mubr.f32.gmra.mxu0 %v532
    %v6207 = vpop.f32.mrf.mxu0
    %v6208 = vadd.f32 0.0, %v6207
    %v6209 = vpop.f32.mrf.mxu0
    %6210 = vmatprep.mubr.f32.mxu0 0.0
    %6211 = vmatmul.mubr.f32.gmra.mxu0 %v535
    %v6212 = vpop.f32.mrf.mxu0
    %v6213 = vadd.f32 0.0, %v6212
    %v6214 = vpop.f32.mrf.mxu0
    %6215 = vmatprep.mubr.f32.mxu0 0.0
    %6216 = vmatmul.mubr.f32.gmra.mxu0 %v538
    %v6217 = vpop.f32.mrf.mxu0
    %v6218 = vadd.f32 0.0, %v6217
    %v6219 = vpop.f32.mrf.mxu0
    %6220 = vmatprep.mubr.f32.mxu0 0.0
    %6221 = vmatmul.mubr.f32.gmra.mxu0 %v541
    %v6222 = vpop.f32.mrf.mxu0
    %v6223 = vadd.f32 0.0, %v6222
    %v6224 = vpop.f32.mrf.mxu0
    %6225 = vdwg.mxu0
    %6227 = vset.pattern.permute.xlu0 0
    %6228 = vperm.xlu0 %6227, %v6208
    %v6229 = vpop.permute.xlu0 %6228
    %6232 = vset.pattern.permute.xlu0 0
    %6233 = vperm.xlu0 %6232, %v6213
    %v6234 = vpop.permute.xlu0 %6233
    %6237 = vset.pattern.permute.xlu0 0
    %6238 = vperm.xlu0 %6237, %v6218
    %v6239 = vpop.permute.xlu0 %6238
    %6242 = vset.pattern.permute.xlu0 0
    %6243 = vperm.xlu0 %6242, %v6223
    %v6244 = vpop.permute.xlu0 %6243
    %v6246 = vsub.f32 %v4307, %v6229
    %v6247 = vsub.f32 %v4308, %v6234
    %v6248 = vsub.f32 %v4309, %v6239
    %v6249 = vsub.f32 %v4310, %v6244
    %v6250 = vmul.f32 %v6246, %v6246
    %v6251 = vmul.f32 %v6247, %v6247
    %v6252 = vmul.f32 %v6248, %v6248
    %v6253 = vmul.f32 %v6249, %v6249
    %6258 = vrot.lane.b32.xlu0 %v6250, 64
    %v6259 = vpop.permute.xlu0 %6258
    %6260 = vrot.lane.b32.xlu0 %v6251, 64
    %v6261 = vpop.permute.xlu0 %6260
    %6262 = vrot.lane.b32.xlu0 %v6252, 64
    %v6263 = vpop.permute.xlu0 %6262
    %6264 = vrot.lane.b32.xlu0 %v6253, 64
    %v6265 = vpop.permute.xlu0 %6264
    %v6270 = vsel %vm443, %v6259, 0.0
    %6271 = vadd.xlane.f32.xlu0 %v6270
    %v6272 = vpop.xlane.xlu0 %6271
    %v6273 = vsel %vm443, %v6261, 0.0
    %6274 = vadd.xlane.f32.xlu0 %v6273
    %v6275 = vpop.xlane.xlu0 %6274
    %v6276 = vsel %vm443, %v6263, 0.0
    %6277 = vadd.xlane.f32.xlu0 %v6276
    %v6278 = vpop.xlane.xlu0 %6277
    %v6279 = vsel %vm443, %v6265, 0.0
    %6280 = vadd.xlane.f32.xlu0 %v6279
    %v6281 = vpop.xlane.xlu0 %6280
    %6282 = vmatprep.subr.mxu0 0.0
    %6283 = vmatpush1.msra.mxu0 0.0
    %6284 = vmatprep.subr.mxu0 0.0
    %6285 = vmatpush1.msra.mxu0 0.0
    %6286 = vmatprep.subr.mxu0 0.0
    %6287 = vmatpush1.msra.mxu0 0.0
    %6288 = vmatprep.subr.mxu0 0.0
    %6289 = vmatpush1.msra.mxu0 0.0
    %6290 = vmatprep.subr.mxu0 0.0
    %6291 = vmatpush1.msra.mxu0 0.0
    %6292 = vmatprep.subr.mxu0 0.0
    %6293 = vmatpush1.msra.mxu0 0.0
    %6294 = vmatprep.subr.mxu0 0.0
    %6295 = vmatpush1.msra.mxu0 0.0
    %6296 = vmatprep.subr.mxu0 0.0
    %6297 = vmatpush1.msra.mxu0 0.0
    %6298 = vmatprep.subr.mxu0 0.0
    %6299 = vmatpush1.msra.mxu0 0.0
    %6300 = vmatprep.subr.mxu0 0.0
    %6301 = vmatpush1.msra.mxu0 0.0
    %6302 = vmatprep.subr.mxu0 0.0
    %6303 = vmatpush1.msra.mxu0 0.0
    %6304 = vmatprep.subr.mxu0 0.0
    %6305 = vmatpush1.msra.mxu0 0.0
    %6306 = vmatprep.subr.mxu0 0.0
    %6307 = vmatpush1.msra.mxu0 %v6281
    %6308 = vmatprep.subr.mxu0 0.0
    %6309 = vmatpush1.msra.mxu0 %v6278
    %6310 = vmatprep.subr.mxu0 0.0
    %6311 = vmatpush1.msra.mxu0 %v6275
    %6312 = vmatprep.subr.mxu0 0.0
    %6313 = vmatpush1.msra.mxu0 %v6272
    %6314 = vmatprep.subr.mxu0 0.0
    %6315 = vmatpush2.msra.mxu0 0.0
    %6316 = vmatprep.subr.mxu0 0.0
    %6317 = vmatpush2.msra.mxu0 0.0
    %6318 = vmatprep.subr.mxu0 0.0
    %6319 = vmatpush2.msra.mxu0 0.0
    %6320 = vmatprep.subr.mxu0 0.0
    %6321 = vmatpush2.msra.mxu0 0.0
    %6322 = vmatprep.subr.mxu0 0.0
    %6323 = vmatpush2.msra.mxu0 0.0
    %6324 = vmatprep.subr.mxu0 0.0
    %6325 = vmatpush2.msra.mxu0 0.0
    %6326 = vmatprep.subr.mxu0 0.0
    %6327 = vmatpush2.msra.mxu0 0.0
    %6328 = vmatprep.subr.mxu0 0.0
    %6329 = vmatpush2.msra.mxu0 0.0
    %6330 = vmatprep.subr.mxu0 0.0
    %6331 = vmatpush2.msra.mxu0 0.0
    %6332 = vmatprep.subr.mxu0 0.0
    %6333 = vmatpush2.msra.mxu0 0.0
    %6334 = vmatprep.subr.mxu0 0.0
    %6335 = vmatpush2.msra.mxu0 0.0
    %6336 = vmatprep.subr.mxu0 0.0
    %6337 = vmatpush2.msra.mxu0 0.0
    %6338 = vmatprep.subr.mxu0 0.0
    %6339 = vmatpush2.msra.mxu0 0.0
    %6340 = vmatprep.subr.mxu0 0.0
    %6341 = vmatpush2.msra.mxu0 0.0
    %6342 = vmatprep.subr.mxu0 0.0
    %6343 = vmatpush2.msra.mxu0 0.0
    %6344 = vmatprep.subr.mxu0 0.0
    %6345 = vmatpush2.msra.mxu0 0.0
    %6346 = vmatprep.mubr.f32.mxu0 0.0
    %6347 = vmatmul.mubr.f32.gmra.mxu0 %v457
    %v6348 = vpop.f32.mrf.mxu0
    %v6349 = vadd.f32 0.0, %v6348
    %v6350 = vpop.f32.mrf.mxu0
    %6351 = vdwg.mxu0
    %v6352 = vmul.f32 %v6349, 0.0078125
    %v6353 = vadd.f32 %v6352, 1e-05
    %v6354 = vrsqrt.pop %v6353
    %v6356 = vsel %vm543, %v6354, 0
    %6358 = vmatprep.subr.mxu0 0.0
    %6359 = vmatpush1.msra.mxu0 0.0
    %6360 = vmatprep.subr.mxu0 0.0
    %6361 = vmatpush1.msra.mxu0 0.0
    %6362 = vmatprep.subr.mxu0 0.0
    %6363 = vmatpush1.msra.mxu0 0.0
    %6364 = vmatprep.subr.mxu0 0.0
    %6365 = vmatpush1.msra.mxu0 0.0
    %6366 = vmatprep.subr.mxu0 0.0
    %6367 = vmatpush1.msra.mxu0 0.0
    %6368 = vmatprep.subr.mxu0 0.0
    %6369 = vmatpush1.msra.mxu0 0.0
    %6370 = vmatprep.subr.mxu0 0.0
    %6371 = vmatpush1.msra.mxu0 0.0
    %6372 = vmatprep.subr.mxu0 0.0
    %6373 = vmatpush1.msra.mxu0 0.0
    %6374 = vmatprep.subr.mxu0 0.0
    %6375 = vmatpush1.msra.mxu0 0.0
    %6376 = vmatprep.subr.mxu0 0.0
    %6377 = vmatpush1.msra.mxu0 0.0
    %6378 = vmatprep.subr.mxu0 0.0
    %6379 = vmatpush1.msra.mxu0 0.0
    %6380 = vmatprep.subr.mxu0 0.0
    %6381 = vmatpush1.msra.mxu0 0.0
    %6382 = vmatprep.subr.mxu0 0.0
    %6383 = vmatpush1.msra.mxu0 0.0
    %6384 = vmatprep.subr.mxu0 0.0
    %6385 = vmatpush1.msra.mxu0 0.0
    %6386 = vmatprep.subr.mxu0 0.0
    %6387 = vmatpush1.msra.mxu0 0.0
    %6388 = vmatprep.subr.mxu0 0.0
    %6389 = vmatpush1.msra.mxu0 %v6356
    %6390 = vmatprep.subr.mxu0 0.0
    %6391 = vmatpush2.msra.mxu0 0.0
    %6392 = vmatprep.subr.mxu0 0.0
    %6393 = vmatpush2.msra.mxu0 0.0
    %6394 = vmatprep.subr.mxu0 0.0
    %6395 = vmatpush2.msra.mxu0 0.0
    %6396 = vmatprep.subr.mxu0 0.0
    %6397 = vmatpush2.msra.mxu0 0.0
    %6398 = vmatprep.subr.mxu0 0.0
    %6399 = vmatpush2.msra.mxu0 0.0
    %6400 = vmatprep.subr.mxu0 0.0
    %6401 = vmatpush2.msra.mxu0 0.0
    %6402 = vmatprep.subr.mxu0 0.0
    %6403 = vmatpush2.msra.mxu0 0.0
    %6404 = vmatprep.subr.mxu0 0.0
    %6405 = vmatpush2.msra.mxu0 0.0
    %6406 = vmatprep.subr.mxu0 0.0
    %6407 = vmatpush2.msra.mxu0 0.0
    %6408 = vmatprep.subr.mxu0 0.0
    %6409 = vmatpush2.msra.mxu0 0.0
    %6410 = vmatprep.subr.mxu0 0.0
    %6411 = vmatpush2.msra.mxu0 0.0
    %6412 = vmatprep.subr.mxu0 0.0
    %6413 = vmatpush2.msra.mxu0 0.0
    %6414 = vmatprep.subr.mxu0 0.0
    %6415 = vmatpush2.msra.mxu0 0.0
    %6416 = vmatprep.subr.mxu0 0.0
    %6417 = vmatpush2.msra.mxu0 0.0
    %6418 = vmatprep.subr.mxu0 0.0
    %6419 = vmatpush2.msra.mxu0 0.0
    %6420 = vmatprep.subr.mxu0 0.0
    %6421 = vmatpush2.msra.mxu0 0.0
    %6422 = vmatprep.mubr.f32.mxu0 0.0
    %6423 = vmatmul.mubr.f32.gmra.mxu0 %v532
    %v6424 = vpop.f32.mrf.mxu0
    %v6425 = vadd.f32 0.0, %v6424
    %v6426 = vpop.f32.mrf.mxu0
    %6427 = vmatprep.mubr.f32.mxu0 0.0
    %6428 = vmatmul.mubr.f32.gmra.mxu0 %v535
    %v6429 = vpop.f32.mrf.mxu0
    %v6430 = vadd.f32 0.0, %v6429
    %v6431 = vpop.f32.mrf.mxu0
    %6432 = vmatprep.mubr.f32.mxu0 0.0
    %6433 = vmatmul.mubr.f32.gmra.mxu0 %v538
    %v6434 = vpop.f32.mrf.mxu0
    %v6435 = vadd.f32 0.0, %v6434
    %v6436 = vpop.f32.mrf.mxu0
    %6437 = vmatprep.mubr.f32.mxu0 0.0
    %6438 = vmatmul.mubr.f32.gmra.mxu0 %v541
    %v6439 = vpop.f32.mrf.mxu0
    %v6440 = vadd.f32 0.0, %v6439
    %v6441 = vpop.f32.mrf.mxu0
    %6442 = vdwg.mxu0
    %v6443 = vmul.f32 %v6425, %v4684
    %v6444 = vmul.f32 %v6430, %v4686
    %v6445 = vmul.f32 %v6435, %v4688
    %v6446 = vmul.f32 %v6440, %v4690
    %6448 = vset.pattern.permute.xlu0 0
    %6449 = vperm.xlu0 %6448, %v6443
    %v6450 = vpop.permute.xlu0 %6449
    %6453 = vset.pattern.permute.xlu0 0
    %6454 = vperm.xlu0 %6453, %v6444
    %v6455 = vpop.permute.xlu0 %6454
    %6458 = vset.pattern.permute.xlu0 0
    %6459 = vperm.xlu0 %6458, %v6445
    %v6460 = vpop.permute.xlu0 %6459
    %6463 = vset.pattern.permute.xlu0 0
    %6464 = vperm.xlu0 %6463, %v6446
    %v6465 = vpop.permute.xlu0 %6464
    %v6467 = vmul.f32 %v6246, %v6450
    %v6468 = vmul.f32 %v6247, %v6455
    %v6469 = vmul.f32 %v6248, %v6460
    %v6470 = vmul.f32 %v6249, %v6465
    %v6471 = vadd.f32 %v6467, %v4725
    %v6472 = vadd.f32 %v6468, %v4729
    %v6473 = vadd.f32 %v6469, %v4733
    %v6474 = vadd.f32 %v6470, %v4737
    %6475 = vrot.lane.b32.xlu0 %v4307, 48
    %v6476 = vpop.permute.xlu0 %6475
    %6477 = vrot.lane.b32.xlu0 %v4308, 48
    %v6478 = vpop.permute.xlu0 %6477
    %6479 = vrot.lane.b32.xlu0 %v4309, 48
    %v6480 = vpop.permute.xlu0 %6479
    %6481 = vrot.lane.b32.xlu0 %v4310, 48
    %v6482 = vpop.permute.xlu0 %6481
    %v6487 = vsel %vm443, %v6476, 0.0
    %6488 = vadd.xlane.f32.xlu0 %v6487
    %v6489 = vpop.xlane.xlu0 %6488
    %v6490 = vsel %vm443, %v6478, 0.0
    %6491 = vadd.xlane.f32.xlu0 %v6490
    %v6492 = vpop.xlane.xlu0 %6491
    %v6493 = vsel %vm443, %v6480, 0.0
    %6494 = vadd.xlane.f32.xlu0 %v6493
    %v6495 = vpop.xlane.xlu0 %6494
    %v6496 = vsel %vm443, %v6482, 0.0
    %6497 = vadd.xlane.f32.xlu0 %v6496
    %v6498 = vpop.xlane.xlu0 %6497
    %6499 = vmatprep.subr.mxu0 0.0
    %6500 = vmatpush1.msra.mxu0 0.0
    %6501 = vmatprep.subr.mxu0 0.0
    %6502 = vmatpush1.msra.mxu0 0.0
    %6503 = vmatprep.subr.mxu0 0.0
    %6504 = vmatpush1.msra.mxu0 0.0
    %6505 = vmatprep.subr.mxu0 0.0
    %6506 = vmatpush1.msra.mxu0 0.0
    %6507 = vmatprep.subr.mxu0 0.0
    %6508 = vmatpush1.msra.mxu0 0.0
    %6509 = vmatprep.subr.mxu0 0.0
    %6510 = vmatpush1.msra.mxu0 0.0
    %6511 = vmatprep.subr.mxu0 0.0
    %6512 = vmatpush1.msra.mxu0 0.0
    %6513 = vmatprep.subr.mxu0 0.0
    %6514 = vmatpush1.msra.mxu0 0.0
    %6515 = vmatprep.subr.mxu0 0.0
    %6516 = vmatpush1.msra.mxu0 0.0
    %6517 = vmatprep.subr.mxu0 0.0
    %6518 = vmatpush1.msra.mxu0 0.0
    %6519 = vmatprep.subr.mxu0 0.0
    %6520 = vmatpush1.msra.mxu0 0.0
    %6521 = vmatprep.subr.mxu0 0.0
    %6522 = vmatpush1.msra.mxu0 0.0
    %6523 = vmatprep.subr.mxu0 0.0
    %6524 = vmatpush1.msra.mxu0 %v6498
    %6525 = vmatprep.subr.mxu0 0.0
    %6526 = vmatpush1.msra.mxu0 %v6495
    %6527 = vmatprep.subr.mxu0 0.0
    %6528 = vmatpush1.msra.mxu0 %v6492
    %6529 = vmatprep.subr.mxu0 0.0
    %6530 = vmatpush1.msra.mxu0 %v6489
    %6531 = vmatprep.subr.mxu0 0.0
    %6532 = vmatpush2.msra.mxu0 0.0
    %6533 = vmatprep.subr.mxu0 0.0
    %6534 = vmatpush2.msra.mxu0 0.0
    %6535 = vmatprep.subr.mxu0 0.0
    %6536 = vmatpush2.msra.mxu0 0.0
    %6537 = vmatprep.subr.mxu0 0.0
    %6538 = vmatpush2.msra.mxu0 0.0
    %6539 = vmatprep.subr.mxu0 0.0
    %6540 = vmatpush2.msra.mxu0 0.0
    %6541 = vmatprep.subr.mxu0 0.0
    %6542 = vmatpush2.msra.mxu0 0.0
    %6543 = vmatprep.subr.mxu0 0.0
    %6544 = vmatpush2.msra.mxu0 0.0
    %6545 = vmatprep.subr.mxu0 0.0
    %6546 = vmatpush2.msra.mxu0 0.0
    %6547 = vmatprep.subr.mxu0 0.0
    %6548 = vmatpush2.msra.mxu0 0.0
    %6549 = vmatprep.subr.mxu0 0.0
    %6550 = vmatpush2.msra.mxu0 0.0
    %6551 = vmatprep.subr.mxu0 0.0
    %6552 = vmatpush2.msra.mxu0 0.0
    %6553 = vmatprep.subr.mxu0 0.0
    %6554 = vmatpush2.msra.mxu0 0.0
    %6555 = vmatprep.subr.mxu0 0.0
    %6556 = vmatpush2.msra.mxu0 0.0
    %6557 = vmatprep.subr.mxu0 0.0
    %6558 = vmatpush2.msra.mxu0 0.0
    %6559 = vmatprep.subr.mxu0 0.0
    %6560 = vmatpush2.msra.mxu0 0.0
    %6561 = vmatprep.subr.mxu0 0.0
    %6562 = vmatpush2.msra.mxu0 0.0
    %6563 = vmatprep.mubr.f32.mxu0 0.0
    %6564 = vmatmul.mubr.f32.gmra.mxu0 %v457
    %v6565 = vpop.f32.mrf.mxu0
    %v6566 = vadd.f32 0.0, %v6565
    %v6567 = vpop.f32.mrf.mxu0
    %6568 = vdwg.mxu0
    %v6569 = vmul.f32 %v6566, 0.0078125
    %v6571 = vsel %vm543, %v6569, 0
    %6573 = vmatprep.subr.mxu0 0.0
    %6574 = vmatpush1.msra.mxu0 0.0
    %6575 = vmatprep.subr.mxu0 0.0
    %6576 = vmatpush1.msra.mxu0 0.0
    %6577 = vmatprep.subr.mxu0 0.0
    %6578 = vmatpush1.msra.mxu0 0.0
    %6579 = vmatprep.subr.mxu0 0.0
    %6580 = vmatpush1.msra.mxu0 0.0
    %6581 = vmatprep.subr.mxu0 0.0
    %6582 = vmatpush1.msra.mxu0 0.0
    %6583 = vmatprep.subr.mxu0 0.0
    %6584 = vmatpush1.msra.mxu0 0.0
    %6585 = vmatprep.subr.mxu0 0.0
    %6586 = vmatpush1.msra.mxu0 0.0
    %6587 = vmatprep.subr.mxu0 0.0
    %6588 = vmatpush1.msra.mxu0 0.0
    %6589 = vmatprep.subr.mxu0 0.0
    %6590 = vmatpush1.msra.mxu0 0.0
    %6591 = vmatprep.subr.mxu0 0.0
    %6592 = vmatpush1.msra.mxu0 0.0
    %6593 = vmatprep.subr.mxu0 0.0
    %6594 = vmatpush1.msra.mxu0 0.0
    %6595 = vmatprep.subr.mxu0 0.0
    %6596 = vmatpush1.msra.mxu0 0.0
    %6597 = vmatprep.subr.mxu0 0.0
    %6598 = vmatpush1.msra.mxu0 0.0
    %6599 = vmatprep.subr.mxu0 0.0
    %6600 = vmatpush1.msra.mxu0 0.0
    %6601 = vmatprep.subr.mxu0 0.0
    %6602 = vmatpush1.msra.mxu0 0.0
    %6603 = vmatprep.subr.mxu0 0.0
    %6604 = vmatpush1.msra.mxu0 %v6571
    %6605 = vmatprep.subr.mxu0 0.0
    %6606 = vmatpush2.msra.mxu0 0.0
    %6607 = vmatprep.subr.mxu0 0.0
    %6608 = vmatpush2.msra.mxu0 0.0
    %6609 = vmatprep.subr.mxu0 0.0
    %6610 = vmatpush2.msra.mxu0 0.0
    %6611 = vmatprep.subr.mxu0 0.0
    %6612 = vmatpush2.msra.mxu0 0.0
    %6613 = vmatprep.subr.mxu0 0.0
    %6614 = vmatpush2.msra.mxu0 0.0
    %6615 = vmatprep.subr.mxu0 0.0
    %6616 = vmatpush2.msra.mxu0 0.0
    %6617 = vmatprep.subr.mxu0 0.0
    %6618 = vmatpush2.msra.mxu0 0.0
    %6619 = vmatprep.subr.mxu0 0.0
    %6620 = vmatpush2.msra.mxu0 0.0
    %6621 = vmatprep.subr.mxu0 0.0
    %6622 = vmatpush2.msra.mxu0 0.0
    %6623 = vmatprep.subr.mxu0 0.0
    %6624 = vmatpush2.msra.mxu0 0.0
    %6625 = vmatprep.subr.mxu0 0.0
    %6626 = vmatpush2.msra.mxu0 0.0
    %6627 = vmatprep.subr.mxu0 0.0
    %6628 = vmatpush2.msra.mxu0 0.0
    %6629 = vmatprep.subr.mxu0 0.0
    %6630 = vmatpush2.msra.mxu0 0.0
    %6631 = vmatprep.subr.mxu0 0.0
    %6632 = vmatpush2.msra.mxu0 0.0
    %6633 = vmatprep.subr.mxu0 0.0
    %6634 = vmatpush2.msra.mxu0 0.0
    %6635 = vmatprep.subr.mxu0 0.0
    %6636 = vmatpush2.msra.mxu0 0.0
    %6637 = vmatprep.mubr.f32.mxu0 0.0
    %6638 = vmatmul.mubr.f32.gmra.mxu0 %v532
    %v6639 = vpop.f32.mrf.mxu0
    %v6640 = vadd.f32 0.0, %v6639
    %v6641 = vpop.f32.mrf.mxu0
    %6642 = vmatprep.mubr.f32.mxu0 0.0
    %6643 = vmatmul.mubr.f32.gmra.mxu0 %v535
    %v6644 = vpop.f32.mrf.mxu0
    %v6645 = vadd.f32 0.0, %v6644
    %v6646 = vpop.f32.mrf.mxu0
    %6647 = vmatprep.mubr.f32.mxu0 0.0
    %6648 = vmatmul.mubr.f32.gmra.mxu0 %v538
    %v6649 = vpop.f32.mrf.mxu0
    %v6650 = vadd.f32 0.0, %v6649
    %v6651 = vpop.f32.mrf.mxu0
    %6652 = vmatprep.mubr.f32.mxu0 0.0
    %6653 = vmatmul.mubr.f32.gmra.mxu0 %v541
    %v6654 = vpop.f32.mrf.mxu0
    %v6655 = vadd.f32 0.0, %v6654
    %v6656 = vpop.f32.mrf.mxu0
    %6657 = vdwg.mxu0
    %6659 = vset.pattern.permute.xlu0 0
    %6660 = vperm.xlu0 %6659, %v6640
    %v6661 = vpop.permute.xlu0 %6660
    %6664 = vset.pattern.permute.xlu0 0
    %6665 = vperm.xlu0 %6664, %v6645
    %v6666 = vpop.permute.xlu0 %6665
    %6669 = vset.pattern.permute.xlu0 0
    %6670 = vperm.xlu0 %6669, %v6650
    %v6671 = vpop.permute.xlu0 %6670
    %6674 = vset.pattern.permute.xlu0 0
    %6675 = vperm.xlu0 %6674, %v6655
    %v6676 = vpop.permute.xlu0 %6675
    %v6678 = vsub.f32 %v4307, %v6661
    %v6679 = vsub.f32 %v4308, %v6666
    %v6680 = vsub.f32 %v4309, %v6671
    %v6681 = vsub.f32 %v4310, %v6676
    %v6682 = vmul.f32 %v6678, %v6678
    %v6683 = vmul.f32 %v6679, %v6679
    %v6684 = vmul.f32 %v6680, %v6680
    %v6685 = vmul.f32 %v6681, %v6681
    %6690 = vrot.lane.b32.xlu0 %v6682, 48
    %v6691 = vpop.permute.xlu0 %6690
    %6692 = vrot.lane.b32.xlu0 %v6683, 48
    %v6693 = vpop.permute.xlu0 %6692
    %6694 = vrot.lane.b32.xlu0 %v6684, 48
    %v6695 = vpop.permute.xlu0 %6694
    %6696 = vrot.lane.b32.xlu0 %v6685, 48
    %v6697 = vpop.permute.xlu0 %6696
    %v6702 = vsel %vm443, %v6691, 0.0
    %6703 = vadd.xlane.f32.xlu0 %v6702
    %v6704 = vpop.xlane.xlu0 %6703
    %v6705 = vsel %vm443, %v6693, 0.0
    %6706 = vadd.xlane.f32.xlu0 %v6705
    %v6707 = vpop.xlane.xlu0 %6706
    %v6708 = vsel %vm443, %v6695, 0.0
    %6709 = vadd.xlane.f32.xlu0 %v6708
    %v6710 = vpop.xlane.xlu0 %6709
    %v6711 = vsel %vm443, %v6697, 0.0
    %6712 = vadd.xlane.f32.xlu0 %v6711
    %v6713 = vpop.xlane.xlu0 %6712
    %6714 = vmatprep.subr.mxu0 0.0
    %6715 = vmatpush1.msra.mxu0 0.0
    %6716 = vmatprep.subr.mxu0 0.0
    %6717 = vmatpush1.msra.mxu0 0.0
    %6718 = vmatprep.subr.mxu0 0.0
    %6719 = vmatpush1.msra.mxu0 0.0
    %6720 = vmatprep.subr.mxu0 0.0
    %6721 = vmatpush1.msra.mxu0 0.0
    %6722 = vmatprep.subr.mxu0 0.0
    %6723 = vmatpush1.msra.mxu0 0.0
    %6724 = vmatprep.subr.mxu0 0.0
    %6725 = vmatpush1.msra.mxu0 0.0
    %6726 = vmatprep.subr.mxu0 0.0
    %6727 = vmatpush1.msra.mxu0 0.0
    %6728 = vmatprep.subr.mxu0 0.0
    %6729 = vmatpush1.msra.mxu0 0.0
    %6730 = vmatprep.subr.mxu0 0.0
    %6731 = vmatpush1.msra.mxu0 0.0
    %6732 = vmatprep.subr.mxu0 0.0
    %6733 = vmatpush1.msra.mxu0 0.0
    %6734 = vmatprep.subr.mxu0 0.0
    %6735 = vmatpush1.msra.mxu0 0.0
    %6736 = vmatprep.subr.mxu0 0.0
    %6737 = vmatpush1.msra.mxu0 0.0
    %6738 = vmatprep.subr.mxu0 0.0
    %6739 = vmatpush1.msra.mxu0 %v6713
    %6740 = vmatprep.subr.mxu0 0.0
    %6741 = vmatpush1.msra.mxu0 %v6710
    %6742 = vmatprep.subr.mxu0 0.0
    %6743 = vmatpush1.msra.mxu0 %v6707
    %6744 = vmatprep.subr.mxu0 0.0
    %6745 = vmatpush1.msra.mxu0 %v6704
    %6746 = vmatprep.subr.mxu0 0.0
    %6747 = vmatpush2.msra.mxu0 0.0
    %6748 = vmatprep.subr.mxu0 0.0
    %6749 = vmatpush2.msra.mxu0 0.0
    %6750 = vmatprep.subr.mxu0 0.0
    %6751 = vmatpush2.msra.mxu0 0.0
    %6752 = vmatprep.subr.mxu0 0.0
    %6753 = vmatpush2.msra.mxu0 0.0
    %6754 = vmatprep.subr.mxu0 0.0
    %6755 = vmatpush2.msra.mxu0 0.0
    %6756 = vmatprep.subr.mxu0 0.0
    %6757 = vmatpush2.msra.mxu0 0.0
    %6758 = vmatprep.subr.mxu0 0.0
    %6759 = vmatpush2.msra.mxu0 0.0
    %6760 = vmatprep.subr.mxu0 0.0
    %6761 = vmatpush2.msra.mxu0 0.0
    %6762 = vmatprep.subr.mxu0 0.0
    %6763 = vmatpush2.msra.mxu0 0.0
    %6764 = vmatprep.subr.mxu0 0.0
    %6765 = vmatpush2.msra.mxu0 0.0
    %6766 = vmatprep.subr.mxu0 0.0
    %6767 = vmatpush2.msra.mxu0 0.0
    %6768 = vmatprep.subr.mxu0 0.0
    %6769 = vmatpush2.msra.mxu0 0.0
    %6770 = vmatprep.subr.mxu0 0.0
    %6771 = vmatpush2.msra.mxu0 0.0
    %6772 = vmatprep.subr.mxu0 0.0
    %6773 = vmatpush2.msra.mxu0 0.0
    %6774 = vmatprep.subr.mxu0 0.0
    %6775 = vmatpush2.msra.mxu0 0.0
    %6776 = vmatprep.subr.mxu0 0.0
    %6777 = vmatpush2.msra.mxu0 0.0
    %6778 = vmatprep.mubr.f32.mxu0 0.0
    %6779 = vmatmul.mubr.f32.gmra.mxu0 %v457
    %v6780 = vpop.f32.mrf.mxu0
    %v6781 = vadd.f32 0.0, %v6780
    %v6782 = vpop.f32.mrf.mxu0
    %6783 = vdwg.mxu0
    %v6784 = vmul.f32 %v6781, 0.0078125
    %v6785 = vadd.f32 %v6784, 1e-05
    %v6786 = vrsqrt.pop %v6785
    %v6788 = vsel %vm543, %v6786, 0
    %6790 = vmatprep.subr.mxu0 0.0
    %6791 = vmatpush1.msra.mxu0 0.0
    %6792 = vmatprep.subr.mxu0 0.0
    %6793 = vmatpush1.msra.mxu0 0.0
    %6794 = vmatprep.subr.mxu0 0.0
    %6795 = vmatpush1.msra.mxu0 0.0
    %6796 = vmatprep.subr.mxu0 0.0
    %6797 = vmatpush1.msra.mxu0 0.0
    %6798 = vmatprep.subr.mxu0 0.0
    %6799 = vmatpush1.msra.mxu0 0.0
    %6800 = vmatprep.subr.mxu0 0.0
    %6801 = vmatpush1.msra.mxu0 0.0
    %6802 = vmatprep.subr.mxu0 0.0
    %6803 = vmatpush1.msra.mxu0 0.0
    %6804 = vmatprep.subr.mxu0 0.0
    %6805 = vmatpush1.msra.mxu0 0.0
    %6806 = vmatprep.subr.mxu0 0.0
    %6807 = vmatpush1.msra.mxu0 0.0
    %6808 = vmatprep.subr.mxu0 0.0
    %6809 = vmatpush1.msra.mxu0 0.0
    %6810 = vmatprep.subr.mxu0 0.0
    %6811 = vmatpush1.msra.mxu0 0.0
    %6812 = vmatprep.subr.mxu0 0.0
    %6813 = vmatpush1.msra.mxu0 0.0
    %6814 = vmatprep.subr.mxu0 0.0
    %6815 = vmatpush1.msra.mxu0 0.0
    %6816 = vmatprep.subr.mxu0 0.0
    %6817 = vmatpush1.msra.mxu0 0.0
    %6818 = vmatprep.subr.mxu0 0.0
    %6819 = vmatpush1.msra.mxu0 0.0
    %6820 = vmatprep.subr.mxu0 0.0
    %6821 = vmatpush1.msra.mxu0 %v6788
    %6822 = vmatprep.subr.mxu0 0.0
    %6823 = vmatpush2.msra.mxu0 0.0
    %6824 = vmatprep.subr.mxu0 0.0
    %6825 = vmatpush2.msra.mxu0 0.0
    %6826 = vmatprep.subr.mxu0 0.0
    %6827 = vmatpush2.msra.mxu0 0.0
    %6828 = vmatprep.subr.mxu0 0.0
    %6829 = vmatpush2.msra.mxu0 0.0
    %6830 = vmatprep.subr.mxu0 0.0
    %6831 = vmatpush2.msra.mxu0 0.0
    %6832 = vmatprep.subr.mxu0 0.0
    %6833 = vmatpush2.msra.mxu0 0.0
    %6834 = vmatprep.subr.mxu0 0.0
    %6835 = vmatpush2.msra.mxu0 0.0
    %6836 = vmatprep.subr.mxu0 0.0
    %6837 = vmatpush2.msra.mxu0 0.0
    %6838 = vmatprep.subr.mxu0 0.0
    %6839 = vmatpush2.msra.mxu0 0.0
    %6840 = vmatprep.subr.mxu0 0.0
    %6841 = vmatpush2.msra.mxu0 0.0
    %6842 = vmatprep.subr.mxu0 0.0
    %6843 = vmatpush2.msra.mxu0 0.0
    %6844 = vmatprep.subr.mxu0 0.0
    %6845 = vmatpush2.msra.mxu0 0.0
    %6846 = vmatprep.subr.mxu0 0.0
    %6847 = vmatpush2.msra.mxu0 0.0
    %6848 = vmatprep.subr.mxu0 0.0
    %6849 = vmatpush2.msra.mxu0 0.0
    %6850 = vmatprep.subr.mxu0 0.0
    %6851 = vmatpush2.msra.mxu0 0.0
    %6852 = vmatprep.subr.mxu0 0.0
    %6853 = vmatpush2.msra.mxu0 0.0
    %6854 = vmatprep.mubr.f32.mxu0 0.0
    %6855 = vmatmul.mubr.f32.gmra.mxu0 %v532
    %v6856 = vpop.f32.mrf.mxu0
    %v6857 = vadd.f32 0.0, %v6856
    %v6858 = vpop.f32.mrf.mxu0
    %6859 = vmatprep.mubr.f32.mxu0 0.0
    %6860 = vmatmul.mubr.f32.gmra.mxu0 %v535
    %v6861 = vpop.f32.mrf.mxu0
    %v6862 = vadd.f32 0.0, %v6861
    %v6863 = vpop.f32.mrf.mxu0
    %6864 = vmatprep.mubr.f32.mxu0 0.0
    %6865 = vmatmul.mubr.f32.gmra.mxu0 %v538
    %v6866 = vpop.f32.mrf.mxu0
    %v6867 = vadd.f32 0.0, %v6866
    %v6868 = vpop.f32.mrf.mxu0
    %6869 = vmatprep.mubr.f32.mxu0 0.0
    %6870 = vmatmul.mubr.f32.gmra.mxu0 %v541
    %v6871 = vpop.f32.mrf.mxu0
    %v6872 = vadd.f32 0.0, %v6871
    %v6873 = vpop.f32.mrf.mxu0
    %6874 = vdwg.mxu0
    %v6875 = vmul.f32 %v6857, %v4684
    %v6876 = vmul.f32 %v6862, %v4686
    %v6877 = vmul.f32 %v6867, %v4688
    %v6878 = vmul.f32 %v6872, %v4690
    %6880 = vset.pattern.permute.xlu0 0
    %6881 = vperm.xlu0 %6880, %v6875
    %v6882 = vpop.permute.xlu0 %6881
    %6885 = vset.pattern.permute.xlu0 0
    %6886 = vperm.xlu0 %6885, %v6876
    %v6887 = vpop.permute.xlu0 %6886
    %6890 = vset.pattern.permute.xlu0 0
    %6891 = vperm.xlu0 %6890, %v6877
    %v6892 = vpop.permute.xlu0 %6891
    %6895 = vset.pattern.permute.xlu0 0
    %6896 = vperm.xlu0 %6895, %v6878
    %v6897 = vpop.permute.xlu0 %6896
    %v6899 = vmul.f32 %v6678, %v6882
    %v6900 = vmul.f32 %v6679, %v6887
    %v6901 = vmul.f32 %v6680, %v6892
    %v6902 = vmul.f32 %v6681, %v6897
    %v6903 = vadd.f32 %v6899, %v4725
    %v6904 = vadd.f32 %v6900, %v4729
    %v6905 = vadd.f32 %v6901, %v4733
    %v6906 = vadd.f32 %v6902, %v4737
    %6907 = vrot.lane.b32.xlu0 %v4307, 32
    %v6908 = vpop.permute.xlu0 %6907
    %6909 = vrot.lane.b32.xlu0 %v4308, 32
    %v6910 = vpop.permute.xlu0 %6909
    %6911 = vrot.lane.b32.xlu0 %v4309, 32
    %v6912 = vpop.permute.xlu0 %6911
    %6913 = vrot.lane.b32.xlu0 %v4310, 32
    %v6914 = vpop.permute.xlu0 %6913
    %v6919 = vsel %vm443, %v6908, 0.0
    %6920 = vadd.xlane.f32.xlu0 %v6919
    %v6921 = vpop.xlane.xlu0 %6920
    %v6922 = vsel %vm443, %v6910, 0.0
    %6923 = vadd.xlane.f32.xlu0 %v6922
    %v6924 = vpop.xlane.xlu0 %6923
    %v6925 = vsel %vm443, %v6912, 0.0
    %6926 = vadd.xlane.f32.xlu0 %v6925
    %v6927 = vpop.xlane.xlu0 %6926
    %v6928 = vsel %vm443, %v6914, 0.0
    %6929 = vadd.xlane.f32.xlu0 %v6928
    %v6930 = vpop.xlane.xlu0 %6929
    %6931 = vmatprep.subr.mxu0 0.0
    %6932 = vmatpush1.msra.mxu0 0.0
    %6933 = vmatprep.subr.mxu0 0.0
    %6934 = vmatpush1.msra.mxu0 0.0
    %6935 = vmatprep.subr.mxu0 0.0
    %6936 = vmatpush1.msra.mxu0 0.0
    %6937 = vmatprep.subr.mxu0 0.0
    %6938 = vmatpush1.msra.mxu0 0.0
    %6939 = vmatprep.subr.mxu0 0.0
    %6940 = vmatpush1.msra.mxu0 0.0
    %6941 = vmatprep.subr.mxu0 0.0
    %6942 = vmatpush1.msra.mxu0 0.0
    %6943 = vmatprep.subr.mxu0 0.0
    %6944 = vmatpush1.msra.mxu0 0.0
    %6945 = vmatprep.subr.mxu0 0.0
    %6946 = vmatpush1.msra.mxu0 0.0
    %6947 = vmatprep.subr.mxu0 0.0
    %6948 = vmatpush1.msra.mxu0 0.0
    %6949 = vmatprep.subr.mxu0 0.0
    %6950 = vmatpush1.msra.mxu0 0.0
    %6951 = vmatprep.subr.mxu0 0.0
    %6952 = vmatpush1.msra.mxu0 0.0
    %6953 = vmatprep.subr.mxu0 0.0
    %6954 = vmatpush1.msra.mxu0 0.0
    %6955 = vmatprep.subr.mxu0 0.0
    %6956 = vmatpush1.msra.mxu0 %v6930
    %6957 = vmatprep.subr.mxu0 0.0
    %6958 = vmatpush1.msra.mxu0 %v6927
    %6959 = vmatprep.subr.mxu0 0.0
    %6960 = vmatpush1.msra.mxu0 %v6924
    %6961 = vmatprep.subr.mxu0 0.0
    %6962 = vmatpush1.msra.mxu0 %v6921
    %6963 = vmatprep.subr.mxu0 0.0
    %6964 = vmatpush2.msra.mxu0 0.0
    %6965 = vmatprep.subr.mxu0 0.0
    %6966 = vmatpush2.msra.mxu0 0.0
    %6967 = vmatprep.subr.mxu0 0.0
    %6968 = vmatpush2.msra.mxu0 0.0
    %6969 = vmatprep.subr.mxu0 0.0
    %6970 = vmatpush2.msra.mxu0 0.0
    %6971 = vmatprep.subr.mxu0 0.0
    %6972 = vmatpush2.msra.mxu0 0.0
    %6973 = vmatprep.subr.mxu0 0.0
    %6974 = vmatpush2.msra.mxu0 0.0
    %6975 = vmatprep.subr.mxu0 0.0
    %6976 = vmatpush2.msra.mxu0 0.0
    %6977 = vmatprep.subr.mxu0 0.0
    %6978 = vmatpush2.msra.mxu0 0.0
    %6979 = vmatprep.subr.mxu0 0.0
    %6980 = vmatpush2.msra.mxu0 0.0
    %6981 = vmatprep.subr.mxu0 0.0
    %6982 = vmatpush2.msra.mxu0 0.0
    %6983 = vmatprep.subr.mxu0 0.0
    %6984 = vmatpush2.msra.mxu0 0.0
    %6985 = vmatprep.subr.mxu0 0.0
    %6986 = vmatpush2.msra.mxu0 0.0
    %6987 = vmatprep.subr.mxu0 0.0
    %6988 = vmatpush2.msra.mxu0 0.0
    %6989 = vmatprep.subr.mxu0 0.0
    %6990 = vmatpush2.msra.mxu0 0.0
    %6991 = vmatprep.subr.mxu0 0.0
    %6992 = vmatpush2.msra.mxu0 0.0
    %6993 = vmatprep.subr.mxu0 0.0
    %6994 = vmatpush2.msra.mxu0 0.0
    %6995 = vmatprep.mubr.f32.mxu0 0.0
    %6996 = vmatmul.mubr.f32.gmra.mxu0 %v457
    %v6997 = vpop.f32.mrf.mxu0
    %v6998 = vadd.f32 0.0, %v6997
    %v6999 = vpop.f32.mrf.mxu0
    %7000 = vdwg.mxu0
    %v7001 = vmul.f32 %v6998, 0.0078125
    %v7003 = vsel %vm543, %v7001, 0
    %7005 = vmatprep.subr.mxu0 0.0
    %7006 = vmatpush1.msra.mxu0 0.0
    %7007 = vmatprep.subr.mxu0 0.0
    %7008 = vmatpush1.msra.mxu0 0.0
    %7009 = vmatprep.subr.mxu0 0.0
    %7010 = vmatpush1.msra.mxu0 0.0
    %7011 = vmatprep.subr.mxu0 0.0
    %7012 = vmatpush1.msra.mxu0 0.0
    %7013 = vmatprep.subr.mxu0 0.0
    %7014 = vmatpush1.msra.mxu0 0.0
    %7015 = vmatprep.subr.mxu0 0.0
    %7016 = vmatpush1.msra.mxu0 0.0
    %7017 = vmatprep.subr.mxu0 0.0
    %7018 = vmatpush1.msra.mxu0 0.0
    %7019 = vmatprep.subr.mxu0 0.0
    %7020 = vmatpush1.msra.mxu0 0.0
    %7021 = vmatprep.subr.mxu0 0.0
    %7022 = vmatpush1.msra.mxu0 0.0
    %7023 = vmatprep.subr.mxu0 0.0
    %7024 = vmatpush1.msra.mxu0 0.0
    %7025 = vmatprep.subr.mxu0 0.0
    %7026 = vmatpush1.msra.mxu0 0.0
    %7027 = vmatprep.subr.mxu0 0.0
    %7028 = vmatpush1.msra.mxu0 0.0
    %7029 = vmatprep.subr.mxu0 0.0
    %7030 = vmatpush1.msra.mxu0 0.0
    %7031 = vmatprep.subr.mxu0 0.0
    %7032 = vmatpush1.msra.mxu0 0.0
    %7033 = vmatprep.subr.mxu0 0.0
    %7034 = vmatpush1.msra.mxu0 0.0
    %7035 = vmatprep.subr.mxu0 0.0
    %7036 = vmatpush1.msra.mxu0 %v7003
    %7037 = vmatprep.subr.mxu0 0.0
    %7038 = vmatpush2.msra.mxu0 0.0
    %7039 = vmatprep.subr.mxu0 0.0
    %7040 = vmatpush2.msra.mxu0 0.0
    %7041 = vmatprep.subr.mxu0 0.0
    %7042 = vmatpush2.msra.mxu0 0.0
    %7043 = vmatprep.subr.mxu0 0.0
    %7044 = vmatpush2.msra.mxu0 0.0
    %7045 = vmatprep.subr.mxu0 0.0
    %7046 = vmatpush2.msra.mxu0 0.0
    %7047 = vmatprep.subr.mxu0 0.0
    %7048 = vmatpush2.msra.mxu0 0.0
    %7049 = vmatprep.subr.mxu0 0.0
    %7050 = vmatpush2.msra.mxu0 0.0
    %7051 = vmatprep.subr.mxu0 0.0
    %7052 = vmatpush2.msra.mxu0 0.0
    %7053 = vmatprep.subr.mxu0 0.0
    %7054 = vmatpush2.msra.mxu0 0.0
    %7055 = vmatprep.subr.mxu0 0.0
    %7056 = vmatpush2.msra.mxu0 0.0
    %7057 = vmatprep.subr.mxu0 0.0
    %7058 = vmatpush2.msra.mxu0 0.0
    %7059 = vmatprep.subr.mxu0 0.0
    %7060 = vmatpush2.msra.mxu0 0.0
    %7061 = vmatprep.subr.mxu0 0.0
    %7062 = vmatpush2.msra.mxu0 0.0
    %7063 = vmatprep.subr.mxu0 0.0
    %7064 = vmatpush2.msra.mxu0 0.0
    %7065 = vmatprep.subr.mxu0 0.0
    %7066 = vmatpush2.msra.mxu0 0.0
    %7067 = vmatprep.subr.mxu0 0.0
    %7068 = vmatpush2.msra.mxu0 0.0
    %7069 = vmatprep.mubr.f32.mxu0 0.0
    %7070 = vmatmul.mubr.f32.gmra.mxu0 %v532
    %v7071 = vpop.f32.mrf.mxu0
    %v7072 = vadd.f32 0.0, %v7071
    %v7073 = vpop.f32.mrf.mxu0
    %7074 = vmatprep.mubr.f32.mxu0 0.0
    %7075 = vmatmul.mubr.f32.gmra.mxu0 %v535
    %v7076 = vpop.f32.mrf.mxu0
    %v7077 = vadd.f32 0.0, %v7076
    %v7078 = vpop.f32.mrf.mxu0
    %7079 = vmatprep.mubr.f32.mxu0 0.0
    %7080 = vmatmul.mubr.f32.gmra.mxu0 %v538
    %v7081 = vpop.f32.mrf.mxu0
    %v7082 = vadd.f32 0.0, %v7081
    %v7083 = vpop.f32.mrf.mxu0
    %7084 = vmatprep.mubr.f32.mxu0 0.0
    %7085 = vmatmul.mubr.f32.gmra.mxu0 %v541
    %v7086 = vpop.f32.mrf.mxu0
    %v7087 = vadd.f32 0.0, %v7086
    %v7088 = vpop.f32.mrf.mxu0
    %7089 = vdwg.mxu0
    %7091 = vset.pattern.permute.xlu0 0
    %7092 = vperm.xlu0 %7091, %v7072
    %v7093 = vpop.permute.xlu0 %7092
    %7096 = vset.pattern.permute.xlu0 0
    %7097 = vperm.xlu0 %7096, %v7077
    %v7098 = vpop.permute.xlu0 %7097
    %7101 = vset.pattern.permute.xlu0 0
    %7102 = vperm.xlu0 %7101, %v7082
    %v7103 = vpop.permute.xlu0 %7102
    %7106 = vset.pattern.permute.xlu0 0
    %7107 = vperm.xlu0 %7106, %v7087
    %v7108 = vpop.permute.xlu0 %7107
    %v7110 = vsub.f32 %v4307, %v7093
    %v7111 = vsub.f32 %v4308, %v7098
    %v7112 = vsub.f32 %v4309, %v7103
    %v7113 = vsub.f32 %v4310, %v7108
    %v7114 = vmul.f32 %v7110, %v7110
    %v7115 = vmul.f32 %v7111, %v7111
    %v7116 = vmul.f32 %v7112, %v7112
    %v7117 = vmul.f32 %v7113, %v7113
    %7122 = vrot.lane.b32.xlu0 %v7114, 32
    %v7123 = vpop.permute.xlu0 %7122
    %7124 = vrot.lane.b32.xlu0 %v7115, 32
    %v7125 = vpop.permute.xlu0 %7124
    %7126 = vrot.lane.b32.xlu0 %v7116, 32
    %v7127 = vpop.permute.xlu0 %7126
    %7128 = vrot.lane.b32.xlu0 %v7117, 32
    %v7129 = vpop.permute.xlu0 %7128
    %v7134 = vsel %vm443, %v7123, 0.0
    %7135 = vadd.xlane.f32.xlu0 %v7134
    %v7136 = vpop.xlane.xlu0 %7135
    %v7137 = vsel %vm443, %v7125, 0.0
    %7138 = vadd.xlane.f32.xlu0 %v7137
    %v7139 = vpop.xlane.xlu0 %7138
    %v7140 = vsel %vm443, %v7127, 0.0
    %7141 = vadd.xlane.f32.xlu0 %v7140
    %v7142 = vpop.xlane.xlu0 %7141
    %v7143 = vsel %vm443, %v7129, 0.0
    %7144 = vadd.xlane.f32.xlu0 %v7143
    %v7145 = vpop.xlane.xlu0 %7144
    %7146 = vmatprep.subr.mxu0 0.0
    %7147 = vmatpush1.msra.mxu0 0.0
    %7148 = vmatprep.subr.mxu0 0.0
    %7149 = vmatpush1.msra.mxu0 0.0
    %7150 = vmatprep.subr.mxu0 0.0
    %7151 = vmatpush1.msra.mxu0 0.0
    %7152 = vmatprep.subr.mxu0 0.0
    %7153 = vmatpush1.msra.mxu0 0.0
    %7154 = vmatprep.subr.mxu0 0.0
    %7155 = vmatpush1.msra.mxu0 0.0
    %7156 = vmatprep.subr.mxu0 0.0
    %7157 = vmatpush1.msra.mxu0 0.0
    %7158 = vmatprep.subr.mxu0 0.0
    %7159 = vmatpush1.msra.mxu0 0.0
    %7160 = vmatprep.subr.mxu0 0.0
    %7161 = vmatpush1.msra.mxu0 0.0
    %7162 = vmatprep.subr.mxu0 0.0
    %7163 = vmatpush1.msra.mxu0 0.0
    %7164 = vmatprep.subr.mxu0 0.0
    %7165 = vmatpush1.msra.mxu0 0.0
    %7166 = vmatprep.subr.mxu0 0.0
    %7167 = vmatpush1.msra.mxu0 0.0
    %7168 = vmatprep.subr.mxu0 0.0
    %7169 = vmatpush1.msra.mxu0 0.0
    %7170 = vmatprep.subr.mxu0 0.0
    %7171 = vmatpush1.msra.mxu0 %v7145
    %7172 = vmatprep.subr.mxu0 0.0
    %7173 = vmatpush1.msra.mxu0 %v7142
    %7174 = vmatprep.subr.mxu0 0.0
    %7175 = vmatpush1.msra.mxu0 %v7139
    %7176 = vmatprep.subr.mxu0 0.0
    %7177 = vmatpush1.msra.mxu0 %v7136
    %7178 = vmatprep.subr.mxu0 0.0
    %7179 = vmatpush2.msra.mxu0 0.0
    %7180 = vmatprep.subr.mxu0 0.0
    %7181 = vmatpush2.msra.mxu0 0.0
    %7182 = vmatprep.subr.mxu0 0.0
    %7183 = vmatpush2.msra.mxu0 0.0
    %7184 = vmatprep.subr.mxu0 0.0
    %7185 = vmatpush2.msra.mxu0 0.0
    %7186 = vmatprep.subr.mxu0 0.0
    %7187 = vmatpush2.msra.mxu0 0.0
    %7188 = vmatprep.subr.mxu0 0.0
    %7189 = vmatpush2.msra.mxu0 0.0
    %7190 = vmatprep.subr.mxu0 0.0
    %7191 = vmatpush2.msra.mxu0 0.0
    %7192 = vmatprep.subr.mxu0 0.0
    %7193 = vmatpush2.msra.mxu0 0.0
    %7194 = vmatprep.subr.mxu0 0.0
    %7195 = vmatpush2.msra.mxu0 0.0
    %7196 = vmatprep.subr.mxu0 0.0
    %7197 = vmatpush2.msra.mxu0 0.0
    %7198 = vmatprep.subr.mxu0 0.0
    %7199 = vmatpush2.msra.mxu0 0.0
    %7200 = vmatprep.subr.mxu0 0.0
    %7201 = vmatpush2.msra.mxu0 0.0
    %7202 = vmatprep.subr.mxu0 0.0
    %7203 = vmatpush2.msra.mxu0 0.0
    %7204 = vmatprep.subr.mxu0 0.0
    %7205 = vmatpush2.msra.mxu0 0.0
    %7206 = vmatprep.subr.mxu0 0.0
    %7207 = vmatpush2.msra.mxu0 0.0
    %7208 = vmatprep.subr.mxu0 0.0
    %7209 = vmatpush2.msra.mxu0 0.0
    %7210 = vmatprep.mubr.f32.mxu0 0.0
    %7211 = vmatmul.mubr.f32.gmra.mxu0 %v457
    %v7212 = vpop.f32.mrf.mxu0
    %v7213 = vadd.f32 0.0, %v7212
    %v7214 = vpop.f32.mrf.mxu0
    %7215 = vdwg.mxu0
    %v7216 = vmul.f32 %v7213, 0.0078125
    %v7217 = vadd.f32 %v7216, 1e-05
    %v7218 = vrsqrt.pop %v7217
    %v7220 = vsel %vm543, %v7218, 0
    %7222 = vmatprep.subr.mxu0 0.0
    %7223 = vmatpush1.msra.mxu0 0.0
    %7224 = vmatprep.subr.mxu0 0.0
    %7225 = vmatpush1.msra.mxu0 0.0
    %7226 = vmatprep.subr.mxu0 0.0
    %7227 = vmatpush1.msra.mxu0 0.0
    %7228 = vmatprep.subr.mxu0 0.0
    %7229 = vmatpush1.msra.mxu0 0.0
    %7230 = vmatprep.subr.mxu0 0.0
    %7231 = vmatpush1.msra.mxu0 0.0
    %7232 = vmatprep.subr.mxu0 0.0
    %7233 = vmatpush1.msra.mxu0 0.0
    %7234 = vmatprep.subr.mxu0 0.0
    %7235 = vmatpush1.msra.mxu0 0.0
    %7236 = vmatprep.subr.mxu0 0.0
    %7237 = vmatpush1.msra.mxu0 0.0
    %7238 = vmatprep.subr.mxu0 0.0
    %7239 = vmatpush1.msra.mxu0 0.0
    %7240 = vmatprep.subr.mxu0 0.0
    %7241 = vmatpush1.msra.mxu0 0.0
    %7242 = vmatprep.subr.mxu0 0.0
    %7243 = vmatpush1.msra.mxu0 0.0
    %7244 = vmatprep.subr.mxu0 0.0
    %7245 = vmatpush1.msra.mxu0 0.0
    %7246 = vmatprep.subr.mxu0 0.0
    %7247 = vmatpush1.msra.mxu0 0.0
    %7248 = vmatprep.subr.mxu0 0.0
    %7249 = vmatpush1.msra.mxu0 0.0
    %7250 = vmatprep.subr.mxu0 0.0
    %7251 = vmatpush1.msra.mxu0 0.0
    %7252 = vmatprep.subr.mxu0 0.0
    %7253 = vmatpush1.msra.mxu0 %v7220
    %7254 = vmatprep.subr.mxu0 0.0
    %7255 = vmatpush2.msra.mxu0 0.0
    %7256 = vmatprep.subr.mxu0 0.0
    %7257 = vmatpush2.msra.mxu0 0.0
    %7258 = vmatprep.subr.mxu0 0.0
    %7259 = vmatpush2.msra.mxu0 0.0
    %7260 = vmatprep.subr.mxu0 0.0
    %7261 = vmatpush2.msra.mxu0 0.0
    %7262 = vmatprep.subr.mxu0 0.0
    %7263 = vmatpush2.msra.mxu0 0.0
    %7264 = vmatprep.subr.mxu0 0.0
    %7265 = vmatpush2.msra.mxu0 0.0
    %7266 = vmatprep.subr.mxu0 0.0
    %7267 = vmatpush2.msra.mxu0 0.0
    %7268 = vmatprep.subr.mxu0 0.0
    %7269 = vmatpush2.msra.mxu0 0.0
    %7270 = vmatprep.subr.mxu0 0.0
    %7271 = vmatpush2.msra.mxu0 0.0
    %7272 = vmatprep.subr.mxu0 0.0
    %7273 = vmatpush2.msra.mxu0 0.0
    %7274 = vmatprep.subr.mxu0 0.0
    %7275 = vmatpush2.msra.mxu0 0.0
    %7276 = vmatprep.subr.mxu0 0.0
    %7277 = vmatpush2.msra.mxu0 0.0
    %7278 = vmatprep.subr.mxu0 0.0
    %7279 = vmatpush2.msra.mxu0 0.0
    %7280 = vmatprep.subr.mxu0 0.0
    %7281 = vmatpush2.msra.mxu0 0.0
    %7282 = vmatprep.subr.mxu0 0.0
    %7283 = vmatpush2.msra.mxu0 0.0
    %7284 = vmatprep.subr.mxu0 0.0
    %7285 = vmatpush2.msra.mxu0 0.0
    %7286 = vmatprep.mubr.f32.mxu0 0.0
    %7287 = vmatmul.mubr.f32.gmra.mxu0 %v532
    %v7288 = vpop.f32.mrf.mxu0
    %v7289 = vadd.f32 0.0, %v7288
    %v7290 = vpop.f32.mrf.mxu0
    %7291 = vmatprep.mubr.f32.mxu0 0.0
    %7292 = vmatmul.mubr.f32.gmra.mxu0 %v535
    %v7293 = vpop.f32.mrf.mxu0
    %v7294 = vadd.f32 0.0, %v7293
    %v7295 = vpop.f32.mrf.mxu0
    %7296 = vmatprep.mubr.f32.mxu0 0.0
    %7297 = vmatmul.mubr.f32.gmra.mxu0 %v538
    %v7298 = vpop.f32.mrf.mxu0
    %v7299 = vadd.f32 0.0, %v7298
    %v7300 = vpop.f32.mrf.mxu0
    %7301 = vmatprep.mubr.f32.mxu0 0.0
    %7302 = vmatmul.mubr.f32.gmra.mxu0 %v541
    %v7303 = vpop.f32.mrf.mxu0
    %v7304 = vadd.f32 0.0, %v7303
    %v7305 = vpop.f32.mrf.mxu0
    %7306 = vdwg.mxu0
    %v7307 = vmul.f32 %v7289, %v4684
    %v7308 = vmul.f32 %v7294, %v4686
    %v7309 = vmul.f32 %v7299, %v4688
    %v7310 = vmul.f32 %v7304, %v4690
    %7312 = vset.pattern.permute.xlu0 0
    %7313 = vperm.xlu0 %7312, %v7307
    %v7314 = vpop.permute.xlu0 %7313
    %7317 = vset.pattern.permute.xlu0 0
    %7318 = vperm.xlu0 %7317, %v7308
    %v7319 = vpop.permute.xlu0 %7318
    %7322 = vset.pattern.permute.xlu0 0
    %7323 = vperm.xlu0 %7322, %v7309
    %v7324 = vpop.permute.xlu0 %7323
    %7327 = vset.pattern.permute.xlu0 0
    %7328 = vperm.xlu0 %7327, %v7310
    %v7329 = vpop.permute.xlu0 %7328
    %v7331 = vmul.f32 %v7110, %v7314
    %v7332 = vmul.f32 %v7111, %v7319
    %v7333 = vmul.f32 %v7112, %v7324
    %v7334 = vmul.f32 %v7113, %v7329
    %v7335 = vadd.f32 %v7331, %v4725
    %v7336 = vadd.f32 %v7332, %v4729
    %v7337 = vadd.f32 %v7333, %v4733
    %v7338 = vadd.f32 %v7334, %v4737
    %7339 = vrot.lane.b32.xlu0 %v4307, 16
    %v7340 = vpop.permute.xlu0 %7339
    %7341 = vrot.lane.b32.xlu0 %v4308, 16
    %v7342 = vpop.permute.xlu0 %7341
    %7343 = vrot.lane.b32.xlu0 %v4309, 16
    %v7344 = vpop.permute.xlu0 %7343
    %7345 = vrot.lane.b32.xlu0 %v4310, 16
    %v7346 = vpop.permute.xlu0 %7345
    %v7351 = vsel %vm443, %v7340, 0.0
    %7352 = vadd.xlane.f32.xlu0 %v7351
    %v7353 = vpop.xlane.xlu0 %7352
    %v7354 = vsel %vm443, %v7342, 0.0
    %7355 = vadd.xlane.f32.xlu0 %v7354
    %v7356 = vpop.xlane.xlu0 %7355
    %v7357 = vsel %vm443, %v7344, 0.0
    %7358 = vadd.xlane.f32.xlu0 %v7357
    %v7359 = vpop.xlane.xlu0 %7358
    %v7360 = vsel %vm443, %v7346, 0.0
    %7361 = vadd.xlane.f32.xlu0 %v7360
    %v7362 = vpop.xlane.xlu0 %7361
    %7363 = vmatprep.subr.mxu0 0.0
    %7364 = vmatpush1.msra.mxu0 0.0
    %7365 = vmatprep.subr.mxu0 0.0
    %7366 = vmatpush1.msra.mxu0 0.0
    %7367 = vmatprep.subr.mxu0 0.0
    %7368 = vmatpush1.msra.mxu0 0.0
    %7369 = vmatprep.subr.mxu0 0.0
    %7370 = vmatpush1.msra.mxu0 0.0
    %7371 = vmatprep.subr.mxu0 0.0
    %7372 = vmatpush1.msra.mxu0 0.0
    %7373 = vmatprep.subr.mxu0 0.0
    %7374 = vmatpush1.msra.mxu0 0.0
    %7375 = vmatprep.subr.mxu0 0.0
    %7376 = vmatpush1.msra.mxu0 0.0
    %7377 = vmatprep.subr.mxu0 0.0
    %7378 = vmatpush1.msra.mxu0 0.0
    %7379 = vmatprep.subr.mxu0 0.0
    %7380 = vmatpush1.msra.mxu0 0.0
    %7381 = vmatprep.subr.mxu0 0.0
    %7382 = vmatpush1.msra.mxu0 0.0
    %7383 = vmatprep.subr.mxu0 0.0
    %7384 = vmatpush1.msra.mxu0 0.0
    %7385 = vmatprep.subr.mxu0 0.0
    %7386 = vmatpush1.msra.mxu0 0.0
    %7387 = vmatprep.subr.mxu0 0.0
    %7388 = vmatpush1.msra.mxu0 %v7362
    %7389 = vmatprep.subr.mxu0 0.0
    %7390 = vmatpush1.msra.mxu0 %v7359
    %7391 = vmatprep.subr.mxu0 0.0
    %7392 = vmatpush1.msra.mxu0 %v7356
    %7393 = vmatprep.subr.mxu0 0.0
    %7394 = vmatpush1.msra.mxu0 %v7353
    %7395 = vmatprep.subr.mxu0 0.0
    %7396 = vmatpush2.msra.mxu0 0.0
    %7397 = vmatprep.subr.mxu0 0.0
    %7398 = vmatpush2.msra.mxu0 0.0
    %7399 = vmatprep.subr.mxu0 0.0
    %7400 = vmatpush2.msra.mxu0 0.0
    %7401 = vmatprep.subr.mxu0 0.0
    %7402 = vmatpush2.msra.mxu0 0.0
    %7403 = vmatprep.subr.mxu0 0.0
    %7404 = vmatpush2.msra.mxu0 0.0
    %7405 = vmatprep.subr.mxu0 0.0
    %7406 = vmatpush2.msra.mxu0 0.0
    %7407 = vmatprep.subr.mxu0 0.0
    %7408 = vmatpush2.msra.mxu0 0.0
    %7409 = vmatprep.subr.mxu0 0.0
    %7410 = vmatpush2.msra.mxu0 0.0
    %7411 = vmatprep.subr.mxu0 0.0
    %7412 = vmatpush2.msra.mxu0 0.0
    %7413 = vmatprep.subr.mxu0 0.0
    %7414 = vmatpush2.msra.mxu0 0.0
    %7415 = vmatprep.subr.mxu0 0.0
    %7416 = vmatpush2.msra.mxu0 0.0
    %7417 = vmatprep.subr.mxu0 0.0
    %7418 = vmatpush2.msra.mxu0 0.0
    %7419 = vmatprep.subr.mxu0 0.0
    %7420 = vmatpush2.msra.mxu0 0.0
    %7421 = vmatprep.subr.mxu0 0.0
    %7422 = vmatpush2.msra.mxu0 0.0
    %7423 = vmatprep.subr.mxu0 0.0
    %7424 = vmatpush2.msra.mxu0 0.0
    %7425 = vmatprep.subr.mxu0 0.0
    %7426 = vmatpush2.msra.mxu0 0.0
    %7427 = vmatprep.mubr.f32.mxu0 0.0
    %7428 = vmatmul.mubr.f32.gmra.mxu0 %v457
    %v7429 = vpop.f32.mrf.mxu0
    %v7430 = vadd.f32 0.0, %v7429
    %v7431 = vpop.f32.mrf.mxu0
    %7432 = vdwg.mxu0
    %v7433 = vmul.f32 %v7430, 0.0078125
    %v7435 = vsel %vm543, %v7433, 0
    %7437 = vmatprep.subr.mxu0 0.0
    %7438 = vmatpush1.msra.mxu0 0.0
    %7439 = vmatprep.subr.mxu0 0.0
    %7440 = vmatpush1.msra.mxu0 0.0
    %7441 = vmatprep.subr.mxu0 0.0
    %7442 = vmatpush1.msra.mxu0 0.0
    %7443 = vmatprep.subr.mxu0 0.0
    %7444 = vmatpush1.msra.mxu0 0.0
    %7445 = vmatprep.subr.mxu0 0.0
    %7446 = vmatpush1.msra.mxu0 0.0
    %7447 = vmatprep.subr.mxu0 0.0
    %7448 = vmatpush1.msra.mxu0 0.0
    %7449 = vmatprep.subr.mxu0 0.0
    %7450 = vmatpush1.msra.mxu0 0.0
    %7451 = vmatprep.subr.mxu0 0.0
    %7452 = vmatpush1.msra.mxu0 0.0
    %7453 = vmatprep.subr.mxu0 0.0
    %7454 = vmatpush1.msra.mxu0 0.0
    %7455 = vmatprep.subr.mxu0 0.0
    %7456 = vmatpush1.msra.mxu0 0.0
    %7457 = vmatprep.subr.mxu0 0.0
    %7458 = vmatpush1.msra.mxu0 0.0
    %7459 = vmatprep.subr.mxu0 0.0
    %7460 = vmatpush1.msra.mxu0 0.0
    %7461 = vmatprep.subr.mxu0 0.0
    %7462 = vmatpush1.msra.mxu0 0.0
    %7463 = vmatprep.subr.mxu0 0.0
    %7464 = vmatpush1.msra.mxu0 0.0
    %7465 = vmatprep.subr.mxu0 0.0
    %7466 = vmatpush1.msra.mxu0 0.0
    %7467 = vmatprep.subr.mxu0 0.0
    %7468 = vmatpush1.msra.mxu0 %v7435
    %7469 = vmatprep.subr.mxu0 0.0
    %7470 = vmatpush2.msra.mxu0 0.0
    %7471 = vmatprep.subr.mxu0 0.0
    %7472 = vmatpush2.msra.mxu0 0.0
    %7473 = vmatprep.subr.mxu0 0.0
    %7474 = vmatpush2.msra.mxu0 0.0
    %7475 = vmatprep.subr.mxu0 0.0
    %7476 = vmatpush2.msra.mxu0 0.0
    %7477 = vmatprep.subr.mxu0 0.0
    %7478 = vmatpush2.msra.mxu0 0.0
    %7479 = vmatprep.subr.mxu0 0.0
    %7480 = vmatpush2.msra.mxu0 0.0
    %7481 = vmatprep.subr.mxu0 0.0
    %7482 = vmatpush2.msra.mxu0 0.0
    %7483 = vmatprep.subr.mxu0 0.0
    %7484 = vmatpush2.msra.mxu0 0.0
    %7485 = vmatprep.subr.mxu0 0.0
    %7486 = vmatpush2.msra.mxu0 0.0
    %7487 = vmatprep.subr.mxu0 0.0
    %7488 = vmatpush2.msra.mxu0 0.0
    %7489 = vmatprep.subr.mxu0 0.0
    %7490 = vmatpush2.msra.mxu0 0.0
    %7491 = vmatprep.subr.mxu0 0.0
    %7492 = vmatpush2.msra.mxu0 0.0
    %7493 = vmatprep.subr.mxu0 0.0
    %7494 = vmatpush2.msra.mxu0 0.0
    %7495 = vmatprep.subr.mxu0 0.0
    %7496 = vmatpush2.msra.mxu0 0.0
    %7497 = vmatprep.subr.mxu0 0.0
    %7498 = vmatpush2.msra.mxu0 0.0
    %7499 = vmatprep.subr.mxu0 0.0
    %7500 = vmatpush2.msra.mxu0 0.0
    %7501 = vmatprep.mubr.f32.mxu0 0.0
    %7502 = vmatmul.mubr.f32.gmra.mxu0 %v532
    %v7503 = vpop.f32.mrf.mxu0
    %v7504 = vadd.f32 0.0, %v7503
    %v7505 = vpop.f32.mrf.mxu0
    %7506 = vmatprep.mubr.f32.mxu0 0.0
    %7507 = vmatmul.mubr.f32.gmra.mxu0 %v535
    %v7508 = vpop.f32.mrf.mxu0
    %v7509 = vadd.f32 0.0, %v7508
    %v7510 = vpop.f32.mrf.mxu0
    %7511 = vmatprep.mubr.f32.mxu0 0.0
    %7512 = vmatmul.mubr.f32.gmra.mxu0 %v538
    %v7513 = vpop.f32.mrf.mxu0
    %v7514 = vadd.f32 0.0, %v7513
    %v7515 = vpop.f32.mrf.mxu0
    %7516 = vmatprep.mubr.f32.mxu0 0.0
    %7517 = vmatmul.mubr.f32.gmra.mxu0 %v541
    %v7518 = vpop.f32.mrf.mxu0
    %v7519 = vadd.f32 0.0, %v7518
    %v7520 = vpop.f32.mrf.mxu0
    %7521 = vdwg.mxu0
    %7523 = vset.pattern.permute.xlu0 0
    %7524 = vperm.xlu0 %7523, %v7504
    %v7525 = vpop.permute.xlu0 %7524
    %7528 = vset.pattern.permute.xlu0 0
    %7529 = vperm.xlu0 %7528, %v7509
    %v7530 = vpop.permute.xlu0 %7529
    %7533 = vset.pattern.permute.xlu0 0
    %7534 = vperm.xlu0 %7533, %v7514
    %v7535 = vpop.permute.xlu0 %7534
    %7538 = vset.pattern.permute.xlu0 0
    %7539 = vperm.xlu0 %7538, %v7519
    %v7540 = vpop.permute.xlu0 %7539
    %v7542 = vsub.f32 %v4307, %v7525
    %v7543 = vsub.f32 %v4308, %v7530
    %v7544 = vsub.f32 %v4309, %v7535
    %v7545 = vsub.f32 %v4310, %v7540
    %v7546 = vmul.f32 %v7542, %v7542
    %v7547 = vmul.f32 %v7543, %v7543
    %v7548 = vmul.f32 %v7544, %v7544
    %v7549 = vmul.f32 %v7545, %v7545
    %7554 = vrot.lane.b32.xlu0 %v7546, 16
    %v7555 = vpop.permute.xlu0 %7554
    %7556 = vrot.lane.b32.xlu0 %v7547, 16
    %v7557 = vpop.permute.xlu0 %7556
    %7558 = vrot.lane.b32.xlu0 %v7548, 16
    %v7559 = vpop.permute.xlu0 %7558
    %7560 = vrot.lane.b32.xlu0 %v7549, 16
    %v7561 = vpop.permute.xlu0 %7560
    %v7566 = vsel %vm443, %v7555, 0.0
    %7567 = vadd.xlane.f32.xlu0 %v7566
    %v7568 = vpop.xlane.xlu0 %7567
    %v7569 = vsel %vm443, %v7557, 0.0
    %7570 = vadd.xlane.f32.xlu0 %v7569
    %v7571 = vpop.xlane.xlu0 %7570
    %v7572 = vsel %vm443, %v7559, 0.0
    %7573 = vadd.xlane.f32.xlu0 %v7572
    %v7574 = vpop.xlane.xlu0 %7573
    %v7575 = vsel %vm443, %v7561, 0.0
    %7576 = vadd.xlane.f32.xlu0 %v7575
    %v7577 = vpop.xlane.xlu0 %7576
    %7578 = vmatprep.subr.mxu0 0.0
    %7579 = vmatpush1.msra.mxu0 0.0
    %7580 = vmatprep.subr.mxu0 0.0
    %7581 = vmatpush1.msra.mxu0 0.0
    %7582 = vmatprep.subr.mxu0 0.0
    %7583 = vmatpush1.msra.mxu0 0.0
    %7584 = vmatprep.subr.mxu0 0.0
    %7585 = vmatpush1.msra.mxu0 0.0
    %7586 = vmatprep.subr.mxu0 0.0
    %7587 = vmatpush1.msra.mxu0 0.0
    %7588 = vmatprep.subr.mxu0 0.0
    %7589 = vmatpush1.msra.mxu0 0.0
    %7590 = vmatprep.subr.mxu0 0.0
    %7591 = vmatpush1.msra.mxu0 0.0
    %7592 = vmatprep.subr.mxu0 0.0
    %7593 = vmatpush1.msra.mxu0 0.0
    %7594 = vmatprep.subr.mxu0 0.0
    %7595 = vmatpush1.msra.mxu0 0.0
    %7596 = vmatprep.subr.mxu0 0.0
    %7597 = vmatpush1.msra.mxu0 0.0
    %7598 = vmatprep.subr.mxu0 0.0
    %7599 = vmatpush1.msra.mxu0 0.0
    %7600 = vmatprep.subr.mxu0 0.0
    %7601 = vmatpush1.msra.mxu0 0.0
    %7602 = vmatprep.subr.mxu0 0.0
    %7603 = vmatpush1.msra.mxu0 %v7577
    %7604 = vmatprep.subr.mxu0 0.0
    %7605 = vmatpush1.msra.mxu0 %v7574
    %7606 = vmatprep.subr.mxu0 0.0
    %7607 = vmatpush1.msra.mxu0 %v7571
    %7608 = vmatprep.subr.mxu0 0.0
    %7609 = vmatpush1.msra.mxu0 %v7568
    %7610 = vmatprep.subr.mxu0 0.0
    %7611 = vmatpush2.msra.mxu0 0.0
    %7612 = vmatprep.subr.mxu0 0.0
    %7613 = vmatpush2.msra.mxu0 0.0
    %7614 = vmatprep.subr.mxu0 0.0
    %7615 = vmatpush2.msra.mxu0 0.0
    %7616 = vmatprep.subr.mxu0 0.0
    %7617 = vmatpush2.msra.mxu0 0.0
    %7618 = vmatprep.subr.mxu0 0.0
    %7619 = vmatpush2.msra.mxu0 0.0
    %7620 = vmatprep.subr.mxu0 0.0
    %7621 = vmatpush2.msra.mxu0 0.0
    %7622 = vmatprep.subr.mxu0 0.0
    %7623 = vmatpush2.msra.mxu0 0.0
    %7624 = vmatprep.subr.mxu0 0.0
    %7625 = vmatpush2.msra.mxu0 0.0
    %7626 = vmatprep.subr.mxu0 0.0
    %7627 = vmatpush2.msra.mxu0 0.0
    %7628 = vmatprep.subr.mxu0 0.0
    %7629 = vmatpush2.msra.mxu0 0.0
    %7630 = vmatprep.subr.mxu0 0.0
    %7631 = vmatpush2.msra.mxu0 0.0
    %7632 = vmatprep.subr.mxu0 0.0
    %7633 = vmatpush2.msra.mxu0 0.0
    %7634 = vmatprep.subr.mxu0 0.0
    %7635 = vmatpush2.msra.mxu0 0.0
    %7636 = vmatprep.subr.mxu0 0.0
    %7637 = vmatpush2.msra.mxu0 0.0
    %7638 = vmatprep.subr.mxu0 0.0
    %7639 = vmatpush2.msra.mxu0 0.0
    %7640 = vmatprep.subr.mxu0 0.0
    %7641 = vmatpush2.msra.mxu0 0.0
    %7642 = vmatprep.mubr.f32.mxu0 0.0
    %7643 = vmatmul.mubr.f32.gmra.mxu0 %v457
    %v7644 = vpop.f32.mrf.mxu0
    %v7645 = vadd.f32 0.0, %v7644
    %v7646 = vpop.f32.mrf.mxu0
    %7647 = vdwg.mxu0
    %v7648 = vmul.f32 %v7645, 0.0078125
    %v7649 = vadd.f32 %v7648, 1e-05
    %v7650 = vrsqrt.pop %v7649
    %v7652 = vsel %vm543, %v7650, 0
    %7654 = vmatprep.subr.mxu0 0.0
    %7655 = vmatpush1.msra.mxu0 0.0
    %7656 = vmatprep.subr.mxu0 0.0
    %7657 = vmatpush1.msra.mxu0 0.0
    %7658 = vmatprep.subr.mxu0 0.0
    %7659 = vmatpush1.msra.mxu0 0.0
    %7660 = vmatprep.subr.mxu0 0.0
    %7661 = vmatpush1.msra.mxu0 0.0
    %7662 = vmatprep.subr.mxu0 0.0
    %7663 = vmatpush1.msra.mxu0 0.0
    %7664 = vmatprep.subr.mxu0 0.0
    %7665 = vmatpush1.msra.mxu0 0.0
    %7666 = vmatprep.subr.mxu0 0.0
    %7667 = vmatpush1.msra.mxu0 0.0
    %7668 = vmatprep.subr.mxu0 0.0
    %7669 = vmatpush1.msra.mxu0 0.0
    %7670 = vmatprep.subr.mxu0 0.0
    %7671 = vmatpush1.msra.mxu0 0.0
    %7672 = vmatprep.subr.mxu0 0.0
    %7673 = vmatpush1.msra.mxu0 0.0
    %7674 = vmatprep.subr.mxu0 0.0
    %7675 = vmatpush1.msra.mxu0 0.0
    %7676 = vmatprep.subr.mxu0 0.0
    %7677 = vmatpush1.msra.mxu0 0.0
    %7678 = vmatprep.subr.mxu0 0.0
    %7679 = vmatpush1.msra.mxu0 0.0
    %7680 = vmatprep.subr.mxu0 0.0
    %7681 = vmatpush1.msra.mxu0 0.0
    %7682 = vmatprep.subr.mxu0 0.0
    %7683 = vmatpush1.msra.mxu0 0.0
    %7684 = vmatprep.subr.mxu0 0.0
    %7685 = vmatpush1.msra.mxu0 %v7652
    %7686 = vmatprep.subr.mxu0 0.0
    %7687 = vmatpush2.msra.mxu0 0.0
    %7688 = vmatprep.subr.mxu0 0.0
    %7689 = vmatpush2.msra.mxu0 0.0
    %7690 = vmatprep.subr.mxu0 0.0
    %7691 = vmatpush2.msra.mxu0 0.0
    %7692 = vmatprep.subr.mxu0 0.0
    %7693 = vmatpush2.msra.mxu0 0.0
    %7694 = vmatprep.subr.mxu0 0.0
    %7695 = vmatpush2.msra.mxu0 0.0
    %7696 = vmatprep.subr.mxu0 0.0
    %7697 = vmatpush2.msra.mxu0 0.0
    %7698 = vmatprep.subr.mxu0 0.0
    %7699 = vmatpush2.msra.mxu0 0.0
    %7700 = vmatprep.subr.mxu0 0.0
    %7701 = vmatpush2.msra.mxu0 0.0
    %7702 = vmatprep.subr.mxu0 0.0
    %7703 = vmatpush2.msra.mxu0 0.0
    %7704 = vmatprep.subr.mxu0 0.0
    %7705 = vmatpush2.msra.mxu0 0.0
    %7706 = vmatprep.subr.mxu0 0.0
    %7707 = vmatpush2.msra.mxu0 0.0
    %7708 = vmatprep.subr.mxu0 0.0
    %7709 = vmatpush2.msra.mxu0 0.0
    %7710 = vmatprep.subr.mxu0 0.0
    %7711 = vmatpush2.msra.mxu0 0.0
    %7712 = vmatprep.subr.mxu0 0.0
    %7713 = vmatpush2.msra.mxu0 0.0
    %7714 = vmatprep.subr.mxu0 0.0
    %7715 = vmatpush2.msra.mxu0 0.0
    %7716 = vmatprep.subr.mxu0 0.0
    %7717 = vmatpush2.msra.mxu0 0.0
    %7718 = vmatprep.mubr.f32.mxu0 0.0
    %7719 = vmatmul.mubr.f32.gmra.mxu0 %v532
    %v7720 = vpop.f32.mrf.mxu0
    %v7721 = vadd.f32 0.0, %v7720
    %v7722 = vpop.f32.mrf.mxu0
    %7723 = vmatprep.mubr.f32.mxu0 0.0
    %7724 = vmatmul.mubr.f32.gmra.mxu0 %v535
    %v7725 = vpop.f32.mrf.mxu0
    %v7726 = vadd.f32 0.0, %v7725
    %v7727 = vpop.f32.mrf.mxu0
    %7728 = vmatprep.mubr.f32.mxu0 0.0
    %7729 = vmatmul.mubr.f32.gmra.mxu0 %v538
    %v7730 = vpop.f32.mrf.mxu0
    %v7731 = vadd.f32 0.0, %v7730
    %v7732 = vpop.f32.mrf.mxu0
    %7733 = vmatprep.mubr.f32.mxu0 0.0
    %7734 = vmatmul.mubr.f32.gmra.mxu0 %v541
    %v7735 = vpop.f32.mrf.mxu0
    %v7736 = vadd.f32 0.0, %v7735
    %v7737 = vpop.f32.mrf.mxu0
    %7738 = vdwg.mxu0
    %v7739 = vmul.f32 %v7721, %v4684
    %v7740 = vmul.f32 %v7726, %v4686
    %v7741 = vmul.f32 %v7731, %v4688
    %v7742 = vmul.f32 %v7736, %v4690
    %7744 = vset.pattern.permute.xlu0 0
    %7745 = vperm.xlu0 %7744, %v7739
    %v7746 = vpop.permute.xlu0 %7745
    %7749 = vset.pattern.permute.xlu0 0
    %7750 = vperm.xlu0 %7749, %v7740
    %v7751 = vpop.permute.xlu0 %7750
    %7754 = vset.pattern.permute.xlu0 0
    %7755 = vperm.xlu0 %7754, %v7741
    %v7756 = vpop.permute.xlu0 %7755
    %7759 = vset.pattern.permute.xlu0 0
    %7760 = vperm.xlu0 %7759, %v7742
    %v7761 = vpop.permute.xlu0 %7760
    %v7763 = vmul.f32 %v7542, %v7746
    %v7764 = vmul.f32 %v7543, %v7751
    %v7765 = vmul.f32 %v7544, %v7756
    %v7766 = vmul.f32 %v7545, %v7761
    %v7767 = vadd.f32 %v7763, %v4725
    %v7768 = vadd.f32 %v7764, %v4729
    %v7769 = vadd.f32 %v7765, %v4733
    %v7770 = vadd.f32 %v7766, %v4737
    %v7771 = vsel %vm443, %v4739, %v5175
    %v7772 = vsel %vm443, %v4740, %v5176
    %v7773 = vsel %vm443, %v4741, %v5177
    %v7774 = vsel %vm443, %v4742, %v5178
    %v7775 = vsel %vm118, %v7771, %v5607
    %v7776 = vsel %vm118, %v7772, %v5608
    %v7777 = vsel %vm118, %v7773, %v5609
    %v7778 = vsel %vm118, %v7774, %v5610
    %v7779 = vsel %vm3929, %v7775, %v6039
    %v7780 = vsel %vm3929, %v7776, %v6040
    %v7781 = vsel %vm3929, %v7777, %v6041
    %v7782 = vsel %vm3929, %v7778, %v6042
    %v7783 = vsel %vm3934, %v7779, %v6471
    %v7784 = vsel %vm3934, %v7780, %v6472
    %v7785 = vsel %vm3934, %v7781, %v6473
    %v7786 = vsel %vm3934, %v7782, %v6474
    %v7787 = vsel %vm3939, %v7783, %v6903
    %v7788 = vsel %vm3939, %v7784, %v6904
    %v7789 = vsel %vm3939, %v7785, %v6905
    %v7790 = vsel %vm3939, %v7786, %v6906
    %v7791 = vsel %vm3944, %v7787, %v7335
    %v7792 = vsel %vm3944, %v7788, %v7336
    %v7793 = vsel %vm3944, %v7789, %v7337
    %v7794 = vsel %vm3944, %v7790, %v7338
    %v7795 = vsel %vm3949, %v7791, %v7767
    %v7796 = vsel %vm3949, %v7792, %v7768
    %v7797 = vsel %vm3949, %v7793, %v7769
    %v7798 = vsel %vm3949, %v7794, %v7770
    %v7799 = vadd.f32 %v7795, %v69
    %v7800 = vadd.f32 %v7796, %v70
    %v7801 = vadd.f32 %v7797, %v71
    %v7802 = vadd.f32 %v7798, %v72
    %v7803 = vmax.f32 %v7799, 0.0
    %v7804 = vmax.f32 %v7800, 0.0
    %v7805 = vmax.f32 %v7801, 0.0
    %v7806 = vmax.f32 %v7802, 0.0
    %7807 = vst [vmem:[#allocation7] sm:$0xff] %v7803
    %7808 = vst [vmem:[#allocation7 + $0x8] sm:$0xff] %v7804
    %7809 = vst [vmem:[#allocation7 + $0x10] sm:$0xff] %v7805
    %7810 = vst [vmem:[#allocation7 + $0x18] sm:$0xff] %v7806
    // Predicated region
    $region42: #{tpu_custom_call.1} parent=1 // pred_check
      _
    $region43: #{tpu_custom_call.1} parent=1 // pred_check_branch
      %7812 = sbr.rel (0) target = $region45
    $region44: #{tpu_custom_call.1} parent=1 // pred_region
      %s7814 = ssub.s32 512, 512
      %7815 = vsyncadd [#allocation4], %s7814
      %s7816 = sshll.u32 [#allocation7], 4
      %s7817 = int_to_ptr.vmem [resolvable:$true] %s7816
      %7822 = dma.vmem_to_hbm [thread:$0]  %s7817, 512, %s8, [#allocation4], 128, 128, 8
    $region45: #{tpu_custom_call.1} parent=1 // pred_fallthru
      _
    // Predicated region
    $region46: #{tpu_custom_call.1} parent=1 // pred_check
      _
    $region47: #{tpu_custom_call.1} parent=1 // pred_check_branch
      %7824 = sbr.rel (0) target = $region49
    $region48: #{tpu_custom_call.1} parent=1 // pred_region
      %7825 = dma.done [#allocation4], 512
    $region49: #{tpu_custom_call.1} parent=1 // pred_fallthru
      _
    %7826 = vsyncpa [#allocation3], 1
    %7827 = vsyncpa [#allocation6], 1
    %7828 = vsyncpa [#allocation4], 1

</llo_original>
